<compile_context>
chip_gen: v6e
topology: v6e:2x2x1
jax: 0.10.0
libtpu: 0.0.40
codegen_flags: <defaults>
</compile_context>

<pallas_src>
import numpy as np
import jax
import jax.numpy as jnp
from jax import lax
from jax.experimental import pallas as pl
from jax.experimental.pallas import tpu as pltpu

STRIDE = 2
PAD = 2
EPS = 1e-5


# ---------------------------------------------------------------------------
# Fused whole-encoder kernel
# ---------------------------------------------------------------------------
def _make_encoder_kernel(num_layers, k, eps):
    def kernel(*refs):
        pos = 0
        v_ref = refs[pos]; pos += 1
        layer_refs = []
        for _ in range(num_layers):
            layer_refs.append(refs[pos:pos + 8]); pos += 8
        srow_ref, wlin_ref, blin_ref, out_ref = refs[pos:pos + 4]

        v = v_ref[...]                                    # (B*H, W*Cin) bf16
        y = None
        for (gbig_ref, s_ref, wbig_ref, bias_ref,
             gamma_ref, beta_ref, p_ref, rep_ref) in layer_refs:
            # ---- Conv2d(k, stride=2, pad=2) as lane-dense GEMMs ----------
            # column-tap gather (+ zero padding along W), all k taps at once:
            r_cat = jnp.dot(v, gbig_ref[...],
                            preferred_element_type=jnp.float32
                            ).astype(jnp.bfloat16)        # (B*H, k*Wo*Ci)
            acc = None
            for a in range(k):
                # row-tap gather (+ zero padding along H):
                rows_a = jnp.dot(s_ref[a], r_cat,
                                 preferred_element_type=jnp.float32
                                 ).astype(jnp.bfloat16)   # (B*Ho, k*Wo*Ci)
                # conv contraction over (c, ox-block, ci):
                part = jnp.dot(rows_a, wbig_ref[a],
                               preferred_element_type=jnp.float32)  # (B*Ho, Wo*Co)
                acc = part if acc is None else acc + part
            ybias = acc + bias_ref[...]                   # (B*Ho, Wo*Co) f32

            # ---- BatchNorm2d (training-mode batch stats) + ReLU ----------
            p = p_ref[...]                                # (Wo*Co, Co), 1/N folded
            rep = rep_ref[...]                            # (Co, Wo*Co) broadcast-back
            mean_c = jnp.dot(jnp.sum(ybias, axis=0, keepdims=True), p,
                             preferred_element_type=jnp.float32)      # (1, Co)
            centered = ybias - jnp.dot(mean_c, rep,
                                       preferred_element_type=jnp.float32)
            var_c = jnp.dot(jnp.sum(centered * centered, axis=0, keepdims=True),
                            p, preferred_element_type=jnp.float32)    # (1, Co)
            scale_row = jnp.dot(gamma_ref[...] * lax.rsqrt(var_c + eps), rep,
                                preferred_element_type=jnp.float32)
            beta_row = jnp.dot(beta_ref[...], rep,
                               preferred_element_type=jnp.float32)
            y = jnp.maximum(centered * scale_row + beta_row, 0.0)     # f32
            v = y.astype(jnp.bfloat16)                    # input slab of next layer

        # ---- final Linear on the (C, H, W)-order flatten -----------------
        out = None
        for oy in range(srow_ref.shape[0]):
            rows = jnp.dot(srow_ref[oy], y,
                           preferred_element_type=jnp.float32)        # (B, Wo*Co)
            t = jnp.dot(rows, wlin_ref[oy],
                        preferred_element_type=jnp.float32)           # (B, z_dim)
            out = t if out is None else out + t
        out_ref[...] = out + blin_ref[...]

    return kernel


# ---------------------------------------------------------------------------
# Wrapper: build the constant gather matrices / repacked weights per layer
# ---------------------------------------------------------------------------
def _conv_layer_operands(w, b, gamma, beta, B, H, W, k, stride, pad):
    """Operands for one fused Conv+BN+ReLU layer (all static-shape driven)."""
    Co, Ci = int(w.shape[0]), int(w.shape[1])
    Ho = (H + 2 * pad - k) // stride + 1
    Wo = (W + 2 * pad - k) // stride + 1

    # Column-tap gather / W zero-padding: (W*Ci, k*Wo*Ci), 0/1 constant.
    g = np.zeros((W * Ci, k, Wo, Ci), np.float32)
    for c in range(k):
        for ox in range(Wo):
            w_src = stride * ox + c - pad
            if 0 <= w_src < W:
                for ci in range(Ci):
                    g[w_src * Ci + ci, c, ox, ci] = 1.0
    gbig = jnp.asarray(g.reshape(W * Ci, k * Wo * Ci), dtype=jnp.bfloat16)

    # Row-tap gather / H zero-padding: (k, B*Ho, B*H), 0/1 constant.
    s = np.zeros((k, B * Ho, B * H), np.float32)
    for a in range(k):
        for bb in range(B):
            for oy in range(Ho):
                h_src = stride * oy + a - pad
                if 0 <= h_src < H:
                    s[a, bb * Ho + oy, bb * H + h_src] = 1.0
    s = jnp.asarray(s, dtype=jnp.bfloat16)

    # Conv weights as k block-diagonal (over ox) RHS matrices:
    #   wbig[a][c*Wo*Ci + ox*Ci + ci, ox'*Co + co] = delta(ox, ox') * W[co, ci, a, c]
    eye = jnp.eye(Wo, dtype=jnp.float32)
    wbig = jnp.einsum("oiac,xy->acxiyo", w.astype(jnp.float32), eye)
    wbig = wbig.reshape(k, k * Wo * Ci, Wo * Co).astype(jnp.bfloat16)

    bias_row = jnp.tile(b.reshape(1, Co).astype(jnp.float32), (1, Wo))  # (1, Wo*Co)
    gamma_r = gamma.reshape(1, Co).astype(jnp.float32)
    beta_r = beta.reshape(1, Co).astype(jnp.float32)

    # Per-channel reduction of the (ox, co) lanes (mean factor folded) and
    # its broadcast-back matrix.
    p = np.zeros((Wo * Co, Co), np.float32)
    rep = np.zeros((Co, Wo * Co), np.float32)
    inv_n = 1.0 / float(B * Ho * Wo)
    for ox in range(Wo):
        for co in range(Co):
            p[ox * Co + co, co] = inv_n
            rep[co, ox * Co + co] = 1.0

    ops = [gbig, s, wbig, bias_row, gamma_r, beta_r,
           jnp.asarray(p), jnp.asarray(rep)]
    return ops, Ho, Wo, Co


def encoder_forward(x, params):
    """Pallas forward of the Encoder.  x: (B, n_channel, 64, 64) NCHW f32."""
    B, Ci, H, W = (int(d) for d in x.shape)
    k = int(params["w1"].shape[-1])

    flat_ops = []
    Hc, Wc, Cc = H, W, Ci
    for i in range(1, 5):
        layer_ops, Hc, Wc, Cc = _conv_layer_operands(
            params[f"w{i}"], params[f"b{i}"],
            params[f"gamma{i}"], params[f"beta{i}"],
            B, Hc, Wc, k, STRIDE, PAD)
        flat_ops.extend(layer_ops)

    # Final Linear: fold the (C, H, W)-order flatten into a row permutation of
    # the weight and a per-output-row (oy) selection of the last activation.
    z_dim = int(params["w_out"].shape[1])
    srow = np.zeros((Hc, B, B * Hc), np.float32)
    for oy in range(Hc):
        for bb in range(B):
            srow[oy, bb, bb * Hc + oy] = 1.0
    wlin = jnp.transpose(params["w_out"].reshape(Cc, Hc, Wc, z_dim), (1, 2, 0, 3))
    wlin = wlin.reshape(Hc, Wc * Cc, z_dim).astype(jnp.float32)
    blin = params["b_out"].reshape(1, z_dim).astype(jnp.float32)

    # Input as a lane-dense (B*H, W*Cin) bf16 slab (rows=(b,h), lanes=(w,ci)).
    v0 = jnp.transpose(x, (0, 2, 3, 1)).reshape(B * H, W * Ci).astype(jnp.bfloat16)

    kernel = _make_encoder_kernel(num_layers=4, k=k, eps=EPS)
    out = pl.pallas_call(
        kernel,
        out_shape=jax.ShapeDtypeStruct((B, z_dim), jnp.float32),
        compiler_params=pltpu.CompilerParams(vmem_limit_bytes=32 * 1024 * 1024),
    )(v0, *flat_ops, jnp.asarray(srow), wlin, blin)
    return out


# ---------------------------------------------------------------------------
# Pure-XLA reference (same bf16 rounding points as the kernel) for a sanity
# check of the fused kernel's numerics.
# ---------------------------------------------------------------------------
def encoder_reference(x, params):
    h = jnp.transpose(x, (0, 2, 3, 1)).astype(jnp.float32)       # NHWC
    for i in range(1, 5):
        w = params[f"w{i}"].astype(jnp.bfloat16).astype(jnp.float32)
        hin = h.astype(jnp.bfloat16).astype(jnp.float32)
        y = lax.conv_general_dilated(
            hin, jnp.transpose(w, (2, 3, 1, 0)),
            window_strides=(STRIDE, STRIDE),
            padding=((PAD, PAD), (PAD, PAD)),
            dimension_numbers=("NHWC", "HWIO", "NHWC"),
            precision=lax.Precision.HIGHEST)
        y = y + params[f"b{i}"].reshape(1, 1, 1, -1)
        mean = jnp.mean(y, axis=(0, 1, 2), keepdims=True)
        var = jnp.mean(jnp.square(y - mean), axis=(0, 1, 2), keepdims=True)
        y = (y - mean) * lax.rsqrt(var + EPS)
        y = y * params[f"gamma{i}"].reshape(1, 1, 1, -1) \
              + params[f"beta{i}"].reshape(1, 1, 1, -1)
        h = jnp.maximum(y, 0.0)
    B = x.shape[0]
    flat = jnp.transpose(h, (0, 3, 1, 2)).reshape(B, -1)          # (C,H,W) order
    return jnp.dot(flat, params["w_out"],
                   precision=lax.Precision.HIGHEST) + params["b_out"]


# ---------------------------------------------------------------------------
# Parameters (w_out stored as (in_features, z_dim), i.e. Linear.weight^T)
# ---------------------------------------------------------------------------
def init_params(key, h_dim, z_dim, n_channel, k):
    keys = jax.random.split(key, 10)
    chans = [n_channel, h_dim, 2 * h_dim, 4 * h_dim, 8 * h_dim]
    p = {}
    for i in range(1, 5):
        cin, cout = chans[i - 1], chans[i]
        p[f"w{i}"] = jax.random.normal(keys[2 * (i - 1)], (cout, cin, k, k),
                                       jnp.float32) * 0.05
        p[f"b{i}"] = jax.random.normal(keys[2 * (i - 1) + 1], (cout,),
                                       jnp.float32) * 0.05
        p[f"gamma{i}"] = jnp.ones((cout,), jnp.float32)   # BN weight init
        p[f"beta{i}"] = jnp.zeros((cout,), jnp.float32)   # BN bias init
    in_feats = 8 * h_dim * 4 * 4
    p["w_out"] = jax.random.normal(keys[8], (in_feats, z_dim), jnp.float32) * 0.05
    p["b_out"] = jax.random.normal(keys[9], (z_dim,), jnp.float32) * 0.05
    return p


if __name__ == "__main__":
    h_dim, z_dim, n_channel, kernel_size = 4, 8, 3, 5
    batch = 2   # 64x64 input -> 32 -> 16 -> 8 -> 4, matching Linear(8*h_dim*4*4)

    key = jax.random.PRNGKey(0)
    kx, kp = jax.random.split(key)
    x = jax.random.normal(kx, (batch, n_channel, 64, 64), jnp.float32)
    params = init_params(kp, h_dim, z_dim, n_channel, kernel_size)

    fwd = jax.jit(encoder_forward)
    out = fwd(x, params)
    jax.block_until_ready(out)

    assert out.shape == (batch, z_dim), out.shape
    assert bool(jnp.all(jnp.isfinite(out)))

    ref = jax.jit(encoder_reference)(x, params)
    jax.block_until_ready(ref)
    err = float(jnp.max(jnp.abs(out - ref)))
    assert err < 5e-2, f"max abs error vs reference: {err}"

    print("KERNEL_OK")
</pallas_src>

<mosaic_0001>
module attributes {stable_mosaic.version = 11 : i64} {
  func.func @kernel(%arg0: memref<128x192xbf16, #tpu.memory_space<vmem>>, %arg1: memref<192x480xbf16, #tpu.memory_space<vmem>>, %arg2: memref<5x64x128xbf16, #tpu.memory_space<vmem>>, %arg3: memref<5x480x128xbf16, #tpu.memory_space<vmem>>, %arg4: memref<1x128xf32, #tpu.memory_space<vmem>>, %arg5: memref<1x4xf32, #tpu.memory_space<vmem>>, %arg6: memref<1x4xf32, #tpu.memory_space<vmem>>, %arg7: memref<128x4xf32, #tpu.memory_space<vmem>>, %arg8: memref<4x128xf32, #tpu.memory_space<vmem>>, %arg9: memref<128x320xbf16, #tpu.memory_space<vmem>>, %arg10: memref<5x32x64xbf16, #tpu.memory_space<vmem>>, %arg11: memref<5x320x128xbf16, #tpu.memory_space<vmem>>, %arg12: memref<1x128xf32, #tpu.memory_space<vmem>>, %arg13: memref<1x8xf32, #tpu.memory_space<vmem>>, %arg14: memref<1x8xf32, #tpu.memory_space<vmem>>, %arg15: memref<128x8xf32, #tpu.memory_space<vmem>>, %arg16: memref<8x128xf32, #tpu.memory_space<vmem>>, %arg17: memref<128x320xbf16, #tpu.memory_space<vmem>>, %arg18: memref<5x16x32xbf16, #tpu.memory_space<vmem>>, %arg19: memref<5x320x128xbf16, #tpu.memory_space<vmem>>, %arg20: memref<1x128xf32, #tpu.memory_space<vmem>>, %arg21: memref<1x16xf32, #tpu.memory_space<vmem>>, %arg22: memref<1x16xf32, #tpu.memory_space<vmem>>, %arg23: memref<128x16xf32, #tpu.memory_space<vmem>>, %arg24: memref<16x128xf32, #tpu.memory_space<vmem>>, %arg25: memref<128x320xbf16, #tpu.memory_space<vmem>>, %arg26: memref<5x8x16xbf16, #tpu.memory_space<vmem>>, %arg27: memref<5x320x128xbf16, #tpu.memory_space<vmem>>, %arg28: memref<1x128xf32, #tpu.memory_space<vmem>>, %arg29: memref<1x32xf32, #tpu.memory_space<vmem>>, %arg30: memref<1x32xf32, #tpu.memory_space<vmem>>, %arg31: memref<128x32xf32, #tpu.memory_space<vmem>>, %arg32: memref<32x128xf32, #tpu.memory_space<vmem>>, %arg33: memref<4x2x8xf32, #tpu.memory_space<vmem>>, %arg34: memref<4x128x8xf32, #tpu.memory_space<vmem>>, %arg35: memref<1x8xf32, #tpu.memory_space<vmem>>, %arg36: memref<2x8xf32, #tpu.memory_space<vmem>>) attributes {dimension_semantics = [], scalar_prefetch = 0 : i64, scratch_operands = 0 : i64, tpu.core_type = #tpu.core_type<tc>} {
    %c0 = arith.constant 0 : index
    %c0_0 = arith.constant 0 : index
    %0 = vector.load %arg0[%c0, %c0_0] : memref<128x192xbf16, #tpu.memory_space<vmem>>, vector<128x192xbf16>
    %c0_1 = arith.constant 0 : index
    %c0_2 = arith.constant 0 : index
    %1 = vector.load %arg1[%c0_1, %c0_2] : memref<192x480xbf16, #tpu.memory_space<vmem>>, vector<192x480xbf16>
    %cst = arith.constant dense<0.000000e+00> : vector<128x480xf32>
    %2 = tpu.matmul %0, %1, %cst {dimension_numbers = #tpu.dot_dimension_numbers<[1], [0], [0], [1], [0, 0, 1, 1], [], []>} : vector<128x192xbf16>, vector<192x480xbf16>, vector<128x480xf32> -> vector<128x480xf32>
    %3 = arith.truncf %2 : vector<128x480xf32> to vector<128x480xbf16>
    %c0_3 = arith.constant 0 : index
    %c0_4 = arith.constant 0 : index
    %c0_5 = arith.constant 0 : index
    %4 = vector.load %arg2[%c0_3, %c0_4, %c0_5] : memref<5x64x128xbf16, #tpu.memory_space<vmem>>, vector<1x64x128xbf16>
    %5 = vector.shape_cast %4 : vector<1x64x128xbf16> to vector<64x128xbf16>
    %cst_6 = arith.constant dense<0.000000e+00> : vector<64x480xf32>
    %6 = tpu.matmul %5, %3, %cst_6 {dimension_numbers = #tpu.dot_dimension_numbers<[1], [0], [0], [1], [0, 0, 1, 1], [], []>} : vector<64x128xbf16>, vector<128x480xbf16>, vector<64x480xf32> -> vector<64x480xf32>
    %7 = arith.truncf %6 : vector<64x480xf32> to vector<64x480xbf16>
    %c0_7 = arith.constant 0 : index
    %c0_8 = arith.constant 0 : index
    %c0_9 = arith.constant 0 : index
    %8 = vector.load %arg3[%c0_7, %c0_8, %c0_9] : memref<5x480x128xbf16, #tpu.memory_space<vmem>>, vector<1x480x128xbf16>
    %9 = vector.shape_cast %8 : vector<1x480x128xbf16> to vector<480x128xbf16>
    %cst_10 = arith.constant dense<0.000000e+00> : vector<64x128xf32>
    %10 = tpu.matmul %7, %9, %cst_10 {dimension_numbers = #tpu.dot_dimension_numbers<[1], [0], [0], [1], [0, 0, 1, 1], [], []>} : vector<64x480xbf16>, vector<480x128xbf16>, vector<64x128xf32> -> vector<64x128xf32>
    %c1 = arith.constant 1 : index
    %c0_11 = arith.constant 0 : index
    %c0_12 = arith.constant 0 : index
    %11 = vector.load %arg2[%c1, %c0_11, %c0_12] : memref<5x64x128xbf16, #tpu.memory_space<vmem>>, vector<1x64x128xbf16>
    %12 = vector.shape_cast %11 : vector<1x64x128xbf16> to vector<64x128xbf16>
    %cst_13 = arith.constant dense<0.000000e+00> : vector<64x480xf32>
    %13 = tpu.matmul %12, %3, %cst_13 {dimension_numbers = #tpu.dot_dimension_numbers<[1], [0], [0], [1], [0, 0, 1, 1], [], []>} : vector<64x128xbf16>, vector<128x480xbf16>, vector<64x480xf32> -> vector<64x480xf32>
    %14 = arith.truncf %13 : vector<64x480xf32> to vector<64x480xbf16>
    %c1_14 = arith.constant 1 : index
    %c0_15 = arith.constant 0 : index
    %c0_16 = arith.constant 0 : index
    %15 = vector.load %arg3[%c1_14, %c0_15, %c0_16] : memref<5x480x128xbf16, #tpu.memory_space<vmem>>, vector<1x480x128xbf16>
    %16 = vector.shape_cast %15 : vector<1x480x128xbf16> to vector<480x128xbf16>
    %cst_17 = arith.constant dense<0.000000e+00> : vector<64x128xf32>
    %17 = tpu.matmul %14, %16, %cst_17 {dimension_numbers = #tpu.dot_dimension_numbers<[1], [0], [0], [1], [0, 0, 1, 1], [], []>} : vector<64x480xbf16>, vector<480x128xbf16>, vector<64x128xf32> -> vector<64x128xf32>
    %18 = arith.addf %10, %17 : vector<64x128xf32>
    %c2 = arith.constant 2 : index
    %c0_18 = arith.constant 0 : index
    %c0_19 = arith.constant 0 : index
    %19 = vector.load %arg2[%c2, %c0_18, %c0_19] : memref<5x64x128xbf16, #tpu.memory_space<vmem>>, vector<1x64x128xbf16>
    %20 = vector.shape_cast %19 : vector<1x64x128xbf16> to vector<64x128xbf16>
    %cst_20 = arith.constant dense<0.000000e+00> : vector<64x480xf32>
    %21 = tpu.matmul %20, %3, %cst_20 {dimension_numbers = #tpu.dot_dimension_numbers<[1], [0], [0], [1], [0, 0, 1, 1], [], []>} : vector<64x128xbf16>, vector<128x480xbf16>, vector<64x480xf32> -> vector<64x480xf32>
    %22 = arith.truncf %21 : vector<64x480xf32> to vector<64x480xbf16>
    %c2_21 = arith.constant 2 : index
    %c0_22 = arith.constant 0 : index
    %c0_23 = arith.constant 0 : index
    %23 = vector.load %arg3[%c2_21, %c0_22, %c0_23] : memref<5x480x128xbf16, #tpu.memory_space<vmem>>, vector<1x480x128xbf16>
    %24 = vector.shape_cast %23 : vector<1x480x128xbf16> to vector<480x128xbf16>
    %cst_24 = arith.constant dense<0.000000e+00> : vector<64x128xf32>
    %25 = tpu.matmul %22, %24, %cst_24 {dimension_numbers = #tpu.dot_dimension_numbers<[1], [0], [0], [1], [0, 0, 1, 1], [], []>} : vector<64x480xbf16>, vector<480x128xbf16>, vector<64x128xf32> -> vector<64x128xf32>
    %26 = arith.addf %18, %25 : vector<64x128xf32>
    %c3 = arith.constant 3 : index
    %c0_25 = arith.constant 0 : index
    %c0_26 = arith.constant 0 : index
    %27 = vector.load %arg2[%c3, %c0_25, %c0_26] : memref<5x64x128xbf16, #tpu.memory_space<vmem>>, vector<1x64x128xbf16>
    %28 = vector.shape_cast %27 : vector<1x64x128xbf16> to vector<64x128xbf16>
    %cst_27 = arith.constant dense<0.000000e+00> : vector<64x480xf32>
    %29 = tpu.matmul %28, %3, %cst_27 {dimension_numbers = #tpu.dot_dimension_numbers<[1], [0], [0], [1], [0, 0, 1, 1], [], []>} : vector<64x128xbf16>, vector<128x480xbf16>, vector<64x480xf32> -> vector<64x480xf32>
    %30 = arith.truncf %29 : vector<64x480xf32> to vector<64x480xbf16>
    %c3_28 = arith.constant 3 : index
    %c0_29 = arith.constant 0 : index
    %c0_30 = arith.constant 0 : index
    %31 = vector.load %arg3[%c3_28, %c0_29, %c0_30] : memref<5x480x128xbf16, #tpu.memory_space<vmem>>, vector<1x480x128xbf16>
    %32 = vector.shape_cast %31 : vector<1x480x128xbf16> to vector<480x128xbf16>
    %cst_31 = arith.constant dense<0.000000e+00> : vector<64x128xf32>
    %33 = tpu.matmul %30, %32, %cst_31 {dimension_numbers = #tpu.dot_dimension_numbers<[1], [0], [0], [1], [0, 0, 1, 1], [], []>} : vector<64x480xbf16>, vector<480x128xbf16>, vector<64x128xf32> -> vector<64x128xf32>
    %34 = arith.addf %26, %33 : vector<64x128xf32>
    %c4 = arith.constant 4 : index
    %c0_32 = arith.constant 0 : index
    %c0_33 = arith.constant 0 : index
    %35 = vector.load %arg2[%c4, %c0_32, %c0_33] : memref<5x64x128xbf16, #tpu.memory_space<vmem>>, vector<1x64x128xbf16>
    %36 = vector.shape_cast %35 : vector<1x64x128xbf16> to vector<64x128xbf16>
    %cst_34 = arith.constant dense<0.000000e+00> : vector<64x480xf32>
    %37 = tpu.matmul %36, %3, %cst_34 {dimension_numbers = #tpu.dot_dimension_numbers<[1], [0], [0], [1], [0, 0, 1, 1], [], []>} : vector<64x128xbf16>, vector<128x480xbf16>, vector<64x480xf32> -> vector<64x480xf32>
    %38 = arith.truncf %37 : vector<64x480xf32> to vector<64x480xbf16>
    %c4_35 = arith.constant 4 : index
    %c0_36 = arith.constant 0 : index
    %c0_37 = arith.constant 0 : index
    %39 = vector.load %arg3[%c4_35, %c0_36, %c0_37] : memref<5x480x128xbf16, #tpu.memory_space<vmem>>, vector<1x480x128xbf16>
    %40 = vector.shape_cast %39 : vector<1x480x128xbf16> to vector<480x128xbf16>
    %cst_38 = arith.constant dense<0.000000e+00> : vector<64x128xf32>
    %41 = tpu.matmul %38, %40, %cst_38 {dimension_numbers = #tpu.dot_dimension_numbers<[1], [0], [0], [1], [0, 0, 1, 1], [], []>} : vector<64x480xbf16>, vector<480x128xbf16>, vector<64x128xf32> -> vector<64x128xf32>
    %42 = arith.addf %34, %41 : vector<64x128xf32>
    %c0_39 = arith.constant 0 : index
    %c0_40 = arith.constant 0 : index
    %43 = vector.load %arg4[%c0_39, %c0_40] : memref<1x128xf32, #tpu.memory_space<vmem>>, vector<1x128xf32>
    %44 = vector.broadcast %43 : vector<1x128xf32> to vector<64x128xf32>
    %45 = arith.addf %42, %44 : vector<64x128xf32>
    %c0_41 = arith.constant 0 : index
    %c0_42 = arith.constant 0 : index
    %46 = vector.load %arg7[%c0_41, %c0_42] : memref<128x4xf32, #tpu.memory_space<vmem>>, vector<128x4xf32>
    %c0_43 = arith.constant 0 : index
    %c0_44 = arith.constant 0 : index
    %47 = vector.load %arg8[%c0_43, %c0_44] : memref<4x128xf32, #tpu.memory_space<vmem>>, vector<4x128xf32>
    %cst_45 = arith.constant dense<0.000000e+00> : vector<128xf32>
    %48 = vector.multi_reduction <add>, %45, %cst_45 [0] : vector<64x128xf32> to vector<128xf32>
    %49 = vector.shape_cast %48 : vector<128xf32> to vector<1x128xf32>
    %cst_46 = arith.constant dense<0.000000e+00> : vector<1x4xf32>
    %50 = tpu.matmul %49, %46, %cst_46 {dimension_numbers = #tpu.dot_dimension_numbers<[1], [0], [0], [1], [0, 0, 1, 1], [], []>} : vector<1x128xf32>, vector<128x4xf32>, vector<1x4xf32> -> vector<1x4xf32>
    %cst_47 = arith.constant dense<0.000000e+00> : vector<1x128xf32>
    %51 = tpu.matmul %50, %47, %cst_47 {dimension_numbers = #tpu.dot_dimension_numbers<[1], [0], [0], [1], [0, 0, 1, 1], [], []>} : vector<1x4xf32>, vector<4x128xf32>, vector<1x128xf32> -> vector<1x128xf32>
    %52 = vector.broadcast %51 : vector<1x128xf32> to vector<64x128xf32>
    %53 = arith.subf %45, %52 : vector<64x128xf32>
    %54 = arith.mulf %53, %53 : vector<64x128xf32>
    %cst_48 = arith.constant dense<0.000000e+00> : vector<128xf32>
    %55 = vector.multi_reduction <add>, %54, %cst_48 [0] : vector<64x128xf32> to vector<128xf32>
    %56 = vector.shape_cast %55 : vector<128xf32> to vector<1x128xf32>
    %cst_49 = arith.constant dense<0.000000e+00> : vector<1x4xf32>
    %57 = tpu.matmul %56, %46, %cst_49 {dimension_numbers = #tpu.dot_dimension_numbers<[1], [0], [0], [1], [0, 0, 1, 1], [], []>} : vector<1x128xf32>, vector<128x4xf32>, vector<1x4xf32> -> vector<1x4xf32>
    %c0_50 = arith.constant 0 : index
    %c0_51 = arith.constant 0 : index
    %58 = vector.load %arg5[%c0_50, %c0_51] : memref<1x4xf32, #tpu.memory_space<vmem>>, vector<1x4xf32>
    %cst_52 = arith.constant 9.99999974E-6 : f32
    %59 = vector.broadcast %cst_52 : f32 to vector<1x4xf32>
    %60 = arith.addf %57, %59 : vector<1x4xf32>
    %61 = math.rsqrt %60 : vector<1x4xf32>
    %62 = arith.mulf %58, %61 : vector<1x4xf32>
    %cst_53 = arith.constant dense<0.000000e+00> : vector<1x128xf32>
    %63 = tpu.matmul %62, %47, %cst_53 {dimension_numbers = #tpu.dot_dimension_numbers<[1], [0], [0], [1], [0, 0, 1, 1], [], []>} : vector<1x4xf32>, vector<4x128xf32>, vector<1x128xf32> -> vector<1x128xf32>
    %c0_54 = arith.constant 0 : index
    %c0_55 = arith.constant 0 : index
    %64 = vector.load %arg6[%c0_54, %c0_55] : memref<1x4xf32, #tpu.memory_space<vmem>>, vector<1x4xf32>
    %cst_56 = arith.constant dense<0.000000e+00> : vector<1x128xf32>
    %65 = tpu.matmul %64, %47, %cst_56 {dimension_numbers = #tpu.dot_dimension_numbers<[1], [0], [0], [1], [0, 0, 1, 1], [], []>} : vector<1x4xf32>, vector<4x128xf32>, vector<1x128xf32> -> vector<1x128xf32>
    %66 = vector.broadcast %63 : vector<1x128xf32> to vector<64x128xf32>
    %67 = arith.mulf %53, %66 : vector<64x128xf32>
    %68 = vector.broadcast %65 : vector<1x128xf32> to vector<64x128xf32>
    %69 = arith.addf %67, %68 : vector<64x128xf32>
    %cst_57 = arith.constant 0.000000e+00 : f32
    %70 = vector.broadcast %cst_57 : f32 to vector<64x128xf32>
    %71 = arith.maximumf %69, %70 : vector<64x128xf32>
    %72 = arith.truncf %71 : vector<64x128xf32> to vector<64x128xbf16>
    %c0_58 = arith.constant 0 : index
    %c0_59 = arith.constant 0 : index
    %73 = vector.load %arg9[%c0_58, %c0_59] : memref<128x320xbf16, #tpu.memory_space<vmem>>, vector<128x320xbf16>
    %cst_60 = arith.constant dense<0.000000e+00> : vector<64x320xf32>
    %74 = tpu.matmul %72, %73, %cst_60 {dimension_numbers = #tpu.dot_dimension_numbers<[1], [0], [0], [1], [0, 0, 1, 1], [], []>} : vector<64x128xbf16>, vector<128x320xbf16>, vector<64x320xf32> -> vector<64x320xf32>
    %75 = arith.truncf %74 : vector<64x320xf32> to vector<64x320xbf16>
    %c0_61 = arith.constant 0 : index
    %c0_62 = arith.constant 0 : index
    %c0_63 = arith.constant 0 : index
    %76 = vector.load %arg10[%c0_61, %c0_62, %c0_63] : memref<5x32x64xbf16, #tpu.memory_space<vmem>>, vector<1x32x64xbf16>
    %77 = vector.shape_cast %76 : vector<1x32x64xbf16> to vector<32x64xbf16>
    %cst_64 = arith.constant dense<0.000000e+00> : vector<32x320xf32>
    %78 = tpu.matmul %77, %75, %cst_64 {dimension_numbers = #tpu.dot_dimension_numbers<[1], [0], [0], [1], [0, 0, 1, 1], [], []>} : vector<32x64xbf16>, vector<64x320xbf16>, vector<32x320xf32> -> vector<32x320xf32>
    %79 = arith.truncf %78 : vector<32x320xf32> to vector<32x320xbf16>
    %c0_65 = arith.constant 0 : index
    %c0_66 = arith.constant 0 : index
    %c0_67 = arith.constant 0 : index
    %80 = vector.load %arg11[%c0_65, %c0_66, %c0_67] : memref<5x320x128xbf16, #tpu.memory_space<vmem>>, vector<1x320x128xbf16>
    %81 = vector.shape_cast %80 : vector<1x320x128xbf16> to vector<320x128xbf16>
    %cst_68 = arith.constant dense<0.000000e+00> : vector<32x128xf32>
    %82 = tpu.matmul %79, %81, %cst_68 {dimension_numbers = #tpu.dot_dimension_numbers<[1], [0], [0], [1], [0, 0, 1, 1], [], []>} : vector<32x320xbf16>, vector<320x128xbf16>, vector<32x128xf32> -> vector<32x128xf32>
    %c1_69 = arith.constant 1 : index
    %c0_70 = arith.constant 0 : index
    %c0_71 = arith.constant 0 : index
    %83 = vector.load %arg10[%c1_69, %c0_70, %c0_71] : memref<5x32x64xbf16, #tpu.memory_space<vmem>>, vector<1x32x64xbf16>
    %84 = vector.shape_cast %83 : vector<1x32x64xbf16> to vector<32x64xbf16>
    %cst_72 = arith.constant dense<0.000000e+00> : vector<32x320xf32>
    %85 = tpu.matmul %84, %75, %cst_72 {dimension_numbers = #tpu.dot_dimension_numbers<[1], [0], [0], [1], [0, 0, 1, 1], [], []>} : vector<32x64xbf16>, vector<64x320xbf16>, vector<32x320xf32> -> vector<32x320xf32>
    %86 = arith.truncf %85 : vector<32x320xf32> to vector<32x320xbf16>
    %c1_73 = arith.constant 1 : index
    %c0_74 = arith.constant 0 : index
    %c0_75 = arith.constant 0 : index
    %87 = vector.load %arg11[%c1_73, %c0_74, %c0_75] : memref<5x320x128xbf16, #tpu.memory_space<vmem>>, vector<1x320x128xbf16>
    %88 = vector.shape_cast %87 : vector<1x320x128xbf16> to vector<320x128xbf16>
    %cst_76 = arith.constant dense<0.000000e+00> : vector<32x128xf32>
    %89 = tpu.matmul %86, %88, %cst_76 {dimension_numbers = #tpu.dot_dimension_numbers<[1], [0], [0], [1], [0, 0, 1, 1], [], []>} : vector<32x320xbf16>, vector<320x128xbf16>, vector<32x128xf32> -> vector<32x128xf32>
    %90 = arith.addf %82, %89 : vector<32x128xf32>
    %c2_77 = arith.constant 2 : index
    %c0_78 = arith.constant 0 : index
    %c0_79 = arith.constant 0 : index
    %91 = vector.load %arg10[%c2_77, %c0_78, %c0_79] : memref<5x32x64xbf16, #tpu.memory_space<vmem>>, vector<1x32x64xbf16>
    %92 = vector.shape_cast %91 : vector<1x32x64xbf16> to vector<32x64xbf16>
    %cst_80 = arith.constant dense<0.000000e+00> : vector<32x320xf32>
    %93 = tpu.matmul %92, %75, %cst_80 {dimension_numbers = #tpu.dot_dimension_numbers<[1], [0], [0], [1], [0, 0, 1, 1], [], []>} : vector<32x64xbf16>, vector<64x320xbf16>, vector<32x320xf32> -> vector<32x320xf32>
    %94 = arith.truncf %93 : vector<32x320xf32> to vector<32x320xbf16>
    %c2_81 = arith.constant 2 : index
    %c0_82 = arith.constant 0 : index
    %c0_83 = arith.constant 0 : index
    %95 = vector.load %arg11[%c2_81, %c0_82, %c0_83] : memref<5x320x128xbf16, #tpu.memory_space<vmem>>, vector<1x320x128xbf16>
    %96 = vector.shape_cast %95 : vector<1x320x128xbf16> to vector<320x128xbf16>
    %cst_84 = arith.constant dense<0.000000e+00> : vector<32x128xf32>
    %97 = tpu.matmul %94, %96, %cst_84 {dimension_numbers = #tpu.dot_dimension_numbers<[1], [0], [0], [1], [0, 0, 1, 1], [], []>} : vector<32x320xbf16>, vector<320x128xbf16>, vector<32x128xf32> -> vector<32x128xf32>
    %98 = arith.addf %90, %97 : vector<32x128xf32>
    %c3_85 = arith.constant 3 : index
    %c0_86 = arith.constant 0 : index
    %c0_87 = arith.constant 0 : index
    %99 = vector.load %arg10[%c3_85, %c0_86, %c0_87] : memref<5x32x64xbf16, #tpu.memory_space<vmem>>, vector<1x32x64xbf16>
    %100 = vector.shape_cast %99 : vector<1x32x64xbf16> to vector<32x64xbf16>
    %cst_88 = arith.constant dense<0.000000e+00> : vector<32x320xf32>
    %101 = tpu.matmul %100, %75, %cst_88 {dimension_numbers = #tpu.dot_dimension_numbers<[1], [0], [0], [1], [0, 0, 1, 1], [], []>} : vector<32x64xbf16>, vector<64x320xbf16>, vector<32x320xf32> -> vector<32x320xf32>
    %102 = arith.truncf %101 : vector<32x320xf32> to vector<32x320xbf16>
    %c3_89 = arith.constant 3 : index
    %c0_90 = arith.constant 0 : index
    %c0_91 = arith.constant 0 : index
    %103 = vector.load %arg11[%c3_89, %c0_90, %c0_91] : memref<5x320x128xbf16, #tpu.memory_space<vmem>>, vector<1x320x128xbf16>
    %104 = vector.shape_cast %103 : vector<1x320x128xbf16> to vector<320x128xbf16>
    %cst_92 = arith.constant dense<0.000000e+00> : vector<32x128xf32>
    %105 = tpu.matmul %102, %104, %cst_92 {dimension_numbers = #tpu.dot_dimension_numbers<[1], [0], [0], [1], [0, 0, 1, 1], [], []>} : vector<32x320xbf16>, vector<320x128xbf16>, vector<32x128xf32> -> vector<32x128xf32>
    %106 = arith.addf %98, %105 : vector<32x128xf32>
    %c4_93 = arith.constant 4 : index
    %c0_94 = arith.constant 0 : index
    %c0_95 = arith.constant 0 : index
    %107 = vector.load %arg10[%c4_93, %c0_94, %c0_95] : memref<5x32x64xbf16, #tpu.memory_space<vmem>>, vector<1x32x64xbf16>
    %108 = vector.shape_cast %107 : vector<1x32x64xbf16> to vector<32x64xbf16>
    %cst_96 = arith.constant dense<0.000000e+00> : vector<32x320xf32>
    %109 = tpu.matmul %108, %75, %cst_96 {dimension_numbers = #tpu.dot_dimension_numbers<[1], [0], [0], [1], [0, 0, 1, 1], [], []>} : vector<32x64xbf16>, vector<64x320xbf16>, vector<32x320xf32> -> vector<32x320xf32>
    %110 = arith.truncf %109 : vector<32x320xf32> to vector<32x320xbf16>
    %c4_97 = arith.constant 4 : index
    %c0_98 = arith.constant 0 : index
    %c0_99 = arith.constant 0 : index
    %111 = vector.load %arg11[%c4_97, %c0_98, %c0_99] : memref<5x320x128xbf16, #tpu.memory_space<vmem>>, vector<1x320x128xbf16>
    %112 = vector.shape_cast %111 : vector<1x320x128xbf16> to vector<320x128xbf16>
    %cst_100 = arith.constant dense<0.000000e+00> : vector<32x128xf32>
    %113 = tpu.matmul %110, %112, %cst_100 {dimension_numbers = #tpu.dot_dimension_numbers<[1], [0], [0], [1], [0, 0, 1, 1], [], []>} : vector<32x320xbf16>, vector<320x128xbf16>, vector<32x128xf32> -> vector<32x128xf32>
    %114 = arith.addf %106, %113 : vector<32x128xf32>
    %c0_101 = arith.constant 0 : index
    %c0_102 = arith.constant 0 : index
    %115 = vector.load %arg12[%c0_101, %c0_102] : memref<1x128xf32, #tpu.memory_space<vmem>>, vector<1x128xf32>
    %116 = vector.broadcast %115 : vector<1x128xf32> to vector<32x128xf32>
    %117 = arith.addf %114, %116 : vector<32x128xf32>
    %c0_103 = arith.constant 0 : index
    %c0_104 = arith.constant 0 : index
    %118 = vector.load %arg15[%c0_103, %c0_104] : memref<128x8xf32, #tpu.memory_space<vmem>>, vector<128x8xf32>
    %c0_105 = arith.constant 0 : index
    %c0_106 = arith.constant 0 : index
    %119 = vector.load %arg16[%c0_105, %c0_106] : memref<8x128xf32, #tpu.memory_space<vmem>>, vector<8x128xf32>
    %cst_107 = arith.constant dense<0.000000e+00> : vector<128xf32>
    %120 = vector.multi_reduction <add>, %117, %cst_107 [0] : vector<32x128xf32> to vector<128xf32>
    %121 = vector.shape_cast %120 : vector<128xf32> to vector<1x128xf32>
    %cst_108 = arith.constant dense<0.000000e+00> : vector<1x8xf32>
    %122 = tpu.matmul %121, %118, %cst_108 {dimension_numbers = #tpu.dot_dimension_numbers<[1], [0], [0], [1], [0, 0, 1, 1], [], []>} : vector<1x128xf32>, vector<128x8xf32>, vector<1x8xf32> -> vector<1x8xf32>
    %cst_109 = arith.constant dense<0.000000e+00> : vector<1x128xf32>
    %123 = tpu.matmul %122, %119, %cst_109 {dimension_numbers = #tpu.dot_dimension_numbers<[1], [0], [0], [1], [0, 0, 1, 1], [], []>} : vector<1x8xf32>, vector<8x128xf32>, vector<1x128xf32> -> vector<1x128xf32>
    %124 = vector.broadcast %123 : vector<1x128xf32> to vector<32x128xf32>
    %125 = arith.subf %117, %124 : vector<32x128xf32>
    %126 = arith.mulf %125, %125 : vector<32x128xf32>
    %cst_110 = arith.constant dense<0.000000e+00> : vector<128xf32>
    %127 = vector.multi_reduction <add>, %126, %cst_110 [0] : vector<32x128xf32> to vector<128xf32>
    %128 = vector.shape_cast %127 : vector<128xf32> to vector<1x128xf32>
    %cst_111 = arith.constant dense<0.000000e+00> : vector<1x8xf32>
    %129 = tpu.matmul %128, %118, %cst_111 {dimension_numbers = #tpu.dot_dimension_numbers<[1], [0], [0], [1], [0, 0, 1, 1], [], []>} : vector<1x128xf32>, vector<128x8xf32>, vector<1x8xf32> -> vector<1x8xf32>
    %c0_112 = arith.constant 0 : index
    %c0_113 = arith.constant 0 : index
    %130 = vector.load %arg13[%c0_112, %c0_113] : memref<1x8xf32, #tpu.memory_space<vmem>>, vector<1x8xf32>
    %cst_114 = arith.constant 9.99999974E-6 : f32
    %131 = vector.broadcast %cst_114 : f32 to vector<1x8xf32>
    %132 = arith.addf %129, %131 : vector<1x8xf32>
    %133 = math.rsqrt %132 : vector<1x8xf32>
    %134 = arith.mulf %130, %133 : vector<1x8xf32>
    %cst_115 = arith.constant dense<0.000000e+00> : vector<1x128xf32>
    %135 = tpu.matmul %134, %119, %cst_115 {dimension_numbers = #tpu.dot_dimension_numbers<[1], [0], [0], [1], [0, 0, 1, 1], [], []>} : vector<1x8xf32>, vector<8x128xf32>, vector<1x128xf32> -> vector<1x128xf32>
    %c0_116 = arith.constant 0 : index
    %c0_117 = arith.constant 0 : index
    %136 = vector.load %arg14[%c0_116, %c0_117] : memref<1x8xf32, #tpu.memory_space<vmem>>, vector<1x8xf32>
    %cst_118 = arith.constant dense<0.000000e+00> : vector<1x128xf32>
    %137 = tpu.matmul %136, %119, %cst_118 {dimension_numbers = #tpu.dot_dimension_numbers<[1], [0], [0], [1], [0, 0, 1, 1], [], []>} : vector<1x8xf32>, vector<8x128xf32>, vector<1x128xf32> -> vector<1x128xf32>
    %138 = vector.broadcast %135 : vector<1x128xf32> to vector<32x128xf32>
    %139 = arith.mulf %125, %138 : vector<32x128xf32>
    %140 = vector.broadcast %137 : vector<1x128xf32> to vector<32x128xf32>
    %141 = arith.addf %139, %140 : vector<32x128xf32>
    %cst_119 = arith.constant 0.000000e+00 : f32
    %142 = vector.broadcast %cst_119 : f32 to vector<32x128xf32>
    %143 = arith.maximumf %141, %142 : vector<32x128xf32>
    %144 = arith.truncf %143 : vector<32x128xf32> to vector<32x128xbf16>
    %c0_120 = arith.constant 0 : index
    %c0_121 = arith.constant 0 : index
    %145 = vector.load %arg17[%c0_120, %c0_121] : memref<128x320xbf16, #tpu.memory_space<vmem>>, vector<128x320xbf16>
    %cst_122 = arith.constant dense<0.000000e+00> : vector<32x320xf32>
    %146 = tpu.matmul %144, %145, %cst_122 {dimension_numbers = #tpu.dot_dimension_numbers<[1], [0], [0], [1], [0, 0, 1, 1], [], []>} : vector<32x128xbf16>, vector<128x320xbf16>, vector<32x320xf32> -> vector<32x320xf32>
    %147 = arith.truncf %146 : vector<32x320xf32> to vector<32x320xbf16>
    %c0_123 = arith.constant 0 : index
    %c0_124 = arith.constant 0 : index
    %c0_125 = arith.constant 0 : index
    %148 = vector.load %arg18[%c0_123, %c0_124, %c0_125] : memref<5x16x32xbf16, #tpu.memory_space<vmem>>, vector<1x16x32xbf16>
    %149 = vector.shape_cast %148 : vector<1x16x32xbf16> to vector<16x32xbf16>
    %cst_126 = arith.constant dense<0.000000e+00> : vector<16x320xf32>
    %150 = tpu.matmul %149, %147, %cst_126 {dimension_numbers = #tpu.dot_dimension_numbers<[1], [0], [0], [1], [0, 0, 1, 1], [], []>} : vector<16x32xbf16>, vector<32x320xbf16>, vector<16x320xf32> -> vector<16x320xf32>
    %151 = arith.truncf %150 : vector<16x320xf32> to vector<16x320xbf16>
    %c0_127 = arith.constant 0 : index
    %c0_128 = arith.constant 0 : index
    %c0_129 = arith.constant 0 : index
    %152 = vector.load %arg19[%c0_127, %c0_128, %c0_129] : memref<5x320x128xbf16, #tpu.memory_space<vmem>>, vector<1x320x128xbf16>
    %153 = vector.shape_cast %152 : vector<1x320x128xbf16> to vector<320x128xbf16>
    %cst_130 = arith.constant dense<0.000000e+00> : vector<16x128xf32>
    %154 = tpu.matmul %151, %153, %cst_130 {dimension_numbers = #tpu.dot_dimension_numbers<[1], [0], [0], [1], [0, 0, 1, 1], [], []>} : vector<16x320xbf16>, vector<320x128xbf16>, vector<16x128xf32> -> vector<16x128xf32>
    %c1_131 = arith.constant 1 : index
    %c0_132 = arith.constant 0 : index
    %c0_133 = arith.constant 0 : index
    %155 = vector.load %arg18[%c1_131, %c0_132, %c0_133] : memref<5x16x32xbf16, #tpu.memory_space<vmem>>, vector<1x16x32xbf16>
    %156 = vector.shape_cast %155 : vector<1x16x32xbf16> to vector<16x32xbf16>
    %cst_134 = arith.constant dense<0.000000e+00> : vector<16x320xf32>
    %157 = tpu.matmul %156, %147, %cst_134 {dimension_numbers = #tpu.dot_dimension_numbers<[1], [0], [0], [1], [0, 0, 1, 1], [], []>} : vector<16x32xbf16>, vector<32x320xbf16>, vector<16x320xf32> -> vector<16x320xf32>
    %158 = arith.truncf %157 : vector<16x320xf32> to vector<16x320xbf16>
    %c1_135 = arith.constant 1 : index
    %c0_136 = arith.constant 0 : index
    %c0_137 = arith.constant 0 : index
    %159 = vector.load %arg19[%c1_135, %c0_136, %c0_137] : memref<5x320x128xbf16, #tpu.memory_space<vmem>>, vector<1x320x128xbf16>
    %160 = vector.shape_cast %159 : vector<1x320x128xbf16> to vector<320x128xbf16>
    %cst_138 = arith.constant dense<0.000000e+00> : vector<16x128xf32>
    %161 = tpu.matmul %158, %160, %cst_138 {dimension_numbers = #tpu.dot_dimension_numbers<[1], [0], [0], [1], [0, 0, 1, 1], [], []>} : vector<16x320xbf16>, vector<320x128xbf16>, vector<16x128xf32> -> vector<16x128xf32>
    %162 = arith.addf %154, %161 : vector<16x128xf32>
    %c2_139 = arith.constant 2 : index
    %c0_140 = arith.constant 0 : index
    %c0_141 = arith.constant 0 : index
    %163 = vector.load %arg18[%c2_139, %c0_140, %c0_141] : memref<5x16x32xbf16, #tpu.memory_space<vmem>>, vector<1x16x32xbf16>
    %164 = vector.shape_cast %163 : vector<1x16x32xbf16> to vector<16x32xbf16>
    %cst_142 = arith.constant dense<0.000000e+00> : vector<16x320xf32>
    %165 = tpu.matmul %164, %147, %cst_142 {dimension_numbers = #tpu.dot_dimension_numbers<[1], [0], [0], [1], [0, 0, 1, 1], [], []>} : vector<16x32xbf16>, vector<32x320xbf16>, vector<16x320xf32> -> vector<16x320xf32>
    %166 = arith.truncf %165 : vector<16x320xf32> to vector<16x320xbf16>
    %c2_143 = arith.constant 2 : index
    %c0_144 = arith.constant 0 : index
    %c0_145 = arith.constant 0 : index
    %167 = vector.load %arg19[%c2_143, %c0_144, %c0_145] : memref<5x320x128xbf16, #tpu.memory_space<vmem>>, vector<1x320x128xbf16>
    %168 = vector.shape_cast %167 : vector<1x320x128xbf16> to vector<320x128xbf16>
    %cst_146 = arith.constant dense<0.000000e+00> : vector<16x128xf32>
    %169 = tpu.matmul %166, %168, %cst_146 {dimension_numbers = #tpu.dot_dimension_numbers<[1], [0], [0], [1], [0, 0, 1, 1], [], []>} : vector<16x320xbf16>, vector<320x128xbf16>, vector<16x128xf32> -> vector<16x128xf32>
    %170 = arith.addf %162, %169 : vector<16x128xf32>
    %c3_147 = arith.constant 3 : index
    %c0_148 = arith.constant 0 : index
    %c0_149 = arith.constant 0 : index
    %171 = vector.load %arg18[%c3_147, %c0_148, %c0_149] : memref<5x16x32xbf16, #tpu.memory_space<vmem>>, vector<1x16x32xbf16>
    %172 = vector.shape_cast %171 : vector<1x16x32xbf16> to vector<16x32xbf16>
    %cst_150 = arith.constant dense<0.000000e+00> : vector<16x320xf32>
    %173 = tpu.matmul %172, %147, %cst_150 {dimension_numbers = #tpu.dot_dimension_numbers<[1], [0], [0], [1], [0, 0, 1, 1], [], []>} : vector<16x32xbf16>, vector<32x320xbf16>, vector<16x320xf32> -> vector<16x320xf32>
    %174 = arith.truncf %173 : vector<16x320xf32> to vector<16x320xbf16>
    %c3_151 = arith.constant 3 : index
    %c0_152 = arith.constant 0 : index
    %c0_153 = arith.constant 0 : index
    %175 = vector.load %arg19[%c3_151, %c0_152, %c0_153] : memref<5x320x128xbf16, #tpu.memory_space<vmem>>, vector<1x320x128xbf16>
    %176 = vector.shape_cast %175 : vector<1x320x128xbf16> to vector<320x128xbf16>
    %cst_154 = arith.constant dense<0.000000e+00> : vector<16x128xf32>
    %177 = tpu.matmul %174, %176, %cst_154 {dimension_numbers = #tpu.dot_dimension_numbers<[1], [0], [0], [1], [0, 0, 1, 1], [], []>} : vector<16x320xbf16>, vector<320x128xbf16>, vector<16x128xf32> -> vector<16x128xf32>
    %178 = arith.addf %170, %177 : vector<16x128xf32>
    %c4_155 = arith.constant 4 : index
    %c0_156 = arith.constant 0 : index
    %c0_157 = arith.constant 0 : index
    %179 = vector.load %arg18[%c4_155, %c0_156, %c0_157] : memref<5x16x32xbf16, #tpu.memory_space<vmem>>, vector<1x16x32xbf16>
    %180 = vector.shape_cast %179 : vector<1x16x32xbf16> to vector<16x32xbf16>
    %cst_158 = arith.constant dense<0.000000e+00> : vector<16x320xf32>
    %181 = tpu.matmul %180, %147, %cst_158 {dimension_numbers = #tpu.dot_dimension_numbers<[1], [0], [0], [1], [0, 0, 1, 1], [], []>} : vector<16x32xbf16>, vector<32x320xbf16>, vector<16x320xf32> -> vector<16x320xf32>
    %182 = arith.truncf %181 : vector<16x320xf32> to vector<16x320xbf16>
    %c4_159 = arith.constant 4 : index
    %c0_160 = arith.constant 0 : index
    %c0_161 = arith.constant 0 : index
    %183 = vector.load %arg19[%c4_159, %c0_160, %c0_161] : memref<5x320x128xbf16, #tpu.memory_space<vmem>>, vector<1x320x128xbf16>
    %184 = vector.shape_cast %183 : vector<1x320x128xbf16> to vector<320x128xbf16>
    %cst_162 = arith.constant dense<0.000000e+00> : vector<16x128xf32>
    %185 = tpu.matmul %182, %184, %cst_162 {dimension_numbers = #tpu.dot_dimension_numbers<[1], [0], [0], [1], [0, 0, 1, 1], [], []>} : vector<16x320xbf16>, vector<320x128xbf16>, vector<16x128xf32> -> vector<16x128xf32>
    %186 = arith.addf %178, %185 : vector<16x128xf32>
    %c0_163 = arith.constant 0 : index
    %c0_164 = arith.constant 0 : index
    %187 = vector.load %arg20[%c0_163, %c0_164] : memref<1x128xf32, #tpu.memory_space<vmem>>, vector<1x128xf32>
    %188 = vector.broadcast %187 : vector<1x128xf32> to vector<16x128xf32>
    %189 = arith.addf %186, %188 : vector<16x128xf32>
    %c0_165 = arith.constant 0 : index
    %c0_166 = arith.constant 0 : index
    %190 = vector.load %arg23[%c0_165, %c0_166] : memref<128x16xf32, #tpu.memory_space<vmem>>, vector<128x16xf32>
    %c0_167 = arith.constant 0 : index
    %c0_168 = arith.constant 0 : index
    %191 = vector.load %arg24[%c0_167, %c0_168] : memref<16x128xf32, #tpu.memory_space<vmem>>, vector<16x128xf32>
    %cst_169 = arith.constant dense<0.000000e+00> : vector<128xf32>
    %192 = vector.multi_reduction <add>, %189, %cst_169 [0] : vector<16x128xf32> to vector<128xf32>
    %193 = vector.shape_cast %192 : vector<128xf32> to vector<1x128xf32>
    %cst_170 = arith.constant dense<0.000000e+00> : vector<1x16xf32>
    %194 = tpu.matmul %193, %190, %cst_170 {dimension_numbers = #tpu.dot_dimension_numbers<[1], [0], [0], [1], [0, 0, 1, 1], [], []>} : vector<1x128xf32>, vector<128x16xf32>, vector<1x16xf32> -> vector<1x16xf32>
    %cst_171 = arith.constant dense<0.000000e+00> : vector<1x128xf32>
    %195 = tpu.matmul %194, %191, %cst_171 {dimension_numbers = #tpu.dot_dimension_numbers<[1], [0], [0], [1], [0, 0, 1, 1], [], []>} : vector<1x16xf32>, vector<16x128xf32>, vector<1x128xf32> -> vector<1x128xf32>
    %196 = vector.broadcast %195 : vector<1x128xf32> to vector<16x128xf32>
    %197 = arith.subf %189, %196 : vector<16x128xf32>
    %198 = arith.mulf %197, %197 : vector<16x128xf32>
    %cst_172 = arith.constant dense<0.000000e+00> : vector<128xf32>
    %199 = vector.multi_reduction <add>, %198, %cst_172 [0] : vector<16x128xf32> to vector<128xf32>
    %200 = vector.shape_cast %199 : vector<128xf32> to vector<1x128xf32>
    %cst_173 = arith.constant dense<0.000000e+00> : vector<1x16xf32>
    %201 = tpu.matmul %200, %190, %cst_173 {dimension_numbers = #tpu.dot_dimension_numbers<[1], [0], [0], [1], [0, 0, 1, 1], [], []>} : vector<1x128xf32>, vector<128x16xf32>, vector<1x16xf32> -> vector<1x16xf32>
    %c0_174 = arith.constant 0 : index
    %c0_175 = arith.constant 0 : index
    %202 = vector.load %arg21[%c0_174, %c0_175] : memref<1x16xf32, #tpu.memory_space<vmem>>, vector<1x16xf32>
    %cst_176 = arith.constant 9.99999974E-6 : f32
    %203 = vector.broadcast %cst_176 : f32 to vector<1x16xf32>
    %204 = arith.addf %201, %203 : vector<1x16xf32>
    %205 = math.rsqrt %204 : vector<1x16xf32>
    %206 = arith.mulf %202, %205 : vector<1x16xf32>
    %cst_177 = arith.constant dense<0.000000e+00> : vector<1x128xf32>
    %207 = tpu.matmul %206, %191, %cst_177 {dimension_numbers = #tpu.dot_dimension_numbers<[1], [0], [0], [1], [0, 0, 1, 1], [], []>} : vector<1x16xf32>, vector<16x128xf32>, vector<1x128xf32> -> vector<1x128xf32>
    %c0_178 = arith.constant 0 : index
    %c0_179 = arith.constant 0 : index
    %208 = vector.load %arg22[%c0_178, %c0_179] : memref<1x16xf32, #tpu.memory_space<vmem>>, vector<1x16xf32>
    %cst_180 = arith.constant dense<0.000000e+00> : vector<1x128xf32>
    %209 = tpu.matmul %208, %191, %cst_180 {dimension_numbers = #tpu.dot_dimension_numbers<[1], [0], [0], [1], [0, 0, 1, 1], [], []>} : vector<1x16xf32>, vector<16x128xf32>, vector<1x128xf32> -> vector<1x128xf32>
    %210 = vector.broadcast %207 : vector<1x128xf32> to vector<16x128xf32>
    %211 = arith.mulf %197, %210 : vector<16x128xf32>
    %212 = vector.broadcast %209 : vector<1x128xf32> to vector<16x128xf32>
    %213 = arith.addf %211, %212 : vector<16x128xf32>
    %cst_181 = arith.constant 0.000000e+00 : f32
    %214 = vector.broadcast %cst_181 : f32 to vector<16x128xf32>
    %215 = arith.maximumf %213, %214 : vector<16x128xf32>
    %216 = arith.truncf %215 : vector<16x128xf32> to vector<16x128xbf16>
    %c0_182 = arith.constant 0 : index
    %c0_183 = arith.constant 0 : index
    %217 = vector.load %arg25[%c0_182, %c0_183] : memref<128x320xbf16, #tpu.memory_space<vmem>>, vector<128x320xbf16>
    %cst_184 = arith.constant dense<0.000000e+00> : vector<16x320xf32>
    %218 = tpu.matmul %216, %217, %cst_184 {dimension_numbers = #tpu.dot_dimension_numbers<[1], [0], [0], [1], [0, 0, 1, 1], [], []>} : vector<16x128xbf16>, vector<128x320xbf16>, vector<16x320xf32> -> vector<16x320xf32>
    %219 = arith.truncf %218 : vector<16x320xf32> to vector<16x320xbf16>
    %c0_185 = arith.constant 0 : index
    %c0_186 = arith.constant 0 : index
    %c0_187 = arith.constant 0 : index
    %220 = vector.load %arg26[%c0_185, %c0_186, %c0_187] : memref<5x8x16xbf16, #tpu.memory_space<vmem>>, vector<1x8x16xbf16>
    %221 = vector.shape_cast %220 : vector<1x8x16xbf16> to vector<8x16xbf16>
    %cst_188 = arith.constant dense<0.000000e+00> : vector<8x320xf32>
    %222 = tpu.matmul %221, %219, %cst_188 {dimension_numbers = #tpu.dot_dimension_numbers<[1], [0], [0], [1], [0, 0, 1, 1], [], []>} : vector<8x16xbf16>, vector<16x320xbf16>, vector<8x320xf32> -> vector<8x320xf32>
    %223 = arith.truncf %222 : vector<8x320xf32> to vector<8x320xbf16>
    %c0_189 = arith.constant 0 : index
    %c0_190 = arith.constant 0 : index
    %c0_191 = arith.constant 0 : index
    %224 = vector.load %arg27[%c0_189, %c0_190, %c0_191] : memref<5x320x128xbf16, #tpu.memory_space<vmem>>, vector<1x320x128xbf16>
    %225 = vector.shape_cast %224 : vector<1x320x128xbf16> to vector<320x128xbf16>
    %cst_192 = arith.constant dense<0.000000e+00> : vector<8x128xf32>
    %226 = tpu.matmul %223, %225, %cst_192 {dimension_numbers = #tpu.dot_dimension_numbers<[1], [0], [0], [1], [0, 0, 1, 1], [], []>} : vector<8x320xbf16>, vector<320x128xbf16>, vector<8x128xf32> -> vector<8x128xf32>
    %c1_193 = arith.constant 1 : index
    %c0_194 = arith.constant 0 : index
    %c0_195 = arith.constant 0 : index
    %227 = vector.load %arg26[%c1_193, %c0_194, %c0_195] : memref<5x8x16xbf16, #tpu.memory_space<vmem>>, vector<1x8x16xbf16>
    %228 = vector.shape_cast %227 : vector<1x8x16xbf16> to vector<8x16xbf16>
    %cst_196 = arith.constant dense<0.000000e+00> : vector<8x320xf32>
    %229 = tpu.matmul %228, %219, %cst_196 {dimension_numbers = #tpu.dot_dimension_numbers<[1], [0], [0], [1], [0, 0, 1, 1], [], []>} : vector<8x16xbf16>, vector<16x320xbf16>, vector<8x320xf32> -> vector<8x320xf32>
    %230 = arith.truncf %229 : vector<8x320xf32> to vector<8x320xbf16>
    %c1_197 = arith.constant 1 : index
    %c0_198 = arith.constant 0 : index
    %c0_199 = arith.constant 0 : index
    %231 = vector.load %arg27[%c1_197, %c0_198, %c0_199] : memref<5x320x128xbf16, #tpu.memory_space<vmem>>, vector<1x320x128xbf16>
    %232 = vector.shape_cast %231 : vector<1x320x128xbf16> to vector<320x128xbf16>
    %cst_200 = arith.constant dense<0.000000e+00> : vector<8x128xf32>
    %233 = tpu.matmul %230, %232, %cst_200 {dimension_numbers = #tpu.dot_dimension_numbers<[1], [0], [0], [1], [0, 0, 1, 1], [], []>} : vector<8x320xbf16>, vector<320x128xbf16>, vector<8x128xf32> -> vector<8x128xf32>
    %234 = arith.addf %226, %233 : vector<8x128xf32>
    %c2_201 = arith.constant 2 : index
    %c0_202 = arith.constant 0 : index
    %c0_203 = arith.constant 0 : index
    %235 = vector.load %arg26[%c2_201, %c0_202, %c0_203] : memref<5x8x16xbf16, #tpu.memory_space<vmem>>, vector<1x8x16xbf16>
    %236 = vector.shape_cast %235 : vector<1x8x16xbf16> to vector<8x16xbf16>
    %cst_204 = arith.constant dense<0.000000e+00> : vector<8x320xf32>
    %237 = tpu.matmul %236, %219, %cst_204 {dimension_numbers = #tpu.dot_dimension_numbers<[1], [0], [0], [1], [0, 0, 1, 1], [], []>} : vector<8x16xbf16>, vector<16x320xbf16>, vector<8x320xf32> -> vector<8x320xf32>
    %238 = arith.truncf %237 : vector<8x320xf32> to vector<8x320xbf16>
    %c2_205 = arith.constant 2 : index
    %c0_206 = arith.constant 0 : index
    %c0_207 = arith.constant 0 : index
    %239 = vector.load %arg27[%c2_205, %c0_206, %c0_207] : memref<5x320x128xbf16, #tpu.memory_space<vmem>>, vector<1x320x128xbf16>
    %240 = vector.shape_cast %239 : vector<1x320x128xbf16> to vector<320x128xbf16>
    %cst_208 = arith.constant dense<0.000000e+00> : vector<8x128xf32>
    %241 = tpu.matmul %238, %240, %cst_208 {dimension_numbers = #tpu.dot_dimension_numbers<[1], [0], [0], [1], [0, 0, 1, 1], [], []>} : vector<8x320xbf16>, vector<320x128xbf16>, vector<8x128xf32> -> vector<8x128xf32>
    %242 = arith.addf %234, %241 : vector<8x128xf32>
    %c3_209 = arith.constant 3 : index
    %c0_210 = arith.constant 0 : index
    %c0_211 = arith.constant 0 : index
    %243 = vector.load %arg26[%c3_209, %c0_210, %c0_211] : memref<5x8x16xbf16, #tpu.memory_space<vmem>>, vector<1x8x16xbf16>
    %244 = vector.shape_cast %243 : vector<1x8x16xbf16> to vector<8x16xbf16>
    %cst_212 = arith.constant dense<0.000000e+00> : vector<8x320xf32>
    %245 = tpu.matmul %244, %219, %cst_212 {dimension_numbers = #tpu.dot_dimension_numbers<[1], [0], [0], [1], [0, 0, 1, 1], [], []>} : vector<8x16xbf16>, vector<16x320xbf16>, vector<8x320xf32> -> vector<8x320xf32>
    %246 = arith.truncf %245 : vector<8x320xf32> to vector<8x320xbf16>
    %c3_213 = arith.constant 3 : index
    %c0_214 = arith.constant 0 : index
    %c0_215 = arith.constant 0 : index
    %247 = vector.load %arg27[%c3_213, %c0_214, %c0_215] : memref<5x320x128xbf16, #tpu.memory_space<vmem>>, vector<1x320x128xbf16>
    %248 = vector.shape_cast %247 : vector<1x320x128xbf16> to vector<320x128xbf16>
    %cst_216 = arith.constant dense<0.000000e+00> : vector<8x128xf32>
    %249 = tpu.matmul %246, %248, %cst_216 {dimension_numbers = #tpu.dot_dimension_numbers<[1], [0], [0], [1], [0, 0, 1, 1], [], []>} : vector<8x320xbf16>, vector<320x128xbf16>, vector<8x128xf32> -> vector<8x128xf32>
    %250 = arith.addf %242, %249 : vector<8x128xf32>
    %c4_217 = arith.constant 4 : index
    %c0_218 = arith.constant 0 : index
    %c0_219 = arith.constant 0 : index
    %251 = vector.load %arg26[%c4_217, %c0_218, %c0_219] : memref<5x8x16xbf16, #tpu.memory_space<vmem>>, vector<1x8x16xbf16>
    %252 = vector.shape_cast %251 : vector<1x8x16xbf16> to vector<8x16xbf16>
    %cst_220 = arith.constant dense<0.000000e+00> : vector<8x320xf32>
    %253 = tpu.matmul %252, %219, %cst_220 {dimension_numbers = #tpu.dot_dimension_numbers<[1], [0], [0], [1], [0, 0, 1, 1], [], []>} : vector<8x16xbf16>, vector<16x320xbf16>, vector<8x320xf32> -> vector<8x320xf32>
    %254 = arith.truncf %253 : vector<8x320xf32> to vector<8x320xbf16>
    %c4_221 = arith.constant 4 : index
    %c0_222 = arith.constant 0 : index
    %c0_223 = arith.constant 0 : index
    %255 = vector.load %arg27[%c4_221, %c0_222, %c0_223] : memref<5x320x128xbf16, #tpu.memory_space<vmem>>, vector<1x320x128xbf16>
    %256 = vector.shape_cast %255 : vector<1x320x128xbf16> to vector<320x128xbf16>
    %cst_224 = arith.constant dense<0.000000e+00> : vector<8x128xf32>
    %257 = tpu.matmul %254, %256, %cst_224 {dimension_numbers = #tpu.dot_dimension_numbers<[1], [0], [0], [1], [0, 0, 1, 1], [], []>} : vector<8x320xbf16>, vector<320x128xbf16>, vector<8x128xf32> -> vector<8x128xf32>
    %258 = arith.addf %250, %257 : vector<8x128xf32>
    %c0_225 = arith.constant 0 : index
    %c0_226 = arith.constant 0 : index
    %259 = vector.load %arg28[%c0_225, %c0_226] : memref<1x128xf32, #tpu.memory_space<vmem>>, vector<1x128xf32>
    %260 = vector.broadcast %259 : vector<1x128xf32> to vector<8x128xf32>
    %261 = arith.addf %258, %260 : vector<8x128xf32>
    %c0_227 = arith.constant 0 : index
    %c0_228 = arith.constant 0 : index
    %262 = vector.load %arg31[%c0_227, %c0_228] : memref<128x32xf32, #tpu.memory_space<vmem>>, vector<128x32xf32>
    %c0_229 = arith.constant 0 : index
    %c0_230 = arith.constant 0 : index
    %263 = vector.load %arg32[%c0_229, %c0_230] : memref<32x128xf32, #tpu.memory_space<vmem>>, vector<32x128xf32>
    %cst_231 = arith.constant dense<0.000000e+00> : vector<128xf32>
    %264 = vector.multi_reduction <add>, %261, %cst_231 [0] : vector<8x128xf32> to vector<128xf32>
    %265 = vector.shape_cast %264 : vector<128xf32> to vector<1x128xf32>
    %cst_232 = arith.constant dense<0.000000e+00> : vector<1x32xf32>
    %266 = tpu.matmul %265, %262, %cst_232 {dimension_numbers = #tpu.dot_dimension_numbers<[1], [0], [0], [1], [0, 0, 1, 1], [], []>} : vector<1x128xf32>, vector<128x32xf32>, vector<1x32xf32> -> vector<1x32xf32>
    %cst_233 = arith.constant dense<0.000000e+00> : vector<1x128xf32>
    %267 = tpu.matmul %266, %263, %cst_233 {dimension_numbers = #tpu.dot_dimension_numbers<[1], [0], [0], [1], [0, 0, 1, 1], [], []>} : vector<1x32xf32>, vector<32x128xf32>, vector<1x128xf32> -> vector<1x128xf32>
    %268 = vector.broadcast %267 : vector<1x128xf32> to vector<8x128xf32>
    %269 = arith.subf %261, %268 : vector<8x128xf32>
    %270 = arith.mulf %269, %269 : vector<8x128xf32>
    %cst_234 = arith.constant dense<0.000000e+00> : vector<128xf32>
    %271 = vector.multi_reduction <add>, %270, %cst_234 [0] : vector<8x128xf32> to vector<128xf32>
    %272 = vector.shape_cast %271 : vector<128xf32> to vector<1x128xf32>
    %cst_235 = arith.constant dense<0.000000e+00> : vector<1x32xf32>
    %273 = tpu.matmul %272, %262, %cst_235 {dimension_numbers = #tpu.dot_dimension_numbers<[1], [0], [0], [1], [0, 0, 1, 1], [], []>} : vector<1x128xf32>, vector<128x32xf32>, vector<1x32xf32> -> vector<1x32xf32>
    %c0_236 = arith.constant 0 : index
    %c0_237 = arith.constant 0 : index
    %274 = vector.load %arg29[%c0_236, %c0_237] : memref<1x32xf32, #tpu.memory_space<vmem>>, vector<1x32xf32>
    %cst_238 = arith.constant 9.99999974E-6 : f32
    %275 = vector.broadcast %cst_238 : f32 to vector<1x32xf32>
    %276 = arith.addf %273, %275 : vector<1x32xf32>
    %277 = math.rsqrt %276 : vector<1x32xf32>
    %278 = arith.mulf %274, %277 : vector<1x32xf32>
    %cst_239 = arith.constant dense<0.000000e+00> : vector<1x128xf32>
    %279 = tpu.matmul %278, %263, %cst_239 {dimension_numbers = #tpu.dot_dimension_numbers<[1], [0], [0], [1], [0, 0, 1, 1], [], []>} : vector<1x32xf32>, vector<32x128xf32>, vector<1x128xf32> -> vector<1x128xf32>
    %c0_240 = arith.constant 0 : index
    %c0_241 = arith.constant 0 : index
    %280 = vector.load %arg30[%c0_240, %c0_241] : memref<1x32xf32, #tpu.memory_space<vmem>>, vector<1x32xf32>
    %cst_242 = arith.constant dense<0.000000e+00> : vector<1x128xf32>
    %281 = tpu.matmul %280, %263, %cst_242 {dimension_numbers = #tpu.dot_dimension_numbers<[1], [0], [0], [1], [0, 0, 1, 1], [], []>} : vector<1x32xf32>, vector<32x128xf32>, vector<1x128xf32> -> vector<1x128xf32>
    %282 = vector.broadcast %279 : vector<1x128xf32> to vector<8x128xf32>
    %283 = arith.mulf %269, %282 : vector<8x128xf32>
    %284 = vector.broadcast %281 : vector<1x128xf32> to vector<8x128xf32>
    %285 = arith.addf %283, %284 : vector<8x128xf32>
    %cst_243 = arith.constant 0.000000e+00 : f32
    %286 = vector.broadcast %cst_243 : f32 to vector<8x128xf32>
    %287 = arith.maximumf %285, %286 : vector<8x128xf32>
    %c0_244 = arith.constant 0 : index
    %c0_245 = arith.constant 0 : index
    %c0_246 = arith.constant 0 : index
    %288 = vector.load %arg33[%c0_244, %c0_245, %c0_246] : memref<4x2x8xf32, #tpu.memory_space<vmem>>, vector<1x2x8xf32>
    %289 = vector.shape_cast %288 : vector<1x2x8xf32> to vector<2x8xf32>
    %cst_247 = arith.constant dense<0.000000e+00> : vector<2x128xf32>
    %290 = tpu.matmul %289, %287, %cst_247 {dimension_numbers = #tpu.dot_dimension_numbers<[1], [0], [0], [1], [0, 0, 1, 1], [], []>} : vector<2x8xf32>, vector<8x128xf32>, vector<2x128xf32> -> vector<2x128xf32>
    %c0_248 = arith.constant 0 : index
    %c0_249 = arith.constant 0 : index
    %c0_250 = arith.constant 0 : index
    %291 = vector.load %arg34[%c0_248, %c0_249, %c0_250] : memref<4x128x8xf32, #tpu.memory_space<vmem>>, vector<1x128x8xf32>
    %292 = vector.shape_cast %291 : vector<1x128x8xf32> to vector<128x8xf32>
    %cst_251 = arith.constant dense<0.000000e+00> : vector<2x8xf32>
    %293 = tpu.matmul %290, %292, %cst_251 {dimension_numbers = #tpu.dot_dimension_numbers<[1], [0], [0], [1], [0, 0, 1, 1], [], []>} : vector<2x128xf32>, vector<128x8xf32>, vector<2x8xf32> -> vector<2x8xf32>
    %c1_252 = arith.constant 1 : index
    %c0_253 = arith.constant 0 : index
    %c0_254 = arith.constant 0 : index
    %294 = vector.load %arg33[%c1_252, %c0_253, %c0_254] : memref<4x2x8xf32, #tpu.memory_space<vmem>>, vector<1x2x8xf32>
    %295 = vector.shape_cast %294 : vector<1x2x8xf32> to vector<2x8xf32>
    %cst_255 = arith.constant dense<0.000000e+00> : vector<2x128xf32>
    %296 = tpu.matmul %295, %287, %cst_255 {dimension_numbers = #tpu.dot_dimension_numbers<[1], [0], [0], [1], [0, 0, 1, 1], [], []>} : vector<2x8xf32>, vector<8x128xf32>, vector<2x128xf32> -> vector<2x128xf32>
    %c1_256 = arith.constant 1 : index
    %c0_257 = arith.constant 0 : index
    %c0_258 = arith.constant 0 : index
    %297 = vector.load %arg34[%c1_256, %c0_257, %c0_258] : memref<4x128x8xf32, #tpu.memory_space<vmem>>, vector<1x128x8xf32>
    %298 = vector.shape_cast %297 : vector<1x128x8xf32> to vector<128x8xf32>
    %cst_259 = arith.constant dense<0.000000e+00> : vector<2x8xf32>
    %299 = tpu.matmul %296, %298, %cst_259 {dimension_numbers = #tpu.dot_dimension_numbers<[1], [0], [0], [1], [0, 0, 1, 1], [], []>} : vector<2x128xf32>, vector<128x8xf32>, vector<2x8xf32> -> vector<2x8xf32>
    %300 = arith.addf %293, %299 : vector<2x8xf32>
    %c2_260 = arith.constant 2 : index
    %c0_261 = arith.constant 0 : index
    %c0_262 = arith.constant 0 : index
    %301 = vector.load %arg33[%c2_260, %c0_261, %c0_262] : memref<4x2x8xf32, #tpu.memory_space<vmem>>, vector<1x2x8xf32>
    %302 = vector.shape_cast %301 : vector<1x2x8xf32> to vector<2x8xf32>
    %cst_263 = arith.constant dense<0.000000e+00> : vector<2x128xf32>
    %303 = tpu.matmul %302, %287, %cst_263 {dimension_numbers = #tpu.dot_dimension_numbers<[1], [0], [0], [1], [0, 0, 1, 1], [], []>} : vector<2x8xf32>, vector<8x128xf32>, vector<2x128xf32> -> vector<2x128xf32>
    %c2_264 = arith.constant 2 : index
    %c0_265 = arith.constant 0 : index
    %c0_266 = arith.constant 0 : index
    %304 = vector.load %arg34[%c2_264, %c0_265, %c0_266] : memref<4x128x8xf32, #tpu.memory_space<vmem>>, vector<1x128x8xf32>
    %305 = vector.shape_cast %304 : vector<1x128x8xf32> to vector<128x8xf32>
    %cst_267 = arith.constant dense<0.000000e+00> : vector<2x8xf32>
    %306 = tpu.matmul %303, %305, %cst_267 {dimension_numbers = #tpu.dot_dimension_numbers<[1], [0], [0], [1], [0, 0, 1, 1], [], []>} : vector<2x128xf32>, vector<128x8xf32>, vector<2x8xf32> -> vector<2x8xf32>
    %307 = arith.addf %300, %306 : vector<2x8xf32>
    %c3_268 = arith.constant 3 : index
    %c0_269 = arith.constant 0 : index
    %c0_270 = arith.constant 0 : index
    %308 = vector.load %arg33[%c3_268, %c0_269, %c0_270] : memref<4x2x8xf32, #tpu.memory_space<vmem>>, vector<1x2x8xf32>
    %309 = vector.shape_cast %308 : vector<1x2x8xf32> to vector<2x8xf32>
    %cst_271 = arith.constant dense<0.000000e+00> : vector<2x128xf32>
    %310 = tpu.matmul %309, %287, %cst_271 {dimension_numbers = #tpu.dot_dimension_numbers<[1], [0], [0], [1], [0, 0, 1, 1], [], []>} : vector<2x8xf32>, vector<8x128xf32>, vector<2x128xf32> -> vector<2x128xf32>
    %c3_272 = arith.constant 3 : index
    %c0_273 = arith.constant 0 : index
    %c0_274 = arith.constant 0 : index
    %311 = vector.load %arg34[%c3_272, %c0_273, %c0_274] : memref<4x128x8xf32, #tpu.memory_space<vmem>>, vector<1x128x8xf32>
    %312 = vector.shape_cast %311 : vector<1x128x8xf32> to vector<128x8xf32>
    %cst_275 = arith.constant dense<0.000000e+00> : vector<2x8xf32>
    %313 = tpu.matmul %310, %312, %cst_275 {dimension_numbers = #tpu.dot_dimension_numbers<[1], [0], [0], [1], [0, 0, 1, 1], [], []>} : vector<2x128xf32>, vector<128x8xf32>, vector<2x8xf32> -> vector<2x8xf32>
    %314 = arith.addf %307, %313 : vector<2x8xf32>
    %c0_276 = arith.constant 0 : index
    %c0_277 = arith.constant 0 : index
    %315 = vector.load %arg35[%c0_276, %c0_277] : memref<1x8xf32, #tpu.memory_space<vmem>>, vector<1x8xf32>
    %316 = vector.broadcast %315 : vector<1x8xf32> to vector<2x8xf32>
    %317 = arith.addf %314, %316 : vector<2x8xf32>
    %c0_278 = arith.constant 0 : index
    %c0_279 = arith.constant 0 : index
    %318 = vector.load %arg36[%c0_278, %c0_279] : memref<2x8xf32, #tpu.memory_space<vmem>>, vector<2x8xf32>
    tpu.vector_store %arg36[%c0_278, %c0_279], %317 {strides = array<i32>} : memref<2x8xf32, #tpu.memory_space<vmem>>, vector<2x8xf32>,
    return
  }
}

</mosaic_0001>

<llo_original>
// kernel: encoder_forward.1
$region0: #{encoder_forward.1}
  #allocation0 [shape = 'u32[]', space=smem, size = 0x4, offset = 0x4, fixed_abs, tag = 'smem constant byte address 0x4 - core index']
  #allocation1 [shape = 'u32[144,128]{1,0:T(1,128)}', space=vmem, size = 0x12000, scoped, tag = 'internal scratch']
  %s0 = inlined_call_operand.smem [shape: u32[37], index: -1, kind: input, shape index: {}]
  %s1 = sld [smem:[%s0]]
  %s2 = scalar_lea.smem %s0, 1
  %s3 = sld [smem:[%s2]]
  %s4 = scalar_lea.smem %s0, 2
  %s5 = sld [smem:[%s4]]
  %s6 = scalar_lea.smem %s0, 3
  %s7 = sld [smem:[%s6]]
  %s8 = scalar_lea.smem %s0, 4
  %s9 = sld [smem:[%s8]]
  %s10 = scalar_lea.smem %s0, 5
  %s11 = sld [smem:[%s10]]
  %s12 = scalar_lea.smem %s0, 6
  %s13 = sld [smem:[%s12]]
  %s14 = scalar_lea.smem %s0, 7
  %s15 = sld [smem:[%s14]]
  %s16 = scalar_lea.smem %s0, 8
  %s17 = sld [smem:[%s16]]
  %s18 = scalar_lea.smem %s0, 9
  %s19 = sld [smem:[%s18]]
  %s20 = scalar_lea.smem %s0, 10
  %s21 = sld [smem:[%s20]]
  %s22 = scalar_lea.smem %s0, 11
  %s23 = sld [smem:[%s22]]
  %s24 = scalar_lea.smem %s0, 12
  %s25 = sld [smem:[%s24]]
  %s26 = scalar_lea.smem %s0, 13
  %s27 = sld [smem:[%s26]]
  %s28 = scalar_lea.smem %s0, 14
  %s29 = sld [smem:[%s28]]
  %s30 = scalar_lea.smem %s0, 15
  %s31 = sld [smem:[%s30]]
  %s32 = scalar_lea.smem %s0, 16
  %s33 = sld [smem:[%s32]]
  %s34 = scalar_lea.smem %s0, 17
  %s35 = sld [smem:[%s34]]
  %s36 = scalar_lea.smem %s0, 18
  %s37 = sld [smem:[%s36]]
  %s38 = scalar_lea.smem %s0, 19
  %s39 = sld [smem:[%s38]]
  %s40 = scalar_lea.smem %s0, 20
  %s41 = sld [smem:[%s40]]
  %s42 = scalar_lea.smem %s0, 21
  %s43 = sld [smem:[%s42]]
  %s44 = scalar_lea.smem %s0, 22
  %s45 = sld [smem:[%s44]]
  %s46 = scalar_lea.smem %s0, 23
  %s47 = sld [smem:[%s46]]
  %s48 = scalar_lea.smem %s0, 24
  %s49 = sld [smem:[%s48]]
  %s50 = scalar_lea.smem %s0, 25
  %s51 = sld [smem:[%s50]]
  %s52 = scalar_lea.smem %s0, 26
  %s53 = sld [smem:[%s52]]
  %s54 = scalar_lea.smem %s0, 27
  %s55 = sld [smem:[%s54]]
  %s56 = scalar_lea.smem %s0, 28
  %s57 = sld [smem:[%s56]]
  %s58 = scalar_lea.smem %s0, 29
  %s59 = sld [smem:[%s58]]
  %s60 = scalar_lea.smem %s0, 30
  %s61 = sld [smem:[%s60]]
  %s62 = scalar_lea.smem %s0, 31
  %s63 = sld [smem:[%s62]]
  %s64 = scalar_lea.smem %s0, 32
  %s65 = sld [smem:[%s64]]
  %s66 = scalar_lea.smem %s0, 33
  %s67 = sld [smem:[%s66]]
  %s68 = scalar_lea.smem %s0, 34
  %s69 = sld [smem:[%s68]]
  %s70 = scalar_lea.smem %s0, 35
  %s71 = sld [smem:[%s70]]
  %s72 = scalar_lea.smem %s0, 36
  %s73 = sld [smem:[%s72]]
  %s74 = sld [smem:[#allocation0]]
  $region154: #{encoder_forward.1} parent=0
    _
  %s76 = ssub.s32 1, %s74
  %s77 = scalar_select 0, %s76, %s74
  $region1: #{encoder_forward.1} parent=0
    #allocation2 [shape = 'u8[1024]{0}', space=vmem, size = 0x400, scoped, tag = 'output window, operand 0, single buffered']
    #allocation3 [shape = 's32[1]{0}', space=sflag, size = 0x4, scoped, tag = 'scoped memory for encoder_forward.1']
    %78 = vsyncpa [#allocation3], 0
    // Predicated region
    $region2: #{encoder_forward.1} parent=1 // pred_check
      _
    $region3: #{encoder_forward.1} parent=1 // pred_check_branch
      %80 = sbr.rel (0) target = $region5
    $region4: #{encoder_forward.1} parent=1 // pred_region
      _
    $region5: #{encoder_forward.1} parent=1 // pred_fallthru
      _
    // Predicated region
    $region6: #{encoder_forward.1} parent=1 // pred_check
      _
    $region7: #{encoder_forward.1} parent=1 // pred_check_branch
      %82 = sbr.rel (0) target = $region9
    $region8: #{encoder_forward.1} parent=1 // pred_region
      _
    $region9: #{encoder_forward.1} parent=1 // pred_fallthru
      _
    // Predicated region
    $region10: #{encoder_forward.1} parent=1 // pred_check
      _
    $region11: #{encoder_forward.1} parent=1 // pred_check_branch
      %84 = sbr.rel (0) target = $region13
    $region12: #{encoder_forward.1} parent=1 // pred_region
      _
    $region13: #{encoder_forward.1} parent=1 // pred_fallthru
      _
    // Predicated region
    $region14: #{encoder_forward.1} parent=1 // pred_check
      _
    $region15: #{encoder_forward.1} parent=1 // pred_check_branch
      %86 = sbr.rel (0) target = $region17
    $region16: #{encoder_forward.1} parent=1 // pred_region
      _
    $region17: #{encoder_forward.1} parent=1 // pred_fallthru
      _
    // Predicated region
    $region18: #{encoder_forward.1} parent=1 // pred_check
      _
    $region19: #{encoder_forward.1} parent=1 // pred_check_branch
      %88 = sbr.rel (0) target = $region21
    $region20: #{encoder_forward.1} parent=1 // pred_region
      _
    $region21: #{encoder_forward.1} parent=1 // pred_fallthru
      _
    // Predicated region
    $region22: #{encoder_forward.1} parent=1 // pred_check
      _
    $region23: #{encoder_forward.1} parent=1 // pred_check_branch
      %90 = sbr.rel (0) target = $region25
    $region24: #{encoder_forward.1} parent=1 // pred_region
      _
    $region25: #{encoder_forward.1} parent=1 // pred_fallthru
      _
    // Predicated region
    $region26: #{encoder_forward.1} parent=1 // pred_check
      _
    $region27: #{encoder_forward.1} parent=1 // pred_check_branch
      %92 = sbr.rel (0) target = $region29
    $region28: #{encoder_forward.1} parent=1 // pred_region
      _
    $region29: #{encoder_forward.1} parent=1 // pred_fallthru
      _
    // Predicated region
    $region30: #{encoder_forward.1} parent=1 // pred_check
      _
    $region31: #{encoder_forward.1} parent=1 // pred_check_branch
      %94 = sbr.rel (0) target = $region33
    $region32: #{encoder_forward.1} parent=1 // pred_region
      _
    $region33: #{encoder_forward.1} parent=1 // pred_fallthru
      _
    // Predicated region
    $region34: #{encoder_forward.1} parent=1 // pred_check
      _
    $region35: #{encoder_forward.1} parent=1 // pred_check_branch
      %96 = sbr.rel (0) target = $region37
    $region36: #{encoder_forward.1} parent=1 // pred_region
      _
    $region37: #{encoder_forward.1} parent=1 // pred_fallthru
      _
    // Predicated region
    $region38: #{encoder_forward.1} parent=1 // pred_check
      _
    $region39: #{encoder_forward.1} parent=1 // pred_check_branch
      %98 = sbr.rel (0) target = $region41
    $region40: #{encoder_forward.1} parent=1 // pred_region
      _
    $region41: #{encoder_forward.1} parent=1 // pred_fallthru
      _
    // Predicated region
    $region42: #{encoder_forward.1} parent=1 // pred_check
      _
    $region43: #{encoder_forward.1} parent=1 // pred_check_branch
      %100 = sbr.rel (0) target = $region45
    $region44: #{encoder_forward.1} parent=1 // pred_region
      _
    $region45: #{encoder_forward.1} parent=1 // pred_fallthru
      _
    // Predicated region
    $region46: #{encoder_forward.1} parent=1 // pred_check
      _
    $region47: #{encoder_forward.1} parent=1 // pred_check_branch
      %102 = sbr.rel (0) target = $region49
    $region48: #{encoder_forward.1} parent=1 // pred_region
      _
    $region49: #{encoder_forward.1} parent=1 // pred_fallthru
      _
    // Predicated region
    $region50: #{encoder_forward.1} parent=1 // pred_check
      _
    $region51: #{encoder_forward.1} parent=1 // pred_check_branch
      %104 = sbr.rel (0) target = $region53
    $region52: #{encoder_forward.1} parent=1 // pred_region
      _
    $region53: #{encoder_forward.1} parent=1 // pred_fallthru
      _
    // Predicated region
    $region54: #{encoder_forward.1} parent=1 // pred_check
      _
    $region55: #{encoder_forward.1} parent=1 // pred_check_branch
      %106 = sbr.rel (0) target = $region57
    $region56: #{encoder_forward.1} parent=1 // pred_region
      _
    $region57: #{encoder_forward.1} parent=1 // pred_fallthru
      _
    // Predicated region
    $region58: #{encoder_forward.1} parent=1 // pred_check
      _
    $region59: #{encoder_forward.1} parent=1 // pred_check_branch
      %108 = sbr.rel (0) target = $region61
    $region60: #{encoder_forward.1} parent=1 // pred_region
      _
    $region61: #{encoder_forward.1} parent=1 // pred_fallthru
      _
    // Predicated region
    $region62: #{encoder_forward.1} parent=1 // pred_check
      _
    $region63: #{encoder_forward.1} parent=1 // pred_check_branch
      %110 = sbr.rel (0) target = $region65
    $region64: #{encoder_forward.1} parent=1 // pred_region
      _
    $region65: #{encoder_forward.1} parent=1 // pred_fallthru
      _
    // Predicated region
    $region66: #{encoder_forward.1} parent=1 // pred_check
      _
    $region67: #{encoder_forward.1} parent=1 // pred_check_branch
      %112 = sbr.rel (0) target = $region69
    $region68: #{encoder_forward.1} parent=1 // pred_region
      _
    $region69: #{encoder_forward.1} parent=1 // pred_fallthru
      _
    // Predicated region
    $region70: #{encoder_forward.1} parent=1 // pred_check
      _
    $region71: #{encoder_forward.1} parent=1 // pred_check_branch
      %114 = sbr.rel (0) target = $region73
    $region72: #{encoder_forward.1} parent=1 // pred_region
      _
    $region73: #{encoder_forward.1} parent=1 // pred_fallthru
      _
    // Predicated region
    $region74: #{encoder_forward.1} parent=1 // pred_check
      _
    $region75: #{encoder_forward.1} parent=1 // pred_check_branch
      %116 = sbr.rel (0) target = $region77
    $region76: #{encoder_forward.1} parent=1 // pred_region
      _
    $region77: #{encoder_forward.1} parent=1 // pred_fallthru
      _
    // Predicated region
    $region78: #{encoder_forward.1} parent=1 // pred_check
      _
    $region79: #{encoder_forward.1} parent=1 // pred_check_branch
      %118 = sbr.rel (0) target = $region81
    $region80: #{encoder_forward.1} parent=1 // pred_region
      _
    $region81: #{encoder_forward.1} parent=1 // pred_fallthru
      _
    // Predicated region
    $region82: #{encoder_forward.1} parent=1 // pred_check
      _
    $region83: #{encoder_forward.1} parent=1 // pred_check_branch
      %120 = sbr.rel (0) target = $region85
    $region84: #{encoder_forward.1} parent=1 // pred_region
      _
    $region85: #{encoder_forward.1} parent=1 // pred_fallthru
      _
    // Predicated region
    $region86: #{encoder_forward.1} parent=1 // pred_check
      _
    $region87: #{encoder_forward.1} parent=1 // pred_check_branch
      %122 = sbr.rel (0) target = $region89
    $region88: #{encoder_forward.1} parent=1 // pred_region
      _
    $region89: #{encoder_forward.1} parent=1 // pred_fallthru
      _
    // Predicated region
    $region90: #{encoder_forward.1} parent=1 // pred_check
      _
    $region91: #{encoder_forward.1} parent=1 // pred_check_branch
      %124 = sbr.rel (0) target = $region93
    $region92: #{encoder_forward.1} parent=1 // pred_region
      _
    $region93: #{encoder_forward.1} parent=1 // pred_fallthru
      _
    // Predicated region
    $region94: #{encoder_forward.1} parent=1 // pred_check
      _
    $region95: #{encoder_forward.1} parent=1 // pred_check_branch
      %126 = sbr.rel (0) target = $region97
    $region96: #{encoder_forward.1} parent=1 // pred_region
      _
    $region97: #{encoder_forward.1} parent=1 // pred_fallthru
      _
    // Predicated region
    $region98: #{encoder_forward.1} parent=1 // pred_check
      _
    $region99: #{encoder_forward.1} parent=1 // pred_check_branch
      %128 = sbr.rel (0) target = $region101
    $region100: #{encoder_forward.1} parent=1 // pred_region
      _
    $region101: #{encoder_forward.1} parent=1 // pred_fallthru
      _
    // Predicated region
    $region102: #{encoder_forward.1} parent=1 // pred_check
      _
    $region103: #{encoder_forward.1} parent=1 // pred_check_branch
      %130 = sbr.rel (0) target = $region105
    $region104: #{encoder_forward.1} parent=1 // pred_region
      _
    $region105: #{encoder_forward.1} parent=1 // pred_fallthru
      _
    // Predicated region
    $region106: #{encoder_forward.1} parent=1 // pred_check
      _
    $region107: #{encoder_forward.1} parent=1 // pred_check_branch
      %132 = sbr.rel (0) target = $region109
    $region108: #{encoder_forward.1} parent=1 // pred_region
      _
    $region109: #{encoder_forward.1} parent=1 // pred_fallthru
      _
    // Predicated region
    $region110: #{encoder_forward.1} parent=1 // pred_check
      _
    $region111: #{encoder_forward.1} parent=1 // pred_check_branch
      %134 = sbr.rel (0) target = $region113
    $region112: #{encoder_forward.1} parent=1 // pred_region
      _
    $region113: #{encoder_forward.1} parent=1 // pred_fallthru
      _
    // Predicated region
    $region114: #{encoder_forward.1} parent=1 // pred_check
      _
    $region115: #{encoder_forward.1} parent=1 // pred_check_branch
      %136 = sbr.rel (0) target = $region117
    $region116: #{encoder_forward.1} parent=1 // pred_region
      _
    $region117: #{encoder_forward.1} parent=1 // pred_fallthru
      _
    // Predicated region
    $region118: #{encoder_forward.1} parent=1 // pred_check
      _
    $region119: #{encoder_forward.1} parent=1 // pred_check_branch
      %138 = sbr.rel (0) target = $region121
    $region120: #{encoder_forward.1} parent=1 // pred_region
      _
    $region121: #{encoder_forward.1} parent=1 // pred_fallthru
      _
    // Predicated region
    $region122: #{encoder_forward.1} parent=1 // pred_check
      _
    $region123: #{encoder_forward.1} parent=1 // pred_check_branch
      %140 = sbr.rel (0) target = $region125
    $region124: #{encoder_forward.1} parent=1 // pred_region
      _
    $region125: #{encoder_forward.1} parent=1 // pred_fallthru
      _
    // Predicated region
    $region126: #{encoder_forward.1} parent=1 // pred_check
      _
    $region127: #{encoder_forward.1} parent=1 // pred_check_branch
      %142 = sbr.rel (0) target = $region129
    $region128: #{encoder_forward.1} parent=1 // pred_region
      _
    $region129: #{encoder_forward.1} parent=1 // pred_fallthru
      _
    // Predicated region
    $region130: #{encoder_forward.1} parent=1 // pred_check
      _
    $region131: #{encoder_forward.1} parent=1 // pred_check_branch
      %144 = sbr.rel (0) target = $region133
    $region132: #{encoder_forward.1} parent=1 // pred_region
      _
    $region133: #{encoder_forward.1} parent=1 // pred_fallthru
      _
    // Predicated region
    $region134: #{encoder_forward.1} parent=1 // pred_check
      _
    $region135: #{encoder_forward.1} parent=1 // pred_check_branch
      %146 = sbr.rel (0) target = $region137
    $region136: #{encoder_forward.1} parent=1 // pred_region
      _
    $region137: #{encoder_forward.1} parent=1 // pred_fallthru
      _
    // Predicated region
    $region138: #{encoder_forward.1} parent=1 // pred_check
      _
    $region139: #{encoder_forward.1} parent=1 // pred_check_branch
      %148 = sbr.rel (0) target = $region141
    $region140: #{encoder_forward.1} parent=1 // pred_region
      _
    $region141: #{encoder_forward.1} parent=1 // pred_fallthru
      _
    // Predicated region
    $region142: #{encoder_forward.1} parent=1 // pred_check
      _
    $region143: #{encoder_forward.1} parent=1 // pred_check_branch
      %150 = sbr.rel (0) target = $region145
    $region144: #{encoder_forward.1} parent=1 // pred_region
      _
    $region145: #{encoder_forward.1} parent=1 // pred_fallthru
      _
    %v152 = vld [vmem:[%s1] sm:$0xff]
    %v153 = vld [vmem:[%s1 + $0x8] sm:$0xff]
    %v154 = vld [vmem:[%s1 + $0x10] sm:$0xff]
    %v155 = vld [vmem:[%s1 + $0x18] sm:$0xff]
    %v156 = vld [vmem:[%s1 + $0x20] sm:$0xff]
    %v157 = vld [vmem:[%s1 + $0x28] sm:$0xff]
    %v158 = vld [vmem:[%s1 + $0x30] sm:$0xff]
    %v159 = vld [vmem:[%s1 + $0x38] sm:$0xff]
    %v160 = vld [vmem:[%s1 + $0x40] sm:$0xff]
    %v161 = vld [vmem:[%s1 + $0x48] sm:$0xff]
    %v162 = vld [vmem:[%s1 + $0x50] sm:$0xff]
    %v163 = vld [vmem:[%s1 + $0x58] sm:$0xff]
    %v164 = vld [vmem:[%s1 + $0x60] sm:$0xff]
    %v165 = vld [vmem:[%s1 + $0x68] sm:$0xff]
    %v166 = vld [vmem:[%s1 + $0x70] sm:$0xff]
    %v167 = vld [vmem:[%s1 + $0x78] sm:$0xff]
    %v168 = vld [vmem:[%s3] sm:$0xff]
    %v169 = vld [vmem:[%s3 + $0x8] sm:$0xff]
    %v170 = vld [vmem:[%s3 + $0x10] sm:$0xff]
    %v171 = vld [vmem:[%s3 + $0x18] sm:$0xff]
    %v172 = vld [vmem:[%s3 + $0x20] sm:$0xff]
    %v173 = vld [vmem:[%s3 + $0x28] sm:$0xff]
    %v174 = vld [vmem:[%s3 + $0x30] sm:$0xff]
    %v175 = vld [vmem:[%s3 + $0x38] sm:$0xff]
    %v176 = vld [vmem:[%s3 + $0x40] sm:$0xff]
    %v177 = vld [vmem:[%s3 + $0x48] sm:$0xff]
    %v178 = vld [vmem:[%s3 + $0x50] sm:$0xff]
    %v179 = vld [vmem:[%s3 + $0x58] sm:$0xff]
    %v180 = vld [vmem:[%s3 + $0x60] sm:$0xff]
    %v181 = vld [vmem:[%s3 + $0x68] sm:$0xff]
    %v182 = vld [vmem:[%s3 + $0x70] sm:$0xff]
    %v183 = vld [vmem:[%s3 + $0x78] sm:$0xff]
    %v184 = vld [vmem:[%s3 + $0x80] sm:$0xff]
    %v185 = vld [vmem:[%s3 + $0x88] sm:$0xff]
    %v186 = vld [vmem:[%s3 + $0x90] sm:$0xff]
    %v187 = vld [vmem:[%s3 + $0x98] sm:$0xff]
    %v188 = vld [vmem:[%s3 + $0xa0] sm:$0xff]
    %v189 = vld [vmem:[%s3 + $0xa8] sm:$0xff]
    %v190 = vld [vmem:[%s3 + $0xb0] sm:$0xff]
    %v191 = vld [vmem:[%s3 + $0xb8] sm:$0xff]
    %v192 = vld [vmem:[%s3 + $0xc0] sm:$0xff]
    %v193 = vld [vmem:[%s3 + $0xc8] sm:$0xff]
    %v194 = vld [vmem:[%s3 + $0xd0] sm:$0xff]
    %v195 = vld [vmem:[%s3 + $0xd8] sm:$0xff]
    %v196 = vld [vmem:[%s3 + $0xe0] sm:$0xff]
    %v197 = vld [vmem:[%s3 + $0xe8] sm:$0xff]
    %v198 = vld [vmem:[%s3 + $0xf0] sm:$0xff]
    %v199 = vld [vmem:[%s3 + $0xf8] sm:$0xff]
    %v200 = vld [vmem:[%s3 + $0x100] sm:$0xff]
    %v201 = vld [vmem:[%s3 + $0x108] sm:$0xff]
    %v202 = vld [vmem:[%s3 + $0x110] sm:$0xff]
    %v203 = vld [vmem:[%s3 + $0x118] sm:$0xff]
    %v204 = vld [vmem:[%s3 + $0x120] sm:$0xff]
    %v205 = vld [vmem:[%s3 + $0x128] sm:$0xff]
    %v206 = vld [vmem:[%s3 + $0x130] sm:$0xff]
    %v207 = vld [vmem:[%s3 + $0x138] sm:$0xff]
    %v208 = vld [vmem:[%s3 + $0x140] sm:$0xff]
    %v209 = vld [vmem:[%s3 + $0x148] sm:$0xff]
    %v210 = vld [vmem:[%s3 + $0x150] sm:$0xff]
    %v211 = vld [vmem:[%s3 + $0x158] sm:$0xff]
    %v212 = vld [vmem:[%s3 + $0x160] sm:$0xff]
    %v213 = vld [vmem:[%s3 + $0x168] sm:$0xff]
    %v214 = vld [vmem:[%s3 + $0x170] sm:$0xff]
    %v215 = vld [vmem:[%s3 + $0x178] sm:$0xff]
    %v232 = vunpack.c.l.b16 %v152
    %v233 = vunpack.c.h.b16 %v152
    %v234 = vunpack.c.l.b16 %v153
    %v235 = vunpack.c.h.b16 %v153
    %v236 = vunpack.c.l.b16 %v154
    %v237 = vunpack.c.h.b16 %v154
    %v238 = vunpack.c.l.b16 %v155
    %v239 = vunpack.c.h.b16 %v155
    %v240 = vunpack.c.l.b16 %v156
    %v241 = vunpack.c.h.b16 %v156
    %v242 = vunpack.c.l.b16 %v157
    %v243 = vunpack.c.h.b16 %v157
    %v244 = vunpack.c.l.b16 %v158
    %v245 = vunpack.c.h.b16 %v158
    %v246 = vunpack.c.l.b16 %v159
    %v247 = vunpack.c.h.b16 %v159
    %v248 = vunpack.c.l.b16 %v160
    %v249 = vunpack.c.h.b16 %v160
    %v250 = vunpack.c.l.b16 %v161
    %v251 = vunpack.c.h.b16 %v161
    %v252 = vunpack.c.l.b16 %v162
    %v253 = vunpack.c.h.b16 %v162
    %v254 = vunpack.c.l.b16 %v163
    %v255 = vunpack.c.h.b16 %v163
    %v256 = vunpack.c.l.b16 %v164
    %v257 = vunpack.c.h.b16 %v164
    %v258 = vunpack.c.l.b16 %v165
    %v259 = vunpack.c.h.b16 %v165
    %v260 = vunpack.c.l.b16 %v166
    %v261 = vunpack.c.h.b16 %v166
    %v262 = vunpack.c.l.b16 %v167
    %v263 = vunpack.c.h.b16 %v167
    %v264 = vpack.c.b16 %v234, %v232
    %v265 = vpack.c.b16 %v235, %v233
    %v266 = vpack.c.b16 %v238, %v236
    %v267 = vpack.c.b16 %v239, %v237
    %v268 = vpack.c.b16 %v242, %v240
    %v269 = vpack.c.b16 %v243, %v241
    %v270 = vpack.c.b16 %v246, %v244
    %v271 = vpack.c.b16 %v247, %v245
    %v272 = vpack.c.b16 %v250, %v248
    %v273 = vpack.c.b16 %v251, %v249
    %v274 = vpack.c.b16 %v254, %v252
    %v275 = vpack.c.b16 %v255, %v253
    %v276 = vpack.c.b16 %v258, %v256
    %v277 = vpack.c.b16 %v259, %v257
    %v278 = vpack.c.b16 %v262, %v260
    %v279 = vpack.c.b16 %v263, %v261
    %v336 = vunpack.c.l.b16 %v168
    %v337 = vunpack.c.h.b16 %v168
    %v338 = vunpack.c.l.b16 %v169
    %v339 = vunpack.c.h.b16 %v169
    %v340 = vunpack.c.l.b16 %v170
    %v341 = vunpack.c.h.b16 %v170
    %v342 = vunpack.c.l.b16 %v171
    %v343 = vunpack.c.h.b16 %v171
    %v344 = vunpack.c.l.b16 %v172
    %v345 = vunpack.c.h.b16 %v172
    %v346 = vunpack.c.l.b16 %v173
    %v347 = vunpack.c.h.b16 %v173
    %v348 = vunpack.c.l.b16 %v174
    %v349 = vunpack.c.h.b16 %v174
    %v350 = vunpack.c.l.b16 %v175
    %v351 = vunpack.c.h.b16 %v175
    %v352 = vunpack.c.l.b16 %v176
    %v353 = vunpack.c.h.b16 %v176
    %v354 = vunpack.c.l.b16 %v177
    %v355 = vunpack.c.h.b16 %v177
    %v356 = vunpack.c.l.b16 %v178
    %v357 = vunpack.c.h.b16 %v178
    %v358 = vunpack.c.l.b16 %v179
    %v359 = vunpack.c.h.b16 %v179
    %v360 = vunpack.c.l.b16 %v180
    %v361 = vunpack.c.h.b16 %v180
    %v362 = vunpack.c.l.b16 %v181
    %v363 = vunpack.c.h.b16 %v181
    %v364 = vunpack.c.l.b16 %v182
    %v365 = vunpack.c.h.b16 %v182
    %v366 = vunpack.c.l.b16 %v183
    %v367 = vunpack.c.h.b16 %v183
    %v368 = vunpack.c.l.b16 %v184
    %v369 = vunpack.c.h.b16 %v184
    %v370 = vunpack.c.l.b16 %v185
    %v371 = vunpack.c.h.b16 %v185
    %v372 = vunpack.c.l.b16 %v186
    %v373 = vunpack.c.h.b16 %v186
    %v374 = vunpack.c.l.b16 %v187
    %v375 = vunpack.c.h.b16 %v187
    %v376 = vunpack.c.l.b16 %v188
    %v377 = vunpack.c.h.b16 %v188
    %v378 = vunpack.c.l.b16 %v189
    %v379 = vunpack.c.h.b16 %v189
    %v380 = vunpack.c.l.b16 %v190
    %v381 = vunpack.c.h.b16 %v190
    %v382 = vunpack.c.l.b16 %v191
    %v383 = vunpack.c.h.b16 %v191
    %v384 = vunpack.c.l.b16 %v192
    %v385 = vunpack.c.h.b16 %v192
    %v386 = vunpack.c.l.b16 %v193
    %v387 = vunpack.c.h.b16 %v193
    %v388 = vunpack.c.l.b16 %v194
    %v389 = vunpack.c.h.b16 %v194
    %v390 = vunpack.c.l.b16 %v195
    %v391 = vunpack.c.h.b16 %v195
    %v392 = vunpack.c.l.b16 %v196
    %v393 = vunpack.c.h.b16 %v196
    %v394 = vunpack.c.l.b16 %v197
    %v395 = vunpack.c.h.b16 %v197
    %v396 = vunpack.c.l.b16 %v198
    %v397 = vunpack.c.h.b16 %v198
    %v398 = vunpack.c.l.b16 %v199
    %v399 = vunpack.c.h.b16 %v199
    %v400 = vunpack.c.l.b16 %v200
    %v401 = vunpack.c.h.b16 %v200
    %v402 = vunpack.c.l.b16 %v201
    %v403 = vunpack.c.h.b16 %v201
    %v404 = vunpack.c.l.b16 %v202
    %v405 = vunpack.c.h.b16 %v202
    %v406 = vunpack.c.l.b16 %v203
    %v407 = vunpack.c.h.b16 %v203
    %v408 = vunpack.c.l.b16 %v204
    %v409 = vunpack.c.h.b16 %v204
    %v410 = vunpack.c.l.b16 %v205
    %v411 = vunpack.c.h.b16 %v205
    %v412 = vunpack.c.l.b16 %v206
    %v413 = vunpack.c.h.b16 %v206
    %v414 = vunpack.c.l.b16 %v207
    %v415 = vunpack.c.h.b16 %v207
    %v416 = vunpack.c.l.b16 %v208
    %v417 = vunpack.c.h.b16 %v208
    %v418 = vunpack.c.l.b16 %v209
    %v419 = vunpack.c.h.b16 %v209
    %v420 = vunpack.c.l.b16 %v210
    %v421 = vunpack.c.h.b16 %v210
    %v422 = vunpack.c.l.b16 %v211
    %v423 = vunpack.c.h.b16 %v211
    %v424 = vunpack.c.l.b16 %v212
    %v425 = vunpack.c.h.b16 %v212
    %v426 = vunpack.c.l.b16 %v213
    %v427 = vunpack.c.h.b16 %v213
    %v428 = vunpack.c.l.b16 %v214
    %v429 = vunpack.c.h.b16 %v214
    %v430 = vunpack.c.l.b16 %v215
    %v431 = vunpack.c.h.b16 %v215
    %v432 = vpack.c.b16 %v340, %v336
    %v433 = vpack.c.b16 %v341, %v337
    %v434 = vpack.c.b16 %v342, %v338
    %v435 = vpack.c.b16 %v343, %v339
    %v436 = vpack.c.b16 %v348, %v344
    %v437 = vpack.c.b16 %v349, %v345
    %v438 = vpack.c.b16 %v350, %v346
    %v439 = vpack.c.b16 %v351, %v347
    %v440 = vpack.c.b16 %v356, %v352
    %v441 = vpack.c.b16 %v357, %v353
    %v442 = vpack.c.b16 %v358, %v354
    %v443 = vpack.c.b16 %v359, %v355
    %v444 = vpack.c.b16 %v364, %v360
    %v445 = vpack.c.b16 %v365, %v361
    %v446 = vpack.c.b16 %v366, %v362
    %v447 = vpack.c.b16 %v367, %v363
    %v448 = vpack.c.b16 %v372, %v368
    %v449 = vpack.c.b16 %v373, %v369
    %v450 = vpack.c.b16 %v374, %v370
    %v451 = vpack.c.b16 %v375, %v371
    %v452 = vpack.c.b16 %v380, %v376
    %v453 = vpack.c.b16 %v381, %v377
    %v454 = vpack.c.b16 %v382, %v378
    %v455 = vpack.c.b16 %v383, %v379
    %v456 = vpack.c.b16 %v388, %v384
    %v457 = vpack.c.b16 %v389, %v385
    %v458 = vpack.c.b16 %v390, %v386
    %v459 = vpack.c.b16 %v391, %v387
    %v460 = vpack.c.b16 %v396, %v392
    %v461 = vpack.c.b16 %v397, %v393
    %v462 = vpack.c.b16 %v398, %v394
    %v463 = vpack.c.b16 %v399, %v395
    %v464 = vpack.c.b16 %v404, %v400
    %v465 = vpack.c.b16 %v405, %v401
    %v466 = vpack.c.b16 %v406, %v402
    %v467 = vpack.c.b16 %v407, %v403
    %v468 = vpack.c.b16 %v412, %v408
    %v469 = vpack.c.b16 %v413, %v409
    %v470 = vpack.c.b16 %v414, %v410
    %v471 = vpack.c.b16 %v415, %v411
    %v472 = vpack.c.b16 %v420, %v416
    %v473 = vpack.c.b16 %v421, %v417
    %v474 = vpack.c.b16 %v422, %v418
    %v475 = vpack.c.b16 %v423, %v419
    %v476 = vpack.c.b16 %v428, %v424
    %v477 = vpack.c.b16 %v429, %v425
    %v478 = vpack.c.b16 %v430, %v426
    %v479 = vpack.c.b16 %v431, %v427
    %vm528 = vcmask 523264
    %v530 = vsel %vm528, %v265, 0
    %v533 = vsel %vm528, %v267, 0
    %v536 = vsel %vm528, %v269, 0
    %v539 = vsel %vm528, %v271, 0
    %v542 = vsel %vm528, %v273, 0
    %v545 = vsel %vm528, %v275, 0
    %v548 = vsel %vm528, %v277, 0
    %v551 = vsel %vm528, %v279, 0
    %553 = vmatprep.subr.bf16.mxu0 %v461
    %554 = vmatpush1.bf16.msra.mxu0 %v460
    %555 = vmatprep.subr.bf16.mxu0 %v457
    %556 = vmatpush1.bf16.msra.mxu0 %v456
    %557 = vmatprep.subr.bf16.mxu0 %v453
    %558 = vmatpush1.bf16.msra.mxu0 %v452
    %559 = vmatprep.subr.bf16.mxu0 %v449
    %560 = vmatpush1.bf16.msra.mxu0 %v448
    %561 = vmatprep.subr.bf16.mxu0 %v445
    %562 = vmatpush1.bf16.msra.mxu0 %v444
    %563 = vmatprep.subr.bf16.mxu0 %v441
    %564 = vmatpush1.bf16.msra.mxu0 %v440
    %565 = vmatprep.subr.bf16.mxu0 %v437
    %566 = vmatpush1.bf16.msra.mxu0 %v436
    %567 = vmatprep.subr.bf16.mxu0 %v433
    %568 = vmatpush1.bf16.msra.mxu0 %v432
    %569 = vmatprep.subr.bf16.mxu0 0
    %570 = vmatpush2.bf16.msra.mxu0 0
    %571 = vmatprep.subr.bf16.mxu0 0
    %572 = vmatpush2.bf16.msra.mxu0 0
    %573 = vmatprep.subr.bf16.mxu0 0
    %574 = vmatpush2.bf16.msra.mxu0 0
    %575 = vmatprep.subr.bf16.mxu0 0
    %576 = vmatpush2.bf16.msra.mxu0 0
    %577 = vmatprep.subr.bf16.mxu0 %v477
    %578 = vmatpush2.bf16.msra.mxu0 %v476
    %579 = vmatprep.subr.bf16.mxu0 %v473
    %580 = vmatpush2.bf16.msra.mxu0 %v472
    %581 = vmatprep.subr.bf16.mxu0 %v469
    %582 = vmatpush2.bf16.msra.mxu0 %v468
    %583 = vmatprep.subr.bf16.mxu0 %v465
    %584 = vmatpush2.bf16.msra.mxu0 %v464
    %585 = vmatprep.mubr.bf16.mxu0 %v530
    %586 = vmatmul.mubr.bf16.gmra.mxu0 %v264
    %v587 = vpop.f32.mrf.mxu0
    %v588 = vadd.f32 0.0, %v587
    %v589 = vpop.f32.mrf.mxu0
    %v590 = vadd.f32 0.0, %v589
    %v591 = vpop.f32.mrf.mxu0
    %v592 = vadd.f32 0.0, %v591
    %v593 = vpop.f32.mrf.mxu0
    %v594 = vadd.f32 0.0, %v593
    %595 = vmatprep.mubr.bf16.mxu0 %v533
    %596 = vmatmul.mubr.bf16.gmra.mxu0 %v266
    %v597 = vpop.f32.mrf.mxu0
    %v598 = vadd.f32 0.0, %v597
    %v599 = vpop.f32.mrf.mxu0
    %v600 = vadd.f32 0.0, %v599
    %v601 = vpop.f32.mrf.mxu0
    %v602 = vadd.f32 0.0, %v601
    %v603 = vpop.f32.mrf.mxu0
    %v604 = vadd.f32 0.0, %v603
    %605 = vmatprep.mubr.bf16.mxu0 %v536
    %606 = vmatmul.mubr.bf16.gmra.mxu0 %v268
    %v607 = vpop.f32.mrf.mxu0
    %v608 = vadd.f32 0.0, %v607
    %v609 = vpop.f32.mrf.mxu0
    %v610 = vadd.f32 0.0, %v609
    %v611 = vpop.f32.mrf.mxu0
    %v612 = vadd.f32 0.0, %v611
    %v613 = vpop.f32.mrf.mxu0
    %v614 = vadd.f32 0.0, %v613
    %615 = vmatprep.mubr.bf16.mxu0 %v539
    %616 = vmatmul.mubr.bf16.gmra.mxu0 %v270
    %v617 = vpop.f32.mrf.mxu0
    %v618 = vadd.f32 0.0, %v617
    %v619 = vpop.f32.mrf.mxu0
    %v620 = vadd.f32 0.0, %v619
    %v621 = vpop.f32.mrf.mxu0
    %v622 = vadd.f32 0.0, %v621
    %v623 = vpop.f32.mrf.mxu0
    %v624 = vadd.f32 0.0, %v623
    %625 = vmatprep.mubr.bf16.mxu0 %v542
    %626 = vmatmul.mubr.bf16.gmra.mxu0 %v272
    %v627 = vpop.f32.mrf.mxu0
    %v628 = vadd.f32 0.0, %v627
    %v629 = vpop.f32.mrf.mxu0
    %v630 = vadd.f32 0.0, %v629
    %v631 = vpop.f32.mrf.mxu0
    %v632 = vadd.f32 0.0, %v631
    %v633 = vpop.f32.mrf.mxu0
    %v634 = vadd.f32 0.0, %v633
    %635 = vmatprep.mubr.bf16.mxu0 %v545
    %636 = vmatmul.mubr.bf16.gmra.mxu0 %v274
    %v637 = vpop.f32.mrf.mxu0
    %v638 = vadd.f32 0.0, %v637
    %v639 = vpop.f32.mrf.mxu0
    %v640 = vadd.f32 0.0, %v639
    %v641 = vpop.f32.mrf.mxu0
    %v642 = vadd.f32 0.0, %v641
    %v643 = vpop.f32.mrf.mxu0
    %v644 = vadd.f32 0.0, %v643
    %645 = vmatprep.mubr.bf16.mxu0 %v548
    %646 = vmatmul.mubr.bf16.gmra.mxu0 %v276
    %v647 = vpop.f32.mrf.mxu0
    %v648 = vadd.f32 0.0, %v647
    %v649 = vpop.f32.mrf.mxu0
    %v650 = vadd.f32 0.0, %v649
    %v651 = vpop.f32.mrf.mxu0
    %v652 = vadd.f32 0.0, %v651
    %v653 = vpop.f32.mrf.mxu0
    %v654 = vadd.f32 0.0, %v653
    %655 = vmatprep.mubr.bf16.mxu0 %v551
    %656 = vmatmul.mubr.bf16.gmra.mxu0 %v278
    %v657 = vpop.f32.mrf.mxu0
    %v658 = vadd.f32 0.0, %v657
    %v659 = vpop.f32.mrf.mxu0
    %v660 = vadd.f32 0.0, %v659
    %v661 = vpop.f32.mrf.mxu0
    %v662 = vadd.f32 0.0, %v661
    %v663 = vpop.f32.mrf.mxu0
    %v664 = vadd.f32 0.0, %v663
    %665 = vdwg.mxu0
    %666 = vmatprep.subr.bf16.mxu0 %v463
    %667 = vmatpush1.bf16.msra.mxu0 %v462
    %668 = vmatprep.subr.bf16.mxu0 %v459
    %669 = vmatpush1.bf16.msra.mxu0 %v458
    %670 = vmatprep.subr.bf16.mxu0 %v455
    %671 = vmatpush1.bf16.msra.mxu0 %v454
    %672 = vmatprep.subr.bf16.mxu0 %v451
    %673 = vmatpush1.bf16.msra.mxu0 %v450
    %674 = vmatprep.subr.bf16.mxu0 %v447
    %675 = vmatpush1.bf16.msra.mxu0 %v446
    %676 = vmatprep.subr.bf16.mxu0 %v443
    %677 = vmatpush1.bf16.msra.mxu0 %v442
    %678 = vmatprep.subr.bf16.mxu0 %v439
    %679 = vmatpush1.bf16.msra.mxu0 %v438
    %680 = vmatprep.subr.bf16.mxu0 %v435
    %681 = vmatpush1.bf16.msra.mxu0 %v434
    %682 = vmatprep.subr.bf16.mxu0 0
    %683 = vmatpush2.bf16.msra.mxu0 0
    %684 = vmatprep.subr.bf16.mxu0 0
    %685 = vmatpush2.bf16.msra.mxu0 0
    %686 = vmatprep.subr.bf16.mxu0 0
    %687 = vmatpush2.bf16.msra.mxu0 0
    %688 = vmatprep.subr.bf16.mxu0 0
    %689 = vmatpush2.bf16.msra.mxu0 0
    %690 = vmatprep.subr.bf16.mxu0 %v479
    %691 = vmatpush2.bf16.msra.mxu0 %v478
    %692 = vmatprep.subr.bf16.mxu0 %v475
    %693 = vmatpush2.bf16.msra.mxu0 %v474
    %694 = vmatprep.subr.bf16.mxu0 %v471
    %695 = vmatpush2.bf16.msra.mxu0 %v470
    %696 = vmatprep.subr.bf16.mxu0 %v467
    %697 = vmatpush2.bf16.msra.mxu0 %v466
    %698 = vmatprep.mubr.bf16.mxu0 %v530
    %699 = vmatmul.mubr.bf16.gmra.mxu0 %v264
    %v700 = vpop.f32.mrf.mxu0
    %v701 = vadd.f32 0.0, %v700
    %v702 = vpop.f32.mrf.mxu0
    %v703 = vadd.f32 0.0, %v702
    %v704 = vpop.f32.mrf.mxu0
    %v705 = vadd.f32 0.0, %v704
    %v706 = vpop.f32.mrf.mxu0
    %v707 = vadd.f32 0.0, %v706
    %708 = vmatprep.mubr.bf16.mxu0 %v533
    %709 = vmatmul.mubr.bf16.gmra.mxu0 %v266
    %v710 = vpop.f32.mrf.mxu0
    %v711 = vadd.f32 0.0, %v710
    %v712 = vpop.f32.mrf.mxu0
    %v713 = vadd.f32 0.0, %v712
    %v714 = vpop.f32.mrf.mxu0
    %v715 = vadd.f32 0.0, %v714
    %v716 = vpop.f32.mrf.mxu0
    %v717 = vadd.f32 0.0, %v716
    %718 = vmatprep.mubr.bf16.mxu0 %v536
    %719 = vmatmul.mubr.bf16.gmra.mxu0 %v268
    %v720 = vpop.f32.mrf.mxu0
    %v721 = vadd.f32 0.0, %v720
    %v722 = vpop.f32.mrf.mxu0
    %v723 = vadd.f32 0.0, %v722
    %v724 = vpop.f32.mrf.mxu0
    %v725 = vadd.f32 0.0, %v724
    %v726 = vpop.f32.mrf.mxu0
    %v727 = vadd.f32 0.0, %v726
    %728 = vmatprep.mubr.bf16.mxu0 %v539
    %729 = vmatmul.mubr.bf16.gmra.mxu0 %v270
    %v730 = vpop.f32.mrf.mxu0
    %v731 = vadd.f32 0.0, %v730
    %v732 = vpop.f32.mrf.mxu0
    %v733 = vadd.f32 0.0, %v732
    %v734 = vpop.f32.mrf.mxu0
    %v735 = vadd.f32 0.0, %v734
    %v736 = vpop.f32.mrf.mxu0
    %v737 = vadd.f32 0.0, %v736
    %738 = vmatprep.mubr.bf16.mxu0 %v542
    %739 = vmatmul.mubr.bf16.gmra.mxu0 %v272
    %v740 = vpop.f32.mrf.mxu0
    %v741 = vadd.f32 0.0, %v740
    %v742 = vpop.f32.mrf.mxu0
    %v743 = vadd.f32 0.0, %v742
    %v744 = vpop.f32.mrf.mxu0
    %v745 = vadd.f32 0.0, %v744
    %v746 = vpop.f32.mrf.mxu0
    %v747 = vadd.f32 0.0, %v746
    %748 = vmatprep.mubr.bf16.mxu0 %v545
    %749 = vmatmul.mubr.bf16.gmra.mxu0 %v274
    %v750 = vpop.f32.mrf.mxu0
    %v751 = vadd.f32 0.0, %v750
    %v752 = vpop.f32.mrf.mxu0
    %v753 = vadd.f32 0.0, %v752
    %v754 = vpop.f32.mrf.mxu0
    %v755 = vadd.f32 0.0, %v754
    %v756 = vpop.f32.mrf.mxu0
    %v757 = vadd.f32 0.0, %v756
    %758 = vmatprep.mubr.bf16.mxu0 %v548
    %759 = vmatmul.mubr.bf16.gmra.mxu0 %v276
    %v760 = vpop.f32.mrf.mxu0
    %v761 = vadd.f32 0.0, %v760
    %v762 = vpop.f32.mrf.mxu0
    %v763 = vadd.f32 0.0, %v762
    %v764 = vpop.f32.mrf.mxu0
    %v765 = vadd.f32 0.0, %v764
    %v766 = vpop.f32.mrf.mxu0
    %v767 = vadd.f32 0.0, %v766
    %768 = vmatprep.mubr.bf16.mxu0 %v551
    %769 = vmatmul.mubr.bf16.gmra.mxu0 %v278
    %v770 = vpop.f32.mrf.mxu0
    %v771 = vadd.f32 0.0, %v770
    %v772 = vpop.f32.mrf.mxu0
    %v773 = vadd.f32 0.0, %v772
    %v774 = vpop.f32.mrf.mxu0
    %v775 = vadd.f32 0.0, %v774
    %v776 = vpop.f32.mrf.mxu0
    %v777 = vadd.f32 0.0, %v776
    %778 = vdwg.mxu0
    %v779 = vpack.c.bf16 %v592, %v588
    %v780 = vpack.c.bf16 %v594, %v590
    %v781 = vpack.c.bf16 %v705, %v701
    %v782 = vpack.c.bf16 %v707, %v703
    %v783 = vpack.c.bf16 %v602, %v598
    %v784 = vpack.c.bf16 %v604, %v600
    %v785 = vpack.c.bf16 %v715, %v711
    %v786 = vpack.c.bf16 %v717, %v713
    %v787 = vpack.c.bf16 %v612, %v608
    %v788 = vpack.c.bf16 %v614, %v610
    %v789 = vpack.c.bf16 %v725, %v721
    %v790 = vpack.c.bf16 %v727, %v723
    %v791 = vpack.c.bf16 %v622, %v618
    %v792 = vpack.c.bf16 %v624, %v620
    %v793 = vpack.c.bf16 %v735, %v731
    %v794 = vpack.c.bf16 %v737, %v733
    %v795 = vpack.c.bf16 %v632, %v628
    %v796 = vpack.c.bf16 %v634, %v630
    %v797 = vpack.c.bf16 %v745, %v741
    %v798 = vpack.c.bf16 %v747, %v743
    %v799 = vpack.c.bf16 %v642, %v638
    %v800 = vpack.c.bf16 %v644, %v640
    %v801 = vpack.c.bf16 %v755, %v751
    %v802 = vpack.c.bf16 %v757, %v753
    %v803 = vpack.c.bf16 %v652, %v648
    %v804 = vpack.c.bf16 %v654, %v650
    %v805 = vpack.c.bf16 %v765, %v761
    %v806 = vpack.c.bf16 %v767, %v763
    %v807 = vpack.c.bf16 %v662, %v658
    %v808 = vpack.c.bf16 %v664, %v660
    %v809 = vpack.c.bf16 %v775, %v771
    %v810 = vpack.c.bf16 %v777, %v773
    %v811 = vld [vmem:[%s5] sm:$0xf]
    %v812 = vld [vmem:[%s5 + $0x4] sm:$0xf]
    %v813 = vld [vmem:[%s5 + $0x8] sm:$0xf]
    %v814 = vld [vmem:[%s5 + $0xc] sm:$0xf]
    %v815 = vld [vmem:[%s5 + $0x10] sm:$0xf]
    %v816 = vld [vmem:[%s5 + $0x14] sm:$0xf]
    %v817 = vld [vmem:[%s5 + $0x18] sm:$0xf]
    %v818 = vld [vmem:[%s5 + $0x1c] sm:$0xf]
    %v827 = vunpack.c.l.b16 %v811
    %v828 = vunpack.c.l.b16 %v812
    %v829 = vunpack.c.l.b16 %v813
    %v830 = vunpack.c.l.b16 %v814
    %v831 = vunpack.c.l.b16 %v815
    %v832 = vunpack.c.l.b16 %v816
    %v833 = vunpack.c.l.b16 %v817
    %v834 = vunpack.c.l.b16 %v818
    %v835 = vpack.c.b16 %v828, %v827
    %v836 = vpack.c.b16 %v830, %v829
    %v837 = vpack.c.b16 %v832, %v831
    %v838 = vpack.c.b16 %v834, %v833
    %843 = vmatprep.subr.bf16.mxu0 %v808
    %844 = vmatpush1.bf16.msra.mxu0 %v807
    %845 = vmatprep.subr.bf16.mxu0 %v804
    %846 = vmatpush1.bf16.msra.mxu0 %v803
    %847 = vmatprep.subr.bf16.mxu0 %v800
    %848 = vmatpush1.bf16.msra.mxu0 %v799
    %849 = vmatprep.subr.bf16.mxu0 %v796
    %850 = vmatpush1.bf16.msra.mxu0 %v795
    %851 = vmatprep.subr.bf16.mxu0 %v792
    %852 = vmatpush1.bf16.msra.mxu0 %v791
    %853 = vmatprep.subr.bf16.mxu0 %v788
    %854 = vmatpush1.bf16.msra.mxu0 %v787
    %855 = vmatprep.subr.bf16.mxu0 %v784
    %856 = vmatpush1.bf16.msra.mxu0 %v783
    %857 = vmatprep.subr.bf16.mxu0 %v780
    %858 = vmatpush1.bf16.msra.mxu0 %v779
    %859 = vmatprep.subr.bf16.mxu0 0
    %860 = vmatpush2.bf16.msra.mxu0 0
    %861 = vmatprep.subr.bf16.mxu0 0
    %862 = vmatpush2.bf16.msra.mxu0 0
    %863 = vmatprep.subr.bf16.mxu0 0
    %864 = vmatpush2.bf16.msra.mxu0 0
    %865 = vmatprep.subr.bf16.mxu0 0
    %866 = vmatpush2.bf16.msra.mxu0 0
    %867 = vmatprep.subr.bf16.mxu0 0
    %868 = vmatpush2.bf16.msra.mxu0 0
    %869 = vmatprep.subr.bf16.mxu0 0
    %870 = vmatpush2.bf16.msra.mxu0 0
    %871 = vmatprep.subr.bf16.mxu0 0
    %872 = vmatpush2.bf16.msra.mxu0 0
    %873 = vmatprep.subr.bf16.mxu0 0
    %874 = vmatpush2.bf16.msra.mxu0 0
    %875 = vmatprep.mubr.bf16.mxu0 0
    %876 = vmatmul.mubr.bf16.gmra.mxu0 %v835
    %v877 = vpop.f32.mrf.mxu0
    %v878 = vadd.f32 0.0, %v877
    %v879 = vpop.f32.mrf.mxu0
    %v880 = vadd.f32 0.0, %v879
    %v881 = vpop.f32.mrf.mxu0
    %v882 = vadd.f32 0.0, %v881
    %v883 = vpop.f32.mrf.mxu0
    %v884 = vadd.f32 0.0, %v883
    %885 = vmatprep.mubr.bf16.mxu0 0
    %886 = vmatmul.mubr.bf16.gmra.mxu0 %v836
    %v887 = vpop.f32.mrf.mxu0
    %v888 = vadd.f32 0.0, %v887
    %v889 = vpop.f32.mrf.mxu0
    %v890 = vadd.f32 0.0, %v889
    %v891 = vpop.f32.mrf.mxu0
    %v892 = vadd.f32 0.0, %v891
    %v893 = vpop.f32.mrf.mxu0
    %v894 = vadd.f32 0.0, %v893
    %895 = vmatprep.mubr.bf16.mxu0 0
    %896 = vmatmul.mubr.bf16.gmra.mxu0 %v837
    %v897 = vpop.f32.mrf.mxu0
    %v898 = vadd.f32 0.0, %v897
    %v899 = vpop.f32.mrf.mxu0
    %v900 = vadd.f32 0.0, %v899
    %v901 = vpop.f32.mrf.mxu0
    %v902 = vadd.f32 0.0, %v901
    %v903 = vpop.f32.mrf.mxu0
    %v904 = vadd.f32 0.0, %v903
    %905 = vmatprep.mubr.bf16.mxu0 0
    %906 = vmatmul.mubr.bf16.gmra.mxu0 %v838
    %v907 = vpop.f32.mrf.mxu0
    %v908 = vadd.f32 0.0, %v907
    %v909 = vpop.f32.mrf.mxu0
    %v910 = vadd.f32 0.0, %v909
    %v911 = vpop.f32.mrf.mxu0
    %v912 = vadd.f32 0.0, %v911
    %v913 = vpop.f32.mrf.mxu0
    %v914 = vadd.f32 0.0, %v913
    %915 = vdwg.mxu0
    %916 = vmatprep.subr.bf16.mxu0 %v810
    %917 = vmatpush1.bf16.msra.mxu0 %v809
    %918 = vmatprep.subr.bf16.mxu0 %v806
    %919 = vmatpush1.bf16.msra.mxu0 %v805
    %920 = vmatprep.subr.bf16.mxu0 %v802
    %921 = vmatpush1.bf16.msra.mxu0 %v801
    %922 = vmatprep.subr.bf16.mxu0 %v798
    %923 = vmatpush1.bf16.msra.mxu0 %v797
    %924 = vmatprep.subr.bf16.mxu0 %v794
    %925 = vmatpush1.bf16.msra.mxu0 %v793
    %926 = vmatprep.subr.bf16.mxu0 %v790
    %927 = vmatpush1.bf16.msra.mxu0 %v789
    %928 = vmatprep.subr.bf16.mxu0 %v786
    %929 = vmatpush1.bf16.msra.mxu0 %v785
    %930 = vmatprep.subr.bf16.mxu0 %v782
    %931 = vmatpush1.bf16.msra.mxu0 %v781
    %932 = vmatprep.subr.bf16.mxu0 0
    %933 = vmatpush2.bf16.msra.mxu0 0
    %934 = vmatprep.subr.bf16.mxu0 0
    %935 = vmatpush2.bf16.msra.mxu0 0
    %936 = vmatprep.subr.bf16.mxu0 0
    %937 = vmatpush2.bf16.msra.mxu0 0
    %938 = vmatprep.subr.bf16.mxu0 0
    %939 = vmatpush2.bf16.msra.mxu0 0
    %940 = vmatprep.subr.bf16.mxu0 0
    %941 = vmatpush2.bf16.msra.mxu0 0
    %942 = vmatprep.subr.bf16.mxu0 0
    %943 = vmatpush2.bf16.msra.mxu0 0
    %944 = vmatprep.subr.bf16.mxu0 0
    %945 = vmatpush2.bf16.msra.mxu0 0
    %946 = vmatprep.subr.bf16.mxu0 0
    %947 = vmatpush2.bf16.msra.mxu0 0
    %948 = vmatprep.mubr.bf16.mxu0 0
    %949 = vmatmul.mubr.bf16.gmra.mxu0 %v835
    %v950 = vpop.f32.mrf.mxu0
    %v951 = vadd.f32 0.0, %v950
    %v952 = vpop.f32.mrf.mxu0
    %v953 = vadd.f32 0.0, %v952
    %v954 = vpop.f32.mrf.mxu0
    %v955 = vadd.f32 0.0, %v954
    %v956 = vpop.f32.mrf.mxu0
    %v957 = vadd.f32 0.0, %v956
    %958 = vmatprep.mubr.bf16.mxu0 0
    %959 = vmatmul.mubr.bf16.gmra.mxu0 %v836
    %v960 = vpop.f32.mrf.mxu0
    %v961 = vadd.f32 0.0, %v960
    %v962 = vpop.f32.mrf.mxu0
    %v963 = vadd.f32 0.0, %v962
    %v964 = vpop.f32.mrf.mxu0
    %v965 = vadd.f32 0.0, %v964
    %v966 = vpop.f32.mrf.mxu0
    %v967 = vadd.f32 0.0, %v966
    %968 = vmatprep.mubr.bf16.mxu0 0
    %969 = vmatmul.mubr.bf16.gmra.mxu0 %v837
    %v970 = vpop.f32.mrf.mxu0
    %v971 = vadd.f32 0.0, %v970
    %v972 = vpop.f32.mrf.mxu0
    %v973 = vadd.f32 0.0, %v972
    %v974 = vpop.f32.mrf.mxu0
    %v975 = vadd.f32 0.0, %v974
    %v976 = vpop.f32.mrf.mxu0
    %v977 = vadd.f32 0.0, %v976
    %978 = vmatprep.mubr.bf16.mxu0 0
    %979 = vmatmul.mubr.bf16.gmra.mxu0 %v838
    %v980 = vpop.f32.mrf.mxu0
    %v981 = vadd.f32 0.0, %v980
    %v982 = vpop.f32.mrf.mxu0
    %v983 = vadd.f32 0.0, %v982
    %v984 = vpop.f32.mrf.mxu0
    %v985 = vadd.f32 0.0, %v984
    %v986 = vpop.f32.mrf.mxu0
    %v987 = vadd.f32 0.0, %v986
    %988 = vdwg.mxu0
    %v989 = vpack.c.bf16 %v882, %v878
    %v990 = vpack.c.bf16 %v884, %v880
    %v991 = vpack.c.bf16 %v955, %v951
    %v992 = vpack.c.bf16 %v957, %v953
    %v993 = vpack.c.bf16 %v892, %v888
    %v994 = vpack.c.bf16 %v894, %v890
    %v995 = vpack.c.bf16 %v965, %v961
    %v996 = vpack.c.bf16 %v967, %v963
    %v997 = vpack.c.bf16 %v902, %v898
    %v998 = vpack.c.bf16 %v904, %v900
    %v999 = vpack.c.bf16 %v975, %v971
    %v1000 = vpack.c.bf16 %v977, %v973
    %v1001 = vpack.c.bf16 %v912, %v908
    %v1002 = vpack.c.bf16 %v914, %v910
    %v1003 = vpack.c.bf16 %v985, %v981
    %v1004 = vpack.c.bf16 %v987, %v983
    %v1005 = vld [vmem:[%s7] sm:$0xf]
    %v1006 = vld [vmem:[%s7 + $0x4] sm:$0xf]
    %v1007 = vld [vmem:[%s7 + $0x8] sm:$0xf]
    %v1008 = vld [vmem:[%s7 + $0xc] sm:$0xf]
    %v1009 = vld [vmem:[%s7 + $0x10] sm:$0xf]
    %v1010 = vld [vmem:[%s7 + $0x14] sm:$0xf]
    %v1011 = vld [vmem:[%s7 + $0x18] sm:$0xf]
    %v1012 = vld [vmem:[%s7 + $0x1c] sm:$0xf]
    %v1013 = vld [vmem:[%s7 + $0x20] sm:$0xf]
    %v1014 = vld [vmem:[%s7 + $0x24] sm:$0xf]
    %v1015 = vld [vmem:[%s7 + $0x28] sm:$0xf]
    %v1016 = vld [vmem:[%s7 + $0x2c] sm:$0xf]
    %v1017 = vld [vmem:[%s7 + $0x30] sm:$0xf]
    %v1018 = vld [vmem:[%s7 + $0x34] sm:$0xf]
    %v1019 = vld [vmem:[%s7 + $0x38] sm:$0xf]
    %v1020 = vld [vmem:[%s7 + $0x3c] sm:$0xf]
    %v1021 = vld [vmem:[%s7 + $0x40] sm:$0xf]
    %v1022 = vld [vmem:[%s7 + $0x44] sm:$0xf]
    %v1023 = vld [vmem:[%s7 + $0x48] sm:$0xf]
    %v1024 = vld [vmem:[%s7 + $0x4c] sm:$0xf]
    %v1025 = vld [vmem:[%s7 + $0x50] sm:$0xf]
    %v1026 = vld [vmem:[%s7 + $0x54] sm:$0xf]
    %v1027 = vld [vmem:[%s7 + $0x58] sm:$0xf]
    %v1028 = vld [vmem:[%s7 + $0x5c] sm:$0xf]
    %v1029 = vld [vmem:[%s7 + $0x60] sm:$0xf]
    %v1030 = vld [vmem:[%s7 + $0x64] sm:$0xf]
    %v1031 = vld [vmem:[%s7 + $0x68] sm:$0xf]
    %v1032 = vld [vmem:[%s7 + $0x6c] sm:$0xf]
    %v1033 = vld [vmem:[%s7 + $0x70] sm:$0xf]
    %v1034 = vld [vmem:[%s7 + $0x74] sm:$0xf]
    %v1035 = vld [vmem:[%s7 + $0x78] sm:$0xf]
    %v1036 = vld [vmem:[%s7 + $0x7c] sm:$0xf]
    %v1037 = vld [vmem:[%s7 + $0x80] sm:$0xf]
    %v1038 = vld [vmem:[%s7 + $0x84] sm:$0xf]
    %v1039 = vld [vmem:[%s7 + $0x88] sm:$0xf]
    %v1040 = vld [vmem:[%s7 + $0x8c] sm:$0xf]
    %v1041 = vld [vmem:[%s7 + $0x90] sm:$0xf]
    %v1042 = vld [vmem:[%s7 + $0x94] sm:$0xf]
    %v1043 = vld [vmem:[%s7 + $0x98] sm:$0xf]
    %v1044 = vld [vmem:[%s7 + $0x9c] sm:$0xf]
    %v1045 = vld [vmem:[%s7 + $0xa0] sm:$0xf]
    %v1046 = vld [vmem:[%s7 + $0xa4] sm:$0xf]
    %v1047 = vld [vmem:[%s7 + $0xa8] sm:$0xf]
    %v1048 = vld [vmem:[%s7 + $0xac] sm:$0xf]
    %v1049 = vld [vmem:[%s7 + $0xb0] sm:$0xf]
    %v1050 = vld [vmem:[%s7 + $0xb4] sm:$0xf]
    %v1051 = vld [vmem:[%s7 + $0xb8] sm:$0xf]
    %v1052 = vld [vmem:[%s7 + $0xbc] sm:$0xf]
    %v1053 = vld [vmem:[%s7 + $0xc0] sm:$0xf]
    %v1054 = vld [vmem:[%s7 + $0xc4] sm:$0xf]
    %v1055 = vld [vmem:[%s7 + $0xc8] sm:$0xf]
    %v1056 = vld [vmem:[%s7 + $0xcc] sm:$0xf]
    %v1057 = vld [vmem:[%s7 + $0xd0] sm:$0xf]
    %v1058 = vld [vmem:[%s7 + $0xd4] sm:$0xf]
    %v1059 = vld [vmem:[%s7 + $0xd8] sm:$0xf]
    %v1060 = vld [vmem:[%s7 + $0xdc] sm:$0xf]
    %v1061 = vld [vmem:[%s7 + $0xe0] sm:$0xf]
    %v1062 = vld [vmem:[%s7 + $0xe4] sm:$0xf]
    %v1063 = vld [vmem:[%s7 + $0xe8] sm:$0xf]
    %v1064 = vld [vmem:[%s7 + $0xec] sm:$0xf]
    %s1065 = scalar_lea.vmem %s5, 32
    %v1066 = vld [vmem:[%s1065] sm:$0xf]
    %v1067 = vld [vmem:[%s1065 + $0x4] sm:$0xf]
    %v1068 = vld [vmem:[%s1065 + $0x8] sm:$0xf]
    %v1069 = vld [vmem:[%s1065 + $0xc] sm:$0xf]
    %v1070 = vld [vmem:[%s1065 + $0x10] sm:$0xf]
    %v1071 = vld [vmem:[%s1065 + $0x14] sm:$0xf]
    %v1072 = vld [vmem:[%s1065 + $0x18] sm:$0xf]
    %v1073 = vld [vmem:[%s1065 + $0x1c] sm:$0xf]
    %v1082 = vunpack.c.l.b16 %v1066
    %v1083 = vunpack.c.l.b16 %v1067
    %v1084 = vunpack.c.l.b16 %v1068
    %v1085 = vunpack.c.l.b16 %v1069
    %v1086 = vunpack.c.l.b16 %v1070
    %v1087 = vunpack.c.l.b16 %v1071
    %v1088 = vunpack.c.l.b16 %v1072
    %v1089 = vunpack.c.l.b16 %v1073
    %v1090 = vpack.c.b16 %v1083, %v1082
    %v1091 = vpack.c.b16 %v1085, %v1084
    %v1092 = vpack.c.b16 %v1087, %v1086
    %v1093 = vpack.c.b16 %v1089, %v1088
    %1098 = vmatprep.subr.bf16.mxu0 %v808
    %1099 = vmatpush1.bf16.msra.mxu0 %v807
    %1100 = vmatprep.subr.bf16.mxu0 %v804
    %1101 = vmatpush1.bf16.msra.mxu0 %v803
    %1102 = vmatprep.subr.bf16.mxu0 %v800
    %1103 = vmatpush1.bf16.msra.mxu0 %v799
    %1104 = vmatprep.subr.bf16.mxu0 %v796
    %1105 = vmatpush1.bf16.msra.mxu0 %v795
    %1106 = vmatprep.subr.bf16.mxu0 %v792
    %1107 = vmatpush1.bf16.msra.mxu0 %v791
    %1108 = vmatprep.subr.bf16.mxu0 %v788
    %1109 = vmatpush1.bf16.msra.mxu0 %v787
    %1110 = vmatprep.subr.bf16.mxu0 %v784
    %1111 = vmatpush1.bf16.msra.mxu0 %v783
    %1112 = vmatprep.subr.bf16.mxu0 %v780
    %1113 = vmatpush1.bf16.msra.mxu0 %v779
    %1114 = vmatprep.subr.bf16.mxu0 0
    %1115 = vmatpush2.bf16.msra.mxu0 0
    %1116 = vmatprep.subr.bf16.mxu0 0
    %1117 = vmatpush2.bf16.msra.mxu0 0
    %1118 = vmatprep.subr.bf16.mxu0 0
    %1119 = vmatpush2.bf16.msra.mxu0 0
    %1120 = vmatprep.subr.bf16.mxu0 0
    %1121 = vmatpush2.bf16.msra.mxu0 0
    %1122 = vmatprep.subr.bf16.mxu0 0
    %1123 = vmatpush2.bf16.msra.mxu0 0
    %1124 = vmatprep.subr.bf16.mxu0 0
    %1125 = vmatpush2.bf16.msra.mxu0 0
    %1126 = vmatprep.subr.bf16.mxu0 0
    %1127 = vmatpush2.bf16.msra.mxu0 0
    %1128 = vmatprep.subr.bf16.mxu0 0
    %1129 = vmatpush2.bf16.msra.mxu0 0
    %1130 = vmatprep.mubr.bf16.mxu0 0
    %1131 = vmatmul.mubr.bf16.gmra.mxu0 %v1090
    %v1132 = vpop.f32.mrf.mxu0
    %v1133 = vadd.f32 0.0, %v1132
    %v1134 = vpop.f32.mrf.mxu0
    %v1135 = vadd.f32 0.0, %v1134
    %v1136 = vpop.f32.mrf.mxu0
    %v1137 = vadd.f32 0.0, %v1136
    %v1138 = vpop.f32.mrf.mxu0
    %v1139 = vadd.f32 0.0, %v1138
    %1140 = vmatprep.mubr.bf16.mxu0 0
    %1141 = vmatmul.mubr.bf16.gmra.mxu0 %v1091
    %v1142 = vpop.f32.mrf.mxu0
    %v1143 = vadd.f32 0.0, %v1142
    %v1144 = vpop.f32.mrf.mxu0
    %v1145 = vadd.f32 0.0, %v1144
    %v1146 = vpop.f32.mrf.mxu0
    %v1147 = vadd.f32 0.0, %v1146
    %v1148 = vpop.f32.mrf.mxu0
    %v1149 = vadd.f32 0.0, %v1148
    %1150 = vmatprep.mubr.bf16.mxu0 0
    %1151 = vmatmul.mubr.bf16.gmra.mxu0 %v1092
    %v1152 = vpop.f32.mrf.mxu0
    %v1153 = vadd.f32 0.0, %v1152
    %v1154 = vpop.f32.mrf.mxu0
    %v1155 = vadd.f32 0.0, %v1154
    %v1156 = vpop.f32.mrf.mxu0
    %v1157 = vadd.f32 0.0, %v1156
    %v1158 = vpop.f32.mrf.mxu0
    %v1159 = vadd.f32 0.0, %v1158
    %1160 = vmatprep.mubr.bf16.mxu0 0
    %1161 = vmatmul.mubr.bf16.gmra.mxu0 %v1093
    %v1162 = vpop.f32.mrf.mxu0
    %v1163 = vadd.f32 0.0, %v1162
    %v1164 = vpop.f32.mrf.mxu0
    %v1165 = vadd.f32 0.0, %v1164
    %v1166 = vpop.f32.mrf.mxu0
    %v1167 = vadd.f32 0.0, %v1166
    %v1168 = vpop.f32.mrf.mxu0
    %v1169 = vadd.f32 0.0, %v1168
    %1170 = vdwg.mxu0
    %1171 = vmatprep.subr.bf16.mxu0 %v810
    %1172 = vmatpush1.bf16.msra.mxu0 %v809
    %1173 = vmatprep.subr.bf16.mxu0 %v806
    %1174 = vmatpush1.bf16.msra.mxu0 %v805
    %1175 = vmatprep.subr.bf16.mxu0 %v802
    %1176 = vmatpush1.bf16.msra.mxu0 %v801
    %1177 = vmatprep.subr.bf16.mxu0 %v798
    %1178 = vmatpush1.bf16.msra.mxu0 %v797
    %1179 = vmatprep.subr.bf16.mxu0 %v794
    %1180 = vmatpush1.bf16.msra.mxu0 %v793
    %1181 = vmatprep.subr.bf16.mxu0 %v790
    %1182 = vmatpush1.bf16.msra.mxu0 %v789
    %1183 = vmatprep.subr.bf16.mxu0 %v786
    %1184 = vmatpush1.bf16.msra.mxu0 %v785
    %1185 = vmatprep.subr.bf16.mxu0 %v782
    %1186 = vmatpush1.bf16.msra.mxu0 %v781
    %1187 = vmatprep.subr.bf16.mxu0 0
    %1188 = vmatpush2.bf16.msra.mxu0 0
    %1189 = vmatprep.subr.bf16.mxu0 0
    %1190 = vmatpush2.bf16.msra.mxu0 0
    %1191 = vmatprep.subr.bf16.mxu0 0
    %1192 = vmatpush2.bf16.msra.mxu0 0
    %1193 = vmatprep.subr.bf16.mxu0 0
    %1194 = vmatpush2.bf16.msra.mxu0 0
    %1195 = vmatprep.subr.bf16.mxu0 0
    %1196 = vmatpush2.bf16.msra.mxu0 0
    %1197 = vmatprep.subr.bf16.mxu0 0
    %1198 = vmatpush2.bf16.msra.mxu0 0
    %1199 = vmatprep.subr.bf16.mxu0 0
    %1200 = vmatpush2.bf16.msra.mxu0 0
    %1201 = vmatprep.subr.bf16.mxu0 0
    %1202 = vmatpush2.bf16.msra.mxu0 0
    %1203 = vmatprep.mubr.bf16.mxu0 0
    %1204 = vmatmul.mubr.bf16.gmra.mxu0 %v1090
    %v1205 = vpop.f32.mrf.mxu0
    %v1206 = vadd.f32 0.0, %v1205
    %v1207 = vpop.f32.mrf.mxu0
    %v1208 = vadd.f32 0.0, %v1207
    %v1209 = vpop.f32.mrf.mxu0
    %v1210 = vadd.f32 0.0, %v1209
    %v1211 = vpop.f32.mrf.mxu0
    %v1212 = vadd.f32 0.0, %v1211
    %1213 = vmatprep.mubr.bf16.mxu0 0
    %1214 = vmatmul.mubr.bf16.gmra.mxu0 %v1091
    %v1215 = vpop.f32.mrf.mxu0
    %v1216 = vadd.f32 0.0, %v1215
    %v1217 = vpop.f32.mrf.mxu0
    %v1218 = vadd.f32 0.0, %v1217
    %v1219 = vpop.f32.mrf.mxu0
    %v1220 = vadd.f32 0.0, %v1219
    %v1221 = vpop.f32.mrf.mxu0
    %v1222 = vadd.f32 0.0, %v1221
    %1223 = vmatprep.mubr.bf16.mxu0 0
    %1224 = vmatmul.mubr.bf16.gmra.mxu0 %v1092
    %v1225 = vpop.f32.mrf.mxu0
    %v1226 = vadd.f32 0.0, %v1225
    %v1227 = vpop.f32.mrf.mxu0
    %v1228 = vadd.f32 0.0, %v1227
    %v1229 = vpop.f32.mrf.mxu0
    %v1230 = vadd.f32 0.0, %v1229
    %v1231 = vpop.f32.mrf.mxu0
    %v1232 = vadd.f32 0.0, %v1231
    %1233 = vmatprep.mubr.bf16.mxu0 0
    %1234 = vmatmul.mubr.bf16.gmra.mxu0 %v1093
    %v1235 = vpop.f32.mrf.mxu0
    %v1236 = vadd.f32 0.0, %v1235
    %v1237 = vpop.f32.mrf.mxu0
    %v1238 = vadd.f32 0.0, %v1237
    %v1239 = vpop.f32.mrf.mxu0
    %v1240 = vadd.f32 0.0, %v1239
    %v1241 = vpop.f32.mrf.mxu0
    %v1242 = vadd.f32 0.0, %v1241
    %1243 = vdwg.mxu0
    %v1244 = vpack.c.bf16 %v1137, %v1133
    %v1245 = vpack.c.bf16 %v1139, %v1135
    %v1246 = vpack.c.bf16 %v1210, %v1206
    %v1247 = vpack.c.bf16 %v1212, %v1208
    %v1248 = vpack.c.bf16 %v1147, %v1143
    %v1249 = vpack.c.bf16 %v1149, %v1145
    %v1250 = vpack.c.bf16 %v1220, %v1216
    %v1251 = vpack.c.bf16 %v1222, %v1218
    %v1252 = vpack.c.bf16 %v1157, %v1153
    %v1253 = vpack.c.bf16 %v1159, %v1155
    %v1254 = vpack.c.bf16 %v1230, %v1226
    %v1255 = vpack.c.bf16 %v1232, %v1228
    %v1256 = vpack.c.bf16 %v1167, %v1163
    %v1257 = vpack.c.bf16 %v1169, %v1165
    %v1258 = vpack.c.bf16 %v1240, %v1236
    %v1259 = vpack.c.bf16 %v1242, %v1238
    %s1260 = scalar_lea.vmem %s7, 240
    %v1261 = vld [vmem:[%s1260] sm:$0xf]
    %v1262 = vld [vmem:[%s1260 + $0x4] sm:$0xf]
    %v1263 = vld [vmem:[%s1260 + $0x8] sm:$0xf]
    %v1264 = vld [vmem:[%s1260 + $0xc] sm:$0xf]
    %v1265 = vld [vmem:[%s1260 + $0x10] sm:$0xf]
    %v1266 = vld [vmem:[%s1260 + $0x14] sm:$0xf]
    %v1267 = vld [vmem:[%s1260 + $0x18] sm:$0xf]
    %v1268 = vld [vmem:[%s1260 + $0x1c] sm:$0xf]
    %v1269 = vld [vmem:[%s1260 + $0x20] sm:$0xf]
    %v1270 = vld [vmem:[%s1260 + $0x24] sm:$0xf]
    %v1271 = vld [vmem:[%s1260 + $0x28] sm:$0xf]
    %v1272 = vld [vmem:[%s1260 + $0x2c] sm:$0xf]
    %v1273 = vld [vmem:[%s1260 + $0x30] sm:$0xf]
    %v1274 = vld [vmem:[%s1260 + $0x34] sm:$0xf]
    %v1275 = vld [vmem:[%s1260 + $0x38] sm:$0xf]
    %v1276 = vld [vmem:[%s1260 + $0x3c] sm:$0xf]
    %v1277 = vld [vmem:[%s1260 + $0x40] sm:$0xf]
    %v1278 = vld [vmem:[%s1260 + $0x44] sm:$0xf]
    %v1279 = vld [vmem:[%s1260 + $0x48] sm:$0xf]
    %v1280 = vld [vmem:[%s1260 + $0x4c] sm:$0xf]
    %v1281 = vld [vmem:[%s1260 + $0x50] sm:$0xf]
    %v1282 = vld [vmem:[%s1260 + $0x54] sm:$0xf]
    %v1283 = vld [vmem:[%s1260 + $0x58] sm:$0xf]
    %v1284 = vld [vmem:[%s1260 + $0x5c] sm:$0xf]
    %v1285 = vld [vmem:[%s1260 + $0x60] sm:$0xf]
    %v1286 = vld [vmem:[%s1260 + $0x64] sm:$0xf]
    %v1287 = vld [vmem:[%s1260 + $0x68] sm:$0xf]
    %v1288 = vld [vmem:[%s1260 + $0x6c] sm:$0xf]
    %v1289 = vld [vmem:[%s1260 + $0x70] sm:$0xf]
    %v1290 = vld [vmem:[%s1260 + $0x74] sm:$0xf]
    %v1291 = vld [vmem:[%s1260 + $0x78] sm:$0xf]
    %v1292 = vld [vmem:[%s1260 + $0x7c] sm:$0xf]
    %v1293 = vld [vmem:[%s1260 + $0x80] sm:$0xf]
    %v1294 = vld [vmem:[%s1260 + $0x84] sm:$0xf]
    %v1295 = vld [vmem:[%s1260 + $0x88] sm:$0xf]
    %v1296 = vld [vmem:[%s1260 + $0x8c] sm:$0xf]
    %v1297 = vld [vmem:[%s1260 + $0x90] sm:$0xf]
    %v1298 = vld [vmem:[%s1260 + $0x94] sm:$0xf]
    %v1299 = vld [vmem:[%s1260 + $0x98] sm:$0xf]
    %v1300 = vld [vmem:[%s1260 + $0x9c] sm:$0xf]
    %v1301 = vld [vmem:[%s1260 + $0xa0] sm:$0xf]
    %v1302 = vld [vmem:[%s1260 + $0xa4] sm:$0xf]
    %v1303 = vld [vmem:[%s1260 + $0xa8] sm:$0xf]
    %v1304 = vld [vmem:[%s1260 + $0xac] sm:$0xf]
    %v1305 = vld [vmem:[%s1260 + $0xb0] sm:$0xf]
    %v1306 = vld [vmem:[%s1260 + $0xb4] sm:$0xf]
    %v1307 = vld [vmem:[%s1260 + $0xb8] sm:$0xf]
    %v1308 = vld [vmem:[%s1260 + $0xbc] sm:$0xf]
    %v1309 = vld [vmem:[%s1260 + $0xc0] sm:$0xf]
    %v1310 = vld [vmem:[%s1260 + $0xc4] sm:$0xf]
    %v1311 = vld [vmem:[%s1260 + $0xc8] sm:$0xf]
    %v1312 = vld [vmem:[%s1260 + $0xcc] sm:$0xf]
    %v1313 = vld [vmem:[%s1260 + $0xd0] sm:$0xf]
    %v1314 = vld [vmem:[%s1260 + $0xd4] sm:$0xf]
    %v1315 = vld [vmem:[%s1260 + $0xd8] sm:$0xf]
    %v1316 = vld [vmem:[%s1260 + $0xdc] sm:$0xf]
    %v1317 = vld [vmem:[%s1260 + $0xe0] sm:$0xf]
    %v1318 = vld [vmem:[%s1260 + $0xe4] sm:$0xf]
    %v1319 = vld [vmem:[%s1260 + $0xe8] sm:$0xf]
    %v1320 = vld [vmem:[%s1260 + $0xec] sm:$0xf]
    %v1381 = vunpack.c.l.b16 %v1261
    %v1382 = vunpack.c.l.b16 %v1262
    %v1383 = vunpack.c.l.b16 %v1263
    %v1384 = vunpack.c.l.b16 %v1264
    %v1385 = vunpack.c.l.b16 %v1265
    %v1386 = vunpack.c.l.b16 %v1266
    %v1387 = vunpack.c.l.b16 %v1267
    %v1388 = vunpack.c.l.b16 %v1268
    %v1389 = vunpack.c.l.b16 %v1269
    %v1390 = vunpack.c.l.b16 %v1270
    %v1391 = vunpack.c.l.b16 %v1271
    %v1392 = vunpack.c.l.b16 %v1272
    %v1393 = vunpack.c.l.b16 %v1273
    %v1394 = vunpack.c.l.b16 %v1274
    %v1395 = vunpack.c.l.b16 %v1275
    %v1396 = vunpack.c.l.b16 %v1276
    %v1397 = vunpack.c.l.b16 %v1277
    %v1398 = vunpack.c.l.b16 %v1278
    %v1399 = vunpack.c.l.b16 %v1279
    %v1400 = vunpack.c.l.b16 %v1280
    %v1401 = vunpack.c.l.b16 %v1281
    %v1402 = vunpack.c.l.b16 %v1282
    %v1403 = vunpack.c.l.b16 %v1283
    %v1404 = vunpack.c.l.b16 %v1284
    %v1405 = vunpack.c.l.b16 %v1285
    %v1406 = vunpack.c.l.b16 %v1286
    %v1407 = vunpack.c.l.b16 %v1287
    %v1408 = vunpack.c.l.b16 %v1288
    %v1409 = vunpack.c.l.b16 %v1289
    %v1410 = vunpack.c.l.b16 %v1290
    %v1411 = vunpack.c.l.b16 %v1291
    %v1412 = vunpack.c.l.b16 %v1292
    %v1413 = vunpack.c.l.b16 %v1293
    %v1414 = vunpack.c.l.b16 %v1294
    %v1415 = vunpack.c.l.b16 %v1295
    %v1416 = vunpack.c.l.b16 %v1296
    %v1417 = vunpack.c.l.b16 %v1297
    %v1418 = vunpack.c.l.b16 %v1298
    %v1419 = vunpack.c.l.b16 %v1299
    %v1420 = vunpack.c.l.b16 %v1300
    %v1421 = vunpack.c.l.b16 %v1301
    %v1422 = vunpack.c.l.b16 %v1302
    %v1423 = vunpack.c.l.b16 %v1303
    %v1424 = vunpack.c.l.b16 %v1304
    %v1425 = vunpack.c.l.b16 %v1305
    %v1426 = vunpack.c.l.b16 %v1306
    %v1427 = vunpack.c.l.b16 %v1307
    %v1428 = vunpack.c.l.b16 %v1308
    %v1429 = vunpack.c.l.b16 %v1309
    %v1430 = vunpack.c.l.b16 %v1310
    %v1431 = vunpack.c.l.b16 %v1311
    %v1432 = vunpack.c.l.b16 %v1312
    %v1433 = vunpack.c.l.b16 %v1313
    %v1434 = vunpack.c.l.b16 %v1314
    %v1435 = vunpack.c.l.b16 %v1315
    %v1436 = vunpack.c.l.b16 %v1316
    %v1437 = vunpack.c.l.b16 %v1317
    %v1438 = vunpack.c.l.b16 %v1318
    %v1439 = vunpack.c.l.b16 %v1319
    %v1440 = vunpack.c.l.b16 %v1320
    %v1441 = vpack.c.b16 %v1382, %v1381
    %v1442 = vpack.c.b16 %v1384, %v1383
    %v1443 = vpack.c.b16 %v1386, %v1385
    %v1444 = vpack.c.b16 %v1388, %v1387
    %v1445 = vpack.c.b16 %v1390, %v1389
    %v1446 = vpack.c.b16 %v1392, %v1391
    %v1447 = vpack.c.b16 %v1394, %v1393
    %v1448 = vpack.c.b16 %v1396, %v1395
    %v1449 = vpack.c.b16 %v1398, %v1397
    %v1450 = vpack.c.b16 %v1400, %v1399
    %v1451 = vpack.c.b16 %v1402, %v1401
    %v1452 = vpack.c.b16 %v1404, %v1403
    %v1453 = vpack.c.b16 %v1406, %v1405
    %v1454 = vpack.c.b16 %v1408, %v1407
    %v1455 = vpack.c.b16 %v1410, %v1409
    %v1456 = vpack.c.b16 %v1412, %v1411
    %v1457 = vpack.c.b16 %v1414, %v1413
    %v1458 = vpack.c.b16 %v1416, %v1415
    %v1459 = vpack.c.b16 %v1418, %v1417
    %v1460 = vpack.c.b16 %v1420, %v1419
    %v1461 = vpack.c.b16 %v1422, %v1421
    %v1462 = vpack.c.b16 %v1424, %v1423
    %v1463 = vpack.c.b16 %v1426, %v1425
    %v1464 = vpack.c.b16 %v1428, %v1427
    %v1465 = vpack.c.b16 %v1430, %v1429
    %v1466 = vpack.c.b16 %v1432, %v1431
    %v1467 = vpack.c.b16 %v1434, %v1433
    %v1468 = vpack.c.b16 %v1436, %v1435
    %v1469 = vpack.c.b16 %v1438, %v1437
    %v1470 = vpack.c.b16 %v1440, %v1439
    %vm1501 = vcmask 785408
    %v1503 = vsel %vm1501, %v1247, 0
    %v1506 = vsel %vm1501, %v1251, 0
    %v1509 = vsel %vm1501, %v1255, 0
    %v1512 = vsel %vm1501, %v1259, 0
    %1514 = vmatprep.subr.bf16.mxu0 0
    %1515 = vmatpush1.bf16.msra.mxu0 %v1448
    %1516 = vmatprep.subr.bf16.mxu0 0
    %1517 = vmatpush1.bf16.msra.mxu0 %v1447
    %1518 = vmatprep.subr.bf16.mxu0 0
    %1519 = vmatpush1.bf16.msra.mxu0 %v1446
    %1520 = vmatprep.subr.bf16.mxu0 0
    %1521 = vmatpush1.bf16.msra.mxu0 %v1445
    %1522 = vmatprep.subr.bf16.mxu0 0
    %1523 = vmatpush1.bf16.msra.mxu0 %v1444
    %1524 = vmatprep.subr.bf16.mxu0 0
    %1525 = vmatpush1.bf16.msra.mxu0 %v1443
    %1526 = vmatprep.subr.bf16.mxu0 0
    %1527 = vmatpush1.bf16.msra.mxu0 %v1442
    %1528 = vmatprep.subr.bf16.mxu0 0
    %1529 = vmatpush1.bf16.msra.mxu0 %v1441
    %1530 = vmatprep.subr.bf16.mxu0 0
    %1531 = vmatpush2.bf16.msra.mxu0 %v1456
    %1532 = vmatprep.subr.bf16.mxu0 0
    %1533 = vmatpush2.bf16.msra.mxu0 %v1455
    %1534 = vmatprep.subr.bf16.mxu0 0
    %1535 = vmatpush2.bf16.msra.mxu0 %v1454
    %1536 = vmatprep.subr.bf16.mxu0 0
    %1537 = vmatpush2.bf16.msra.mxu0 %v1453
    %1538 = vmatprep.subr.bf16.mxu0 0
    %1539 = vmatpush2.bf16.msra.mxu0 %v1452
    %1540 = vmatprep.subr.bf16.mxu0 0
    %1541 = vmatpush2.bf16.msra.mxu0 %v1451
    %1542 = vmatprep.subr.bf16.mxu0 0
    %1543 = vmatpush2.bf16.msra.mxu0 %v1450
    %1544 = vmatprep.subr.bf16.mxu0 0
    %1545 = vmatpush2.bf16.msra.mxu0 %v1449
    %1546 = vmatprep.mubr.bf16.mxu0 %v1245
    %1547 = vmatmul.mubr.bf16.gmra.mxu0 %v1244
    %v1548 = vpop.f32.mrf.mxu0
    %v1549 = vadd.f32 0.0, %v1548
    %v1550 = vpop.f32.mrf.mxu0
    %v1551 = vpop.f32.mrf.mxu0
    %v1552 = vadd.f32 0.0, %v1551
    %v1553 = vpop.f32.mrf.mxu0
    %1554 = vmatprep.mubr.bf16.mxu0 %v1249
    %1555 = vmatmul.mubr.bf16.gmra.mxu0 %v1248
    %v1556 = vpop.f32.mrf.mxu0
    %v1557 = vadd.f32 0.0, %v1556
    %v1558 = vpop.f32.mrf.mxu0
    %v1559 = vpop.f32.mrf.mxu0
    %v1560 = vadd.f32 0.0, %v1559
    %v1561 = vpop.f32.mrf.mxu0
    %1562 = vmatprep.mubr.bf16.mxu0 %v1253
    %1563 = vmatmul.mubr.bf16.gmra.mxu0 %v1252
    %v1564 = vpop.f32.mrf.mxu0
    %v1565 = vadd.f32 0.0, %v1564
    %v1566 = vpop.f32.mrf.mxu0
    %v1567 = vpop.f32.mrf.mxu0
    %v1568 = vadd.f32 0.0, %v1567
    %v1569 = vpop.f32.mrf.mxu0
    %1570 = vmatprep.mubr.bf16.mxu0 %v1257
    %1571 = vmatmul.mubr.bf16.gmra.mxu0 %v1256
    %v1572 = vpop.f32.mrf.mxu0
    %v1573 = vadd.f32 0.0, %v1572
    %v1574 = vpop.f32.mrf.mxu0
    %v1575 = vpop.f32.mrf.mxu0
    %v1576 = vadd.f32 0.0, %v1575
    %v1577 = vpop.f32.mrf.mxu0
    %1578 = vdwg.mxu0
    %1579 = vmatprep.subr.bf16.mxu0 0
    %1580 = vmatpush1.bf16.msra.mxu0 %v1464
    %1581 = vmatprep.subr.bf16.mxu0 0
    %1582 = vmatpush1.bf16.msra.mxu0 %v1463
    %1583 = vmatprep.subr.bf16.mxu0 0
    %1584 = vmatpush1.bf16.msra.mxu0 %v1462
    %1585 = vmatprep.subr.bf16.mxu0 0
    %1586 = vmatpush1.bf16.msra.mxu0 %v1461
    %1587 = vmatprep.subr.bf16.mxu0 0
    %1588 = vmatpush1.bf16.msra.mxu0 %v1460
    %1589 = vmatprep.subr.bf16.mxu0 0
    %1590 = vmatpush1.bf16.msra.mxu0 %v1459
    %1591 = vmatprep.subr.bf16.mxu0 0
    %1592 = vmatpush1.bf16.msra.mxu0 %v1458
    %1593 = vmatprep.subr.bf16.mxu0 0
    %1594 = vmatpush1.bf16.msra.mxu0 %v1457
    %1595 = vmatprep.subr.bf16.mxu0 0
    %1596 = vmatpush2.bf16.msra.mxu0 0
    %1597 = vmatprep.subr.bf16.mxu0 0
    %1598 = vmatpush2.bf16.msra.mxu0 0
    %1599 = vmatprep.subr.bf16.mxu0 0
    %1600 = vmatpush2.bf16.msra.mxu0 %v1470
    %1601 = vmatprep.subr.bf16.mxu0 0
    %1602 = vmatpush2.bf16.msra.mxu0 %v1469
    %1603 = vmatprep.subr.bf16.mxu0 0
    %1604 = vmatpush2.bf16.msra.mxu0 %v1468
    %1605 = vmatprep.subr.bf16.mxu0 0
    %1606 = vmatpush2.bf16.msra.mxu0 %v1467
    %1607 = vmatprep.subr.bf16.mxu0 0
    %1608 = vmatpush2.bf16.msra.mxu0 %v1466
    %1609 = vmatprep.subr.bf16.mxu0 0
    %1610 = vmatpush2.bf16.msra.mxu0 %v1465
    %1611 = vmatprep.mubr.bf16.mxu0 %v1503
    %1612 = vmatmul.mubr.bf16.gmra.mxu0 %v1246
    %v1613 = vpop.f32.mrf.mxu0
    %v1614 = vadd.f32 %v1549, %v1613
    %v1615 = vpop.f32.mrf.mxu0
    %v1616 = vpop.f32.mrf.mxu0
    %v1617 = vadd.f32 %v1552, %v1616
    %v1618 = vpop.f32.mrf.mxu0
    %1619 = vmatprep.mubr.bf16.mxu0 %v1506
    %1620 = vmatmul.mubr.bf16.gmra.mxu0 %v1250
    %v1621 = vpop.f32.mrf.mxu0
    %v1622 = vadd.f32 %v1557, %v1621
    %v1623 = vpop.f32.mrf.mxu0
    %v1624 = vpop.f32.mrf.mxu0
    %v1625 = vadd.f32 %v1560, %v1624
    %v1626 = vpop.f32.mrf.mxu0
    %1627 = vmatprep.mubr.bf16.mxu0 %v1509
    %1628 = vmatmul.mubr.bf16.gmra.mxu0 %v1254
    %v1629 = vpop.f32.mrf.mxu0
    %v1630 = vadd.f32 %v1565, %v1629
    %v1631 = vpop.f32.mrf.mxu0
    %v1632 = vpop.f32.mrf.mxu0
    %v1633 = vadd.f32 %v1568, %v1632
    %v1634 = vpop.f32.mrf.mxu0
    %1635 = vmatprep.mubr.bf16.mxu0 %v1512
    %1636 = vmatmul.mubr.bf16.gmra.mxu0 %v1258
    %v1637 = vpop.f32.mrf.mxu0
    %v1638 = vadd.f32 %v1573, %v1637
    %v1639 = vpop.f32.mrf.mxu0
    %v1640 = vpop.f32.mrf.mxu0
    %v1641 = vadd.f32 %v1576, %v1640
    %v1642 = vpop.f32.mrf.mxu0
    %1643 = vdwg.mxu0
    %v1704 = vunpack.c.l.b16 %v1005
    %v1705 = vunpack.c.l.b16 %v1006
    %v1706 = vunpack.c.l.b16 %v1007
    %v1707 = vunpack.c.l.b16 %v1008
    %v1708 = vunpack.c.l.b16 %v1009
    %v1709 = vunpack.c.l.b16 %v1010
    %v1710 = vunpack.c.l.b16 %v1011
    %v1711 = vunpack.c.l.b16 %v1012
    %v1712 = vunpack.c.l.b16 %v1013
    %v1713 = vunpack.c.l.b16 %v1014
    %v1714 = vunpack.c.l.b16 %v1015
    %v1715 = vunpack.c.l.b16 %v1016
    %v1716 = vunpack.c.l.b16 %v1017
    %v1717 = vunpack.c.l.b16 %v1018
    %v1718 = vunpack.c.l.b16 %v1019
    %v1719 = vunpack.c.l.b16 %v1020
    %v1720 = vunpack.c.l.b16 %v1021
    %v1721 = vunpack.c.l.b16 %v1022
    %v1722 = vunpack.c.l.b16 %v1023
    %v1723 = vunpack.c.l.b16 %v1024
    %v1724 = vunpack.c.l.b16 %v1025
    %v1725 = vunpack.c.l.b16 %v1026
    %v1726 = vunpack.c.l.b16 %v1027
    %v1727 = vunpack.c.l.b16 %v1028
    %v1728 = vunpack.c.l.b16 %v1029
    %v1729 = vunpack.c.l.b16 %v1030
    %v1730 = vunpack.c.l.b16 %v1031
    %v1731 = vunpack.c.l.b16 %v1032
    %v1732 = vunpack.c.l.b16 %v1033
    %v1733 = vunpack.c.l.b16 %v1034
    %v1734 = vunpack.c.l.b16 %v1035
    %v1735 = vunpack.c.l.b16 %v1036
    %v1736 = vunpack.c.l.b16 %v1037
    %v1737 = vunpack.c.l.b16 %v1038
    %v1738 = vunpack.c.l.b16 %v1039
    %v1739 = vunpack.c.l.b16 %v1040
    %v1740 = vunpack.c.l.b16 %v1041
    %v1741 = vunpack.c.l.b16 %v1042
    %v1742 = vunpack.c.l.b16 %v1043
    %v1743 = vunpack.c.l.b16 %v1044
    %v1744 = vunpack.c.l.b16 %v1045
    %v1745 = vunpack.c.l.b16 %v1046
    %v1746 = vunpack.c.l.b16 %v1047
    %v1747 = vunpack.c.l.b16 %v1048
    %v1748 = vunpack.c.l.b16 %v1049
    %v1749 = vunpack.c.l.b16 %v1050
    %v1750 = vunpack.c.l.b16 %v1051
    %v1751 = vunpack.c.l.b16 %v1052
    %v1752 = vunpack.c.l.b16 %v1053
    %v1753 = vunpack.c.l.b16 %v1054
    %v1754 = vunpack.c.l.b16 %v1055
    %v1755 = vunpack.c.l.b16 %v1056
    %v1756 = vunpack.c.l.b16 %v1057
    %v1757 = vunpack.c.l.b16 %v1058
    %v1758 = vunpack.c.l.b16 %v1059
    %v1759 = vunpack.c.l.b16 %v1060
    %v1760 = vunpack.c.l.b16 %v1061
    %v1761 = vunpack.c.l.b16 %v1062
    %v1762 = vunpack.c.l.b16 %v1063
    %v1763 = vunpack.c.l.b16 %v1064
    %v1764 = vpack.c.b16 %v1705, %v1704
    %v1765 = vpack.c.b16 %v1707, %v1706
    %v1766 = vpack.c.b16 %v1709, %v1708
    %v1767 = vpack.c.b16 %v1711, %v1710
    %v1768 = vpack.c.b16 %v1713, %v1712
    %v1769 = vpack.c.b16 %v1715, %v1714
    %v1770 = vpack.c.b16 %v1717, %v1716
    %v1771 = vpack.c.b16 %v1719, %v1718
    %v1772 = vpack.c.b16 %v1721, %v1720
    %v1773 = vpack.c.b16 %v1723, %v1722
    %v1774 = vpack.c.b16 %v1725, %v1724
    %v1775 = vpack.c.b16 %v1727, %v1726
    %v1776 = vpack.c.b16 %v1729, %v1728
    %v1777 = vpack.c.b16 %v1731, %v1730
    %v1778 = vpack.c.b16 %v1733, %v1732
    %v1779 = vpack.c.b16 %v1735, %v1734
    %v1780 = vpack.c.b16 %v1737, %v1736
    %v1781 = vpack.c.b16 %v1739, %v1738
    %v1782 = vpack.c.b16 %v1741, %v1740
    %v1783 = vpack.c.b16 %v1743, %v1742
    %v1784 = vpack.c.b16 %v1745, %v1744
    %v1785 = vpack.c.b16 %v1747, %v1746
    %v1786 = vpack.c.b16 %v1749, %v1748
    %v1787 = vpack.c.b16 %v1751, %v1750
    %v1788 = vpack.c.b16 %v1753, %v1752
    %v1789 = vpack.c.b16 %v1755, %v1754
    %v1790 = vpack.c.b16 %v1757, %v1756
    %v1791 = vpack.c.b16 %v1759, %v1758
    %v1792 = vpack.c.b16 %v1761, %v1760
    %v1793 = vpack.c.b16 %v1763, %v1762
    %v1825 = vsel %vm1501, %v992, 0
    %v1828 = vsel %vm1501, %v996, 0
    %v1831 = vsel %vm1501, %v1000, 0
    %v1834 = vsel %vm1501, %v1004, 0
    %1836 = vmatprep.subr.bf16.mxu0 0
    %1837 = vmatpush1.bf16.msra.mxu0 %v1771
    %1838 = vmatprep.subr.bf16.mxu0 0
    %1839 = vmatpush1.bf16.msra.mxu0 %v1770
    %1840 = vmatprep.subr.bf16.mxu0 0
    %1841 = vmatpush1.bf16.msra.mxu0 %v1769
    %1842 = vmatprep.subr.bf16.mxu0 0
    %1843 = vmatpush1.bf16.msra.mxu0 %v1768
    %1844 = vmatprep.subr.bf16.mxu0 0
    %1845 = vmatpush1.bf16.msra.mxu0 %v1767
    %1846 = vmatprep.subr.bf16.mxu0 0
    %1847 = vmatpush1.bf16.msra.mxu0 %v1766
    %1848 = vmatprep.subr.bf16.mxu0 0
    %1849 = vmatpush1.bf16.msra.mxu0 %v1765
    %1850 = vmatprep.subr.bf16.mxu0 0
    %1851 = vmatpush1.bf16.msra.mxu0 %v1764
    %1852 = vmatprep.subr.bf16.mxu0 0
    %1853 = vmatpush2.bf16.msra.mxu0 %v1779
    %1854 = vmatprep.subr.bf16.mxu0 0
    %1855 = vmatpush2.bf16.msra.mxu0 %v1778
    %1856 = vmatprep.subr.bf16.mxu0 0
    %1857 = vmatpush2.bf16.msra.mxu0 %v1777
    %1858 = vmatprep.subr.bf16.mxu0 0
    %1859 = vmatpush2.bf16.msra.mxu0 %v1776
    %1860 = vmatprep.subr.bf16.mxu0 0
    %1861 = vmatpush2.bf16.msra.mxu0 %v1775
    %1862 = vmatprep.subr.bf16.mxu0 0
    %1863 = vmatpush2.bf16.msra.mxu0 %v1774
    %1864 = vmatprep.subr.bf16.mxu0 0
    %1865 = vmatpush2.bf16.msra.mxu0 %v1773
    %1866 = vmatprep.subr.bf16.mxu0 0
    %1867 = vmatpush2.bf16.msra.mxu0 %v1772
    %1868 = vmatprep.mubr.bf16.mxu0 %v990
    %1869 = vmatmul.mubr.bf16.gmra.mxu0 %v989
    %v1870 = vpop.f32.mrf.mxu0
    %v1871 = vadd.f32 %v1614, %v1870
    %v1872 = vpop.f32.mrf.mxu0
    %v1873 = vpop.f32.mrf.mxu0
    %v1874 = vadd.f32 %v1617, %v1873
    %v1875 = vpop.f32.mrf.mxu0
    %1876 = vmatprep.mubr.bf16.mxu0 %v994
    %1877 = vmatmul.mubr.bf16.gmra.mxu0 %v993
    %v1878 = vpop.f32.mrf.mxu0
    %v1879 = vadd.f32 %v1622, %v1878
    %v1880 = vpop.f32.mrf.mxu0
    %v1881 = vpop.f32.mrf.mxu0
    %v1882 = vadd.f32 %v1625, %v1881
    %v1883 = vpop.f32.mrf.mxu0
    %1884 = vmatprep.mubr.bf16.mxu0 %v998
    %1885 = vmatmul.mubr.bf16.gmra.mxu0 %v997
    %v1886 = vpop.f32.mrf.mxu0
    %v1887 = vadd.f32 %v1630, %v1886
    %v1888 = vpop.f32.mrf.mxu0
    %v1889 = vpop.f32.mrf.mxu0
    %v1890 = vadd.f32 %v1633, %v1889
    %v1891 = vpop.f32.mrf.mxu0
    %1892 = vmatprep.mubr.bf16.mxu0 %v1002
    %1893 = vmatmul.mubr.bf16.gmra.mxu0 %v1001
    %v1894 = vpop.f32.mrf.mxu0
    %v1895 = vadd.f32 %v1638, %v1894
    %v1896 = vpop.f32.mrf.mxu0
    %v1897 = vpop.f32.mrf.mxu0
    %v1898 = vadd.f32 %v1641, %v1897
    %v1899 = vpop.f32.mrf.mxu0
    %1900 = vdwg.mxu0
    %1901 = vmatprep.subr.bf16.mxu0 0
    %1902 = vmatpush1.bf16.msra.mxu0 %v1787
    %1903 = vmatprep.subr.bf16.mxu0 0
    %1904 = vmatpush1.bf16.msra.mxu0 %v1786
    %1905 = vmatprep.subr.bf16.mxu0 0
    %1906 = vmatpush1.bf16.msra.mxu0 %v1785
    %1907 = vmatprep.subr.bf16.mxu0 0
    %1908 = vmatpush1.bf16.msra.mxu0 %v1784
    %1909 = vmatprep.subr.bf16.mxu0 0
    %1910 = vmatpush1.bf16.msra.mxu0 %v1783
    %1911 = vmatprep.subr.bf16.mxu0 0
    %1912 = vmatpush1.bf16.msra.mxu0 %v1782
    %1913 = vmatprep.subr.bf16.mxu0 0
    %1914 = vmatpush1.bf16.msra.mxu0 %v1781
    %1915 = vmatprep.subr.bf16.mxu0 0
    %1916 = vmatpush1.bf16.msra.mxu0 %v1780
    %1917 = vmatprep.subr.bf16.mxu0 0
    %1918 = vmatpush2.bf16.msra.mxu0 0
    %1919 = vmatprep.subr.bf16.mxu0 0
    %1920 = vmatpush2.bf16.msra.mxu0 0
    %1921 = vmatprep.subr.bf16.mxu0 0
    %1922 = vmatpush2.bf16.msra.mxu0 %v1793
    %1923 = vmatprep.subr.bf16.mxu0 0
    %1924 = vmatpush2.bf16.msra.mxu0 %v1792
    %1925 = vmatprep.subr.bf16.mxu0 0
    %1926 = vmatpush2.bf16.msra.mxu0 %v1791
    %1927 = vmatprep.subr.bf16.mxu0 0
    %1928 = vmatpush2.bf16.msra.mxu0 %v1790
    %1929 = vmatprep.subr.bf16.mxu0 0
    %1930 = vmatpush2.bf16.msra.mxu0 %v1789
    %1931 = vmatprep.subr.bf16.mxu0 0
    %1932 = vmatpush2.bf16.msra.mxu0 %v1788
    %1933 = vmatprep.mubr.bf16.mxu0 %v1825
    %1934 = vmatmul.mubr.bf16.gmra.mxu0 %v991
    %v1935 = vpop.f32.mrf.mxu0
    %v1936 = vadd.f32 %v1871, %v1935
    %v1937 = vpop.f32.mrf.mxu0
    %v1938 = vpop.f32.mrf.mxu0
    %v1939 = vadd.f32 %v1874, %v1938
    %v1940 = vpop.f32.mrf.mxu0
    %1941 = vmatprep.mubr.bf16.mxu0 %v1828
    %1942 = vmatmul.mubr.bf16.gmra.mxu0 %v995
    %v1943 = vpop.f32.mrf.mxu0
    %v1944 = vadd.f32 %v1879, %v1943
    %v1945 = vpop.f32.mrf.mxu0
    %v1946 = vpop.f32.mrf.mxu0
    %v1947 = vadd.f32 %v1882, %v1946
    %v1948 = vpop.f32.mrf.mxu0
    %1949 = vmatprep.mubr.bf16.mxu0 %v1831
    %1950 = vmatmul.mubr.bf16.gmra.mxu0 %v999
    %v1951 = vpop.f32.mrf.mxu0
    %v1952 = vadd.f32 %v1887, %v1951
    %v1953 = vpop.f32.mrf.mxu0
    %v1954 = vpop.f32.mrf.mxu0
    %v1955 = vadd.f32 %v1890, %v1954
    %v1956 = vpop.f32.mrf.mxu0
    %1957 = vmatprep.mubr.bf16.mxu0 %v1834
    %1958 = vmatmul.mubr.bf16.gmra.mxu0 %v1003
    %v1959 = vpop.f32.mrf.mxu0
    %v1960 = vadd.f32 %v1895, %v1959
    %v1961 = vpop.f32.mrf.mxu0
    %v1962 = vpop.f32.mrf.mxu0
    %v1963 = vadd.f32 %v1898, %v1962
    %v1964 = vpop.f32.mrf.mxu0
    %1965 = vdwg.mxu0
    %s1966 = scalar_lea.vmem %s5, 64
    %v1967 = vld [vmem:[%s1966] sm:$0xf]
    %v1968 = vld [vmem:[%s1966 + $0x4] sm:$0xf]
    %v1969 = vld [vmem:[%s1966 + $0x8] sm:$0xf]
    %v1970 = vld [vmem:[%s1966 + $0xc] sm:$0xf]
    %v1971 = vld [vmem:[%s1966 + $0x10] sm:$0xf]
    %v1972 = vld [vmem:[%s1966 + $0x14] sm:$0xf]
    %v1973 = vld [vmem:[%s1966 + $0x18] sm:$0xf]
    %v1974 = vld [vmem:[%s1966 + $0x1c] sm:$0xf]
    %v1983 = vunpack.c.l.b16 %v1967
    %v1984 = vunpack.c.l.b16 %v1968
    %v1985 = vunpack.c.l.b16 %v1969
    %v1986 = vunpack.c.l.b16 %v1970
    %v1987 = vunpack.c.l.b16 %v1971
    %v1988 = vunpack.c.l.b16 %v1972
    %v1989 = vunpack.c.l.b16 %v1973
    %v1990 = vunpack.c.l.b16 %v1974
    %v1991 = vpack.c.b16 %v1984, %v1983
    %v1992 = vpack.c.b16 %v1986, %v1985
    %v1993 = vpack.c.b16 %v1988, %v1987
    %v1994 = vpack.c.b16 %v1990, %v1989
    %1999 = vmatprep.subr.bf16.mxu0 %v808
    %2000 = vmatpush1.bf16.msra.mxu0 %v807
    %2001 = vmatprep.subr.bf16.mxu0 %v804
    %2002 = vmatpush1.bf16.msra.mxu0 %v803
    %2003 = vmatprep.subr.bf16.mxu0 %v800
    %2004 = vmatpush1.bf16.msra.mxu0 %v799
    %2005 = vmatprep.subr.bf16.mxu0 %v796
    %2006 = vmatpush1.bf16.msra.mxu0 %v795
    %2007 = vmatprep.subr.bf16.mxu0 %v792
    %2008 = vmatpush1.bf16.msra.mxu0 %v791
    %2009 = vmatprep.subr.bf16.mxu0 %v788
    %2010 = vmatpush1.bf16.msra.mxu0 %v787
    %2011 = vmatprep.subr.bf16.mxu0 %v784
    %2012 = vmatpush1.bf16.msra.mxu0 %v783
    %2013 = vmatprep.subr.bf16.mxu0 %v780
    %2014 = vmatpush1.bf16.msra.mxu0 %v779
    %2015 = vmatprep.subr.bf16.mxu0 0
    %2016 = vmatpush2.bf16.msra.mxu0 0
    %2017 = vmatprep.subr.bf16.mxu0 0
    %2018 = vmatpush2.bf16.msra.mxu0 0
    %2019 = vmatprep.subr.bf16.mxu0 0
    %2020 = vmatpush2.bf16.msra.mxu0 0
    %2021 = vmatprep.subr.bf16.mxu0 0
    %2022 = vmatpush2.bf16.msra.mxu0 0
    %2023 = vmatprep.subr.bf16.mxu0 0
    %2024 = vmatpush2.bf16.msra.mxu0 0
    %2025 = vmatprep.subr.bf16.mxu0 0
    %2026 = vmatpush2.bf16.msra.mxu0 0
    %2027 = vmatprep.subr.bf16.mxu0 0
    %2028 = vmatpush2.bf16.msra.mxu0 0
    %2029 = vmatprep.subr.bf16.mxu0 0
    %2030 = vmatpush2.bf16.msra.mxu0 0
    %2031 = vmatprep.mubr.bf16.mxu0 0
    %2032 = vmatmul.mubr.bf16.gmra.mxu0 %v1991
    %v2033 = vpop.f32.mrf.mxu0
    %v2034 = vadd.f32 0.0, %v2033
    %v2035 = vpop.f32.mrf.mxu0
    %v2036 = vadd.f32 0.0, %v2035
    %v2037 = vpop.f32.mrf.mxu0
    %v2038 = vadd.f32 0.0, %v2037
    %v2039 = vpop.f32.mrf.mxu0
    %v2040 = vadd.f32 0.0, %v2039
    %2041 = vmatprep.mubr.bf16.mxu0 0
    %2042 = vmatmul.mubr.bf16.gmra.mxu0 %v1992
    %v2043 = vpop.f32.mrf.mxu0
    %v2044 = vadd.f32 0.0, %v2043
    %v2045 = vpop.f32.mrf.mxu0
    %v2046 = vadd.f32 0.0, %v2045
    %v2047 = vpop.f32.mrf.mxu0
    %v2048 = vadd.f32 0.0, %v2047
    %v2049 = vpop.f32.mrf.mxu0
    %v2050 = vadd.f32 0.0, %v2049
    %2051 = vmatprep.mubr.bf16.mxu0 0
    %2052 = vmatmul.mubr.bf16.gmra.mxu0 %v1993
    %v2053 = vpop.f32.mrf.mxu0
    %v2054 = vadd.f32 0.0, %v2053
    %v2055 = vpop.f32.mrf.mxu0
    %v2056 = vadd.f32 0.0, %v2055
    %v2057 = vpop.f32.mrf.mxu0
    %v2058 = vadd.f32 0.0, %v2057
    %v2059 = vpop.f32.mrf.mxu0
    %v2060 = vadd.f32 0.0, %v2059
    %2061 = vmatprep.mubr.bf16.mxu0 0
    %2062 = vmatmul.mubr.bf16.gmra.mxu0 %v1994
    %v2063 = vpop.f32.mrf.mxu0
    %v2064 = vadd.f32 0.0, %v2063
    %v2065 = vpop.f32.mrf.mxu0
    %v2066 = vadd.f32 0.0, %v2065
    %v2067 = vpop.f32.mrf.mxu0
    %v2068 = vadd.f32 0.0, %v2067
    %v2069 = vpop.f32.mrf.mxu0
    %v2070 = vadd.f32 0.0, %v2069
    %2071 = vdwg.mxu0
    %2072 = vmatprep.subr.bf16.mxu0 %v810
    %2073 = vmatpush1.bf16.msra.mxu0 %v809
    %2074 = vmatprep.subr.bf16.mxu0 %v806
    %2075 = vmatpush1.bf16.msra.mxu0 %v805
    %2076 = vmatprep.subr.bf16.mxu0 %v802
    %2077 = vmatpush1.bf16.msra.mxu0 %v801
    %2078 = vmatprep.subr.bf16.mxu0 %v798
    %2079 = vmatpush1.bf16.msra.mxu0 %v797
    %2080 = vmatprep.subr.bf16.mxu0 %v794
    %2081 = vmatpush1.bf16.msra.mxu0 %v793
    %2082 = vmatprep.subr.bf16.mxu0 %v790
    %2083 = vmatpush1.bf16.msra.mxu0 %v789
    %2084 = vmatprep.subr.bf16.mxu0 %v786
    %2085 = vmatpush1.bf16.msra.mxu0 %v785
    %2086 = vmatprep.subr.bf16.mxu0 %v782
    %2087 = vmatpush1.bf16.msra.mxu0 %v781
    %2088 = vmatprep.subr.bf16.mxu0 0
    %2089 = vmatpush2.bf16.msra.mxu0 0
    %2090 = vmatprep.subr.bf16.mxu0 0
    %2091 = vmatpush2.bf16.msra.mxu0 0
    %2092 = vmatprep.subr.bf16.mxu0 0
    %2093 = vmatpush2.bf16.msra.mxu0 0
    %2094 = vmatprep.subr.bf16.mxu0 0
    %2095 = vmatpush2.bf16.msra.mxu0 0
    %2096 = vmatprep.subr.bf16.mxu0 0
    %2097 = vmatpush2.bf16.msra.mxu0 0
    %2098 = vmatprep.subr.bf16.mxu0 0
    %2099 = vmatpush2.bf16.msra.mxu0 0
    %2100 = vmatprep.subr.bf16.mxu0 0
    %2101 = vmatpush2.bf16.msra.mxu0 0
    %2102 = vmatprep.subr.bf16.mxu0 0
    %2103 = vmatpush2.bf16.msra.mxu0 0
    %2104 = vmatprep.mubr.bf16.mxu0 0
    %2105 = vmatmul.mubr.bf16.gmra.mxu0 %v1991
    %v2106 = vpop.f32.mrf.mxu0
    %v2107 = vadd.f32 0.0, %v2106
    %v2108 = vpop.f32.mrf.mxu0
    %v2109 = vadd.f32 0.0, %v2108
    %v2110 = vpop.f32.mrf.mxu0
    %v2111 = vadd.f32 0.0, %v2110
    %v2112 = vpop.f32.mrf.mxu0
    %v2113 = vadd.f32 0.0, %v2112
    %2114 = vmatprep.mubr.bf16.mxu0 0
    %2115 = vmatmul.mubr.bf16.gmra.mxu0 %v1992
    %v2116 = vpop.f32.mrf.mxu0
    %v2117 = vadd.f32 0.0, %v2116
    %v2118 = vpop.f32.mrf.mxu0
    %v2119 = vadd.f32 0.0, %v2118
    %v2120 = vpop.f32.mrf.mxu0
    %v2121 = vadd.f32 0.0, %v2120
    %v2122 = vpop.f32.mrf.mxu0
    %v2123 = vadd.f32 0.0, %v2122
    %2124 = vmatprep.mubr.bf16.mxu0 0
    %2125 = vmatmul.mubr.bf16.gmra.mxu0 %v1993
    %v2126 = vpop.f32.mrf.mxu0
    %v2127 = vadd.f32 0.0, %v2126
    %v2128 = vpop.f32.mrf.mxu0
    %v2129 = vadd.f32 0.0, %v2128
    %v2130 = vpop.f32.mrf.mxu0
    %v2131 = vadd.f32 0.0, %v2130
    %v2132 = vpop.f32.mrf.mxu0
    %v2133 = vadd.f32 0.0, %v2132
    %2134 = vmatprep.mubr.bf16.mxu0 0
    %2135 = vmatmul.mubr.bf16.gmra.mxu0 %v1994
    %v2136 = vpop.f32.mrf.mxu0
    %v2137 = vadd.f32 0.0, %v2136
    %v2138 = vpop.f32.mrf.mxu0
    %v2139 = vadd.f32 0.0, %v2138
    %v2140 = vpop.f32.mrf.mxu0
    %v2141 = vadd.f32 0.0, %v2140
    %v2142 = vpop.f32.mrf.mxu0
    %v2143 = vadd.f32 0.0, %v2142
    %2144 = vdwg.mxu0
    %v2145 = vpack.c.bf16 %v2038, %v2034
    %v2146 = vpack.c.bf16 %v2040, %v2036
    %v2147 = vpack.c.bf16 %v2111, %v2107
    %v2148 = vpack.c.bf16 %v2113, %v2109
    %v2149 = vpack.c.bf16 %v2048, %v2044
    %v2150 = vpack.c.bf16 %v2050, %v2046
    %v2151 = vpack.c.bf16 %v2121, %v2117
    %v2152 = vpack.c.bf16 %v2123, %v2119
    %v2153 = vpack.c.bf16 %v2058, %v2054
    %v2154 = vpack.c.bf16 %v2060, %v2056
    %v2155 = vpack.c.bf16 %v2131, %v2127
    %v2156 = vpack.c.bf16 %v2133, %v2129
    %v2157 = vpack.c.bf16 %v2068, %v2064
    %v2158 = vpack.c.bf16 %v2070, %v2066
    %v2159 = vpack.c.bf16 %v2141, %v2137
    %v2160 = vpack.c.bf16 %v2143, %v2139
    %s2161 = scalar_lea.vmem %s7, 480
    %v2162 = vld [vmem:[%s2161] sm:$0xf]
    %v2163 = vld [vmem:[%s2161 + $0x4] sm:$0xf]
    %v2164 = vld [vmem:[%s2161 + $0x8] sm:$0xf]
    %v2165 = vld [vmem:[%s2161 + $0xc] sm:$0xf]
    %v2166 = vld [vmem:[%s2161 + $0x10] sm:$0xf]
    %v2167 = vld [vmem:[%s2161 + $0x14] sm:$0xf]
    %v2168 = vld [vmem:[%s2161 + $0x18] sm:$0xf]
    %v2169 = vld [vmem:[%s2161 + $0x1c] sm:$0xf]
    %v2170 = vld [vmem:[%s2161 + $0x20] sm:$0xf]
    %v2171 = vld [vmem:[%s2161 + $0x24] sm:$0xf]
    %v2172 = vld [vmem:[%s2161 + $0x28] sm:$0xf]
    %v2173 = vld [vmem:[%s2161 + $0x2c] sm:$0xf]
    %v2174 = vld [vmem:[%s2161 + $0x30] sm:$0xf]
    %v2175 = vld [vmem:[%s2161 + $0x34] sm:$0xf]
    %v2176 = vld [vmem:[%s2161 + $0x38] sm:$0xf]
    %v2177 = vld [vmem:[%s2161 + $0x3c] sm:$0xf]
    %v2178 = vld [vmem:[%s2161 + $0x40] sm:$0xf]
    %v2179 = vld [vmem:[%s2161 + $0x44] sm:$0xf]
    %v2180 = vld [vmem:[%s2161 + $0x48] sm:$0xf]
    %v2181 = vld [vmem:[%s2161 + $0x4c] sm:$0xf]
    %v2182 = vld [vmem:[%s2161 + $0x50] sm:$0xf]
    %v2183 = vld [vmem:[%s2161 + $0x54] sm:$0xf]
    %v2184 = vld [vmem:[%s2161 + $0x58] sm:$0xf]
    %v2185 = vld [vmem:[%s2161 + $0x5c] sm:$0xf]
    %v2186 = vld [vmem:[%s2161 + $0x60] sm:$0xf]
    %v2187 = vld [vmem:[%s2161 + $0x64] sm:$0xf]
    %v2188 = vld [vmem:[%s2161 + $0x68] sm:$0xf]
    %v2189 = vld [vmem:[%s2161 + $0x6c] sm:$0xf]
    %v2190 = vld [vmem:[%s2161 + $0x70] sm:$0xf]
    %v2191 = vld [vmem:[%s2161 + $0x74] sm:$0xf]
    %v2192 = vld [vmem:[%s2161 + $0x78] sm:$0xf]
    %v2193 = vld [vmem:[%s2161 + $0x7c] sm:$0xf]
    %v2194 = vld [vmem:[%s2161 + $0x80] sm:$0xf]
    %v2195 = vld [vmem:[%s2161 + $0x84] sm:$0xf]
    %v2196 = vld [vmem:[%s2161 + $0x88] sm:$0xf]
    %v2197 = vld [vmem:[%s2161 + $0x8c] sm:$0xf]
    %v2198 = vld [vmem:[%s2161 + $0x90] sm:$0xf]
    %v2199 = vld [vmem:[%s2161 + $0x94] sm:$0xf]
    %v2200 = vld [vmem:[%s2161 + $0x98] sm:$0xf]
    %v2201 = vld [vmem:[%s2161 + $0x9c] sm:$0xf]
    %v2202 = vld [vmem:[%s2161 + $0xa0] sm:$0xf]
    %v2203 = vld [vmem:[%s2161 + $0xa4] sm:$0xf]
    %v2204 = vld [vmem:[%s2161 + $0xa8] sm:$0xf]
    %v2205 = vld [vmem:[%s2161 + $0xac] sm:$0xf]
    %v2206 = vld [vmem:[%s2161 + $0xb0] sm:$0xf]
    %v2207 = vld [vmem:[%s2161 + $0xb4] sm:$0xf]
    %v2208 = vld [vmem:[%s2161 + $0xb8] sm:$0xf]
    %v2209 = vld [vmem:[%s2161 + $0xbc] sm:$0xf]
    %v2210 = vld [vmem:[%s2161 + $0xc0] sm:$0xf]
    %v2211 = vld [vmem:[%s2161 + $0xc4] sm:$0xf]
    %v2212 = vld [vmem:[%s2161 + $0xc8] sm:$0xf]
    %v2213 = vld [vmem:[%s2161 + $0xcc] sm:$0xf]
    %v2214 = vld [vmem:[%s2161 + $0xd0] sm:$0xf]
    %v2215 = vld [vmem:[%s2161 + $0xd4] sm:$0xf]
    %v2216 = vld [vmem:[%s2161 + $0xd8] sm:$0xf]
    %v2217 = vld [vmem:[%s2161 + $0xdc] sm:$0xf]
    %v2218 = vld [vmem:[%s2161 + $0xe0] sm:$0xf]
    %v2219 = vld [vmem:[%s2161 + $0xe4] sm:$0xf]
    %v2220 = vld [vmem:[%s2161 + $0xe8] sm:$0xf]
    %v2221 = vld [vmem:[%s2161 + $0xec] sm:$0xf]
    %v2282 = vunpack.c.l.b16 %v2162
    %v2283 = vunpack.c.l.b16 %v2163
    %v2284 = vunpack.c.l.b16 %v2164
    %v2285 = vunpack.c.l.b16 %v2165
    %v2286 = vunpack.c.l.b16 %v2166
    %v2287 = vunpack.c.l.b16 %v2167
    %v2288 = vunpack.c.l.b16 %v2168
    %v2289 = vunpack.c.l.b16 %v2169
    %v2290 = vunpack.c.l.b16 %v2170
    %v2291 = vunpack.c.l.b16 %v2171
    %v2292 = vunpack.c.l.b16 %v2172
    %v2293 = vunpack.c.l.b16 %v2173
    %v2294 = vunpack.c.l.b16 %v2174
    %v2295 = vunpack.c.l.b16 %v2175
    %v2296 = vunpack.c.l.b16 %v2176
    %v2297 = vunpack.c.l.b16 %v2177
    %v2298 = vunpack.c.l.b16 %v2178
    %v2299 = vunpack.c.l.b16 %v2179
    %v2300 = vunpack.c.l.b16 %v2180
    %v2301 = vunpack.c.l.b16 %v2181
    %v2302 = vunpack.c.l.b16 %v2182
    %v2303 = vunpack.c.l.b16 %v2183
    %v2304 = vunpack.c.l.b16 %v2184
    %v2305 = vunpack.c.l.b16 %v2185
    %v2306 = vunpack.c.l.b16 %v2186
    %v2307 = vunpack.c.l.b16 %v2187
    %v2308 = vunpack.c.l.b16 %v2188
    %v2309 = vunpack.c.l.b16 %v2189
    %v2310 = vunpack.c.l.b16 %v2190
    %v2311 = vunpack.c.l.b16 %v2191
    %v2312 = vunpack.c.l.b16 %v2192
    %v2313 = vunpack.c.l.b16 %v2193
    %v2314 = vunpack.c.l.b16 %v2194
    %v2315 = vunpack.c.l.b16 %v2195
    %v2316 = vunpack.c.l.b16 %v2196
    %v2317 = vunpack.c.l.b16 %v2197
    %v2318 = vunpack.c.l.b16 %v2198
    %v2319 = vunpack.c.l.b16 %v2199
    %v2320 = vunpack.c.l.b16 %v2200
    %v2321 = vunpack.c.l.b16 %v2201
    %v2322 = vunpack.c.l.b16 %v2202
    %v2323 = vunpack.c.l.b16 %v2203
    %v2324 = vunpack.c.l.b16 %v2204
    %v2325 = vunpack.c.l.b16 %v2205
    %v2326 = vunpack.c.l.b16 %v2206
    %v2327 = vunpack.c.l.b16 %v2207
    %v2328 = vunpack.c.l.b16 %v2208
    %v2329 = vunpack.c.l.b16 %v2209
    %v2330 = vunpack.c.l.b16 %v2210
    %v2331 = vunpack.c.l.b16 %v2211
    %v2332 = vunpack.c.l.b16 %v2212
    %v2333 = vunpack.c.l.b16 %v2213
    %v2334 = vunpack.c.l.b16 %v2214
    %v2335 = vunpack.c.l.b16 %v2215
    %v2336 = vunpack.c.l.b16 %v2216
    %v2337 = vunpack.c.l.b16 %v2217
    %v2338 = vunpack.c.l.b16 %v2218
    %v2339 = vunpack.c.l.b16 %v2219
    %v2340 = vunpack.c.l.b16 %v2220
    %v2341 = vunpack.c.l.b16 %v2221
    %v2342 = vpack.c.b16 %v2283, %v2282
    %v2343 = vpack.c.b16 %v2285, %v2284
    %v2344 = vpack.c.b16 %v2287, %v2286
    %v2345 = vpack.c.b16 %v2289, %v2288
    %v2346 = vpack.c.b16 %v2291, %v2290
    %v2347 = vpack.c.b16 %v2293, %v2292
    %v2348 = vpack.c.b16 %v2295, %v2294
    %v2349 = vpack.c.b16 %v2297, %v2296
    %v2350 = vpack.c.b16 %v2299, %v2298
    %v2351 = vpack.c.b16 %v2301, %v2300
    %v2352 = vpack.c.b16 %v2303, %v2302
    %v2353 = vpack.c.b16 %v2305, %v2304
    %v2354 = vpack.c.b16 %v2307, %v2306
    %v2355 = vpack.c.b16 %v2309, %v2308
    %v2356 = vpack.c.b16 %v2311, %v2310
    %v2357 = vpack.c.b16 %v2313, %v2312
    %v2358 = vpack.c.b16 %v2315, %v2314
    %v2359 = vpack.c.b16 %v2317, %v2316
    %v2360 = vpack.c.b16 %v2319, %v2318
    %v2361 = vpack.c.b16 %v2321, %v2320
    %v2362 = vpack.c.b16 %v2323, %v2322
    %v2363 = vpack.c.b16 %v2325, %v2324
    %v2364 = vpack.c.b16 %v2327, %v2326
    %v2365 = vpack.c.b16 %v2329, %v2328
    %v2366 = vpack.c.b16 %v2331, %v2330
    %v2367 = vpack.c.b16 %v2333, %v2332
    %v2368 = vpack.c.b16 %v2335, %v2334
    %v2369 = vpack.c.b16 %v2337, %v2336
    %v2370 = vpack.c.b16 %v2339, %v2338
    %v2371 = vpack.c.b16 %v2341, %v2340
    %v2403 = vsel %vm1501, %v2148, 0
    %v2406 = vsel %vm1501, %v2152, 0
    %v2409 = vsel %vm1501, %v2156, 0
    %v2412 = vsel %vm1501, %v2160, 0
    %2414 = vmatprep.subr.bf16.mxu0 0
    %2415 = vmatpush1.bf16.msra.mxu0 %v2349
    %2416 = vmatprep.subr.bf16.mxu0 0
    %2417 = vmatpush1.bf16.msra.mxu0 %v2348
    %2418 = vmatprep.subr.bf16.mxu0 0
    %2419 = vmatpush1.bf16.msra.mxu0 %v2347
    %2420 = vmatprep.subr.bf16.mxu0 0
    %2421 = vmatpush1.bf16.msra.mxu0 %v2346
    %2422 = vmatprep.subr.bf16.mxu0 0
    %2423 = vmatpush1.bf16.msra.mxu0 %v2345
    %2424 = vmatprep.subr.bf16.mxu0 0
    %2425 = vmatpush1.bf16.msra.mxu0 %v2344
    %2426 = vmatprep.subr.bf16.mxu0 0
    %2427 = vmatpush1.bf16.msra.mxu0 %v2343
    %2428 = vmatprep.subr.bf16.mxu0 0
    %2429 = vmatpush1.bf16.msra.mxu0 %v2342
    %2430 = vmatprep.subr.bf16.mxu0 0
    %2431 = vmatpush2.bf16.msra.mxu0 %v2357
    %2432 = vmatprep.subr.bf16.mxu0 0
    %2433 = vmatpush2.bf16.msra.mxu0 %v2356
    %2434 = vmatprep.subr.bf16.mxu0 0
    %2435 = vmatpush2.bf16.msra.mxu0 %v2355
    %2436 = vmatprep.subr.bf16.mxu0 0
    %2437 = vmatpush2.bf16.msra.mxu0 %v2354
    %2438 = vmatprep.subr.bf16.mxu0 0
    %2439 = vmatpush2.bf16.msra.mxu0 %v2353
    %2440 = vmatprep.subr.bf16.mxu0 0
    %2441 = vmatpush2.bf16.msra.mxu0 %v2352
    %2442 = vmatprep.subr.bf16.mxu0 0
    %2443 = vmatpush2.bf16.msra.mxu0 %v2351
    %2444 = vmatprep.subr.bf16.mxu0 0
    %2445 = vmatpush2.bf16.msra.mxu0 %v2350
    %2446 = vmatprep.mubr.bf16.mxu0 %v2146
    %2447 = vmatmul.mubr.bf16.gmra.mxu0 %v2145
    %v2448 = vpop.f32.mrf.mxu0
    %v2449 = vadd.f32 0.0, %v2448
    %v2450 = vpop.f32.mrf.mxu0
    %v2451 = vpop.f32.mrf.mxu0
    %v2452 = vadd.f32 0.0, %v2451
    %v2453 = vpop.f32.mrf.mxu0
    %2454 = vmatprep.mubr.bf16.mxu0 %v2150
    %2455 = vmatmul.mubr.bf16.gmra.mxu0 %v2149
    %v2456 = vpop.f32.mrf.mxu0
    %v2457 = vadd.f32 0.0, %v2456
    %v2458 = vpop.f32.mrf.mxu0
    %v2459 = vpop.f32.mrf.mxu0
    %v2460 = vadd.f32 0.0, %v2459
    %v2461 = vpop.f32.mrf.mxu0
    %2462 = vmatprep.mubr.bf16.mxu0 %v2154
    %2463 = vmatmul.mubr.bf16.gmra.mxu0 %v2153
    %v2464 = vpop.f32.mrf.mxu0
    %v2465 = vadd.f32 0.0, %v2464
    %v2466 = vpop.f32.mrf.mxu0
    %v2467 = vpop.f32.mrf.mxu0
    %v2468 = vadd.f32 0.0, %v2467
    %v2469 = vpop.f32.mrf.mxu0
    %2470 = vmatprep.mubr.bf16.mxu0 %v2158
    %2471 = vmatmul.mubr.bf16.gmra.mxu0 %v2157
    %v2472 = vpop.f32.mrf.mxu0
    %v2473 = vadd.f32 0.0, %v2472
    %v2474 = vpop.f32.mrf.mxu0
    %v2475 = vpop.f32.mrf.mxu0
    %v2476 = vadd.f32 0.0, %v2475
    %v2477 = vpop.f32.mrf.mxu0
    %2478 = vdwg.mxu0
    %2479 = vmatprep.subr.bf16.mxu0 0
    %2480 = vmatpush1.bf16.msra.mxu0 %v2365
    %2481 = vmatprep.subr.bf16.mxu0 0
    %2482 = vmatpush1.bf16.msra.mxu0 %v2364
    %2483 = vmatprep.subr.bf16.mxu0 0
    %2484 = vmatpush1.bf16.msra.mxu0 %v2363
    %2485 = vmatprep.subr.bf16.mxu0 0
    %2486 = vmatpush1.bf16.msra.mxu0 %v2362
    %2487 = vmatprep.subr.bf16.mxu0 0
    %2488 = vmatpush1.bf16.msra.mxu0 %v2361
    %2489 = vmatprep.subr.bf16.mxu0 0
    %2490 = vmatpush1.bf16.msra.mxu0 %v2360
    %2491 = vmatprep.subr.bf16.mxu0 0
    %2492 = vmatpush1.bf16.msra.mxu0 %v2359
    %2493 = vmatprep.subr.bf16.mxu0 0
    %2494 = vmatpush1.bf16.msra.mxu0 %v2358
    %2495 = vmatprep.subr.bf16.mxu0 0
    %2496 = vmatpush2.bf16.msra.mxu0 0
    %2497 = vmatprep.subr.bf16.mxu0 0
    %2498 = vmatpush2.bf16.msra.mxu0 0
    %2499 = vmatprep.subr.bf16.mxu0 0
    %2500 = vmatpush2.bf16.msra.mxu0 %v2371
    %2501 = vmatprep.subr.bf16.mxu0 0
    %2502 = vmatpush2.bf16.msra.mxu0 %v2370
    %2503 = vmatprep.subr.bf16.mxu0 0
    %2504 = vmatpush2.bf16.msra.mxu0 %v2369
    %2505 = vmatprep.subr.bf16.mxu0 0
    %2506 = vmatpush2.bf16.msra.mxu0 %v2368
    %2507 = vmatprep.subr.bf16.mxu0 0
    %2508 = vmatpush2.bf16.msra.mxu0 %v2367
    %2509 = vmatprep.subr.bf16.mxu0 0
    %2510 = vmatpush2.bf16.msra.mxu0 %v2366
    %2511 = vmatprep.mubr.bf16.mxu0 %v2403
    %2512 = vmatmul.mubr.bf16.gmra.mxu0 %v2147
    %v2513 = vpop.f32.mrf.mxu0
    %v2514 = vadd.f32 %v2449, %v2513
    %v2515 = vpop.f32.mrf.mxu0
    %v2516 = vpop.f32.mrf.mxu0
    %v2517 = vadd.f32 %v2452, %v2516
    %v2518 = vpop.f32.mrf.mxu0
    %2519 = vmatprep.mubr.bf16.mxu0 %v2406
    %2520 = vmatmul.mubr.bf16.gmra.mxu0 %v2151
    %v2521 = vpop.f32.mrf.mxu0
    %v2522 = vadd.f32 %v2457, %v2521
    %v2523 = vpop.f32.mrf.mxu0
    %v2524 = vpop.f32.mrf.mxu0
    %v2525 = vadd.f32 %v2460, %v2524
    %v2526 = vpop.f32.mrf.mxu0
    %2527 = vmatprep.mubr.bf16.mxu0 %v2409
    %2528 = vmatmul.mubr.bf16.gmra.mxu0 %v2155
    %v2529 = vpop.f32.mrf.mxu0
    %v2530 = vadd.f32 %v2465, %v2529
    %v2531 = vpop.f32.mrf.mxu0
    %v2532 = vpop.f32.mrf.mxu0
    %v2533 = vadd.f32 %v2468, %v2532
    %v2534 = vpop.f32.mrf.mxu0
    %2535 = vmatprep.mubr.bf16.mxu0 %v2412
    %2536 = vmatmul.mubr.bf16.gmra.mxu0 %v2159
    %v2537 = vpop.f32.mrf.mxu0
    %v2538 = vadd.f32 %v2473, %v2537
    %v2539 = vpop.f32.mrf.mxu0
    %v2540 = vpop.f32.mrf.mxu0
    %v2541 = vadd.f32 %v2476, %v2540
    %v2542 = vpop.f32.mrf.mxu0
    %2543 = vdwg.mxu0
    %v2544 = vadd.f32 %v1936, %v2514
    %v2545 = vadd.f32 %v1939, %v2517
    %v2546 = vadd.f32 %v1944, %v2522
    %v2547 = vadd.f32 %v1947, %v2525
    %v2548 = vadd.f32 %v1952, %v2530
    %v2549 = vadd.f32 %v1955, %v2533
    %v2550 = vadd.f32 %v1960, %v2538
    %v2551 = vadd.f32 %v1963, %v2541
    %s2552 = scalar_lea.vmem %s5, 96
    %v2553 = vld [vmem:[%s2552] sm:$0xf]
    %v2554 = vld [vmem:[%s2552 + $0x4] sm:$0xf]
    %v2555 = vld [vmem:[%s2552 + $0x8] sm:$0xf]
    %v2556 = vld [vmem:[%s2552 + $0xc] sm:$0xf]
    %v2557 = vld [vmem:[%s2552 + $0x10] sm:$0xf]
    %v2558 = vld [vmem:[%s2552 + $0x14] sm:$0xf]
    %v2559 = vld [vmem:[%s2552 + $0x18] sm:$0xf]
    %v2560 = vld [vmem:[%s2552 + $0x1c] sm:$0xf]
    %v2569 = vunpack.c.l.b16 %v2553
    %v2570 = vunpack.c.l.b16 %v2554
    %v2571 = vunpack.c.l.b16 %v2555
    %v2572 = vunpack.c.l.b16 %v2556
    %v2573 = vunpack.c.l.b16 %v2557
    %v2574 = vunpack.c.l.b16 %v2558
    %v2575 = vunpack.c.l.b16 %v2559
    %v2576 = vunpack.c.l.b16 %v2560
    %v2577 = vpack.c.b16 %v2570, %v2569
    %v2578 = vpack.c.b16 %v2572, %v2571
    %v2579 = vpack.c.b16 %v2574, %v2573
    %v2580 = vpack.c.b16 %v2576, %v2575
    %2585 = vmatprep.subr.bf16.mxu0 %v808
    %2586 = vmatpush1.bf16.msra.mxu0 %v807
    %2587 = vmatprep.subr.bf16.mxu0 %v804
    %2588 = vmatpush1.bf16.msra.mxu0 %v803
    %2589 = vmatprep.subr.bf16.mxu0 %v800
    %2590 = vmatpush1.bf16.msra.mxu0 %v799
    %2591 = vmatprep.subr.bf16.mxu0 %v796
    %2592 = vmatpush1.bf16.msra.mxu0 %v795
    %2593 = vmatprep.subr.bf16.mxu0 %v792
    %2594 = vmatpush1.bf16.msra.mxu0 %v791
    %2595 = vmatprep.subr.bf16.mxu0 %v788
    %2596 = vmatpush1.bf16.msra.mxu0 %v787
    %2597 = vmatprep.subr.bf16.mxu0 %v784
    %2598 = vmatpush1.bf16.msra.mxu0 %v783
    %2599 = vmatprep.subr.bf16.mxu0 %v780
    %2600 = vmatpush1.bf16.msra.mxu0 %v779
    %2601 = vmatprep.subr.bf16.mxu0 0
    %2602 = vmatpush2.bf16.msra.mxu0 0
    %2603 = vmatprep.subr.bf16.mxu0 0
    %2604 = vmatpush2.bf16.msra.mxu0 0
    %2605 = vmatprep.subr.bf16.mxu0 0
    %2606 = vmatpush2.bf16.msra.mxu0 0
    %2607 = vmatprep.subr.bf16.mxu0 0
    %2608 = vmatpush2.bf16.msra.mxu0 0
    %2609 = vmatprep.subr.bf16.mxu0 0
    %2610 = vmatpush2.bf16.msra.mxu0 0
    %2611 = vmatprep.subr.bf16.mxu0 0
    %2612 = vmatpush2.bf16.msra.mxu0 0
    %2613 = vmatprep.subr.bf16.mxu0 0
    %2614 = vmatpush2.bf16.msra.mxu0 0
    %2615 = vmatprep.subr.bf16.mxu0 0
    %2616 = vmatpush2.bf16.msra.mxu0 0
    %2617 = vmatprep.mubr.bf16.mxu0 0
    %2618 = vmatmul.mubr.bf16.gmra.mxu0 %v2577
    %v2619 = vpop.f32.mrf.mxu0
    %v2620 = vadd.f32 0.0, %v2619
    %v2621 = vpop.f32.mrf.mxu0
    %v2622 = vadd.f32 0.0, %v2621
    %v2623 = vpop.f32.mrf.mxu0
    %v2624 = vadd.f32 0.0, %v2623
    %v2625 = vpop.f32.mrf.mxu0
    %v2626 = vadd.f32 0.0, %v2625
    %2627 = vmatprep.mubr.bf16.mxu0 0
    %2628 = vmatmul.mubr.bf16.gmra.mxu0 %v2578
    %v2629 = vpop.f32.mrf.mxu0
    %v2630 = vadd.f32 0.0, %v2629
    %v2631 = vpop.f32.mrf.mxu0
    %v2632 = vadd.f32 0.0, %v2631
    %v2633 = vpop.f32.mrf.mxu0
    %v2634 = vadd.f32 0.0, %v2633
    %v2635 = vpop.f32.mrf.mxu0
    %v2636 = vadd.f32 0.0, %v2635
    %2637 = vmatprep.mubr.bf16.mxu0 0
    %2638 = vmatmul.mubr.bf16.gmra.mxu0 %v2579
    %v2639 = vpop.f32.mrf.mxu0
    %v2640 = vadd.f32 0.0, %v2639
    %v2641 = vpop.f32.mrf.mxu0
    %v2642 = vadd.f32 0.0, %v2641
    %v2643 = vpop.f32.mrf.mxu0
    %v2644 = vadd.f32 0.0, %v2643
    %v2645 = vpop.f32.mrf.mxu0
    %v2646 = vadd.f32 0.0, %v2645
    %2647 = vmatprep.mubr.bf16.mxu0 0
    %2648 = vmatmul.mubr.bf16.gmra.mxu0 %v2580
    %v2649 = vpop.f32.mrf.mxu0
    %v2650 = vadd.f32 0.0, %v2649
    %v2651 = vpop.f32.mrf.mxu0
    %v2652 = vadd.f32 0.0, %v2651
    %v2653 = vpop.f32.mrf.mxu0
    %v2654 = vadd.f32 0.0, %v2653
    %v2655 = vpop.f32.mrf.mxu0
    %v2656 = vadd.f32 0.0, %v2655
    %2657 = vdwg.mxu0
    %2658 = vmatprep.subr.bf16.mxu0 %v810
    %2659 = vmatpush1.bf16.msra.mxu0 %v809
    %2660 = vmatprep.subr.bf16.mxu0 %v806
    %2661 = vmatpush1.bf16.msra.mxu0 %v805
    %2662 = vmatprep.subr.bf16.mxu0 %v802
    %2663 = vmatpush1.bf16.msra.mxu0 %v801
    %2664 = vmatprep.subr.bf16.mxu0 %v798
    %2665 = vmatpush1.bf16.msra.mxu0 %v797
    %2666 = vmatprep.subr.bf16.mxu0 %v794
    %2667 = vmatpush1.bf16.msra.mxu0 %v793
    %2668 = vmatprep.subr.bf16.mxu0 %v790
    %2669 = vmatpush1.bf16.msra.mxu0 %v789
    %2670 = vmatprep.subr.bf16.mxu0 %v786
    %2671 = vmatpush1.bf16.msra.mxu0 %v785
    %2672 = vmatprep.subr.bf16.mxu0 %v782
    %2673 = vmatpush1.bf16.msra.mxu0 %v781
    %2674 = vmatprep.subr.bf16.mxu0 0
    %2675 = vmatpush2.bf16.msra.mxu0 0
    %2676 = vmatprep.subr.bf16.mxu0 0
    %2677 = vmatpush2.bf16.msra.mxu0 0
    %2678 = vmatprep.subr.bf16.mxu0 0
    %2679 = vmatpush2.bf16.msra.mxu0 0
    %2680 = vmatprep.subr.bf16.mxu0 0
    %2681 = vmatpush2.bf16.msra.mxu0 0
    %2682 = vmatprep.subr.bf16.mxu0 0
    %2683 = vmatpush2.bf16.msra.mxu0 0
    %2684 = vmatprep.subr.bf16.mxu0 0
    %2685 = vmatpush2.bf16.msra.mxu0 0
    %2686 = vmatprep.subr.bf16.mxu0 0
    %2687 = vmatpush2.bf16.msra.mxu0 0
    %2688 = vmatprep.subr.bf16.mxu0 0
    %2689 = vmatpush2.bf16.msra.mxu0 0
    %2690 = vmatprep.mubr.bf16.mxu0 0
    %2691 = vmatmul.mubr.bf16.gmra.mxu0 %v2577
    %v2692 = vpop.f32.mrf.mxu0
    %v2693 = vadd.f32 0.0, %v2692
    %v2694 = vpop.f32.mrf.mxu0
    %v2695 = vadd.f32 0.0, %v2694
    %v2696 = vpop.f32.mrf.mxu0
    %v2697 = vadd.f32 0.0, %v2696
    %v2698 = vpop.f32.mrf.mxu0
    %v2699 = vadd.f32 0.0, %v2698
    %2700 = vmatprep.mubr.bf16.mxu0 0
    %2701 = vmatmul.mubr.bf16.gmra.mxu0 %v2578
    %v2702 = vpop.f32.mrf.mxu0
    %v2703 = vadd.f32 0.0, %v2702
    %v2704 = vpop.f32.mrf.mxu0
    %v2705 = vadd.f32 0.0, %v2704
    %v2706 = vpop.f32.mrf.mxu0
    %v2707 = vadd.f32 0.0, %v2706
    %v2708 = vpop.f32.mrf.mxu0
    %v2709 = vadd.f32 0.0, %v2708
    %2710 = vmatprep.mubr.bf16.mxu0 0
    %2711 = vmatmul.mubr.bf16.gmra.mxu0 %v2579
    %v2712 = vpop.f32.mrf.mxu0
    %v2713 = vadd.f32 0.0, %v2712
    %v2714 = vpop.f32.mrf.mxu0
    %v2715 = vadd.f32 0.0, %v2714
    %v2716 = vpop.f32.mrf.mxu0
    %v2717 = vadd.f32 0.0, %v2716
    %v2718 = vpop.f32.mrf.mxu0
    %v2719 = vadd.f32 0.0, %v2718
    %2720 = vmatprep.mubr.bf16.mxu0 0
    %2721 = vmatmul.mubr.bf16.gmra.mxu0 %v2580
    %v2722 = vpop.f32.mrf.mxu0
    %v2723 = vadd.f32 0.0, %v2722
    %v2724 = vpop.f32.mrf.mxu0
    %v2725 = vadd.f32 0.0, %v2724
    %v2726 = vpop.f32.mrf.mxu0
    %v2727 = vadd.f32 0.0, %v2726
    %v2728 = vpop.f32.mrf.mxu0
    %v2729 = vadd.f32 0.0, %v2728
    %2730 = vdwg.mxu0
    %v2731 = vpack.c.bf16 %v2624, %v2620
    %v2732 = vpack.c.bf16 %v2626, %v2622
    %v2733 = vpack.c.bf16 %v2697, %v2693
    %v2734 = vpack.c.bf16 %v2699, %v2695
    %v2735 = vpack.c.bf16 %v2634, %v2630
    %v2736 = vpack.c.bf16 %v2636, %v2632
    %v2737 = vpack.c.bf16 %v2707, %v2703
    %v2738 = vpack.c.bf16 %v2709, %v2705
    %v2739 = vpack.c.bf16 %v2644, %v2640
    %v2740 = vpack.c.bf16 %v2646, %v2642
    %v2741 = vpack.c.bf16 %v2717, %v2713
    %v2742 = vpack.c.bf16 %v2719, %v2715
    %v2743 = vpack.c.bf16 %v2654, %v2650
    %v2744 = vpack.c.bf16 %v2656, %v2652
    %v2745 = vpack.c.bf16 %v2727, %v2723
    %v2746 = vpack.c.bf16 %v2729, %v2725
    %s2747 = scalar_lea.vmem %s7, 720
    %v2748 = vld [vmem:[%s2747] sm:$0xf]
    %v2749 = vld [vmem:[%s2747 + $0x4] sm:$0xf]
    %v2750 = vld [vmem:[%s2747 + $0x8] sm:$0xf]
    %v2751 = vld [vmem:[%s2747 + $0xc] sm:$0xf]
    %v2752 = vld [vmem:[%s2747 + $0x10] sm:$0xf]
    %v2753 = vld [vmem:[%s2747 + $0x14] sm:$0xf]
    %v2754 = vld [vmem:[%s2747 + $0x18] sm:$0xf]
    %v2755 = vld [vmem:[%s2747 + $0x1c] sm:$0xf]
    %v2756 = vld [vmem:[%s2747 + $0x20] sm:$0xf]
    %v2757 = vld [vmem:[%s2747 + $0x24] sm:$0xf]
    %v2758 = vld [vmem:[%s2747 + $0x28] sm:$0xf]
    %v2759 = vld [vmem:[%s2747 + $0x2c] sm:$0xf]
    %v2760 = vld [vmem:[%s2747 + $0x30] sm:$0xf]
    %v2761 = vld [vmem:[%s2747 + $0x34] sm:$0xf]
    %v2762 = vld [vmem:[%s2747 + $0x38] sm:$0xf]
    %v2763 = vld [vmem:[%s2747 + $0x3c] sm:$0xf]
    %v2764 = vld [vmem:[%s2747 + $0x40] sm:$0xf]
    %v2765 = vld [vmem:[%s2747 + $0x44] sm:$0xf]
    %v2766 = vld [vmem:[%s2747 + $0x48] sm:$0xf]
    %v2767 = vld [vmem:[%s2747 + $0x4c] sm:$0xf]
    %v2768 = vld [vmem:[%s2747 + $0x50] sm:$0xf]
    %v2769 = vld [vmem:[%s2747 + $0x54] sm:$0xf]
    %v2770 = vld [vmem:[%s2747 + $0x58] sm:$0xf]
    %v2771 = vld [vmem:[%s2747 + $0x5c] sm:$0xf]
    %v2772 = vld [vmem:[%s2747 + $0x60] sm:$0xf]
    %v2773 = vld [vmem:[%s2747 + $0x64] sm:$0xf]
    %v2774 = vld [vmem:[%s2747 + $0x68] sm:$0xf]
    %v2775 = vld [vmem:[%s2747 + $0x6c] sm:$0xf]
    %v2776 = vld [vmem:[%s2747 + $0x70] sm:$0xf]
    %v2777 = vld [vmem:[%s2747 + $0x74] sm:$0xf]
    %v2778 = vld [vmem:[%s2747 + $0x78] sm:$0xf]
    %v2779 = vld [vmem:[%s2747 + $0x7c] sm:$0xf]
    %v2780 = vld [vmem:[%s2747 + $0x80] sm:$0xf]
    %v2781 = vld [vmem:[%s2747 + $0x84] sm:$0xf]
    %v2782 = vld [vmem:[%s2747 + $0x88] sm:$0xf]
    %v2783 = vld [vmem:[%s2747 + $0x8c] sm:$0xf]
    %v2784 = vld [vmem:[%s2747 + $0x90] sm:$0xf]
    %v2785 = vld [vmem:[%s2747 + $0x94] sm:$0xf]
    %v2786 = vld [vmem:[%s2747 + $0x98] sm:$0xf]
    %v2787 = vld [vmem:[%s2747 + $0x9c] sm:$0xf]
    %v2788 = vld [vmem:[%s2747 + $0xa0] sm:$0xf]
    %v2789 = vld [vmem:[%s2747 + $0xa4] sm:$0xf]
    %v2790 = vld [vmem:[%s2747 + $0xa8] sm:$0xf]
    %v2791 = vld [vmem:[%s2747 + $0xac] sm:$0xf]
    %v2792 = vld [vmem:[%s2747 + $0xb0] sm:$0xf]
    %v2793 = vld [vmem:[%s2747 + $0xb4] sm:$0xf]
    %v2794 = vld [vmem:[%s2747 + $0xb8] sm:$0xf]
    %v2795 = vld [vmem:[%s2747 + $0xbc] sm:$0xf]
    %v2796 = vld [vmem:[%s2747 + $0xc0] sm:$0xf]
    %v2797 = vld [vmem:[%s2747 + $0xc4] sm:$0xf]
    %v2798 = vld [vmem:[%s2747 + $0xc8] sm:$0xf]
    %v2799 = vld [vmem:[%s2747 + $0xcc] sm:$0xf]
    %v2800 = vld [vmem:[%s2747 + $0xd0] sm:$0xf]
    %v2801 = vld [vmem:[%s2747 + $0xd4] sm:$0xf]
    %v2802 = vld [vmem:[%s2747 + $0xd8] sm:$0xf]
    %v2803 = vld [vmem:[%s2747 + $0xdc] sm:$0xf]
    %v2804 = vld [vmem:[%s2747 + $0xe0] sm:$0xf]
    %v2805 = vld [vmem:[%s2747 + $0xe4] sm:$0xf]
    %v2806 = vld [vmem:[%s2747 + $0xe8] sm:$0xf]
    %v2807 = vld [vmem:[%s2747 + $0xec] sm:$0xf]
    %v2868 = vunpack.c.l.b16 %v2748
    %v2869 = vunpack.c.l.b16 %v2749
    %v2870 = vunpack.c.l.b16 %v2750
    %v2871 = vunpack.c.l.b16 %v2751
    %v2872 = vunpack.c.l.b16 %v2752
    %v2873 = vunpack.c.l.b16 %v2753
    %v2874 = vunpack.c.l.b16 %v2754
    %v2875 = vunpack.c.l.b16 %v2755
    %v2876 = vunpack.c.l.b16 %v2756
    %v2877 = vunpack.c.l.b16 %v2757
    %v2878 = vunpack.c.l.b16 %v2758
    %v2879 = vunpack.c.l.b16 %v2759
    %v2880 = vunpack.c.l.b16 %v2760
    %v2881 = vunpack.c.l.b16 %v2761
    %v2882 = vunpack.c.l.b16 %v2762
    %v2883 = vunpack.c.l.b16 %v2763
    %v2884 = vunpack.c.l.b16 %v2764
    %v2885 = vunpack.c.l.b16 %v2765
    %v2886 = vunpack.c.l.b16 %v2766
    %v2887 = vunpack.c.l.b16 %v2767
    %v2888 = vunpack.c.l.b16 %v2768
    %v2889 = vunpack.c.l.b16 %v2769
    %v2890 = vunpack.c.l.b16 %v2770
    %v2891 = vunpack.c.l.b16 %v2771
    %v2892 = vunpack.c.l.b16 %v2772
    %v2893 = vunpack.c.l.b16 %v2773
    %v2894 = vunpack.c.l.b16 %v2774
    %v2895 = vunpack.c.l.b16 %v2775
    %v2896 = vunpack.c.l.b16 %v2776
    %v2897 = vunpack.c.l.b16 %v2777
    %v2898 = vunpack.c.l.b16 %v2778
    %v2899 = vunpack.c.l.b16 %v2779
    %v2900 = vunpack.c.l.b16 %v2780
    %v2901 = vunpack.c.l.b16 %v2781
    %v2902 = vunpack.c.l.b16 %v2782
    %v2903 = vunpack.c.l.b16 %v2783
    %v2904 = vunpack.c.l.b16 %v2784
    %v2905 = vunpack.c.l.b16 %v2785
    %v2906 = vunpack.c.l.b16 %v2786
    %v2907 = vunpack.c.l.b16 %v2787
    %v2908 = vunpack.c.l.b16 %v2788
    %v2909 = vunpack.c.l.b16 %v2789
    %v2910 = vunpack.c.l.b16 %v2790
    %v2911 = vunpack.c.l.b16 %v2791
    %v2912 = vunpack.c.l.b16 %v2792
    %v2913 = vunpack.c.l.b16 %v2793
    %v2914 = vunpack.c.l.b16 %v2794
    %v2915 = vunpack.c.l.b16 %v2795
    %v2916 = vunpack.c.l.b16 %v2796
    %v2917 = vunpack.c.l.b16 %v2797
    %v2918 = vunpack.c.l.b16 %v2798
    %v2919 = vunpack.c.l.b16 %v2799
    %v2920 = vunpack.c.l.b16 %v2800
    %v2921 = vunpack.c.l.b16 %v2801
    %v2922 = vunpack.c.l.b16 %v2802
    %v2923 = vunpack.c.l.b16 %v2803
    %v2924 = vunpack.c.l.b16 %v2804
    %v2925 = vunpack.c.l.b16 %v2805
    %v2926 = vunpack.c.l.b16 %v2806
    %v2927 = vunpack.c.l.b16 %v2807
    %v2928 = vpack.c.b16 %v2869, %v2868
    %v2929 = vpack.c.b16 %v2871, %v2870
    %v2930 = vpack.c.b16 %v2873, %v2872
    %v2931 = vpack.c.b16 %v2875, %v2874
    %v2932 = vpack.c.b16 %v2877, %v2876
    %v2933 = vpack.c.b16 %v2879, %v2878
    %v2934 = vpack.c.b16 %v2881, %v2880
    %v2935 = vpack.c.b16 %v2883, %v2882
    %v2936 = vpack.c.b16 %v2885, %v2884
    %v2937 = vpack.c.b16 %v2887, %v2886
    %v2938 = vpack.c.b16 %v2889, %v2888
    %v2939 = vpack.c.b16 %v2891, %v2890
    %v2940 = vpack.c.b16 %v2893, %v2892
    %v2941 = vpack.c.b16 %v2895, %v2894
    %v2942 = vpack.c.b16 %v2897, %v2896
    %v2943 = vpack.c.b16 %v2899, %v2898
    %v2944 = vpack.c.b16 %v2901, %v2900
    %v2945 = vpack.c.b16 %v2903, %v2902
    %v2946 = vpack.c.b16 %v2905, %v2904
    %v2947 = vpack.c.b16 %v2907, %v2906
    %v2948 = vpack.c.b16 %v2909, %v2908
    %v2949 = vpack.c.b16 %v2911, %v2910
    %v2950 = vpack.c.b16 %v2913, %v2912
    %v2951 = vpack.c.b16 %v2915, %v2914
    %v2952 = vpack.c.b16 %v2917, %v2916
    %v2953 = vpack.c.b16 %v2919, %v2918
    %v2954 = vpack.c.b16 %v2921, %v2920
    %v2955 = vpack.c.b16 %v2923, %v2922
    %v2956 = vpack.c.b16 %v2925, %v2924
    %v2957 = vpack.c.b16 %v2927, %v2926
    %v2989 = vsel %vm1501, %v2734, 0
    %v2992 = vsel %vm1501, %v2738, 0
    %v2995 = vsel %vm1501, %v2742, 0
    %v2998 = vsel %vm1501, %v2746, 0
    %3000 = vmatprep.subr.bf16.mxu0 0
    %3001 = vmatpush1.bf16.msra.mxu0 %v2935
    %3002 = vmatprep.subr.bf16.mxu0 0
    %3003 = vmatpush1.bf16.msra.mxu0 %v2934
    %3004 = vmatprep.subr.bf16.mxu0 0
    %3005 = vmatpush1.bf16.msra.mxu0 %v2933
    %3006 = vmatprep.subr.bf16.mxu0 0
    %3007 = vmatpush1.bf16.msra.mxu0 %v2932
    %3008 = vmatprep.subr.bf16.mxu0 0
    %3009 = vmatpush1.bf16.msra.mxu0 %v2931
    %3010 = vmatprep.subr.bf16.mxu0 0
    %3011 = vmatpush1.bf16.msra.mxu0 %v2930
    %3012 = vmatprep.subr.bf16.mxu0 0
    %3013 = vmatpush1.bf16.msra.mxu0 %v2929
    %3014 = vmatprep.subr.bf16.mxu0 0
    %3015 = vmatpush1.bf16.msra.mxu0 %v2928
    %3016 = vmatprep.subr.bf16.mxu0 0
    %3017 = vmatpush2.bf16.msra.mxu0 %v2943
    %3018 = vmatprep.subr.bf16.mxu0 0
    %3019 = vmatpush2.bf16.msra.mxu0 %v2942
    %3020 = vmatprep.subr.bf16.mxu0 0
    %3021 = vmatpush2.bf16.msra.mxu0 %v2941
    %3022 = vmatprep.subr.bf16.mxu0 0
    %3023 = vmatpush2.bf16.msra.mxu0 %v2940
    %3024 = vmatprep.subr.bf16.mxu0 0
    %3025 = vmatpush2.bf16.msra.mxu0 %v2939
    %3026 = vmatprep.subr.bf16.mxu0 0
    %3027 = vmatpush2.bf16.msra.mxu0 %v2938
    %3028 = vmatprep.subr.bf16.mxu0 0
    %3029 = vmatpush2.bf16.msra.mxu0 %v2937
    %3030 = vmatprep.subr.bf16.mxu0 0
    %3031 = vmatpush2.bf16.msra.mxu0 %v2936
    %3032 = vmatprep.mubr.bf16.mxu0 %v2732
    %3033 = vmatmul.mubr.bf16.gmra.mxu0 %v2731
    %v3034 = vpop.f32.mrf.mxu0
    %v3035 = vadd.f32 0.0, %v3034
    %v3036 = vpop.f32.mrf.mxu0
    %v3037 = vpop.f32.mrf.mxu0
    %v3038 = vadd.f32 0.0, %v3037
    %v3039 = vpop.f32.mrf.mxu0
    %3040 = vmatprep.mubr.bf16.mxu0 %v2736
    %3041 = vmatmul.mubr.bf16.gmra.mxu0 %v2735
    %v3042 = vpop.f32.mrf.mxu0
    %v3043 = vadd.f32 0.0, %v3042
    %v3044 = vpop.f32.mrf.mxu0
    %v3045 = vpop.f32.mrf.mxu0
    %v3046 = vadd.f32 0.0, %v3045
    %v3047 = vpop.f32.mrf.mxu0
    %3048 = vmatprep.mubr.bf16.mxu0 %v2740
    %3049 = vmatmul.mubr.bf16.gmra.mxu0 %v2739
    %v3050 = vpop.f32.mrf.mxu0
    %v3051 = vadd.f32 0.0, %v3050
    %v3052 = vpop.f32.mrf.mxu0
    %v3053 = vpop.f32.mrf.mxu0
    %v3054 = vadd.f32 0.0, %v3053
    %v3055 = vpop.f32.mrf.mxu0
    %3056 = vmatprep.mubr.bf16.mxu0 %v2744
    %3057 = vmatmul.mubr.bf16.gmra.mxu0 %v2743
    %v3058 = vpop.f32.mrf.mxu0
    %v3059 = vadd.f32 0.0, %v3058
    %v3060 = vpop.f32.mrf.mxu0
    %v3061 = vpop.f32.mrf.mxu0
    %v3062 = vadd.f32 0.0, %v3061
    %v3063 = vpop.f32.mrf.mxu0
    %3064 = vdwg.mxu0
    %3065 = vmatprep.subr.bf16.mxu0 0
    %3066 = vmatpush1.bf16.msra.mxu0 %v2951
    %3067 = vmatprep.subr.bf16.mxu0 0
    %3068 = vmatpush1.bf16.msra.mxu0 %v2950
    %3069 = vmatprep.subr.bf16.mxu0 0
    %3070 = vmatpush1.bf16.msra.mxu0 %v2949
    %3071 = vmatprep.subr.bf16.mxu0 0
    %3072 = vmatpush1.bf16.msra.mxu0 %v2948
    %3073 = vmatprep.subr.bf16.mxu0 0
    %3074 = vmatpush1.bf16.msra.mxu0 %v2947
    %3075 = vmatprep.subr.bf16.mxu0 0
    %3076 = vmatpush1.bf16.msra.mxu0 %v2946
    %3077 = vmatprep.subr.bf16.mxu0 0
    %3078 = vmatpush1.bf16.msra.mxu0 %v2945
    %3079 = vmatprep.subr.bf16.mxu0 0
    %3080 = vmatpush1.bf16.msra.mxu0 %v2944
    %3081 = vmatprep.subr.bf16.mxu0 0
    %3082 = vmatpush2.bf16.msra.mxu0 0
    %3083 = vmatprep.subr.bf16.mxu0 0
    %3084 = vmatpush2.bf16.msra.mxu0 0
    %3085 = vmatprep.subr.bf16.mxu0 0
    %3086 = vmatpush2.bf16.msra.mxu0 %v2957
    %3087 = vmatprep.subr.bf16.mxu0 0
    %3088 = vmatpush2.bf16.msra.mxu0 %v2956
    %3089 = vmatprep.subr.bf16.mxu0 0
    %3090 = vmatpush2.bf16.msra.mxu0 %v2955
    %3091 = vmatprep.subr.bf16.mxu0 0
    %3092 = vmatpush2.bf16.msra.mxu0 %v2954
    %3093 = vmatprep.subr.bf16.mxu0 0
    %3094 = vmatpush2.bf16.msra.mxu0 %v2953
    %3095 = vmatprep.subr.bf16.mxu0 0
    %3096 = vmatpush2.bf16.msra.mxu0 %v2952
    %3097 = vmatprep.mubr.bf16.mxu0 %v2989
    %3098 = vmatmul.mubr.bf16.gmra.mxu0 %v2733
    %v3099 = vpop.f32.mrf.mxu0
    %v3100 = vadd.f32 %v3035, %v3099
    %v3101 = vpop.f32.mrf.mxu0
    %v3102 = vpop.f32.mrf.mxu0
    %v3103 = vadd.f32 %v3038, %v3102
    %v3104 = vpop.f32.mrf.mxu0
    %3105 = vmatprep.mubr.bf16.mxu0 %v2992
    %3106 = vmatmul.mubr.bf16.gmra.mxu0 %v2737
    %v3107 = vpop.f32.mrf.mxu0
    %v3108 = vadd.f32 %v3043, %v3107
    %v3109 = vpop.f32.mrf.mxu0
    %v3110 = vpop.f32.mrf.mxu0
    %v3111 = vadd.f32 %v3046, %v3110
    %v3112 = vpop.f32.mrf.mxu0
    %3113 = vmatprep.mubr.bf16.mxu0 %v2995
    %3114 = vmatmul.mubr.bf16.gmra.mxu0 %v2741
    %v3115 = vpop.f32.mrf.mxu0
    %v3116 = vadd.f32 %v3051, %v3115
    %v3117 = vpop.f32.mrf.mxu0
    %v3118 = vpop.f32.mrf.mxu0
    %v3119 = vadd.f32 %v3054, %v3118
    %v3120 = vpop.f32.mrf.mxu0
    %3121 = vmatprep.mubr.bf16.mxu0 %v2998
    %3122 = vmatmul.mubr.bf16.gmra.mxu0 %v2745
    %v3123 = vpop.f32.mrf.mxu0
    %v3124 = vadd.f32 %v3059, %v3123
    %v3125 = vpop.f32.mrf.mxu0
    %v3126 = vpop.f32.mrf.mxu0
    %v3127 = vadd.f32 %v3062, %v3126
    %v3128 = vpop.f32.mrf.mxu0
    %3129 = vdwg.mxu0
    %v3130 = vadd.f32 %v2544, %v3100
    %v3131 = vadd.f32 %v2545, %v3103
    %v3132 = vadd.f32 %v2546, %v3108
    %v3133 = vadd.f32 %v2547, %v3111
    %v3134 = vadd.f32 %v2548, %v3116
    %v3135 = vadd.f32 %v2549, %v3119
    %v3136 = vadd.f32 %v2550, %v3124
    %v3137 = vadd.f32 %v2551, %v3127
    %s3138 = scalar_lea.vmem %s5, 128
    %v3139 = vld [vmem:[%s3138] sm:$0xf]
    %v3140 = vld [vmem:[%s3138 + $0x4] sm:$0xf]
    %v3141 = vld [vmem:[%s3138 + $0x8] sm:$0xf]
    %v3142 = vld [vmem:[%s3138 + $0xc] sm:$0xf]
    %v3143 = vld [vmem:[%s3138 + $0x10] sm:$0xf]
    %v3144 = vld [vmem:[%s3138 + $0x14] sm:$0xf]
    %v3145 = vld [vmem:[%s3138 + $0x18] sm:$0xf]
    %v3146 = vld [vmem:[%s3138 + $0x1c] sm:$0xf]
    %v3155 = vunpack.c.l.b16 %v3139
    %v3156 = vunpack.c.l.b16 %v3140
    %v3157 = vunpack.c.l.b16 %v3141
    %v3158 = vunpack.c.l.b16 %v3142
    %v3159 = vunpack.c.l.b16 %v3143
    %v3160 = vunpack.c.l.b16 %v3144
    %v3161 = vunpack.c.l.b16 %v3145
    %v3162 = vunpack.c.l.b16 %v3146
    %v3163 = vpack.c.b16 %v3156, %v3155
    %v3164 = vpack.c.b16 %v3158, %v3157
    %v3165 = vpack.c.b16 %v3160, %v3159
    %v3166 = vpack.c.b16 %v3162, %v3161
    %3171 = vmatprep.subr.bf16.mxu0 %v808
    %3172 = vmatpush1.bf16.msra.mxu0 %v807
    %3173 = vmatprep.subr.bf16.mxu0 %v804
    %3174 = vmatpush1.bf16.msra.mxu0 %v803
    %3175 = vmatprep.subr.bf16.mxu0 %v800
    %3176 = vmatpush1.bf16.msra.mxu0 %v799
    %3177 = vmatprep.subr.bf16.mxu0 %v796
    %3178 = vmatpush1.bf16.msra.mxu0 %v795
    %3179 = vmatprep.subr.bf16.mxu0 %v792
    %3180 = vmatpush1.bf16.msra.mxu0 %v791
    %3181 = vmatprep.subr.bf16.mxu0 %v788
    %3182 = vmatpush1.bf16.msra.mxu0 %v787
    %3183 = vmatprep.subr.bf16.mxu0 %v784
    %3184 = vmatpush1.bf16.msra.mxu0 %v783
    %3185 = vmatprep.subr.bf16.mxu0 %v780
    %3186 = vmatpush1.bf16.msra.mxu0 %v779
    %3187 = vmatprep.subr.bf16.mxu0 0
    %3188 = vmatpush2.bf16.msra.mxu0 0
    %3189 = vmatprep.subr.bf16.mxu0 0
    %3190 = vmatpush2.bf16.msra.mxu0 0
    %3191 = vmatprep.subr.bf16.mxu0 0
    %3192 = vmatpush2.bf16.msra.mxu0 0
    %3193 = vmatprep.subr.bf16.mxu0 0
    %3194 = vmatpush2.bf16.msra.mxu0 0
    %3195 = vmatprep.subr.bf16.mxu0 0
    %3196 = vmatpush2.bf16.msra.mxu0 0
    %3197 = vmatprep.subr.bf16.mxu0 0
    %3198 = vmatpush2.bf16.msra.mxu0 0
    %3199 = vmatprep.subr.bf16.mxu0 0
    %3200 = vmatpush2.bf16.msra.mxu0 0
    %3201 = vmatprep.subr.bf16.mxu0 0
    %3202 = vmatpush2.bf16.msra.mxu0 0
    %3203 = vmatprep.mubr.bf16.mxu0 0
    %3204 = vmatmul.mubr.bf16.gmra.mxu0 %v3163
    %v3205 = vpop.f32.mrf.mxu0
    %v3206 = vadd.f32 0.0, %v3205
    %v3207 = vpop.f32.mrf.mxu0
    %v3208 = vadd.f32 0.0, %v3207
    %v3209 = vpop.f32.mrf.mxu0
    %v3210 = vadd.f32 0.0, %v3209
    %v3211 = vpop.f32.mrf.mxu0
    %v3212 = vadd.f32 0.0, %v3211
    %3213 = vmatprep.mubr.bf16.mxu0 0
    %3214 = vmatmul.mubr.bf16.gmra.mxu0 %v3164
    %v3215 = vpop.f32.mrf.mxu0
    %v3216 = vadd.f32 0.0, %v3215
    %v3217 = vpop.f32.mrf.mxu0
    %v3218 = vadd.f32 0.0, %v3217
    %v3219 = vpop.f32.mrf.mxu0
    %v3220 = vadd.f32 0.0, %v3219
    %v3221 = vpop.f32.mrf.mxu0
    %v3222 = vadd.f32 0.0, %v3221
    %3223 = vmatprep.mubr.bf16.mxu0 0
    %3224 = vmatmul.mubr.bf16.gmra.mxu0 %v3165
    %v3225 = vpop.f32.mrf.mxu0
    %v3226 = vadd.f32 0.0, %v3225
    %v3227 = vpop.f32.mrf.mxu0
    %v3228 = vadd.f32 0.0, %v3227
    %v3229 = vpop.f32.mrf.mxu0
    %v3230 = vadd.f32 0.0, %v3229
    %v3231 = vpop.f32.mrf.mxu0
    %v3232 = vadd.f32 0.0, %v3231
    %3233 = vmatprep.mubr.bf16.mxu0 0
    %3234 = vmatmul.mubr.bf16.gmra.mxu0 %v3166
    %v3235 = vpop.f32.mrf.mxu0
    %v3236 = vadd.f32 0.0, %v3235
    %v3237 = vpop.f32.mrf.mxu0
    %v3238 = vadd.f32 0.0, %v3237
    %v3239 = vpop.f32.mrf.mxu0
    %v3240 = vadd.f32 0.0, %v3239
    %v3241 = vpop.f32.mrf.mxu0
    %v3242 = vadd.f32 0.0, %v3241
    %3243 = vdwg.mxu0
    %3244 = vmatprep.subr.bf16.mxu0 %v810
    %3245 = vmatpush1.bf16.msra.mxu0 %v809
    %3246 = vmatprep.subr.bf16.mxu0 %v806
    %3247 = vmatpush1.bf16.msra.mxu0 %v805
    %3248 = vmatprep.subr.bf16.mxu0 %v802
    %3249 = vmatpush1.bf16.msra.mxu0 %v801
    %3250 = vmatprep.subr.bf16.mxu0 %v798
    %3251 = vmatpush1.bf16.msra.mxu0 %v797
    %3252 = vmatprep.subr.bf16.mxu0 %v794
    %3253 = vmatpush1.bf16.msra.mxu0 %v793
    %3254 = vmatprep.subr.bf16.mxu0 %v790
    %3255 = vmatpush1.bf16.msra.mxu0 %v789
    %3256 = vmatprep.subr.bf16.mxu0 %v786
    %3257 = vmatpush1.bf16.msra.mxu0 %v785
    %3258 = vmatprep.subr.bf16.mxu0 %v782
    %3259 = vmatpush1.bf16.msra.mxu0 %v781
    %3260 = vmatprep.subr.bf16.mxu0 0
    %3261 = vmatpush2.bf16.msra.mxu0 0
    %3262 = vmatprep.subr.bf16.mxu0 0
    %3263 = vmatpush2.bf16.msra.mxu0 0
    %3264 = vmatprep.subr.bf16.mxu0 0
    %3265 = vmatpush2.bf16.msra.mxu0 0
    %3266 = vmatprep.subr.bf16.mxu0 0
    %3267 = vmatpush2.bf16.msra.mxu0 0
    %3268 = vmatprep.subr.bf16.mxu0 0
    %3269 = vmatpush2.bf16.msra.mxu0 0
    %3270 = vmatprep.subr.bf16.mxu0 0
    %3271 = vmatpush2.bf16.msra.mxu0 0
    %3272 = vmatprep.subr.bf16.mxu0 0
    %3273 = vmatpush2.bf16.msra.mxu0 0
    %3274 = vmatprep.subr.bf16.mxu0 0
    %3275 = vmatpush2.bf16.msra.mxu0 0
    %3276 = vmatprep.mubr.bf16.mxu0 0
    %3277 = vmatmul.mubr.bf16.gmra.mxu0 %v3163
    %v3278 = vpop.f32.mrf.mxu0
    %v3279 = vadd.f32 0.0, %v3278
    %v3280 = vpop.f32.mrf.mxu0
    %v3281 = vadd.f32 0.0, %v3280
    %v3282 = vpop.f32.mrf.mxu0
    %v3283 = vadd.f32 0.0, %v3282
    %v3284 = vpop.f32.mrf.mxu0
    %v3285 = vadd.f32 0.0, %v3284
    %3286 = vmatprep.mubr.bf16.mxu0 0
    %3287 = vmatmul.mubr.bf16.gmra.mxu0 %v3164
    %v3288 = vpop.f32.mrf.mxu0
    %v3289 = vadd.f32 0.0, %v3288
    %v3290 = vpop.f32.mrf.mxu0
    %v3291 = vadd.f32 0.0, %v3290
    %v3292 = vpop.f32.mrf.mxu0
    %v3293 = vadd.f32 0.0, %v3292
    %v3294 = vpop.f32.mrf.mxu0
    %v3295 = vadd.f32 0.0, %v3294
    %3296 = vmatprep.mubr.bf16.mxu0 0
    %3297 = vmatmul.mubr.bf16.gmra.mxu0 %v3165
    %v3298 = vpop.f32.mrf.mxu0
    %v3299 = vadd.f32 0.0, %v3298
    %v3300 = vpop.f32.mrf.mxu0
    %v3301 = vadd.f32 0.0, %v3300
    %v3302 = vpop.f32.mrf.mxu0
    %v3303 = vadd.f32 0.0, %v3302
    %v3304 = vpop.f32.mrf.mxu0
    %v3305 = vadd.f32 0.0, %v3304
    %3306 = vmatprep.mubr.bf16.mxu0 0
    %3307 = vmatmul.mubr.bf16.gmra.mxu0 %v3166
    %v3308 = vpop.f32.mrf.mxu0
    %v3309 = vadd.f32 0.0, %v3308
    %v3310 = vpop.f32.mrf.mxu0
    %v3311 = vadd.f32 0.0, %v3310
    %v3312 = vpop.f32.mrf.mxu0
    %v3313 = vadd.f32 0.0, %v3312
    %v3314 = vpop.f32.mrf.mxu0
    %v3315 = vadd.f32 0.0, %v3314
    %3316 = vdwg.mxu0
    %v3317 = vpack.c.bf16 %v3210, %v3206
    %v3318 = vpack.c.bf16 %v3212, %v3208
    %v3319 = vpack.c.bf16 %v3283, %v3279
    %v3320 = vpack.c.bf16 %v3285, %v3281
    %v3321 = vpack.c.bf16 %v3220, %v3216
    %v3322 = vpack.c.bf16 %v3222, %v3218
    %v3323 = vpack.c.bf16 %v3293, %v3289
    %v3324 = vpack.c.bf16 %v3295, %v3291
    %v3325 = vpack.c.bf16 %v3230, %v3226
    %v3326 = vpack.c.bf16 %v3232, %v3228
    %v3327 = vpack.c.bf16 %v3303, %v3299
    %v3328 = vpack.c.bf16 %v3305, %v3301
    %v3329 = vpack.c.bf16 %v3240, %v3236
    %v3330 = vpack.c.bf16 %v3242, %v3238
    %v3331 = vpack.c.bf16 %v3313, %v3309
    %v3332 = vpack.c.bf16 %v3315, %v3311
    %s3333 = scalar_lea.vmem %s7, 960
    %v3334 = vld [vmem:[%s3333] sm:$0xf]
    %v3335 = vld [vmem:[%s3333 + $0x4] sm:$0xf]
    %v3336 = vld [vmem:[%s3333 + $0x8] sm:$0xf]
    %v3337 = vld [vmem:[%s3333 + $0xc] sm:$0xf]
    %v3338 = vld [vmem:[%s3333 + $0x10] sm:$0xf]
    %v3339 = vld [vmem:[%s3333 + $0x14] sm:$0xf]
    %v3340 = vld [vmem:[%s3333 + $0x18] sm:$0xf]
    %v3341 = vld [vmem:[%s3333 + $0x1c] sm:$0xf]
    %v3342 = vld [vmem:[%s3333 + $0x20] sm:$0xf]
    %v3343 = vld [vmem:[%s3333 + $0x24] sm:$0xf]
    %v3344 = vld [vmem:[%s3333 + $0x28] sm:$0xf]
    %v3345 = vld [vmem:[%s3333 + $0x2c] sm:$0xf]
    %v3346 = vld [vmem:[%s3333 + $0x30] sm:$0xf]
    %v3347 = vld [vmem:[%s3333 + $0x34] sm:$0xf]
    %v3348 = vld [vmem:[%s3333 + $0x38] sm:$0xf]
    %v3349 = vld [vmem:[%s3333 + $0x3c] sm:$0xf]
    %v3350 = vld [vmem:[%s3333 + $0x40] sm:$0xf]
    %v3351 = vld [vmem:[%s3333 + $0x44] sm:$0xf]
    %v3352 = vld [vmem:[%s3333 + $0x48] sm:$0xf]
    %v3353 = vld [vmem:[%s3333 + $0x4c] sm:$0xf]
    %v3354 = vld [vmem:[%s3333 + $0x50] sm:$0xf]
    %v3355 = vld [vmem:[%s3333 + $0x54] sm:$0xf]
    %v3356 = vld [vmem:[%s3333 + $0x58] sm:$0xf]
    %v3357 = vld [vmem:[%s3333 + $0x5c] sm:$0xf]
    %v3358 = vld [vmem:[%s3333 + $0x60] sm:$0xf]
    %v3359 = vld [vmem:[%s3333 + $0x64] sm:$0xf]
    %v3360 = vld [vmem:[%s3333 + $0x68] sm:$0xf]
    %v3361 = vld [vmem:[%s3333 + $0x6c] sm:$0xf]
    %v3362 = vld [vmem:[%s3333 + $0x70] sm:$0xf]
    %v3363 = vld [vmem:[%s3333 + $0x74] sm:$0xf]
    %v3364 = vld [vmem:[%s3333 + $0x78] sm:$0xf]
    %v3365 = vld [vmem:[%s3333 + $0x7c] sm:$0xf]
    %v3366 = vld [vmem:[%s3333 + $0x80] sm:$0xf]
    %v3367 = vld [vmem:[%s3333 + $0x84] sm:$0xf]
    %v3368 = vld [vmem:[%s3333 + $0x88] sm:$0xf]
    %v3369 = vld [vmem:[%s3333 + $0x8c] sm:$0xf]
    %v3370 = vld [vmem:[%s3333 + $0x90] sm:$0xf]
    %v3371 = vld [vmem:[%s3333 + $0x94] sm:$0xf]
    %v3372 = vld [vmem:[%s3333 + $0x98] sm:$0xf]
    %v3373 = vld [vmem:[%s3333 + $0x9c] sm:$0xf]
    %v3374 = vld [vmem:[%s3333 + $0xa0] sm:$0xf]
    %v3375 = vld [vmem:[%s3333 + $0xa4] sm:$0xf]
    %v3376 = vld [vmem:[%s3333 + $0xa8] sm:$0xf]
    %v3377 = vld [vmem:[%s3333 + $0xac] sm:$0xf]
    %v3378 = vld [vmem:[%s3333 + $0xb0] sm:$0xf]
    %v3379 = vld [vmem:[%s3333 + $0xb4] sm:$0xf]
    %v3380 = vld [vmem:[%s3333 + $0xb8] sm:$0xf]
    %v3381 = vld [vmem:[%s3333 + $0xbc] sm:$0xf]
    %v3382 = vld [vmem:[%s3333 + $0xc0] sm:$0xf]
    %v3383 = vld [vmem:[%s3333 + $0xc4] sm:$0xf]
    %v3384 = vld [vmem:[%s3333 + $0xc8] sm:$0xf]
    %v3385 = vld [vmem:[%s3333 + $0xcc] sm:$0xf]
    %v3386 = vld [vmem:[%s3333 + $0xd0] sm:$0xf]
    %v3387 = vld [vmem:[%s3333 + $0xd4] sm:$0xf]
    %v3388 = vld [vmem:[%s3333 + $0xd8] sm:$0xf]
    %v3389 = vld [vmem:[%s3333 + $0xdc] sm:$0xf]
    %v3390 = vld [vmem:[%s3333 + $0xe0] sm:$0xf]
    %v3391 = vld [vmem:[%s3333 + $0xe4] sm:$0xf]
    %v3392 = vld [vmem:[%s3333 + $0xe8] sm:$0xf]
    %v3393 = vld [vmem:[%s3333 + $0xec] sm:$0xf]
    %v3454 = vunpack.c.l.b16 %v3334
    %v3455 = vunpack.c.l.b16 %v3335
    %v3456 = vunpack.c.l.b16 %v3336
    %v3457 = vunpack.c.l.b16 %v3337
    %v3458 = vunpack.c.l.b16 %v3338
    %v3459 = vunpack.c.l.b16 %v3339
    %v3460 = vunpack.c.l.b16 %v3340
    %v3461 = vunpack.c.l.b16 %v3341
    %v3462 = vunpack.c.l.b16 %v3342
    %v3463 = vunpack.c.l.b16 %v3343
    %v3464 = vunpack.c.l.b16 %v3344
    %v3465 = vunpack.c.l.b16 %v3345
    %v3466 = vunpack.c.l.b16 %v3346
    %v3467 = vunpack.c.l.b16 %v3347
    %v3468 = vunpack.c.l.b16 %v3348
    %v3469 = vunpack.c.l.b16 %v3349
    %v3470 = vunpack.c.l.b16 %v3350
    %v3471 = vunpack.c.l.b16 %v3351
    %v3472 = vunpack.c.l.b16 %v3352
    %v3473 = vunpack.c.l.b16 %v3353
    %v3474 = vunpack.c.l.b16 %v3354
    %v3475 = vunpack.c.l.b16 %v3355
    %v3476 = vunpack.c.l.b16 %v3356
    %v3477 = vunpack.c.l.b16 %v3357
    %v3478 = vunpack.c.l.b16 %v3358
    %v3479 = vunpack.c.l.b16 %v3359
    %v3480 = vunpack.c.l.b16 %v3360
    %v3481 = vunpack.c.l.b16 %v3361
    %v3482 = vunpack.c.l.b16 %v3362
    %v3483 = vunpack.c.l.b16 %v3363
    %v3484 = vunpack.c.l.b16 %v3364
    %v3485 = vunpack.c.l.b16 %v3365
    %v3486 = vunpack.c.l.b16 %v3366
    %v3487 = vunpack.c.l.b16 %v3367
    %v3488 = vunpack.c.l.b16 %v3368
    %v3489 = vunpack.c.l.b16 %v3369
    %v3490 = vunpack.c.l.b16 %v3370
    %v3491 = vunpack.c.l.b16 %v3371
    %v3492 = vunpack.c.l.b16 %v3372
    %v3493 = vunpack.c.l.b16 %v3373
    %v3494 = vunpack.c.l.b16 %v3374
    %v3495 = vunpack.c.l.b16 %v3375
    %v3496 = vunpack.c.l.b16 %v3376
    %v3497 = vunpack.c.l.b16 %v3377
    %v3498 = vunpack.c.l.b16 %v3378
    %v3499 = vunpack.c.l.b16 %v3379
    %v3500 = vunpack.c.l.b16 %v3380
    %v3501 = vunpack.c.l.b16 %v3381
    %v3502 = vunpack.c.l.b16 %v3382
    %v3503 = vunpack.c.l.b16 %v3383
    %v3504 = vunpack.c.l.b16 %v3384
    %v3505 = vunpack.c.l.b16 %v3385
    %v3506 = vunpack.c.l.b16 %v3386
    %v3507 = vunpack.c.l.b16 %v3387
    %v3508 = vunpack.c.l.b16 %v3388
    %v3509 = vunpack.c.l.b16 %v3389
    %v3510 = vunpack.c.l.b16 %v3390
    %v3511 = vunpack.c.l.b16 %v3391
    %v3512 = vunpack.c.l.b16 %v3392
    %v3513 = vunpack.c.l.b16 %v3393
    %v3514 = vpack.c.b16 %v3455, %v3454
    %v3515 = vpack.c.b16 %v3457, %v3456
    %v3516 = vpack.c.b16 %v3459, %v3458
    %v3517 = vpack.c.b16 %v3461, %v3460
    %v3518 = vpack.c.b16 %v3463, %v3462
    %v3519 = vpack.c.b16 %v3465, %v3464
    %v3520 = vpack.c.b16 %v3467, %v3466
    %v3521 = vpack.c.b16 %v3469, %v3468
    %v3522 = vpack.c.b16 %v3471, %v3470
    %v3523 = vpack.c.b16 %v3473, %v3472
    %v3524 = vpack.c.b16 %v3475, %v3474
    %v3525 = vpack.c.b16 %v3477, %v3476
    %v3526 = vpack.c.b16 %v3479, %v3478
    %v3527 = vpack.c.b16 %v3481, %v3480
    %v3528 = vpack.c.b16 %v3483, %v3482
    %v3529 = vpack.c.b16 %v3485, %v3484
    %v3530 = vpack.c.b16 %v3487, %v3486
    %v3531 = vpack.c.b16 %v3489, %v3488
    %v3532 = vpack.c.b16 %v3491, %v3490
    %v3533 = vpack.c.b16 %v3493, %v3492
    %v3534 = vpack.c.b16 %v3495, %v3494
    %v3535 = vpack.c.b16 %v3497, %v3496
    %v3536 = vpack.c.b16 %v3499, %v3498
    %v3537 = vpack.c.b16 %v3501, %v3500
    %v3538 = vpack.c.b16 %v3503, %v3502
    %v3539 = vpack.c.b16 %v3505, %v3504
    %v3540 = vpack.c.b16 %v3507, %v3506
    %v3541 = vpack.c.b16 %v3509, %v3508
    %v3542 = vpack.c.b16 %v3511, %v3510
    %v3543 = vpack.c.b16 %v3513, %v3512
    %v3575 = vsel %vm1501, %v3320, 0
    %v3578 = vsel %vm1501, %v3324, 0
    %v3581 = vsel %vm1501, %v3328, 0
    %v3584 = vsel %vm1501, %v3332, 0
    %3586 = vmatprep.subr.bf16.mxu0 0
    %3587 = vmatpush1.bf16.msra.mxu0 %v3521
    %3588 = vmatprep.subr.bf16.mxu0 0
    %3589 = vmatpush1.bf16.msra.mxu0 %v3520
    %3590 = vmatprep.subr.bf16.mxu0 0
    %3591 = vmatpush1.bf16.msra.mxu0 %v3519
    %3592 = vmatprep.subr.bf16.mxu0 0
    %3593 = vmatpush1.bf16.msra.mxu0 %v3518
    %3594 = vmatprep.subr.bf16.mxu0 0
    %3595 = vmatpush1.bf16.msra.mxu0 %v3517
    %3596 = vmatprep.subr.bf16.mxu0 0
    %3597 = vmatpush1.bf16.msra.mxu0 %v3516
    %3598 = vmatprep.subr.bf16.mxu0 0
    %3599 = vmatpush1.bf16.msra.mxu0 %v3515
    %3600 = vmatprep.subr.bf16.mxu0 0
    %3601 = vmatpush1.bf16.msra.mxu0 %v3514
    %3602 = vmatprep.subr.bf16.mxu0 0
    %3603 = vmatpush2.bf16.msra.mxu0 %v3529
    %3604 = vmatprep.subr.bf16.mxu0 0
    %3605 = vmatpush2.bf16.msra.mxu0 %v3528
    %3606 = vmatprep.subr.bf16.mxu0 0
    %3607 = vmatpush2.bf16.msra.mxu0 %v3527
    %3608 = vmatprep.subr.bf16.mxu0 0
    %3609 = vmatpush2.bf16.msra.mxu0 %v3526
    %3610 = vmatprep.subr.bf16.mxu0 0
    %3611 = vmatpush2.bf16.msra.mxu0 %v3525
    %3612 = vmatprep.subr.bf16.mxu0 0
    %3613 = vmatpush2.bf16.msra.mxu0 %v3524
    %3614 = vmatprep.subr.bf16.mxu0 0
    %3615 = vmatpush2.bf16.msra.mxu0 %v3523
    %3616 = vmatprep.subr.bf16.mxu0 0
    %3617 = vmatpush2.bf16.msra.mxu0 %v3522
    %3618 = vmatprep.mubr.bf16.mxu0 %v3318
    %3619 = vmatmul.mubr.bf16.gmra.mxu0 %v3317
    %v3620 = vpop.f32.mrf.mxu0
    %v3621 = vadd.f32 0.0, %v3620
    %v3622 = vpop.f32.mrf.mxu0
    %v3623 = vpop.f32.mrf.mxu0
    %v3624 = vadd.f32 0.0, %v3623
    %v3625 = vpop.f32.mrf.mxu0
    %3626 = vmatprep.mubr.bf16.mxu0 %v3322
    %3627 = vmatmul.mubr.bf16.gmra.mxu0 %v3321
    %v3628 = vpop.f32.mrf.mxu0
    %v3629 = vadd.f32 0.0, %v3628
    %v3630 = vpop.f32.mrf.mxu0
    %v3631 = vpop.f32.mrf.mxu0
    %v3632 = vadd.f32 0.0, %v3631
    %v3633 = vpop.f32.mrf.mxu0
    %3634 = vmatprep.mubr.bf16.mxu0 %v3326
    %3635 = vmatmul.mubr.bf16.gmra.mxu0 %v3325
    %v3636 = vpop.f32.mrf.mxu0
    %v3637 = vadd.f32 0.0, %v3636
    %v3638 = vpop.f32.mrf.mxu0
    %v3639 = vpop.f32.mrf.mxu0
    %v3640 = vadd.f32 0.0, %v3639
    %v3641 = vpop.f32.mrf.mxu0
    %3642 = vmatprep.mubr.bf16.mxu0 %v3330
    %3643 = vmatmul.mubr.bf16.gmra.mxu0 %v3329
    %v3644 = vpop.f32.mrf.mxu0
    %v3645 = vadd.f32 0.0, %v3644
    %v3646 = vpop.f32.mrf.mxu0
    %v3647 = vpop.f32.mrf.mxu0
    %v3648 = vadd.f32 0.0, %v3647
    %v3649 = vpop.f32.mrf.mxu0
    %3650 = vdwg.mxu0
    %3651 = vmatprep.subr.bf16.mxu0 0
    %3652 = vmatpush1.bf16.msra.mxu0 %v3537
    %3653 = vmatprep.subr.bf16.mxu0 0
    %3654 = vmatpush1.bf16.msra.mxu0 %v3536
    %3655 = vmatprep.subr.bf16.mxu0 0
    %3656 = vmatpush1.bf16.msra.mxu0 %v3535
    %3657 = vmatprep.subr.bf16.mxu0 0
    %3658 = vmatpush1.bf16.msra.mxu0 %v3534
    %3659 = vmatprep.subr.bf16.mxu0 0
    %3660 = vmatpush1.bf16.msra.mxu0 %v3533
    %3661 = vmatprep.subr.bf16.mxu0 0
    %3662 = vmatpush1.bf16.msra.mxu0 %v3532
    %3663 = vmatprep.subr.bf16.mxu0 0
    %3664 = vmatpush1.bf16.msra.mxu0 %v3531
    %3665 = vmatprep.subr.bf16.mxu0 0
    %3666 = vmatpush1.bf16.msra.mxu0 %v3530
    %3667 = vmatprep.subr.bf16.mxu0 0
    %3668 = vmatpush2.bf16.msra.mxu0 0
    %3669 = vmatprep.subr.bf16.mxu0 0
    %3670 = vmatpush2.bf16.msra.mxu0 0
    %3671 = vmatprep.subr.bf16.mxu0 0
    %3672 = vmatpush2.bf16.msra.mxu0 %v3543
    %3673 = vmatprep.subr.bf16.mxu0 0
    %3674 = vmatpush2.bf16.msra.mxu0 %v3542
    %3675 = vmatprep.subr.bf16.mxu0 0
    %3676 = vmatpush2.bf16.msra.mxu0 %v3541
    %3677 = vmatprep.subr.bf16.mxu0 0
    %3678 = vmatpush2.bf16.msra.mxu0 %v3540
    %3679 = vmatprep.subr.bf16.mxu0 0
    %3680 = vmatpush2.bf16.msra.mxu0 %v3539
    %3681 = vmatprep.subr.bf16.mxu0 0
    %3682 = vmatpush2.bf16.msra.mxu0 %v3538
    %3683 = vmatprep.mubr.bf16.mxu0 %v3575
    %3684 = vmatmul.mubr.bf16.gmra.mxu0 %v3319
    %v3685 = vpop.f32.mrf.mxu0
    %v3686 = vadd.f32 %v3621, %v3685
    %v3687 = vpop.f32.mrf.mxu0
    %v3688 = vpop.f32.mrf.mxu0
    %v3689 = vadd.f32 %v3624, %v3688
    %v3690 = vpop.f32.mrf.mxu0
    %3691 = vmatprep.mubr.bf16.mxu0 %v3578
    %3692 = vmatmul.mubr.bf16.gmra.mxu0 %v3323
    %v3693 = vpop.f32.mrf.mxu0
    %v3694 = vadd.f32 %v3629, %v3693
    %v3695 = vpop.f32.mrf.mxu0
    %v3696 = vpop.f32.mrf.mxu0
    %v3697 = vadd.f32 %v3632, %v3696
    %v3698 = vpop.f32.mrf.mxu0
    %3699 = vmatprep.mubr.bf16.mxu0 %v3581
    %3700 = vmatmul.mubr.bf16.gmra.mxu0 %v3327
    %v3701 = vpop.f32.mrf.mxu0
    %v3702 = vadd.f32 %v3637, %v3701
    %v3703 = vpop.f32.mrf.mxu0
    %v3704 = vpop.f32.mrf.mxu0
    %v3705 = vadd.f32 %v3640, %v3704
    %v3706 = vpop.f32.mrf.mxu0
    %3707 = vmatprep.mubr.bf16.mxu0 %v3584
    %3708 = vmatmul.mubr.bf16.gmra.mxu0 %v3331
    %v3709 = vpop.f32.mrf.mxu0
    %v3710 = vadd.f32 %v3645, %v3709
    %v3711 = vpop.f32.mrf.mxu0
    %v3712 = vpop.f32.mrf.mxu0
    %v3713 = vadd.f32 %v3648, %v3712
    %v3714 = vpop.f32.mrf.mxu0
    %3715 = vdwg.mxu0
    %v3716 = vadd.f32 %v3130, %v3686
    %v3717 = vadd.f32 %v3131, %v3689
    %v3718 = vadd.f32 %v3132, %v3694
    %v3719 = vadd.f32 %v3133, %v3697
    %v3720 = vadd.f32 %v3134, %v3702
    %v3721 = vadd.f32 %v3135, %v3705
    %v3722 = vadd.f32 %v3136, %v3710
    %v3723 = vadd.f32 %v3137, %v3713
    %v3724 = vld [vmem:[%s9] sm:$0x1]
    %v3726 = vlaneseq
    %v3727 = vshrl.u32 %v3726, 7
    %v3728 = vsub.s32 0, %v3727
    %v3729 = vrot.slane %v3724, %v3728
    %v3731 = vadd.f32 %v3716, %v3729
    %v3732 = vadd.f32 %v3717, %v3729
    %v3733 = vadd.f32 %v3718, %v3729
    %v3734 = vadd.f32 %v3719, %v3729
    %v3735 = vadd.f32 %v3720, %v3729
    %v3736 = vadd.f32 %v3721, %v3729
    %v3737 = vadd.f32 %v3722, %v3729
    %v3738 = vadd.f32 %v3723, %v3729
    %v3739 = vld [vmem:[%s15] sm:$0xff]
    %v3740 = vld [vmem:[%s15 + $0x8] sm:$0xff]
    %v3741 = vld [vmem:[%s15 + $0x10] sm:$0xff]
    %v3742 = vld [vmem:[%s15 + $0x18] sm:$0xff]
    %v3743 = vld [vmem:[%s15 + $0x20] sm:$0xff]
    %v3744 = vld [vmem:[%s15 + $0x28] sm:$0xff]
    %v3745 = vld [vmem:[%s15 + $0x30] sm:$0xff]
    %v3746 = vld [vmem:[%s15 + $0x38] sm:$0xff]
    %v3747 = vld [vmem:[%s15 + $0x40] sm:$0xff]
    %v3748 = vld [vmem:[%s15 + $0x48] sm:$0xff]
    %v3749 = vld [vmem:[%s15 + $0x50] sm:$0xff]
    %v3750 = vld [vmem:[%s15 + $0x58] sm:$0xff]
    %v3751 = vld [vmem:[%s15 + $0x60] sm:$0xff]
    %v3752 = vld [vmem:[%s15 + $0x68] sm:$0xff]
    %v3753 = vld [vmem:[%s15 + $0x70] sm:$0xff]
    %v3754 = vld [vmem:[%s15 + $0x78] sm:$0xff]
    %v3755 = vld [vmem:[%s17] sm:$0xf]
    %v3756 = vadd.f32 %v3731, %v3732
    %v3757 = vadd.f32 %v3756, %v3733
    %v3758 = vadd.f32 %v3757, %v3734
    %v3759 = vadd.f32 %v3758, %v3735
    %v3760 = vadd.f32 %v3759, %v3736
    %v3761 = vadd.f32 %v3760, %v3737
    %v3762 = vadd.f32 %v3761, %v3738
    %v3763 = vrot.slane %v3762, 4
    %v3764 = vadd.f32 %v3762, %v3763
    %v3765 = vrot.slane %v3764, 2
    %v3766 = vadd.f32 %v3764, %v3765
    %v3767 = vrot.slane %v3766, 1
    %v3768 = vadd.f32 %v3766, %v3767
    %3769 = vmatprep.subr.mxu0 0.0
    %3770 = vmatpush1.msra.mxu0 %v3754
    %3771 = vmatprep.subr.mxu0 0.0
    %3772 = vmatpush1.msra.mxu0 %v3753
    %3773 = vmatprep.subr.mxu0 0.0
    %3774 = vmatpush1.msra.mxu0 %v3752
    %3775 = vmatprep.subr.mxu0 0.0
    %3776 = vmatpush1.msra.mxu0 %v3751
    %3777 = vmatprep.subr.mxu0 0.0
    %3778 = vmatpush1.msra.mxu0 %v3750
    %3779 = vmatprep.subr.mxu0 0.0
    %3780 = vmatpush1.msra.mxu0 %v3749
    %3781 = vmatprep.subr.mxu0 0.0
    %3782 = vmatpush1.msra.mxu0 %v3748
    %3783 = vmatprep.subr.mxu0 0.0
    %3784 = vmatpush1.msra.mxu0 %v3747
    %3785 = vmatprep.subr.mxu0 0.0
    %3786 = vmatpush1.msra.mxu0 %v3746
    %3787 = vmatprep.subr.mxu0 0.0
    %3788 = vmatpush1.msra.mxu0 %v3745
    %3789 = vmatprep.subr.mxu0 0.0
    %3790 = vmatpush1.msra.mxu0 %v3744
    %3791 = vmatprep.subr.mxu0 0.0
    %3792 = vmatpush1.msra.mxu0 %v3743
    %3793 = vmatprep.subr.mxu0 0.0
    %3794 = vmatpush1.msra.mxu0 %v3742
    %3795 = vmatprep.subr.mxu0 0.0
    %3796 = vmatpush1.msra.mxu0 %v3741
    %3797 = vmatprep.subr.mxu0 0.0
    %3798 = vmatpush1.msra.mxu0 %v3740
    %3799 = vmatprep.subr.mxu0 0.0
    %3800 = vmatpush1.msra.mxu0 %v3739
    %3801 = vmatprep.subr.mxu0 0.0
    %3802 = vmatpush2.msra.mxu0 0.0
    %3803 = vmatprep.subr.mxu0 0.0
    %3804 = vmatpush2.msra.mxu0 0.0
    %3805 = vmatprep.subr.mxu0 0.0
    %3806 = vmatpush2.msra.mxu0 0.0
    %3807 = vmatprep.subr.mxu0 0.0
    %3808 = vmatpush2.msra.mxu0 0.0
    %3809 = vmatprep.subr.mxu0 0.0
    %3810 = vmatpush2.msra.mxu0 0.0
    %3811 = vmatprep.subr.mxu0 0.0
    %3812 = vmatpush2.msra.mxu0 0.0
    %3813 = vmatprep.subr.mxu0 0.0
    %3814 = vmatpush2.msra.mxu0 0.0
    %3815 = vmatprep.subr.mxu0 0.0
    %3816 = vmatpush2.msra.mxu0 0.0
    %3817 = vmatprep.subr.mxu0 0.0
    %3818 = vmatpush2.msra.mxu0 0.0
    %3819 = vmatprep.subr.mxu0 0.0
    %3820 = vmatpush2.msra.mxu0 0.0
    %3821 = vmatprep.subr.mxu0 0.0
    %3822 = vmatpush2.msra.mxu0 0.0
    %3823 = vmatprep.subr.mxu0 0.0
    %3824 = vmatpush2.msra.mxu0 0.0
    %3825 = vmatprep.subr.mxu0 0.0
    %3826 = vmatpush2.msra.mxu0 0.0
    %3827 = vmatprep.subr.mxu0 0.0
    %3828 = vmatpush2.msra.mxu0 0.0
    %3829 = vmatprep.subr.mxu0 0.0
    %3830 = vmatpush2.msra.mxu0 0.0
    %3831 = vmatprep.subr.mxu0 0.0
    %3832 = vmatpush2.msra.mxu0 0.0
    %3833 = vmatprep.mubr.f32.mxu0 0.0
    %3834 = vmatmul.mubr.f32.gmra.mxu0 %v3768
    %v3835 = vpop.f32.mrf.mxu0
    %v3836 = vadd.f32 0.0, %v3835
    %v3837 = vpop.f32.mrf.mxu0
    %3838 = vdwg.mxu0
    %vm3839 = vcmask 31744
    %v3841 = vsel %vm3839, %v3836, 0
    %vm3843 = vcmask 1043456
    %v3845 = vsel %vm3843, %v3755, 0
    %3847 = vmatprep.subr.mxu0 0.0
    %3848 = vmatpush1.msra.mxu0 0.0
    %3849 = vmatprep.subr.mxu0 0.0
    %3850 = vmatpush1.msra.mxu0 0.0
    %3851 = vmatprep.subr.mxu0 0.0
    %3852 = vmatpush1.msra.mxu0 0.0
    %3853 = vmatprep.subr.mxu0 0.0
    %3854 = vmatpush1.msra.mxu0 0.0
    %3855 = vmatprep.subr.mxu0 0.0
    %3856 = vmatpush1.msra.mxu0 0.0
    %3857 = vmatprep.subr.mxu0 0.0
    %3858 = vmatpush1.msra.mxu0 0.0
    %3859 = vmatprep.subr.mxu0 0.0
    %3860 = vmatpush1.msra.mxu0 0.0
    %3861 = vmatprep.subr.mxu0 0.0
    %3862 = vmatpush1.msra.mxu0 0.0
    %3863 = vmatprep.subr.mxu0 0.0
    %3864 = vmatpush1.msra.mxu0 0.0
    %3865 = vmatprep.subr.mxu0 0.0
    %3866 = vmatpush1.msra.mxu0 0.0
    %3867 = vmatprep.subr.mxu0 0.0
    %3868 = vmatpush1.msra.mxu0 0.0
    %3869 = vmatprep.subr.mxu0 0.0
    %3870 = vmatpush1.msra.mxu0 0.0
    %3871 = vmatprep.subr.mxu0 0.0
    %3872 = vmatpush1.msra.mxu0 0.0
    %3873 = vmatprep.subr.mxu0 0.0
    %3874 = vmatpush1.msra.mxu0 0.0
    %3875 = vmatprep.subr.mxu0 0.0
    %3876 = vmatpush1.msra.mxu0 0.0
    %3877 = vmatprep.subr.mxu0 0.0
    %3878 = vmatpush1.msra.mxu0 %v3845
    %3879 = vmatprep.subr.mxu0 0.0
    %3880 = vmatpush2.msra.mxu0 0.0
    %3881 = vmatprep.subr.mxu0 0.0
    %3882 = vmatpush2.msra.mxu0 0.0
    %3883 = vmatprep.subr.mxu0 0.0
    %3884 = vmatpush2.msra.mxu0 0.0
    %3885 = vmatprep.subr.mxu0 0.0
    %3886 = vmatpush2.msra.mxu0 0.0
    %3887 = vmatprep.subr.mxu0 0.0
    %3888 = vmatpush2.msra.mxu0 0.0
    %3889 = vmatprep.subr.mxu0 0.0
    %3890 = vmatpush2.msra.mxu0 0.0
    %3891 = vmatprep.subr.mxu0 0.0
    %3892 = vmatpush2.msra.mxu0 0.0
    %3893 = vmatprep.subr.mxu0 0.0
    %3894 = vmatpush2.msra.mxu0 0.0
    %3895 = vmatprep.subr.mxu0 0.0
    %3896 = vmatpush2.msra.mxu0 0.0
    %3897 = vmatprep.subr.mxu0 0.0
    %3898 = vmatpush2.msra.mxu0 0.0
    %3899 = vmatprep.subr.mxu0 0.0
    %3900 = vmatpush2.msra.mxu0 0.0
    %3901 = vmatprep.subr.mxu0 0.0
    %3902 = vmatpush2.msra.mxu0 0.0
    %3903 = vmatprep.subr.mxu0 0.0
    %3904 = vmatpush2.msra.mxu0 0.0
    %3905 = vmatprep.subr.mxu0 0.0
    %3906 = vmatpush2.msra.mxu0 0.0
    %3907 = vmatprep.subr.mxu0 0.0
    %3908 = vmatpush2.msra.mxu0 0.0
    %3909 = vmatprep.subr.mxu0 0.0
    %3910 = vmatpush2.msra.mxu0 0.0
    %3911 = vmatprep.mubr.f32.mxu0 0.0
    %3912 = vmatmul.mubr.f32.gmra.mxu0 %v3841
    %v3913 = vpop.f32.mrf.mxu0
    %v3914 = vadd.f32 0.0, %v3913
    %v3915 = vpop.f32.mrf.mxu0
    %3916 = vdwg.mxu0
    %v3917 = vlaneseq
    %v3918 = vshrl.u32 %v3917, 7
    %v3919 = vsub.s32 0, %v3918
    %v3920 = vrot.slane %v3914, %v3919
    %v3921 = vsub.f32 %v3731, %v3920
    %v3922 = vsub.f32 %v3732, %v3920
    %v3923 = vsub.f32 %v3733, %v3920
    %v3924 = vsub.f32 %v3734, %v3920
    %v3925 = vsub.f32 %v3735, %v3920
    %v3926 = vsub.f32 %v3736, %v3920
    %v3927 = vsub.f32 %v3737, %v3920
    %v3928 = vsub.f32 %v3738, %v3920
    %v3929 = vmul.f32 %v3921, %v3921
    %v3930 = vmul.f32 %v3922, %v3922
    %v3931 = vmul.f32 %v3923, %v3923
    %v3932 = vmul.f32 %v3924, %v3924
    %v3933 = vmul.f32 %v3925, %v3925
    %v3934 = vmul.f32 %v3926, %v3926
    %v3935 = vmul.f32 %v3927, %v3927
    %v3936 = vmul.f32 %v3928, %v3928
    %v3937 = vadd.f32 %v3929, %v3930
    %v3938 = vadd.f32 %v3937, %v3931
    %v3939 = vadd.f32 %v3938, %v3932
    %v3940 = vadd.f32 %v3939, %v3933
    %v3941 = vadd.f32 %v3940, %v3934
    %v3942 = vadd.f32 %v3941, %v3935
    %v3943 = vadd.f32 %v3942, %v3936
    %v3944 = vrot.slane %v3943, 4
    %v3945 = vadd.f32 %v3943, %v3944
    %v3946 = vrot.slane %v3945, 2
    %v3947 = vadd.f32 %v3945, %v3946
    %v3948 = vrot.slane %v3947, 1
    %v3949 = vadd.f32 %v3947, %v3948
    %v3950 = vld [vmem:[%s11] sm:$0x1]
    %3951 = vmatprep.subr.mxu0 0.0
    %3952 = vmatpush1.msra.mxu0 %v3754
    %3953 = vmatprep.subr.mxu0 0.0
    %3954 = vmatpush1.msra.mxu0 %v3753
    %3955 = vmatprep.subr.mxu0 0.0
    %3956 = vmatpush1.msra.mxu0 %v3752
    %3957 = vmatprep.subr.mxu0 0.0
    %3958 = vmatpush1.msra.mxu0 %v3751
    %3959 = vmatprep.subr.mxu0 0.0
    %3960 = vmatpush1.msra.mxu0 %v3750
    %3961 = vmatprep.subr.mxu0 0.0
    %3962 = vmatpush1.msra.mxu0 %v3749
    %3963 = vmatprep.subr.mxu0 0.0
    %3964 = vmatpush1.msra.mxu0 %v3748
    %3965 = vmatprep.subr.mxu0 0.0
    %3966 = vmatpush1.msra.mxu0 %v3747
    %3967 = vmatprep.subr.mxu0 0.0
    %3968 = vmatpush1.msra.mxu0 %v3746
    %3969 = vmatprep.subr.mxu0 0.0
    %3970 = vmatpush1.msra.mxu0 %v3745
    %3971 = vmatprep.subr.mxu0 0.0
    %3972 = vmatpush1.msra.mxu0 %v3744
    %3973 = vmatprep.subr.mxu0 0.0
    %3974 = vmatpush1.msra.mxu0 %v3743
    %3975 = vmatprep.subr.mxu0 0.0
    %3976 = vmatpush1.msra.mxu0 %v3742
    %3977 = vmatprep.subr.mxu0 0.0
    %3978 = vmatpush1.msra.mxu0 %v3741
    %3979 = vmatprep.subr.mxu0 0.0
    %3980 = vmatpush1.msra.mxu0 %v3740
    %3981 = vmatprep.subr.mxu0 0.0
    %3982 = vmatpush1.msra.mxu0 %v3739
    %3983 = vmatprep.subr.mxu0 0.0
    %3984 = vmatpush2.msra.mxu0 0.0
    %3985 = vmatprep.subr.mxu0 0.0
    %3986 = vmatpush2.msra.mxu0 0.0
    %3987 = vmatprep.subr.mxu0 0.0
    %3988 = vmatpush2.msra.mxu0 0.0
    %3989 = vmatprep.subr.mxu0 0.0
    %3990 = vmatpush2.msra.mxu0 0.0
    %3991 = vmatprep.subr.mxu0 0.0
    %3992 = vmatpush2.msra.mxu0 0.0
    %3993 = vmatprep.subr.mxu0 0.0
    %3994 = vmatpush2.msra.mxu0 0.0
    %3995 = vmatprep.subr.mxu0 0.0
    %3996 = vmatpush2.msra.mxu0 0.0
    %3997 = vmatprep.subr.mxu0 0.0
    %3998 = vmatpush2.msra.mxu0 0.0
    %3999 = vmatprep.subr.mxu0 0.0
    %4000 = vmatpush2.msra.mxu0 0.0
    %4001 = vmatprep.subr.mxu0 0.0
    %4002 = vmatpush2.msra.mxu0 0.0
    %4003 = vmatprep.subr.mxu0 0.0
    %4004 = vmatpush2.msra.mxu0 0.0
    %4005 = vmatprep.subr.mxu0 0.0
    %4006 = vmatpush2.msra.mxu0 0.0
    %4007 = vmatprep.subr.mxu0 0.0
    %4008 = vmatpush2.msra.mxu0 0.0
    %4009 = vmatprep.subr.mxu0 0.0
    %4010 = vmatpush2.msra.mxu0 0.0
    %4011 = vmatprep.subr.mxu0 0.0
    %4012 = vmatpush2.msra.mxu0 0.0
    %4013 = vmatprep.subr.mxu0 0.0
    %4014 = vmatpush2.msra.mxu0 0.0
    %4015 = vmatprep.mubr.f32.mxu0 0.0
    %4016 = vmatmul.mubr.f32.gmra.mxu0 %v3949
    %v4017 = vpop.f32.mrf.mxu0
    %v4018 = vadd.f32 1e-05, %v4017
    %v4019 = vpop.f32.mrf.mxu0
    %4020 = vdwg.mxu0
    %v4021 = vrsqrt.pop %v4018
    %v4022 = vmul.f32 %v3950, %v4021
    %v4024 = vsel %vm3839, %v4022, 0
    %4026 = vmatprep.subr.mxu0 0.0
    %4027 = vmatpush1.msra.mxu0 0.0
    %4028 = vmatprep.subr.mxu0 0.0
    %4029 = vmatpush1.msra.mxu0 0.0
    %4030 = vmatprep.subr.mxu0 0.0
    %4031 = vmatpush1.msra.mxu0 0.0
    %4032 = vmatprep.subr.mxu0 0.0
    %4033 = vmatpush1.msra.mxu0 0.0
    %4034 = vmatprep.subr.mxu0 0.0
    %4035 = vmatpush1.msra.mxu0 0.0
    %4036 = vmatprep.subr.mxu0 0.0
    %4037 = vmatpush1.msra.mxu0 0.0
    %4038 = vmatprep.subr.mxu0 0.0
    %4039 = vmatpush1.msra.mxu0 0.0
    %4040 = vmatprep.subr.mxu0 0.0
    %4041 = vmatpush1.msra.mxu0 0.0
    %4042 = vmatprep.subr.mxu0 0.0
    %4043 = vmatpush1.msra.mxu0 0.0
    %4044 = vmatprep.subr.mxu0 0.0
    %4045 = vmatpush1.msra.mxu0 0.0
    %4046 = vmatprep.subr.mxu0 0.0
    %4047 = vmatpush1.msra.mxu0 0.0
    %4048 = vmatprep.subr.mxu0 0.0
    %4049 = vmatpush1.msra.mxu0 0.0
    %4050 = vmatprep.subr.mxu0 0.0
    %4051 = vmatpush1.msra.mxu0 0.0
    %4052 = vmatprep.subr.mxu0 0.0
    %4053 = vmatpush1.msra.mxu0 0.0
    %4054 = vmatprep.subr.mxu0 0.0
    %4055 = vmatpush1.msra.mxu0 0.0
    %4056 = vmatprep.subr.mxu0 0.0
    %4057 = vmatpush1.msra.mxu0 %v3845
    %4058 = vmatprep.subr.mxu0 0.0
    %4059 = vmatpush2.msra.mxu0 0.0
    %4060 = vmatprep.subr.mxu0 0.0
    %4061 = vmatpush2.msra.mxu0 0.0
    %4062 = vmatprep.subr.mxu0 0.0
    %4063 = vmatpush2.msra.mxu0 0.0
    %4064 = vmatprep.subr.mxu0 0.0
    %4065 = vmatpush2.msra.mxu0 0.0
    %4066 = vmatprep.subr.mxu0 0.0
    %4067 = vmatpush2.msra.mxu0 0.0
    %4068 = vmatprep.subr.mxu0 0.0
    %4069 = vmatpush2.msra.mxu0 0.0
    %4070 = vmatprep.subr.mxu0 0.0
    %4071 = vmatpush2.msra.mxu0 0.0
    %4072 = vmatprep.subr.mxu0 0.0
    %4073 = vmatpush2.msra.mxu0 0.0
    %4074 = vmatprep.subr.mxu0 0.0
    %4075 = vmatpush2.msra.mxu0 0.0
    %4076 = vmatprep.subr.mxu0 0.0
    %4077 = vmatpush2.msra.mxu0 0.0
    %4078 = vmatprep.subr.mxu0 0.0
    %4079 = vmatpush2.msra.mxu0 0.0
    %4080 = vmatprep.subr.mxu0 0.0
    %4081 = vmatpush2.msra.mxu0 0.0
    %4082 = vmatprep.subr.mxu0 0.0
    %4083 = vmatpush2.msra.mxu0 0.0
    %4084 = vmatprep.subr.mxu0 0.0
    %4085 = vmatpush2.msra.mxu0 0.0
    %4086 = vmatprep.subr.mxu0 0.0
    %4087 = vmatpush2.msra.mxu0 0.0
    %4088 = vmatprep.subr.mxu0 0.0
    %4089 = vmatpush2.msra.mxu0 0.0
    %4090 = vmatprep.mubr.f32.mxu0 0.0
    %4091 = vmatmul.mubr.f32.gmra.mxu0 %v4024
    %v4092 = vpop.f32.mrf.mxu0
    %v4093 = vadd.f32 0.0, %v4092
    %v4094 = vpop.f32.mrf.mxu0
    %4095 = vdwg.mxu0
    %v4096 = vld [vmem:[%s13] sm:$0x1]
    %v4098 = vsel %vm3839, %v4096, 0
    %4100 = vmatprep.subr.mxu0 0.0
    %4101 = vmatpush1.msra.mxu0 0.0
    %4102 = vmatprep.subr.mxu0 0.0
    %4103 = vmatpush1.msra.mxu0 0.0
    %4104 = vmatprep.subr.mxu0 0.0
    %4105 = vmatpush1.msra.mxu0 0.0
    %4106 = vmatprep.subr.mxu0 0.0
    %4107 = vmatpush1.msra.mxu0 0.0
    %4108 = vmatprep.subr.mxu0 0.0
    %4109 = vmatpush1.msra.mxu0 0.0
    %4110 = vmatprep.subr.mxu0 0.0
    %4111 = vmatpush1.msra.mxu0 0.0
    %4112 = vmatprep.subr.mxu0 0.0
    %4113 = vmatpush1.msra.mxu0 0.0
    %4114 = vmatprep.subr.mxu0 0.0
    %4115 = vmatpush1.msra.mxu0 0.0
    %4116 = vmatprep.subr.mxu0 0.0
    %4117 = vmatpush1.msra.mxu0 0.0
    %4118 = vmatprep.subr.mxu0 0.0
    %4119 = vmatpush1.msra.mxu0 0.0
    %4120 = vmatprep.subr.mxu0 0.0
    %4121 = vmatpush1.msra.mxu0 0.0
    %4122 = vmatprep.subr.mxu0 0.0
    %4123 = vmatpush1.msra.mxu0 0.0
    %4124 = vmatprep.subr.mxu0 0.0
    %4125 = vmatpush1.msra.mxu0 0.0
    %4126 = vmatprep.subr.mxu0 0.0
    %4127 = vmatpush1.msra.mxu0 0.0
    %4128 = vmatprep.subr.mxu0 0.0
    %4129 = vmatpush1.msra.mxu0 0.0
    %4130 = vmatprep.subr.mxu0 0.0
    %4131 = vmatpush1.msra.mxu0 %v3845
    %4132 = vmatprep.subr.mxu0 0.0
    %4133 = vmatpush2.msra.mxu0 0.0
    %4134 = vmatprep.subr.mxu0 0.0
    %4135 = vmatpush2.msra.mxu0 0.0
    %4136 = vmatprep.subr.mxu0 0.0
    %4137 = vmatpush2.msra.mxu0 0.0
    %4138 = vmatprep.subr.mxu0 0.0
    %4139 = vmatpush2.msra.mxu0 0.0
    %4140 = vmatprep.subr.mxu0 0.0
    %4141 = vmatpush2.msra.mxu0 0.0
    %4142 = vmatprep.subr.mxu0 0.0
    %4143 = vmatpush2.msra.mxu0 0.0
    %4144 = vmatprep.subr.mxu0 0.0
    %4145 = vmatpush2.msra.mxu0 0.0
    %4146 = vmatprep.subr.mxu0 0.0
    %4147 = vmatpush2.msra.mxu0 0.0
    %4148 = vmatprep.subr.mxu0 0.0
    %4149 = vmatpush2.msra.mxu0 0.0
    %4150 = vmatprep.subr.mxu0 0.0
    %4151 = vmatpush2.msra.mxu0 0.0
    %4152 = vmatprep.subr.mxu0 0.0
    %4153 = vmatpush2.msra.mxu0 0.0
    %4154 = vmatprep.subr.mxu0 0.0
    %4155 = vmatpush2.msra.mxu0 0.0
    %4156 = vmatprep.subr.mxu0 0.0
    %4157 = vmatpush2.msra.mxu0 0.0
    %4158 = vmatprep.subr.mxu0 0.0
    %4159 = vmatpush2.msra.mxu0 0.0
    %4160 = vmatprep.subr.mxu0 0.0
    %4161 = vmatpush2.msra.mxu0 0.0
    %4162 = vmatprep.subr.mxu0 0.0
    %4163 = vmatpush2.msra.mxu0 0.0
    %4164 = vmatprep.mubr.f32.mxu0 0.0
    %4165 = vmatmul.mubr.f32.gmra.mxu0 %v4098
    %v4166 = vpop.f32.mrf.mxu0
    %v4167 = vadd.f32 0.0, %v4166
    %v4168 = vpop.f32.mrf.mxu0
    %4169 = vdwg.mxu0
    %v4170 = vlaneseq
    %v4171 = vshrl.u32 %v4170, 7
    %v4172 = vsub.s32 0, %v4171
    %v4173 = vrot.slane %v4093, %v4172
    %v4174 = vmul.f32 %v3921, %v4173
    %v4175 = vmul.f32 %v3922, %v4173
    %v4176 = vmul.f32 %v3923, %v4173
    %v4177 = vmul.f32 %v3924, %v4173
    %v4178 = vmul.f32 %v3925, %v4173
    %v4179 = vmul.f32 %v3926, %v4173
    %v4180 = vmul.f32 %v3927, %v4173
    %v4181 = vmul.f32 %v3928, %v4173
    %v4182 = vlaneseq
    %v4183 = vshrl.u32 %v4182, 7
    %v4184 = vsub.s32 0, %v4183
    %v4185 = vrot.slane %v4167, %v4184
    %v4186 = vadd.f32 %v4174, %v4185
    %v4187 = vadd.f32 %v4175, %v4185
    %v4188 = vadd.f32 %v4176, %v4185
    %v4189 = vadd.f32 %v4177, %v4185
    %v4190 = vadd.f32 %v4178, %v4185
    %v4191 = vadd.f32 %v4179, %v4185
    %v4192 = vadd.f32 %v4180, %v4185
    %v4193 = vadd.f32 %v4181, %v4185
    %v4194 = vmax.f32 %v4186, 0.0
    %v4195 = vmax.f32 %v4187, 0.0
    %v4196 = vmax.f32 %v4188, 0.0
    %v4197 = vmax.f32 %v4189, 0.0
    %v4198 = vmax.f32 %v4190, 0.0
    %v4199 = vmax.f32 %v4191, 0.0
    %v4200 = vmax.f32 %v4192, 0.0
    %v4201 = vmax.f32 %v4193, 0.0
    %v4202 = vpack.c.bf16 %v4195, %v4194
    %v4203 = vpack.c.bf16 %v4197, %v4196
    %v4204 = vpack.c.bf16 %v4199, %v4198
    %v4205 = vpack.c.bf16 %v4201, %v4200
    %v4206 = vld [vmem:[%s19] sm:$0xff]
    %v4207 = vld [vmem:[%s19 + $0x8] sm:$0xf]
    %v4208 = vld [vmem:[%s19 + $0xc] sm:$0xff]
    %v4209 = vld [vmem:[%s19 + $0x14] sm:$0xf]
    %v4210 = vld [vmem:[%s19 + $0x18] sm:$0xff]
    %v4211 = vld [vmem:[%s19 + $0x20] sm:$0xf]
    %v4212 = vld [vmem:[%s19 + $0x24] sm:$0xff]
    %v4213 = vld [vmem:[%s19 + $0x2c] sm:$0xf]
    %v4214 = vld [vmem:[%s19 + $0x30] sm:$0xff]
    %v4215 = vld [vmem:[%s19 + $0x38] sm:$0xf]
    %v4216 = vld [vmem:[%s19 + $0x3c] sm:$0xff]
    %v4217 = vld [vmem:[%s19 + $0x44] sm:$0xf]
    %v4218 = vld [vmem:[%s19 + $0x48] sm:$0xff]
    %v4219 = vld [vmem:[%s19 + $0x50] sm:$0xf]
    %v4220 = vld [vmem:[%s19 + $0x54] sm:$0xff]
    %v4221 = vld [vmem:[%s19 + $0x5c] sm:$0xf]
    %v4222 = vld [vmem:[%s19 + $0x60] sm:$0xff]
    %v4223 = vld [vmem:[%s19 + $0x68] sm:$0xf]
    %v4224 = vld [vmem:[%s19 + $0x6c] sm:$0xff]
    %v4225 = vld [vmem:[%s19 + $0x74] sm:$0xf]
    %v4226 = vld [vmem:[%s19 + $0x78] sm:$0xff]
    %v4227 = vld [vmem:[%s19 + $0x80] sm:$0xf]
    %v4228 = vld [vmem:[%s19 + $0x84] sm:$0xff]
    %v4229 = vld [vmem:[%s19 + $0x8c] sm:$0xf]
    %v4230 = vld [vmem:[%s19 + $0x90] sm:$0xff]
    %v4231 = vld [vmem:[%s19 + $0x98] sm:$0xf]
    %v4232 = vld [vmem:[%s19 + $0x9c] sm:$0xff]
    %v4233 = vld [vmem:[%s19 + $0xa4] sm:$0xf]
    %v4234 = vld [vmem:[%s19 + $0xa8] sm:$0xff]
    %v4235 = vld [vmem:[%s19 + $0xb0] sm:$0xf]
    %v4236 = vld [vmem:[%s19 + $0xb4] sm:$0xff]
    %v4237 = vld [vmem:[%s19 + $0xbc] sm:$0xf]
    %v4270 = vunpack.c.l.b16 %v4206
    %v4271 = vunpack.c.h.b16 %v4206
    %v4272 = vunpack.c.l.b16 %v4207
    %v4273 = vunpack.c.l.b16 %v4208
    %v4274 = vunpack.c.h.b16 %v4208
    %v4275 = vunpack.c.l.b16 %v4209
    %v4276 = vunpack.c.l.b16 %v4210
    %v4277 = vunpack.c.h.b16 %v4210
    %v4278 = vunpack.c.l.b16 %v4211
    %v4279 = vunpack.c.l.b16 %v4212
    %v4280 = vunpack.c.h.b16 %v4212
    %v4281 = vunpack.c.l.b16 %v4213
    %v4282 = vunpack.c.l.b16 %v4214
    %v4283 = vunpack.c.h.b16 %v4214
    %v4284 = vunpack.c.l.b16 %v4215
    %v4285 = vunpack.c.l.b16 %v4216
    %v4286 = vunpack.c.h.b16 %v4216
    %v4287 = vunpack.c.l.b16 %v4217
    %v4288 = vunpack.c.l.b16 %v4218
    %v4289 = vunpack.c.h.b16 %v4218
    %v4290 = vunpack.c.l.b16 %v4219
    %v4291 = vunpack.c.l.b16 %v4220
    %v4292 = vunpack.c.h.b16 %v4220
    %v4293 = vunpack.c.l.b16 %v4221
    %v4294 = vunpack.c.l.b16 %v4222
    %v4295 = vunpack.c.h.b16 %v4222
    %v4296 = vunpack.c.l.b16 %v4223
    %v4297 = vunpack.c.l.b16 %v4224
    %v4298 = vunpack.c.h.b16 %v4224
    %v4299 = vunpack.c.l.b16 %v4225
    %v4300 = vunpack.c.l.b16 %v4226
    %v4301 = vunpack.c.h.b16 %v4226
    %v4302 = vunpack.c.l.b16 %v4227
    %v4303 = vunpack.c.l.b16 %v4228
    %v4304 = vunpack.c.h.b16 %v4228
    %v4305 = vunpack.c.l.b16 %v4229
    %v4306 = vunpack.c.l.b16 %v4230
    %v4307 = vunpack.c.h.b16 %v4230
    %v4308 = vunpack.c.l.b16 %v4231
    %v4309 = vunpack.c.l.b16 %v4232
    %v4310 = vunpack.c.h.b16 %v4232
    %v4311 = vunpack.c.l.b16 %v4233
    %v4312 = vunpack.c.l.b16 %v4234
    %v4313 = vunpack.c.h.b16 %v4234
    %v4314 = vunpack.c.l.b16 %v4235
    %v4315 = vunpack.c.l.b16 %v4236
    %v4316 = vunpack.c.h.b16 %v4236
    %v4317 = vunpack.c.l.b16 %v4237
    %v4318 = vpack.c.b16 %v4273, %v4270
    %v4319 = vpack.c.b16 %v4274, %v4271
    %v4320 = vpack.c.b16 %v4275, %v4272
    %v4321 = vpack.c.b16 %v4279, %v4276
    %v4322 = vpack.c.b16 %v4280, %v4277
    %v4323 = vpack.c.b16 %v4281, %v4278
    %v4324 = vpack.c.b16 %v4285, %v4282
    %v4325 = vpack.c.b16 %v4286, %v4283
    %v4326 = vpack.c.b16 %v4287, %v4284
    %v4327 = vpack.c.b16 %v4291, %v4288
    %v4328 = vpack.c.b16 %v4292, %v4289
    %v4329 = vpack.c.b16 %v4293, %v4290
    %v4330 = vpack.c.b16 %v4297, %v4294
    %v4331 = vpack.c.b16 %v4298, %v4295
    %v4332 = vpack.c.b16 %v4299, %v4296
    %v4333 = vpack.c.b16 %v4303, %v4300
    %v4334 = vpack.c.b16 %v4304, %v4301
    %v4335 = vpack.c.b16 %v4305, %v4302
    %v4336 = vpack.c.b16 %v4309, %v4306
    %v4337 = vpack.c.b16 %v4310, %v4307
    %v4338 = vpack.c.b16 %v4311, %v4308
    %v4339 = vpack.c.b16 %v4315, %v4312
    %v4340 = vpack.c.b16 %v4316, %v4313
    %v4341 = vpack.c.b16 %v4317, %v4314
    %4366 = vmatprep.subr.bf16.mxu0 %v4340
    %4367 = vmatpush1.bf16.msra.mxu0 %v4339
    %4368 = vmatprep.subr.bf16.mxu0 %v4337
    %4369 = vmatpush1.bf16.msra.mxu0 %v4336
    %4370 = vmatprep.subr.bf16.mxu0 %v4334
    %4371 = vmatpush1.bf16.msra.mxu0 %v4333
    %4372 = vmatprep.subr.bf16.mxu0 %v4331
    %4373 = vmatpush1.bf16.msra.mxu0 %v4330
    %4374 = vmatprep.subr.bf16.mxu0 %v4328
    %4375 = vmatpush1.bf16.msra.mxu0 %v4327
    %4376 = vmatprep.subr.bf16.mxu0 %v4325
    %4377 = vmatpush1.bf16.msra.mxu0 %v4324
    %4378 = vmatprep.subr.bf16.mxu0 %v4322
    %4379 = vmatpush1.bf16.msra.mxu0 %v4321
    %4380 = vmatprep.subr.bf16.mxu0 %v4319
    %4381 = vmatpush1.bf16.msra.mxu0 %v4318
    %4382 = vmatprep.subr.bf16.mxu0 0
    %4383 = vmatpush2.bf16.msra.mxu0 0
    %4384 = vmatprep.subr.bf16.mxu0 0
    %4385 = vmatpush2.bf16.msra.mxu0 0
    %4386 = vmatprep.subr.bf16.mxu0 0
    %4387 = vmatpush2.bf16.msra.mxu0 0
    %4388 = vmatprep.subr.bf16.mxu0 0
    %4389 = vmatpush2.bf16.msra.mxu0 0
    %4390 = vmatprep.subr.bf16.mxu0 0
    %4391 = vmatpush2.bf16.msra.mxu0 0
    %4392 = vmatprep.subr.bf16.mxu0 0
    %4393 = vmatpush2.bf16.msra.mxu0 0
    %4394 = vmatprep.subr.bf16.mxu0 0
    %4395 = vmatpush2.bf16.msra.mxu0 0
    %4396 = vmatprep.subr.bf16.mxu0 0
    %4397 = vmatpush2.bf16.msra.mxu0 0
    %4398 = vmatprep.mubr.bf16.mxu0 0
    %4399 = vmatmul.mubr.bf16.gmra.mxu0 %v4202
    %v4400 = vpop.f32.mrf.mxu0
    %v4401 = vadd.f32 0.0, %v4400
    %v4402 = vpop.f32.mrf.mxu0
    %v4403 = vadd.f32 0.0, %v4402
    %v4404 = vpop.f32.mrf.mxu0
    %v4405 = vadd.f32 0.0, %v4404
    %v4406 = vpop.f32.mrf.mxu0
    %v4407 = vadd.f32 0.0, %v4406
    %4408 = vmatprep.mubr.bf16.mxu0 0
    %4409 = vmatmul.mubr.bf16.gmra.mxu0 %v4203
    %v4410 = vpop.f32.mrf.mxu0
    %v4411 = vadd.f32 0.0, %v4410
    %v4412 = vpop.f32.mrf.mxu0
    %v4413 = vadd.f32 0.0, %v4412
    %v4414 = vpop.f32.mrf.mxu0
    %v4415 = vadd.f32 0.0, %v4414
    %v4416 = vpop.f32.mrf.mxu0
    %v4417 = vadd.f32 0.0, %v4416
    %4418 = vmatprep.mubr.bf16.mxu0 0
    %4419 = vmatmul.mubr.bf16.gmra.mxu0 %v4204
    %v4420 = vpop.f32.mrf.mxu0
    %v4421 = vadd.f32 0.0, %v4420
    %v4422 = vpop.f32.mrf.mxu0
    %v4423 = vadd.f32 0.0, %v4422
    %v4424 = vpop.f32.mrf.mxu0
    %v4425 = vadd.f32 0.0, %v4424
    %v4426 = vpop.f32.mrf.mxu0
    %v4427 = vadd.f32 0.0, %v4426
    %4428 = vmatprep.mubr.bf16.mxu0 0
    %4429 = vmatmul.mubr.bf16.gmra.mxu0 %v4205
    %v4430 = vpop.f32.mrf.mxu0
    %v4431 = vadd.f32 0.0, %v4430
    %v4432 = vpop.f32.mrf.mxu0
    %v4433 = vadd.f32 0.0, %v4432
    %v4434 = vpop.f32.mrf.mxu0
    %v4435 = vadd.f32 0.0, %v4434
    %v4436 = vpop.f32.mrf.mxu0
    %v4437 = vadd.f32 0.0, %v4436
    %4438 = vdwg.mxu0
    %4439 = vmatprep.subr.bf16.mxu0 0
    %4440 = vmatpush1.bf16.msra.mxu0 %v4341
    %4441 = vmatprep.subr.bf16.mxu0 0
    %4442 = vmatpush1.bf16.msra.mxu0 %v4338
    %4443 = vmatprep.subr.bf16.mxu0 0
    %4444 = vmatpush1.bf16.msra.mxu0 %v4335
    %4445 = vmatprep.subr.bf16.mxu0 0
    %4446 = vmatpush1.bf16.msra.mxu0 %v4332
    %4447 = vmatprep.subr.bf16.mxu0 0
    %4448 = vmatpush1.bf16.msra.mxu0 %v4329
    %4449 = vmatprep.subr.bf16.mxu0 0
    %4450 = vmatpush1.bf16.msra.mxu0 %v4326
    %4451 = vmatprep.subr.bf16.mxu0 0
    %4452 = vmatpush1.bf16.msra.mxu0 %v4323
    %4453 = vmatprep.subr.bf16.mxu0 0
    %4454 = vmatpush1.bf16.msra.mxu0 %v4320
    %4455 = vmatprep.subr.bf16.mxu0 0
    %4456 = vmatpush2.bf16.msra.mxu0 0
    %4457 = vmatprep.subr.bf16.mxu0 0
    %4458 = vmatpush2.bf16.msra.mxu0 0
    %4459 = vmatprep.subr.bf16.mxu0 0
    %4460 = vmatpush2.bf16.msra.mxu0 0
    %4461 = vmatprep.subr.bf16.mxu0 0
    %4462 = vmatpush2.bf16.msra.mxu0 0
    %4463 = vmatprep.subr.bf16.mxu0 0
    %4464 = vmatpush2.bf16.msra.mxu0 0
    %4465 = vmatprep.subr.bf16.mxu0 0
    %4466 = vmatpush2.bf16.msra.mxu0 0
    %4467 = vmatprep.subr.bf16.mxu0 0
    %4468 = vmatpush2.bf16.msra.mxu0 0
    %4469 = vmatprep.subr.bf16.mxu0 0
    %4470 = vmatpush2.bf16.msra.mxu0 0
    %4471 = vmatprep.mubr.bf16.mxu0 0
    %4472 = vmatmul.mubr.bf16.gmra.mxu0 %v4202
    %v4473 = vpop.f32.mrf.mxu0
    %v4474 = vadd.f32 0.0, %v4473
    %v4475 = vpop.f32.mrf.mxu0
    %v4476 = vpop.f32.mrf.mxu0
    %v4477 = vadd.f32 0.0, %v4476
    %v4478 = vpop.f32.mrf.mxu0
    %4479 = vmatprep.mubr.bf16.mxu0 0
    %4480 = vmatmul.mubr.bf16.gmra.mxu0 %v4203
    %v4481 = vpop.f32.mrf.mxu0
    %v4482 = vadd.f32 0.0, %v4481
    %v4483 = vpop.f32.mrf.mxu0
    %v4484 = vpop.f32.mrf.mxu0
    %v4485 = vadd.f32 0.0, %v4484
    %v4486 = vpop.f32.mrf.mxu0
    %4487 = vmatprep.mubr.bf16.mxu0 0
    %4488 = vmatmul.mubr.bf16.gmra.mxu0 %v4204
    %v4489 = vpop.f32.mrf.mxu0
    %v4490 = vadd.f32 0.0, %v4489
    %v4491 = vpop.f32.mrf.mxu0
    %v4492 = vpop.f32.mrf.mxu0
    %v4493 = vadd.f32 0.0, %v4492
    %v4494 = vpop.f32.mrf.mxu0
    %4495 = vmatprep.mubr.bf16.mxu0 0
    %4496 = vmatmul.mubr.bf16.gmra.mxu0 %v4205
    %v4497 = vpop.f32.mrf.mxu0
    %v4498 = vadd.f32 0.0, %v4497
    %v4499 = vpop.f32.mrf.mxu0
    %v4500 = vpop.f32.mrf.mxu0
    %v4501 = vadd.f32 0.0, %v4500
    %v4502 = vpop.f32.mrf.mxu0
    %4503 = vdwg.mxu0
    %v4504 = vpack.c.bf16 %v4405, %v4401
    %v4505 = vpack.c.bf16 %v4407, %v4403
    %v4506 = vpack.c.bf16 %v4477, %v4474
    %v4507 = vpack.c.bf16 %v4415, %v4411
    %v4508 = vpack.c.bf16 %v4417, %v4413
    %v4509 = vpack.c.bf16 %v4485, %v4482
    %v4510 = vpack.c.bf16 %v4425, %v4421
    %v4511 = vpack.c.bf16 %v4427, %v4423
    %v4512 = vpack.c.bf16 %v4493, %v4490
    %v4513 = vpack.c.bf16 %v4435, %v4431
    %v4514 = vpack.c.bf16 %v4437, %v4433
    %v4515 = vpack.c.bf16 %v4501, %v4498
    %v4516 = vld [vmem:[%s21] sm:$0xf]
    %v4517 = vld [vmem:[%s21 + $0x4] sm:$0xf]
    %v4518 = vld [vmem:[%s21 + $0x8] sm:$0xf]
    %v4519 = vld [vmem:[%s21 + $0xc] sm:$0xf]
    %v4524 = vunpack.c.l.b16 %v4516
    %v4525 = vunpack.c.l.b16 %v4517
    %v4526 = vunpack.c.l.b16 %v4518
    %v4527 = vunpack.c.l.b16 %v4519
    %v4528 = vpack.c.b16 %v4525, %v4524
    %v4529 = vpack.c.b16 %v4527, %v4526
    %v4531 = vsel %vm528, %v4528, 0
    %v4534 = vsel %vm528, %v4529, 0
    %4536 = vmatprep.subr.bf16.mxu0 0
    %4537 = vmatpush1.bf16.msra.mxu0 0
    %4538 = vmatprep.subr.bf16.mxu0 0
    %4539 = vmatpush1.bf16.msra.mxu0 0
    %4540 = vmatprep.subr.bf16.mxu0 0
    %4541 = vmatpush1.bf16.msra.mxu0 0
    %4542 = vmatprep.subr.bf16.mxu0 0
    %4543 = vmatpush1.bf16.msra.mxu0 0
    %4544 = vmatprep.subr.bf16.mxu0 %v4514
    %4545 = vmatpush1.bf16.msra.mxu0 %v4513
    %4546 = vmatprep.subr.bf16.mxu0 %v4511
    %4547 = vmatpush1.bf16.msra.mxu0 %v4510
    %4548 = vmatprep.subr.bf16.mxu0 %v4508
    %4549 = vmatpush1.bf16.msra.mxu0 %v4507
    %4550 = vmatprep.subr.bf16.mxu0 %v4505
    %4551 = vmatpush1.bf16.msra.mxu0 %v4504
    %4552 = vmatprep.subr.bf16.mxu0 0
    %4553 = vmatpush2.bf16.msra.mxu0 0
    %4554 = vmatprep.subr.bf16.mxu0 0
    %4555 = vmatpush2.bf16.msra.mxu0 0
    %4556 = vmatprep.subr.bf16.mxu0 0
    %4557 = vmatpush2.bf16.msra.mxu0 0
    %4558 = vmatprep.subr.bf16.mxu0 0
    %4559 = vmatpush2.bf16.msra.mxu0 0
    %4560 = vmatprep.subr.bf16.mxu0 0
    %4561 = vmatpush2.bf16.msra.mxu0 0
    %4562 = vmatprep.subr.bf16.mxu0 0
    %4563 = vmatpush2.bf16.msra.mxu0 0
    %4564 = vmatprep.subr.bf16.mxu0 0
    %4565 = vmatpush2.bf16.msra.mxu0 0
    %4566 = vmatprep.subr.bf16.mxu0 0
    %4567 = vmatpush2.bf16.msra.mxu0 0
    %4568 = vmatprep.mubr.bf16.mxu0 0
    %4569 = vmatmul.mubr.bf16.gmra.mxu0 %v4531
    %v4570 = vpop.f32.mrf.mxu0
    %v4571 = vadd.f32 0.0, %v4570
    %v4572 = vpop.f32.mrf.mxu0
    %v4573 = vadd.f32 0.0, %v4572
    %v4574 = vpop.f32.mrf.mxu0
    %v4575 = vadd.f32 0.0, %v4574
    %v4576 = vpop.f32.mrf.mxu0
    %v4577 = vadd.f32 0.0, %v4576
    %4578 = vmatprep.mubr.bf16.mxu0 0
    %4579 = vmatmul.mubr.bf16.gmra.mxu0 %v4534
    %v4580 = vpop.f32.mrf.mxu0
    %v4581 = vadd.f32 0.0, %v4580
    %v4582 = vpop.f32.mrf.mxu0
    %v4583 = vadd.f32 0.0, %v4582
    %v4584 = vpop.f32.mrf.mxu0
    %v4585 = vadd.f32 0.0, %v4584
    %v4586 = vpop.f32.mrf.mxu0
    %v4587 = vadd.f32 0.0, %v4586
    %4588 = vdwg.mxu0
    %4589 = vmatprep.subr.bf16.mxu0 0
    %4590 = vmatpush1.bf16.msra.mxu0 0
    %4591 = vmatprep.subr.bf16.mxu0 0
    %4592 = vmatpush1.bf16.msra.mxu0 0
    %4593 = vmatprep.subr.bf16.mxu0 0
    %4594 = vmatpush1.bf16.msra.mxu0 0
    %4595 = vmatprep.subr.bf16.mxu0 0
    %4596 = vmatpush1.bf16.msra.mxu0 0
    %4597 = vmatprep.subr.bf16.mxu0 0
    %4598 = vmatpush1.bf16.msra.mxu0 %v4515
    %4599 = vmatprep.subr.bf16.mxu0 0
    %4600 = vmatpush1.bf16.msra.mxu0 %v4512
    %4601 = vmatprep.subr.bf16.mxu0 0
    %4602 = vmatpush1.bf16.msra.mxu0 %v4509
    %4603 = vmatprep.subr.bf16.mxu0 0
    %4604 = vmatpush1.bf16.msra.mxu0 %v4506
    %4605 = vmatprep.subr.bf16.mxu0 0
    %4606 = vmatpush2.bf16.msra.mxu0 0
    %4607 = vmatprep.subr.bf16.mxu0 0
    %4608 = vmatpush2.bf16.msra.mxu0 0
    %4609 = vmatprep.subr.bf16.mxu0 0
    %4610 = vmatpush2.bf16.msra.mxu0 0
    %4611 = vmatprep.subr.bf16.mxu0 0
    %4612 = vmatpush2.bf16.msra.mxu0 0
    %4613 = vmatprep.subr.bf16.mxu0 0
    %4614 = vmatpush2.bf16.msra.mxu0 0
    %4615 = vmatprep.subr.bf16.mxu0 0
    %4616 = vmatpush2.bf16.msra.mxu0 0
    %4617 = vmatprep.subr.bf16.mxu0 0
    %4618 = vmatpush2.bf16.msra.mxu0 0
    %4619 = vmatprep.subr.bf16.mxu0 0
    %4620 = vmatpush2.bf16.msra.mxu0 0
    %4621 = vmatprep.mubr.bf16.mxu0 0
    %4622 = vmatmul.mubr.bf16.gmra.mxu0 %v4531
    %v4623 = vpop.f32.mrf.mxu0
    %v4624 = vadd.f32 0.0, %v4623
    %v4625 = vpop.f32.mrf.mxu0
    %v4626 = vpop.f32.mrf.mxu0
    %v4627 = vadd.f32 0.0, %v4626
    %v4628 = vpop.f32.mrf.mxu0
    %4629 = vmatprep.mubr.bf16.mxu0 0
    %4630 = vmatmul.mubr.bf16.gmra.mxu0 %v4534
    %v4631 = vpop.f32.mrf.mxu0
    %v4632 = vadd.f32 0.0, %v4631
    %v4633 = vpop.f32.mrf.mxu0
    %v4634 = vpop.f32.mrf.mxu0
    %v4635 = vadd.f32 0.0, %v4634
    %v4636 = vpop.f32.mrf.mxu0
    %4637 = vdwg.mxu0
    %v4638 = vpack.c.bf16 %v4575, %v4571
    %v4639 = vpack.c.bf16 %v4577, %v4573
    %v4640 = vpack.c.bf16 %v4627, %v4624
    %v4641 = vpack.c.bf16 %v4585, %v4581
    %v4642 = vpack.c.bf16 %v4587, %v4583
    %v4643 = vpack.c.bf16 %v4635, %v4632
    %v4644 = vld [vmem:[%s23] sm:$0xf]
    %v4645 = vld [vmem:[%s23 + $0x4] sm:$0xf]
    %v4646 = vld [vmem:[%s23 + $0x8] sm:$0xf]
    %v4647 = vld [vmem:[%s23 + $0xc] sm:$0xf]
    %v4648 = vld [vmem:[%s23 + $0x10] sm:$0xf]
    %v4649 = vld [vmem:[%s23 + $0x14] sm:$0xf]
    %v4650 = vld [vmem:[%s23 + $0x18] sm:$0xf]
    %v4651 = vld [vmem:[%s23 + $0x1c] sm:$0xf]
    %v4652 = vld [vmem:[%s23 + $0x20] sm:$0xf]
    %v4653 = vld [vmem:[%s23 + $0x24] sm:$0xf]
    %v4654 = vld [vmem:[%s23 + $0x28] sm:$0xf]
    %v4655 = vld [vmem:[%s23 + $0x2c] sm:$0xf]
    %v4656 = vld [vmem:[%s23 + $0x30] sm:$0xf]
    %v4657 = vld [vmem:[%s23 + $0x34] sm:$0xf]
    %v4658 = vld [vmem:[%s23 + $0x38] sm:$0xf]
    %v4659 = vld [vmem:[%s23 + $0x3c] sm:$0xf]
    %v4660 = vld [vmem:[%s23 + $0x40] sm:$0xf]
    %v4661 = vld [vmem:[%s23 + $0x44] sm:$0xf]
    %v4662 = vld [vmem:[%s23 + $0x48] sm:$0xf]
    %v4663 = vld [vmem:[%s23 + $0x4c] sm:$0xf]
    %v4664 = vld [vmem:[%s23 + $0x50] sm:$0xf]
    %v4665 = vld [vmem:[%s23 + $0x54] sm:$0xf]
    %v4666 = vld [vmem:[%s23 + $0x58] sm:$0xf]
    %v4667 = vld [vmem:[%s23 + $0x5c] sm:$0xf]
    %v4668 = vld [vmem:[%s23 + $0x60] sm:$0xf]
    %v4669 = vld [vmem:[%s23 + $0x64] sm:$0xf]
    %v4670 = vld [vmem:[%s23 + $0x68] sm:$0xf]
    %v4671 = vld [vmem:[%s23 + $0x6c] sm:$0xf]
    %v4672 = vld [vmem:[%s23 + $0x70] sm:$0xf]
    %v4673 = vld [vmem:[%s23 + $0x74] sm:$0xf]
    %v4674 = vld [vmem:[%s23 + $0x78] sm:$0xf]
    %v4675 = vld [vmem:[%s23 + $0x7c] sm:$0xf]
    %v4676 = vld [vmem:[%s23 + $0x80] sm:$0xf]
    %v4677 = vld [vmem:[%s23 + $0x84] sm:$0xf]
    %v4678 = vld [vmem:[%s23 + $0x88] sm:$0xf]
    %v4679 = vld [vmem:[%s23 + $0x8c] sm:$0xf]
    %v4680 = vld [vmem:[%s23 + $0x90] sm:$0xf]
    %v4681 = vld [vmem:[%s23 + $0x94] sm:$0xf]
    %v4682 = vld [vmem:[%s23 + $0x98] sm:$0xf]
    %v4683 = vld [vmem:[%s23 + $0x9c] sm:$0xf]
    %s4684 = scalar_lea.vmem %s21, 16
    %v4685 = vld [vmem:[%s4684] sm:$0xf]
    %v4686 = vld [vmem:[%s4684 + $0x4] sm:$0xf]
    %v4687 = vld [vmem:[%s4684 + $0x8] sm:$0xf]
    %v4688 = vld [vmem:[%s4684 + $0xc] sm:$0xf]
    %v4693 = vunpack.c.l.b16 %v4685
    %v4694 = vunpack.c.l.b16 %v4686
    %v4695 = vunpack.c.l.b16 %v4687
    %v4696 = vunpack.c.l.b16 %v4688
    %v4697 = vpack.c.b16 %v4694, %v4693
    %v4698 = vpack.c.b16 %v4696, %v4695
    %v4700 = vsel %vm528, %v4697, 0
    %v4703 = vsel %vm528, %v4698, 0
    %4705 = vmatprep.subr.bf16.mxu0 0
    %4706 = vmatpush1.bf16.msra.mxu0 0
    %4707 = vmatprep.subr.bf16.mxu0 0
    %4708 = vmatpush1.bf16.msra.mxu0 0
    %4709 = vmatprep.subr.bf16.mxu0 0
    %4710 = vmatpush1.bf16.msra.mxu0 0
    %4711 = vmatprep.subr.bf16.mxu0 0
    %4712 = vmatpush1.bf16.msra.mxu0 0
    %4713 = vmatprep.subr.bf16.mxu0 %v4514
    %4714 = vmatpush1.bf16.msra.mxu0 %v4513
    %4715 = vmatprep.subr.bf16.mxu0 %v4511
    %4716 = vmatpush1.bf16.msra.mxu0 %v4510
    %4717 = vmatprep.subr.bf16.mxu0 %v4508
    %4718 = vmatpush1.bf16.msra.mxu0 %v4507
    %4719 = vmatprep.subr.bf16.mxu0 %v4505
    %4720 = vmatpush1.bf16.msra.mxu0 %v4504
    %4721 = vmatprep.subr.bf16.mxu0 0
    %4722 = vmatpush2.bf16.msra.mxu0 0
    %4723 = vmatprep.subr.bf16.mxu0 0
    %4724 = vmatpush2.bf16.msra.mxu0 0
    %4725 = vmatprep.subr.bf16.mxu0 0
    %4726 = vmatpush2.bf16.msra.mxu0 0
    %4727 = vmatprep.subr.bf16.mxu0 0
    %4728 = vmatpush2.bf16.msra.mxu0 0
    %4729 = vmatprep.subr.bf16.mxu0 0
    %4730 = vmatpush2.bf16.msra.mxu0 0
    %4731 = vmatprep.subr.bf16.mxu0 0
    %4732 = vmatpush2.bf16.msra.mxu0 0
    %4733 = vmatprep.subr.bf16.mxu0 0
    %4734 = vmatpush2.bf16.msra.mxu0 0
    %4735 = vmatprep.subr.bf16.mxu0 0
    %4736 = vmatpush2.bf16.msra.mxu0 0
    %4737 = vmatprep.mubr.bf16.mxu0 0
    %4738 = vmatmul.mubr.bf16.gmra.mxu0 %v4700
    %v4739 = vpop.f32.mrf.mxu0
    %v4740 = vadd.f32 0.0, %v4739
    %v4741 = vpop.f32.mrf.mxu0
    %v4742 = vadd.f32 0.0, %v4741
    %v4743 = vpop.f32.mrf.mxu0
    %v4744 = vadd.f32 0.0, %v4743
    %v4745 = vpop.f32.mrf.mxu0
    %v4746 = vadd.f32 0.0, %v4745
    %4747 = vmatprep.mubr.bf16.mxu0 0
    %4748 = vmatmul.mubr.bf16.gmra.mxu0 %v4703
    %v4749 = vpop.f32.mrf.mxu0
    %v4750 = vadd.f32 0.0, %v4749
    %v4751 = vpop.f32.mrf.mxu0
    %v4752 = vadd.f32 0.0, %v4751
    %v4753 = vpop.f32.mrf.mxu0
    %v4754 = vadd.f32 0.0, %v4753
    %v4755 = vpop.f32.mrf.mxu0
    %v4756 = vadd.f32 0.0, %v4755
    %4757 = vdwg.mxu0
    %4758 = vmatprep.subr.bf16.mxu0 0
    %4759 = vmatpush1.bf16.msra.mxu0 0
    %4760 = vmatprep.subr.bf16.mxu0 0
    %4761 = vmatpush1.bf16.msra.mxu0 0
    %4762 = vmatprep.subr.bf16.mxu0 0
    %4763 = vmatpush1.bf16.msra.mxu0 0
    %4764 = vmatprep.subr.bf16.mxu0 0
    %4765 = vmatpush1.bf16.msra.mxu0 0
    %4766 = vmatprep.subr.bf16.mxu0 0
    %4767 = vmatpush1.bf16.msra.mxu0 %v4515
    %4768 = vmatprep.subr.bf16.mxu0 0
    %4769 = vmatpush1.bf16.msra.mxu0 %v4512
    %4770 = vmatprep.subr.bf16.mxu0 0
    %4771 = vmatpush1.bf16.msra.mxu0 %v4509
    %4772 = vmatprep.subr.bf16.mxu0 0
    %4773 = vmatpush1.bf16.msra.mxu0 %v4506
    %4774 = vmatprep.subr.bf16.mxu0 0
    %4775 = vmatpush2.bf16.msra.mxu0 0
    %4776 = vmatprep.subr.bf16.mxu0 0
    %4777 = vmatpush2.bf16.msra.mxu0 0
    %4778 = vmatprep.subr.bf16.mxu0 0
    %4779 = vmatpush2.bf16.msra.mxu0 0
    %4780 = vmatprep.subr.bf16.mxu0 0
    %4781 = vmatpush2.bf16.msra.mxu0 0
    %4782 = vmatprep.subr.bf16.mxu0 0
    %4783 = vmatpush2.bf16.msra.mxu0 0
    %4784 = vmatprep.subr.bf16.mxu0 0
    %4785 = vmatpush2.bf16.msra.mxu0 0
    %4786 = vmatprep.subr.bf16.mxu0 0
    %4787 = vmatpush2.bf16.msra.mxu0 0
    %4788 = vmatprep.subr.bf16.mxu0 0
    %4789 = vmatpush2.bf16.msra.mxu0 0
    %4790 = vmatprep.mubr.bf16.mxu0 0
    %4791 = vmatmul.mubr.bf16.gmra.mxu0 %v4700
    %v4792 = vpop.f32.mrf.mxu0
    %v4793 = vadd.f32 0.0, %v4792
    %v4794 = vpop.f32.mrf.mxu0
    %v4795 = vpop.f32.mrf.mxu0
    %v4796 = vadd.f32 0.0, %v4795
    %v4797 = vpop.f32.mrf.mxu0
    %4798 = vmatprep.mubr.bf16.mxu0 0
    %4799 = vmatmul.mubr.bf16.gmra.mxu0 %v4703
    %v4800 = vpop.f32.mrf.mxu0
    %v4801 = vadd.f32 0.0, %v4800
    %v4802 = vpop.f32.mrf.mxu0
    %v4803 = vpop.f32.mrf.mxu0
    %v4804 = vadd.f32 0.0, %v4803
    %v4805 = vpop.f32.mrf.mxu0
    %4806 = vdwg.mxu0
    %v4807 = vpack.c.bf16 %v4744, %v4740
    %v4808 = vpack.c.bf16 %v4746, %v4742
    %v4809 = vpack.c.bf16 %v4796, %v4793
    %v4810 = vpack.c.bf16 %v4754, %v4750
    %v4811 = vpack.c.bf16 %v4756, %v4752
    %v4812 = vpack.c.bf16 %v4804, %v4801
    %s4813 = scalar_lea.vmem %s23, 160
    %v4814 = vld [vmem:[%s4813] sm:$0xf]
    %v4815 = vld [vmem:[%s4813 + $0x4] sm:$0xf]
    %v4816 = vld [vmem:[%s4813 + $0x8] sm:$0xf]
    %v4817 = vld [vmem:[%s4813 + $0xc] sm:$0xf]
    %v4818 = vld [vmem:[%s4813 + $0x10] sm:$0xf]
    %v4819 = vld [vmem:[%s4813 + $0x14] sm:$0xf]
    %v4820 = vld [vmem:[%s4813 + $0x18] sm:$0xf]
    %v4821 = vld [vmem:[%s4813 + $0x1c] sm:$0xf]
    %v4822 = vld [vmem:[%s4813 + $0x20] sm:$0xf]
    %v4823 = vld [vmem:[%s4813 + $0x24] sm:$0xf]
    %v4824 = vld [vmem:[%s4813 + $0x28] sm:$0xf]
    %v4825 = vld [vmem:[%s4813 + $0x2c] sm:$0xf]
    %v4826 = vld [vmem:[%s4813 + $0x30] sm:$0xf]
    %v4827 = vld [vmem:[%s4813 + $0x34] sm:$0xf]
    %v4828 = vld [vmem:[%s4813 + $0x38] sm:$0xf]
    %v4829 = vld [vmem:[%s4813 + $0x3c] sm:$0xf]
    %v4830 = vld [vmem:[%s4813 + $0x40] sm:$0xf]
    %v4831 = vld [vmem:[%s4813 + $0x44] sm:$0xf]
    %v4832 = vld [vmem:[%s4813 + $0x48] sm:$0xf]
    %v4833 = vld [vmem:[%s4813 + $0x4c] sm:$0xf]
    %v4834 = vld [vmem:[%s4813 + $0x50] sm:$0xf]
    %v4835 = vld [vmem:[%s4813 + $0x54] sm:$0xf]
    %v4836 = vld [vmem:[%s4813 + $0x58] sm:$0xf]
    %v4837 = vld [vmem:[%s4813 + $0x5c] sm:$0xf]
    %v4838 = vld [vmem:[%s4813 + $0x60] sm:$0xf]
    %v4839 = vld [vmem:[%s4813 + $0x64] sm:$0xf]
    %v4840 = vld [vmem:[%s4813 + $0x68] sm:$0xf]
    %v4841 = vld [vmem:[%s4813 + $0x6c] sm:$0xf]
    %v4842 = vld [vmem:[%s4813 + $0x70] sm:$0xf]
    %v4843 = vld [vmem:[%s4813 + $0x74] sm:$0xf]
    %v4844 = vld [vmem:[%s4813 + $0x78] sm:$0xf]
    %v4845 = vld [vmem:[%s4813 + $0x7c] sm:$0xf]
    %v4846 = vld [vmem:[%s4813 + $0x80] sm:$0xf]
    %v4847 = vld [vmem:[%s4813 + $0x84] sm:$0xf]
    %v4848 = vld [vmem:[%s4813 + $0x88] sm:$0xf]
    %v4849 = vld [vmem:[%s4813 + $0x8c] sm:$0xf]
    %v4850 = vld [vmem:[%s4813 + $0x90] sm:$0xf]
    %v4851 = vld [vmem:[%s4813 + $0x94] sm:$0xf]
    %v4852 = vld [vmem:[%s4813 + $0x98] sm:$0xf]
    %v4853 = vld [vmem:[%s4813 + $0x9c] sm:$0xf]
    %v4894 = vunpack.c.l.b16 %v4814
    %v4895 = vunpack.c.l.b16 %v4815
    %v4896 = vunpack.c.l.b16 %v4816
    %v4897 = vunpack.c.l.b16 %v4817
    %v4898 = vunpack.c.l.b16 %v4818
    %v4899 = vunpack.c.l.b16 %v4819
    %v4900 = vunpack.c.l.b16 %v4820
    %v4901 = vunpack.c.l.b16 %v4821
    %v4902 = vunpack.c.l.b16 %v4822
    %v4903 = vunpack.c.l.b16 %v4823
    %v4904 = vunpack.c.l.b16 %v4824
    %v4905 = vunpack.c.l.b16 %v4825
    %v4906 = vunpack.c.l.b16 %v4826
    %v4907 = vunpack.c.l.b16 %v4827
    %v4908 = vunpack.c.l.b16 %v4828
    %v4909 = vunpack.c.l.b16 %v4829
    %v4910 = vunpack.c.l.b16 %v4830
    %v4911 = vunpack.c.l.b16 %v4831
    %v4912 = vunpack.c.l.b16 %v4832
    %v4913 = vunpack.c.l.b16 %v4833
    %v4914 = vunpack.c.l.b16 %v4834
    %v4915 = vunpack.c.l.b16 %v4835
    %v4916 = vunpack.c.l.b16 %v4836
    %v4917 = vunpack.c.l.b16 %v4837
    %v4918 = vunpack.c.l.b16 %v4838
    %v4919 = vunpack.c.l.b16 %v4839
    %v4920 = vunpack.c.l.b16 %v4840
    %v4921 = vunpack.c.l.b16 %v4841
    %v4922 = vunpack.c.l.b16 %v4842
    %v4923 = vunpack.c.l.b16 %v4843
    %v4924 = vunpack.c.l.b16 %v4844
    %v4925 = vunpack.c.l.b16 %v4845
    %v4926 = vunpack.c.l.b16 %v4846
    %v4927 = vunpack.c.l.b16 %v4847
    %v4928 = vunpack.c.l.b16 %v4848
    %v4929 = vunpack.c.l.b16 %v4849
    %v4930 = vunpack.c.l.b16 %v4850
    %v4931 = vunpack.c.l.b16 %v4851
    %v4932 = vunpack.c.l.b16 %v4852
    %v4933 = vunpack.c.l.b16 %v4853
    %v4934 = vpack.c.b16 %v4895, %v4894
    %v4935 = vpack.c.b16 %v4897, %v4896
    %v4936 = vpack.c.b16 %v4899, %v4898
    %v4937 = vpack.c.b16 %v4901, %v4900
    %v4938 = vpack.c.b16 %v4903, %v4902
    %v4939 = vpack.c.b16 %v4905, %v4904
    %v4940 = vpack.c.b16 %v4907, %v4906
    %v4941 = vpack.c.b16 %v4909, %v4908
    %v4942 = vpack.c.b16 %v4911, %v4910
    %v4943 = vpack.c.b16 %v4913, %v4912
    %v4944 = vpack.c.b16 %v4915, %v4914
    %v4945 = vpack.c.b16 %v4917, %v4916
    %v4946 = vpack.c.b16 %v4919, %v4918
    %v4947 = vpack.c.b16 %v4921, %v4920
    %v4948 = vpack.c.b16 %v4923, %v4922
    %v4949 = vpack.c.b16 %v4925, %v4924
    %v4950 = vpack.c.b16 %v4927, %v4926
    %v4951 = vpack.c.b16 %v4929, %v4928
    %v4952 = vpack.c.b16 %v4931, %v4930
    %v4953 = vpack.c.b16 %v4933, %v4932
    %v4975 = vsel %vm528, %v4809, 0
    %v4978 = vsel %vm528, %v4812, 0
    %4980 = vmatprep.subr.bf16.mxu0 0
    %4981 = vmatpush1.bf16.msra.mxu0 %v4941
    %4982 = vmatprep.subr.bf16.mxu0 0
    %4983 = vmatpush1.bf16.msra.mxu0 %v4940
    %4984 = vmatprep.subr.bf16.mxu0 0
    %4985 = vmatpush1.bf16.msra.mxu0 %v4939
    %4986 = vmatprep.subr.bf16.mxu0 0
    %4987 = vmatpush1.bf16.msra.mxu0 %v4938
    %4988 = vmatprep.subr.bf16.mxu0 0
    %4989 = vmatpush1.bf16.msra.mxu0 %v4937
    %4990 = vmatprep.subr.bf16.mxu0 0
    %4991 = vmatpush1.bf16.msra.mxu0 %v4936
    %4992 = vmatprep.subr.bf16.mxu0 0
    %4993 = vmatpush1.bf16.msra.mxu0 %v4935
    %4994 = vmatprep.subr.bf16.mxu0 0
    %4995 = vmatpush1.bf16.msra.mxu0 %v4934
    %4996 = vmatprep.subr.bf16.mxu0 0
    %4997 = vmatpush2.bf16.msra.mxu0 %v4949
    %4998 = vmatprep.subr.bf16.mxu0 0
    %4999 = vmatpush2.bf16.msra.mxu0 %v4948
    %5000 = vmatprep.subr.bf16.mxu0 0
    %5001 = vmatpush2.bf16.msra.mxu0 %v4947
    %5002 = vmatprep.subr.bf16.mxu0 0
    %5003 = vmatpush2.bf16.msra.mxu0 %v4946
    %5004 = vmatprep.subr.bf16.mxu0 0
    %5005 = vmatpush2.bf16.msra.mxu0 %v4945
    %5006 = vmatprep.subr.bf16.mxu0 0
    %5007 = vmatpush2.bf16.msra.mxu0 %v4944
    %5008 = vmatprep.subr.bf16.mxu0 0
    %5009 = vmatpush2.bf16.msra.mxu0 %v4943
    %5010 = vmatprep.subr.bf16.mxu0 0
    %5011 = vmatpush2.bf16.msra.mxu0 %v4942
    %5012 = vmatprep.mubr.bf16.mxu0 %v4808
    %5013 = vmatmul.mubr.bf16.gmra.mxu0 %v4807
    %v5014 = vpop.f32.mrf.mxu0
    %v5015 = vadd.f32 0.0, %v5014
    %v5016 = vpop.f32.mrf.mxu0
    %v5017 = vpop.f32.mrf.mxu0
    %v5018 = vadd.f32 0.0, %v5017
    %v5019 = vpop.f32.mrf.mxu0
    %5020 = vmatprep.mubr.bf16.mxu0 %v4811
    %5021 = vmatmul.mubr.bf16.gmra.mxu0 %v4810
    %v5022 = vpop.f32.mrf.mxu0
    %v5023 = vadd.f32 0.0, %v5022
    %v5024 = vpop.f32.mrf.mxu0
    %v5025 = vpop.f32.mrf.mxu0
    %v5026 = vadd.f32 0.0, %v5025
    %v5027 = vpop.f32.mrf.mxu0
    %5028 = vdwg.mxu0
    %5029 = vmatprep.subr.bf16.mxu0 0
    %5030 = vmatpush1.bf16.msra.mxu0 0
    %5031 = vmatprep.subr.bf16.mxu0 0
    %5032 = vmatpush1.bf16.msra.mxu0 0
    %5033 = vmatprep.subr.bf16.mxu0 0
    %5034 = vmatpush1.bf16.msra.mxu0 0
    %5035 = vmatprep.subr.bf16.mxu0 0
    %5036 = vmatpush1.bf16.msra.mxu0 0
    %5037 = vmatprep.subr.bf16.mxu0 0
    %5038 = vmatpush1.bf16.msra.mxu0 %v4953
    %5039 = vmatprep.subr.bf16.mxu0 0
    %5040 = vmatpush1.bf16.msra.mxu0 %v4952
    %5041 = vmatprep.subr.bf16.mxu0 0
    %5042 = vmatpush1.bf16.msra.mxu0 %v4951
    %5043 = vmatprep.subr.bf16.mxu0 0
    %5044 = vmatpush1.bf16.msra.mxu0 %v4950
    %5045 = vmatprep.subr.bf16.mxu0 0
    %5046 = vmatpush2.bf16.msra.mxu0 0
    %5047 = vmatprep.subr.bf16.mxu0 0
    %5048 = vmatpush2.bf16.msra.mxu0 0
    %5049 = vmatprep.subr.bf16.mxu0 0
    %5050 = vmatpush2.bf16.msra.mxu0 0
    %5051 = vmatprep.subr.bf16.mxu0 0
    %5052 = vmatpush2.bf16.msra.mxu0 0
    %5053 = vmatprep.subr.bf16.mxu0 0
    %5054 = vmatpush2.bf16.msra.mxu0 0
    %5055 = vmatprep.subr.bf16.mxu0 0
    %5056 = vmatpush2.bf16.msra.mxu0 0
    %5057 = vmatprep.subr.bf16.mxu0 0
    %5058 = vmatpush2.bf16.msra.mxu0 0
    %5059 = vmatprep.subr.bf16.mxu0 0
    %5060 = vmatpush2.bf16.msra.mxu0 0
    %5061 = vmatprep.mubr.bf16.mxu0 0
    %5062 = vmatmul.mubr.bf16.gmra.mxu0 %v4975
    %v5063 = vpop.f32.mrf.mxu0
    %v5064 = vadd.f32 %v5015, %v5063
    %v5065 = vpop.f32.mrf.mxu0
    %v5066 = vpop.f32.mrf.mxu0
    %v5067 = vadd.f32 %v5018, %v5066
    %v5068 = vpop.f32.mrf.mxu0
    %5069 = vmatprep.mubr.bf16.mxu0 0
    %5070 = vmatmul.mubr.bf16.gmra.mxu0 %v4978
    %v5071 = vpop.f32.mrf.mxu0
    %v5072 = vadd.f32 %v5023, %v5071
    %v5073 = vpop.f32.mrf.mxu0
    %v5074 = vpop.f32.mrf.mxu0
    %v5075 = vadd.f32 %v5026, %v5074
    %v5076 = vpop.f32.mrf.mxu0
    %5077 = vdwg.mxu0
    %v5118 = vunpack.c.l.b16 %v4644
    %v5119 = vunpack.c.l.b16 %v4645
    %v5120 = vunpack.c.l.b16 %v4646
    %v5121 = vunpack.c.l.b16 %v4647
    %v5122 = vunpack.c.l.b16 %v4648
    %v5123 = vunpack.c.l.b16 %v4649
    %v5124 = vunpack.c.l.b16 %v4650
    %v5125 = vunpack.c.l.b16 %v4651
    %v5126 = vunpack.c.l.b16 %v4652
    %v5127 = vunpack.c.l.b16 %v4653
    %v5128 = vunpack.c.l.b16 %v4654
    %v5129 = vunpack.c.l.b16 %v4655
    %v5130 = vunpack.c.l.b16 %v4656
    %v5131 = vunpack.c.l.b16 %v4657
    %v5132 = vunpack.c.l.b16 %v4658
    %v5133 = vunpack.c.l.b16 %v4659
    %v5134 = vunpack.c.l.b16 %v4660
    %v5135 = vunpack.c.l.b16 %v4661
    %v5136 = vunpack.c.l.b16 %v4662
    %v5137 = vunpack.c.l.b16 %v4663
    %v5138 = vunpack.c.l.b16 %v4664
    %v5139 = vunpack.c.l.b16 %v4665
    %v5140 = vunpack.c.l.b16 %v4666
    %v5141 = vunpack.c.l.b16 %v4667
    %v5142 = vunpack.c.l.b16 %v4668
    %v5143 = vunpack.c.l.b16 %v4669
    %v5144 = vunpack.c.l.b16 %v4670
    %v5145 = vunpack.c.l.b16 %v4671
    %v5146 = vunpack.c.l.b16 %v4672
    %v5147 = vunpack.c.l.b16 %v4673
    %v5148 = vunpack.c.l.b16 %v4674
    %v5149 = vunpack.c.l.b16 %v4675
    %v5150 = vunpack.c.l.b16 %v4676
    %v5151 = vunpack.c.l.b16 %v4677
    %v5152 = vunpack.c.l.b16 %v4678
    %v5153 = vunpack.c.l.b16 %v4679
    %v5154 = vunpack.c.l.b16 %v4680
    %v5155 = vunpack.c.l.b16 %v4681
    %v5156 = vunpack.c.l.b16 %v4682
    %v5157 = vunpack.c.l.b16 %v4683
    %v5158 = vpack.c.b16 %v5119, %v5118
    %v5159 = vpack.c.b16 %v5121, %v5120
    %v5160 = vpack.c.b16 %v5123, %v5122
    %v5161 = vpack.c.b16 %v5125, %v5124
    %v5162 = vpack.c.b16 %v5127, %v5126
    %v5163 = vpack.c.b16 %v5129, %v5128
    %v5164 = vpack.c.b16 %v5131, %v5130
    %v5165 = vpack.c.b16 %v5133, %v5132
    %v5166 = vpack.c.b16 %v5135, %v5134
    %v5167 = vpack.c.b16 %v5137, %v5136
    %v5168 = vpack.c.b16 %v5139, %v5138
    %v5169 = vpack.c.b16 %v5141, %v5140
    %v5170 = vpack.c.b16 %v5143, %v5142
    %v5171 = vpack.c.b16 %v5145, %v5144
    %v5172 = vpack.c.b16 %v5147, %v5146
    %v5173 = vpack.c.b16 %v5149, %v5148
    %v5174 = vpack.c.b16 %v5151, %v5150
    %v5175 = vpack.c.b16 %v5153, %v5152
    %v5176 = vpack.c.b16 %v5155, %v5154
    %v5177 = vpack.c.b16 %v5157, %v5156
    %v5199 = vsel %vm528, %v4640, 0
    %v5202 = vsel %vm528, %v4643, 0
    %5204 = vmatprep.subr.bf16.mxu0 0
    %5205 = vmatpush1.bf16.msra.mxu0 %v5165
    %5206 = vmatprep.subr.bf16.mxu0 0
    %5207 = vmatpush1.bf16.msra.mxu0 %v5164
    %5208 = vmatprep.subr.bf16.mxu0 0
    %5209 = vmatpush1.bf16.msra.mxu0 %v5163
    %5210 = vmatprep.subr.bf16.mxu0 0
    %5211 = vmatpush1.bf16.msra.mxu0 %v5162
    %5212 = vmatprep.subr.bf16.mxu0 0
    %5213 = vmatpush1.bf16.msra.mxu0 %v5161
    %5214 = vmatprep.subr.bf16.mxu0 0
    %5215 = vmatpush1.bf16.msra.mxu0 %v5160
    %5216 = vmatprep.subr.bf16.mxu0 0
    %5217 = vmatpush1.bf16.msra.mxu0 %v5159
    %5218 = vmatprep.subr.bf16.mxu0 0
    %5219 = vmatpush1.bf16.msra.mxu0 %v5158
    %5220 = vmatprep.subr.bf16.mxu0 0
    %5221 = vmatpush2.bf16.msra.mxu0 %v5173
    %5222 = vmatprep.subr.bf16.mxu0 0
    %5223 = vmatpush2.bf16.msra.mxu0 %v5172
    %5224 = vmatprep.subr.bf16.mxu0 0
    %5225 = vmatpush2.bf16.msra.mxu0 %v5171
    %5226 = vmatprep.subr.bf16.mxu0 0
    %5227 = vmatpush2.bf16.msra.mxu0 %v5170
    %5228 = vmatprep.subr.bf16.mxu0 0
    %5229 = vmatpush2.bf16.msra.mxu0 %v5169
    %5230 = vmatprep.subr.bf16.mxu0 0
    %5231 = vmatpush2.bf16.msra.mxu0 %v5168
    %5232 = vmatprep.subr.bf16.mxu0 0
    %5233 = vmatpush2.bf16.msra.mxu0 %v5167
    %5234 = vmatprep.subr.bf16.mxu0 0
    %5235 = vmatpush2.bf16.msra.mxu0 %v5166
    %5236 = vmatprep.mubr.bf16.mxu0 %v4639
    %5237 = vmatmul.mubr.bf16.gmra.mxu0 %v4638
    %v5238 = vpop.f32.mrf.mxu0
    %v5239 = vadd.f32 %v5064, %v5238
    %v5240 = vpop.f32.mrf.mxu0
    %v5241 = vpop.f32.mrf.mxu0
    %v5242 = vadd.f32 %v5067, %v5241
    %v5243 = vpop.f32.mrf.mxu0
    %5244 = vmatprep.mubr.bf16.mxu0 %v4642
    %5245 = vmatmul.mubr.bf16.gmra.mxu0 %v4641
    %v5246 = vpop.f32.mrf.mxu0
    %v5247 = vadd.f32 %v5072, %v5246
    %v5248 = vpop.f32.mrf.mxu0
    %v5249 = vpop.f32.mrf.mxu0
    %v5250 = vadd.f32 %v5075, %v5249
    %v5251 = vpop.f32.mrf.mxu0
    %5252 = vdwg.mxu0
    %5253 = vmatprep.subr.bf16.mxu0 0
    %5254 = vmatpush1.bf16.msra.mxu0 0
    %5255 = vmatprep.subr.bf16.mxu0 0
    %5256 = vmatpush1.bf16.msra.mxu0 0
    %5257 = vmatprep.subr.bf16.mxu0 0
    %5258 = vmatpush1.bf16.msra.mxu0 0
    %5259 = vmatprep.subr.bf16.mxu0 0
    %5260 = vmatpush1.bf16.msra.mxu0 0
    %5261 = vmatprep.subr.bf16.mxu0 0
    %5262 = vmatpush1.bf16.msra.mxu0 %v5177
    %5263 = vmatprep.subr.bf16.mxu0 0
    %5264 = vmatpush1.bf16.msra.mxu0 %v5176
    %5265 = vmatprep.subr.bf16.mxu0 0
    %5266 = vmatpush1.bf16.msra.mxu0 %v5175
    %5267 = vmatprep.subr.bf16.mxu0 0
    %5268 = vmatpush1.bf16.msra.mxu0 %v5174
    %5269 = vmatprep.subr.bf16.mxu0 0
    %5270 = vmatpush2.bf16.msra.mxu0 0
    %5271 = vmatprep.subr.bf16.mxu0 0
    %5272 = vmatpush2.bf16.msra.mxu0 0
    %5273 = vmatprep.subr.bf16.mxu0 0
    %5274 = vmatpush2.bf16.msra.mxu0 0
    %5275 = vmatprep.subr.bf16.mxu0 0
    %5276 = vmatpush2.bf16.msra.mxu0 0
    %5277 = vmatprep.subr.bf16.mxu0 0
    %5278 = vmatpush2.bf16.msra.mxu0 0
    %5279 = vmatprep.subr.bf16.mxu0 0
    %5280 = vmatpush2.bf16.msra.mxu0 0
    %5281 = vmatprep.subr.bf16.mxu0 0
    %5282 = vmatpush2.bf16.msra.mxu0 0
    %5283 = vmatprep.subr.bf16.mxu0 0
    %5284 = vmatpush2.bf16.msra.mxu0 0
    %5285 = vmatprep.mubr.bf16.mxu0 0
    %5286 = vmatmul.mubr.bf16.gmra.mxu0 %v5199
    %v5287 = vpop.f32.mrf.mxu0
    %v5288 = vadd.f32 %v5239, %v5287
    %v5289 = vpop.f32.mrf.mxu0
    %v5290 = vpop.f32.mrf.mxu0
    %v5291 = vadd.f32 %v5242, %v5290
    %v5292 = vpop.f32.mrf.mxu0
    %5293 = vmatprep.mubr.bf16.mxu0 0
    %5294 = vmatmul.mubr.bf16.gmra.mxu0 %v5202
    %v5295 = vpop.f32.mrf.mxu0
    %v5296 = vadd.f32 %v5247, %v5295
    %v5297 = vpop.f32.mrf.mxu0
    %v5298 = vpop.f32.mrf.mxu0
    %v5299 = vadd.f32 %v5250, %v5298
    %v5300 = vpop.f32.mrf.mxu0
    %5301 = vdwg.mxu0
    %s5302 = scalar_lea.vmem %s21, 32
    %v5303 = vld [vmem:[%s5302] sm:$0xf]
    %v5304 = vld [vmem:[%s5302 + $0x4] sm:$0xf]
    %v5305 = vld [vmem:[%s5302 + $0x8] sm:$0xf]
    %v5306 = vld [vmem:[%s5302 + $0xc] sm:$0xf]
    %v5311 = vunpack.c.l.b16 %v5303
    %v5312 = vunpack.c.l.b16 %v5304
    %v5313 = vunpack.c.l.b16 %v5305
    %v5314 = vunpack.c.l.b16 %v5306
    %v5315 = vpack.c.b16 %v5312, %v5311
    %v5316 = vpack.c.b16 %v5314, %v5313
    %v5318 = vsel %vm528, %v5315, 0
    %v5321 = vsel %vm528, %v5316, 0
    %5323 = vmatprep.subr.bf16.mxu0 0
    %5324 = vmatpush1.bf16.msra.mxu0 0
    %5325 = vmatprep.subr.bf16.mxu0 0
    %5326 = vmatpush1.bf16.msra.mxu0 0
    %5327 = vmatprep.subr.bf16.mxu0 0
    %5328 = vmatpush1.bf16.msra.mxu0 0
    %5329 = vmatprep.subr.bf16.mxu0 0
    %5330 = vmatpush1.bf16.msra.mxu0 0
    %5331 = vmatprep.subr.bf16.mxu0 %v4514
    %5332 = vmatpush1.bf16.msra.mxu0 %v4513
    %5333 = vmatprep.subr.bf16.mxu0 %v4511
    %5334 = vmatpush1.bf16.msra.mxu0 %v4510
    %5335 = vmatprep.subr.bf16.mxu0 %v4508
    %5336 = vmatpush1.bf16.msra.mxu0 %v4507
    %5337 = vmatprep.subr.bf16.mxu0 %v4505
    %5338 = vmatpush1.bf16.msra.mxu0 %v4504
    %5339 = vmatprep.subr.bf16.mxu0 0
    %5340 = vmatpush2.bf16.msra.mxu0 0
    %5341 = vmatprep.subr.bf16.mxu0 0
    %5342 = vmatpush2.bf16.msra.mxu0 0
    %5343 = vmatprep.subr.bf16.mxu0 0
    %5344 = vmatpush2.bf16.msra.mxu0 0
    %5345 = vmatprep.subr.bf16.mxu0 0
    %5346 = vmatpush2.bf16.msra.mxu0 0
    %5347 = vmatprep.subr.bf16.mxu0 0
    %5348 = vmatpush2.bf16.msra.mxu0 0
    %5349 = vmatprep.subr.bf16.mxu0 0
    %5350 = vmatpush2.bf16.msra.mxu0 0
    %5351 = vmatprep.subr.bf16.mxu0 0
    %5352 = vmatpush2.bf16.msra.mxu0 0
    %5353 = vmatprep.subr.bf16.mxu0 0
    %5354 = vmatpush2.bf16.msra.mxu0 0
    %5355 = vmatprep.mubr.bf16.mxu0 0
    %5356 = vmatmul.mubr.bf16.gmra.mxu0 %v5318
    %v5357 = vpop.f32.mrf.mxu0
    %v5358 = vadd.f32 0.0, %v5357
    %v5359 = vpop.f32.mrf.mxu0
    %v5360 = vadd.f32 0.0, %v5359
    %v5361 = vpop.f32.mrf.mxu0
    %v5362 = vadd.f32 0.0, %v5361
    %v5363 = vpop.f32.mrf.mxu0
    %v5364 = vadd.f32 0.0, %v5363
    %5365 = vmatprep.mubr.bf16.mxu0 0
    %5366 = vmatmul.mubr.bf16.gmra.mxu0 %v5321
    %v5367 = vpop.f32.mrf.mxu0
    %v5368 = vadd.f32 0.0, %v5367
    %v5369 = vpop.f32.mrf.mxu0
    %v5370 = vadd.f32 0.0, %v5369
    %v5371 = vpop.f32.mrf.mxu0
    %v5372 = vadd.f32 0.0, %v5371
    %v5373 = vpop.f32.mrf.mxu0
    %v5374 = vadd.f32 0.0, %v5373
    %5375 = vdwg.mxu0
    %5376 = vmatprep.subr.bf16.mxu0 0
    %5377 = vmatpush1.bf16.msra.mxu0 0
    %5378 = vmatprep.subr.bf16.mxu0 0
    %5379 = vmatpush1.bf16.msra.mxu0 0
    %5380 = vmatprep.subr.bf16.mxu0 0
    %5381 = vmatpush1.bf16.msra.mxu0 0
    %5382 = vmatprep.subr.bf16.mxu0 0
    %5383 = vmatpush1.bf16.msra.mxu0 0
    %5384 = vmatprep.subr.bf16.mxu0 0
    %5385 = vmatpush1.bf16.msra.mxu0 %v4515
    %5386 = vmatprep.subr.bf16.mxu0 0
    %5387 = vmatpush1.bf16.msra.mxu0 %v4512
    %5388 = vmatprep.subr.bf16.mxu0 0
    %5389 = vmatpush1.bf16.msra.mxu0 %v4509
    %5390 = vmatprep.subr.bf16.mxu0 0
    %5391 = vmatpush1.bf16.msra.mxu0 %v4506
    %5392 = vmatprep.subr.bf16.mxu0 0
    %5393 = vmatpush2.bf16.msra.mxu0 0
    %5394 = vmatprep.subr.bf16.mxu0 0
    %5395 = vmatpush2.bf16.msra.mxu0 0
    %5396 = vmatprep.subr.bf16.mxu0 0
    %5397 = vmatpush2.bf16.msra.mxu0 0
    %5398 = vmatprep.subr.bf16.mxu0 0
    %5399 = vmatpush2.bf16.msra.mxu0 0
    %5400 = vmatprep.subr.bf16.mxu0 0
    %5401 = vmatpush2.bf16.msra.mxu0 0
    %5402 = vmatprep.subr.bf16.mxu0 0
    %5403 = vmatpush2.bf16.msra.mxu0 0
    %5404 = vmatprep.subr.bf16.mxu0 0
    %5405 = vmatpush2.bf16.msra.mxu0 0
    %5406 = vmatprep.subr.bf16.mxu0 0
    %5407 = vmatpush2.bf16.msra.mxu0 0
    %5408 = vmatprep.mubr.bf16.mxu0 0
    %5409 = vmatmul.mubr.bf16.gmra.mxu0 %v5318
    %v5410 = vpop.f32.mrf.mxu0
    %v5411 = vadd.f32 0.0, %v5410
    %v5412 = vpop.f32.mrf.mxu0
    %v5413 = vpop.f32.mrf.mxu0
    %v5414 = vadd.f32 0.0, %v5413
    %v5415 = vpop.f32.mrf.mxu0
    %5416 = vmatprep.mubr.bf16.mxu0 0
    %5417 = vmatmul.mubr.bf16.gmra.mxu0 %v5321
    %v5418 = vpop.f32.mrf.mxu0
    %v5419 = vadd.f32 0.0, %v5418
    %v5420 = vpop.f32.mrf.mxu0
    %v5421 = vpop.f32.mrf.mxu0
    %v5422 = vadd.f32 0.0, %v5421
    %v5423 = vpop.f32.mrf.mxu0
    %5424 = vdwg.mxu0
    %v5425 = vpack.c.bf16 %v5362, %v5358
    %v5426 = vpack.c.bf16 %v5364, %v5360
    %v5427 = vpack.c.bf16 %v5414, %v5411
    %v5428 = vpack.c.bf16 %v5372, %v5368
    %v5429 = vpack.c.bf16 %v5374, %v5370
    %v5430 = vpack.c.bf16 %v5422, %v5419
    %s5431 = scalar_lea.vmem %s23, 320
    %v5432 = vld [vmem:[%s5431] sm:$0xf]
    %v5433 = vld [vmem:[%s5431 + $0x4] sm:$0xf]
    %v5434 = vld [vmem:[%s5431 + $0x8] sm:$0xf]
    %v5435 = vld [vmem:[%s5431 + $0xc] sm:$0xf]
    %v5436 = vld [vmem:[%s5431 + $0x10] sm:$0xf]
    %v5437 = vld [vmem:[%s5431 + $0x14] sm:$0xf]
    %v5438 = vld [vmem:[%s5431 + $0x18] sm:$0xf]
    %v5439 = vld [vmem:[%s5431 + $0x1c] sm:$0xf]
    %v5440 = vld [vmem:[%s5431 + $0x20] sm:$0xf]
    %v5441 = vld [vmem:[%s5431 + $0x24] sm:$0xf]
    %v5442 = vld [vmem:[%s5431 + $0x28] sm:$0xf]
    %v5443 = vld [vmem:[%s5431 + $0x2c] sm:$0xf]
    %v5444 = vld [vmem:[%s5431 + $0x30] sm:$0xf]
    %v5445 = vld [vmem:[%s5431 + $0x34] sm:$0xf]
    %v5446 = vld [vmem:[%s5431 + $0x38] sm:$0xf]
    %v5447 = vld [vmem:[%s5431 + $0x3c] sm:$0xf]
    %v5448 = vld [vmem:[%s5431 + $0x40] sm:$0xf]
    %v5449 = vld [vmem:[%s5431 + $0x44] sm:$0xf]
    %v5450 = vld [vmem:[%s5431 + $0x48] sm:$0xf]
    %v5451 = vld [vmem:[%s5431 + $0x4c] sm:$0xf]
    %v5452 = vld [vmem:[%s5431 + $0x50] sm:$0xf]
    %v5453 = vld [vmem:[%s5431 + $0x54] sm:$0xf]
    %v5454 = vld [vmem:[%s5431 + $0x58] sm:$0xf]
    %v5455 = vld [vmem:[%s5431 + $0x5c] sm:$0xf]
    %v5456 = vld [vmem:[%s5431 + $0x60] sm:$0xf]
    %v5457 = vld [vmem:[%s5431 + $0x64] sm:$0xf]
    %v5458 = vld [vmem:[%s5431 + $0x68] sm:$0xf]
    %v5459 = vld [vmem:[%s5431 + $0x6c] sm:$0xf]
    %v5460 = vld [vmem:[%s5431 + $0x70] sm:$0xf]
    %v5461 = vld [vmem:[%s5431 + $0x74] sm:$0xf]
    %v5462 = vld [vmem:[%s5431 + $0x78] sm:$0xf]
    %v5463 = vld [vmem:[%s5431 + $0x7c] sm:$0xf]
    %v5464 = vld [vmem:[%s5431 + $0x80] sm:$0xf]
    %v5465 = vld [vmem:[%s5431 + $0x84] sm:$0xf]
    %v5466 = vld [vmem:[%s5431 + $0x88] sm:$0xf]
    %v5467 = vld [vmem:[%s5431 + $0x8c] sm:$0xf]
    %v5468 = vld [vmem:[%s5431 + $0x90] sm:$0xf]
    %v5469 = vld [vmem:[%s5431 + $0x94] sm:$0xf]
    %v5470 = vld [vmem:[%s5431 + $0x98] sm:$0xf]
    %v5471 = vld [vmem:[%s5431 + $0x9c] sm:$0xf]
    %v5512 = vunpack.c.l.b16 %v5432
    %v5513 = vunpack.c.l.b16 %v5433
    %v5514 = vunpack.c.l.b16 %v5434
    %v5515 = vunpack.c.l.b16 %v5435
    %v5516 = vunpack.c.l.b16 %v5436
    %v5517 = vunpack.c.l.b16 %v5437
    %v5518 = vunpack.c.l.b16 %v5438
    %v5519 = vunpack.c.l.b16 %v5439
    %v5520 = vunpack.c.l.b16 %v5440
    %v5521 = vunpack.c.l.b16 %v5441
    %v5522 = vunpack.c.l.b16 %v5442
    %v5523 = vunpack.c.l.b16 %v5443
    %v5524 = vunpack.c.l.b16 %v5444
    %v5525 = vunpack.c.l.b16 %v5445
    %v5526 = vunpack.c.l.b16 %v5446
    %v5527 = vunpack.c.l.b16 %v5447
    %v5528 = vunpack.c.l.b16 %v5448
    %v5529 = vunpack.c.l.b16 %v5449
    %v5530 = vunpack.c.l.b16 %v5450
    %v5531 = vunpack.c.l.b16 %v5451
    %v5532 = vunpack.c.l.b16 %v5452
    %v5533 = vunpack.c.l.b16 %v5453
    %v5534 = vunpack.c.l.b16 %v5454
    %v5535 = vunpack.c.l.b16 %v5455
    %v5536 = vunpack.c.l.b16 %v5456
    %v5537 = vunpack.c.l.b16 %v5457
    %v5538 = vunpack.c.l.b16 %v5458
    %v5539 = vunpack.c.l.b16 %v5459
    %v5540 = vunpack.c.l.b16 %v5460
    %v5541 = vunpack.c.l.b16 %v5461
    %v5542 = vunpack.c.l.b16 %v5462
    %v5543 = vunpack.c.l.b16 %v5463
    %v5544 = vunpack.c.l.b16 %v5464
    %v5545 = vunpack.c.l.b16 %v5465
    %v5546 = vunpack.c.l.b16 %v5466
    %v5547 = vunpack.c.l.b16 %v5467
    %v5548 = vunpack.c.l.b16 %v5468
    %v5549 = vunpack.c.l.b16 %v5469
    %v5550 = vunpack.c.l.b16 %v5470
    %v5551 = vunpack.c.l.b16 %v5471
    %v5552 = vpack.c.b16 %v5513, %v5512
    %v5553 = vpack.c.b16 %v5515, %v5514
    %v5554 = vpack.c.b16 %v5517, %v5516
    %v5555 = vpack.c.b16 %v5519, %v5518
    %v5556 = vpack.c.b16 %v5521, %v5520
    %v5557 = vpack.c.b16 %v5523, %v5522
    %v5558 = vpack.c.b16 %v5525, %v5524
    %v5559 = vpack.c.b16 %v5527, %v5526
    %v5560 = vpack.c.b16 %v5529, %v5528
    %v5561 = vpack.c.b16 %v5531, %v5530
    %v5562 = vpack.c.b16 %v5533, %v5532
    %v5563 = vpack.c.b16 %v5535, %v5534
    %v5564 = vpack.c.b16 %v5537, %v5536
    %v5565 = vpack.c.b16 %v5539, %v5538
    %v5566 = vpack.c.b16 %v5541, %v5540
    %v5567 = vpack.c.b16 %v5543, %v5542
    %v5568 = vpack.c.b16 %v5545, %v5544
    %v5569 = vpack.c.b16 %v5547, %v5546
    %v5570 = vpack.c.b16 %v5549, %v5548
    %v5571 = vpack.c.b16 %v5551, %v5550
    %v5593 = vsel %vm528, %v5427, 0
    %v5596 = vsel %vm528, %v5430, 0
    %5598 = vmatprep.subr.bf16.mxu0 0
    %5599 = vmatpush1.bf16.msra.mxu0 %v5559
    %5600 = vmatprep.subr.bf16.mxu0 0
    %5601 = vmatpush1.bf16.msra.mxu0 %v5558
    %5602 = vmatprep.subr.bf16.mxu0 0
    %5603 = vmatpush1.bf16.msra.mxu0 %v5557
    %5604 = vmatprep.subr.bf16.mxu0 0
    %5605 = vmatpush1.bf16.msra.mxu0 %v5556
    %5606 = vmatprep.subr.bf16.mxu0 0
    %5607 = vmatpush1.bf16.msra.mxu0 %v5555
    %5608 = vmatprep.subr.bf16.mxu0 0
    %5609 = vmatpush1.bf16.msra.mxu0 %v5554
    %5610 = vmatprep.subr.bf16.mxu0 0
    %5611 = vmatpush1.bf16.msra.mxu0 %v5553
    %5612 = vmatprep.subr.bf16.mxu0 0
    %5613 = vmatpush1.bf16.msra.mxu0 %v5552
    %5614 = vmatprep.subr.bf16.mxu0 0
    %5615 = vmatpush2.bf16.msra.mxu0 %v5567
    %5616 = vmatprep.subr.bf16.mxu0 0
    %5617 = vmatpush2.bf16.msra.mxu0 %v5566
    %5618 = vmatprep.subr.bf16.mxu0 0
    %5619 = vmatpush2.bf16.msra.mxu0 %v5565
    %5620 = vmatprep.subr.bf16.mxu0 0
    %5621 = vmatpush2.bf16.msra.mxu0 %v5564
    %5622 = vmatprep.subr.bf16.mxu0 0
    %5623 = vmatpush2.bf16.msra.mxu0 %v5563
    %5624 = vmatprep.subr.bf16.mxu0 0
    %5625 = vmatpush2.bf16.msra.mxu0 %v5562
    %5626 = vmatprep.subr.bf16.mxu0 0
    %5627 = vmatpush2.bf16.msra.mxu0 %v5561
    %5628 = vmatprep.subr.bf16.mxu0 0
    %5629 = vmatpush2.bf16.msra.mxu0 %v5560
    %5630 = vmatprep.mubr.bf16.mxu0 %v5426
    %5631 = vmatmul.mubr.bf16.gmra.mxu0 %v5425
    %v5632 = vpop.f32.mrf.mxu0
    %v5633 = vadd.f32 0.0, %v5632
    %v5634 = vpop.f32.mrf.mxu0
    %v5635 = vpop.f32.mrf.mxu0
    %v5636 = vadd.f32 0.0, %v5635
    %v5637 = vpop.f32.mrf.mxu0
    %5638 = vmatprep.mubr.bf16.mxu0 %v5429
    %5639 = vmatmul.mubr.bf16.gmra.mxu0 %v5428
    %v5640 = vpop.f32.mrf.mxu0
    %v5641 = vadd.f32 0.0, %v5640
    %v5642 = vpop.f32.mrf.mxu0
    %v5643 = vpop.f32.mrf.mxu0
    %v5644 = vadd.f32 0.0, %v5643
    %v5645 = vpop.f32.mrf.mxu0
    %5646 = vdwg.mxu0
    %5647 = vmatprep.subr.bf16.mxu0 0
    %5648 = vmatpush1.bf16.msra.mxu0 0
    %5649 = vmatprep.subr.bf16.mxu0 0
    %5650 = vmatpush1.bf16.msra.mxu0 0
    %5651 = vmatprep.subr.bf16.mxu0 0
    %5652 = vmatpush1.bf16.msra.mxu0 0
    %5653 = vmatprep.subr.bf16.mxu0 0
    %5654 = vmatpush1.bf16.msra.mxu0 0
    %5655 = vmatprep.subr.bf16.mxu0 0
    %5656 = vmatpush1.bf16.msra.mxu0 %v5571
    %5657 = vmatprep.subr.bf16.mxu0 0
    %5658 = vmatpush1.bf16.msra.mxu0 %v5570
    %5659 = vmatprep.subr.bf16.mxu0 0
    %5660 = vmatpush1.bf16.msra.mxu0 %v5569
    %5661 = vmatprep.subr.bf16.mxu0 0
    %5662 = vmatpush1.bf16.msra.mxu0 %v5568
    %5663 = vmatprep.subr.bf16.mxu0 0
    %5664 = vmatpush2.bf16.msra.mxu0 0
    %5665 = vmatprep.subr.bf16.mxu0 0
    %5666 = vmatpush2.bf16.msra.mxu0 0
    %5667 = vmatprep.subr.bf16.mxu0 0
    %5668 = vmatpush2.bf16.msra.mxu0 0
    %5669 = vmatprep.subr.bf16.mxu0 0
    %5670 = vmatpush2.bf16.msra.mxu0 0
    %5671 = vmatprep.subr.bf16.mxu0 0
    %5672 = vmatpush2.bf16.msra.mxu0 0
    %5673 = vmatprep.subr.bf16.mxu0 0
    %5674 = vmatpush2.bf16.msra.mxu0 0
    %5675 = vmatprep.subr.bf16.mxu0 0
    %5676 = vmatpush2.bf16.msra.mxu0 0
    %5677 = vmatprep.subr.bf16.mxu0 0
    %5678 = vmatpush2.bf16.msra.mxu0 0
    %5679 = vmatprep.mubr.bf16.mxu0 0
    %5680 = vmatmul.mubr.bf16.gmra.mxu0 %v5593
    %v5681 = vpop.f32.mrf.mxu0
    %v5682 = vadd.f32 %v5633, %v5681
    %v5683 = vpop.f32.mrf.mxu0
    %v5684 = vpop.f32.mrf.mxu0
    %v5685 = vadd.f32 %v5636, %v5684
    %v5686 = vpop.f32.mrf.mxu0
    %5687 = vmatprep.mubr.bf16.mxu0 0
    %5688 = vmatmul.mubr.bf16.gmra.mxu0 %v5596
    %v5689 = vpop.f32.mrf.mxu0
    %v5690 = vadd.f32 %v5641, %v5689
    %v5691 = vpop.f32.mrf.mxu0
    %v5692 = vpop.f32.mrf.mxu0
    %v5693 = vadd.f32 %v5644, %v5692
    %v5694 = vpop.f32.mrf.mxu0
    %5695 = vdwg.mxu0
    %v5696 = vadd.f32 %v5288, %v5682
    %v5697 = vadd.f32 %v5291, %v5685
    %v5698 = vadd.f32 %v5296, %v5690
    %v5699 = vadd.f32 %v5299, %v5693
    %s5700 = scalar_lea.vmem %s21, 48
    %v5701 = vld [vmem:[%s5700] sm:$0xf]
    %v5702 = vld [vmem:[%s5700 + $0x4] sm:$0xf]
    %v5703 = vld [vmem:[%s5700 + $0x8] sm:$0xf]
    %v5704 = vld [vmem:[%s5700 + $0xc] sm:$0xf]
    %v5709 = vunpack.c.l.b16 %v5701
    %v5710 = vunpack.c.l.b16 %v5702
    %v5711 = vunpack.c.l.b16 %v5703
    %v5712 = vunpack.c.l.b16 %v5704
    %v5713 = vpack.c.b16 %v5710, %v5709
    %v5714 = vpack.c.b16 %v5712, %v5711
    %v5716 = vsel %vm528, %v5713, 0
    %v5719 = vsel %vm528, %v5714, 0
    %5721 = vmatprep.subr.bf16.mxu0 0
    %5722 = vmatpush1.bf16.msra.mxu0 0
    %5723 = vmatprep.subr.bf16.mxu0 0
    %5724 = vmatpush1.bf16.msra.mxu0 0
    %5725 = vmatprep.subr.bf16.mxu0 0
    %5726 = vmatpush1.bf16.msra.mxu0 0
    %5727 = vmatprep.subr.bf16.mxu0 0
    %5728 = vmatpush1.bf16.msra.mxu0 0
    %5729 = vmatprep.subr.bf16.mxu0 %v4514
    %5730 = vmatpush1.bf16.msra.mxu0 %v4513
    %5731 = vmatprep.subr.bf16.mxu0 %v4511
    %5732 = vmatpush1.bf16.msra.mxu0 %v4510
    %5733 = vmatprep.subr.bf16.mxu0 %v4508
    %5734 = vmatpush1.bf16.msra.mxu0 %v4507
    %5735 = vmatprep.subr.bf16.mxu0 %v4505
    %5736 = vmatpush1.bf16.msra.mxu0 %v4504
    %5737 = vmatprep.subr.bf16.mxu0 0
    %5738 = vmatpush2.bf16.msra.mxu0 0
    %5739 = vmatprep.subr.bf16.mxu0 0
    %5740 = vmatpush2.bf16.msra.mxu0 0
    %5741 = vmatprep.subr.bf16.mxu0 0
    %5742 = vmatpush2.bf16.msra.mxu0 0
    %5743 = vmatprep.subr.bf16.mxu0 0
    %5744 = vmatpush2.bf16.msra.mxu0 0
    %5745 = vmatprep.subr.bf16.mxu0 0
    %5746 = vmatpush2.bf16.msra.mxu0 0
    %5747 = vmatprep.subr.bf16.mxu0 0
    %5748 = vmatpush2.bf16.msra.mxu0 0
    %5749 = vmatprep.subr.bf16.mxu0 0
    %5750 = vmatpush2.bf16.msra.mxu0 0
    %5751 = vmatprep.subr.bf16.mxu0 0
    %5752 = vmatpush2.bf16.msra.mxu0 0
    %5753 = vmatprep.mubr.bf16.mxu0 0
    %5754 = vmatmul.mubr.bf16.gmra.mxu0 %v5716
    %v5755 = vpop.f32.mrf.mxu0
    %v5756 = vadd.f32 0.0, %v5755
    %v5757 = vpop.f32.mrf.mxu0
    %v5758 = vadd.f32 0.0, %v5757
    %v5759 = vpop.f32.mrf.mxu0
    %v5760 = vadd.f32 0.0, %v5759
    %v5761 = vpop.f32.mrf.mxu0
    %v5762 = vadd.f32 0.0, %v5761
    %5763 = vmatprep.mubr.bf16.mxu0 0
    %5764 = vmatmul.mubr.bf16.gmra.mxu0 %v5719
    %v5765 = vpop.f32.mrf.mxu0
    %v5766 = vadd.f32 0.0, %v5765
    %v5767 = vpop.f32.mrf.mxu0
    %v5768 = vadd.f32 0.0, %v5767
    %v5769 = vpop.f32.mrf.mxu0
    %v5770 = vadd.f32 0.0, %v5769
    %v5771 = vpop.f32.mrf.mxu0
    %v5772 = vadd.f32 0.0, %v5771
    %5773 = vdwg.mxu0
    %5774 = vmatprep.subr.bf16.mxu0 0
    %5775 = vmatpush1.bf16.msra.mxu0 0
    %5776 = vmatprep.subr.bf16.mxu0 0
    %5777 = vmatpush1.bf16.msra.mxu0 0
    %5778 = vmatprep.subr.bf16.mxu0 0
    %5779 = vmatpush1.bf16.msra.mxu0 0
    %5780 = vmatprep.subr.bf16.mxu0 0
    %5781 = vmatpush1.bf16.msra.mxu0 0
    %5782 = vmatprep.subr.bf16.mxu0 0
    %5783 = vmatpush1.bf16.msra.mxu0 %v4515
    %5784 = vmatprep.subr.bf16.mxu0 0
    %5785 = vmatpush1.bf16.msra.mxu0 %v4512
    %5786 = vmatprep.subr.bf16.mxu0 0
    %5787 = vmatpush1.bf16.msra.mxu0 %v4509
    %5788 = vmatprep.subr.bf16.mxu0 0
    %5789 = vmatpush1.bf16.msra.mxu0 %v4506
    %5790 = vmatprep.subr.bf16.mxu0 0
    %5791 = vmatpush2.bf16.msra.mxu0 0
    %5792 = vmatprep.subr.bf16.mxu0 0
    %5793 = vmatpush2.bf16.msra.mxu0 0
    %5794 = vmatprep.subr.bf16.mxu0 0
    %5795 = vmatpush2.bf16.msra.mxu0 0
    %5796 = vmatprep.subr.bf16.mxu0 0
    %5797 = vmatpush2.bf16.msra.mxu0 0
    %5798 = vmatprep.subr.bf16.mxu0 0
    %5799 = vmatpush2.bf16.msra.mxu0 0
    %5800 = vmatprep.subr.bf16.mxu0 0
    %5801 = vmatpush2.bf16.msra.mxu0 0
    %5802 = vmatprep.subr.bf16.mxu0 0
    %5803 = vmatpush2.bf16.msra.mxu0 0
    %5804 = vmatprep.subr.bf16.mxu0 0
    %5805 = vmatpush2.bf16.msra.mxu0 0
    %5806 = vmatprep.mubr.bf16.mxu0 0
    %5807 = vmatmul.mubr.bf16.gmra.mxu0 %v5716
    %v5808 = vpop.f32.mrf.mxu0
    %v5809 = vadd.f32 0.0, %v5808
    %v5810 = vpop.f32.mrf.mxu0
    %v5811 = vpop.f32.mrf.mxu0
    %v5812 = vadd.f32 0.0, %v5811
    %v5813 = vpop.f32.mrf.mxu0
    %5814 = vmatprep.mubr.bf16.mxu0 0
    %5815 = vmatmul.mubr.bf16.gmra.mxu0 %v5719
    %v5816 = vpop.f32.mrf.mxu0
    %v5817 = vadd.f32 0.0, %v5816
    %v5818 = vpop.f32.mrf.mxu0
    %v5819 = vpop.f32.mrf.mxu0
    %v5820 = vadd.f32 0.0, %v5819
    %v5821 = vpop.f32.mrf.mxu0
    %5822 = vdwg.mxu0
    %v5823 = vpack.c.bf16 %v5760, %v5756
    %v5824 = vpack.c.bf16 %v5762, %v5758
    %v5825 = vpack.c.bf16 %v5812, %v5809
    %v5826 = vpack.c.bf16 %v5770, %v5766
    %v5827 = vpack.c.bf16 %v5772, %v5768
    %v5828 = vpack.c.bf16 %v5820, %v5817
    %s5829 = scalar_lea.vmem %s23, 480
    %v5830 = vld [vmem:[%s5829] sm:$0xf]
    %v5831 = vld [vmem:[%s5829 + $0x4] sm:$0xf]
    %v5832 = vld [vmem:[%s5829 + $0x8] sm:$0xf]
    %v5833 = vld [vmem:[%s5829 + $0xc] sm:$0xf]
    %v5834 = vld [vmem:[%s5829 + $0x10] sm:$0xf]
    %v5835 = vld [vmem:[%s5829 + $0x14] sm:$0xf]
    %v5836 = vld [vmem:[%s5829 + $0x18] sm:$0xf]
    %v5837 = vld [vmem:[%s5829 + $0x1c] sm:$0xf]
    %v5838 = vld [vmem:[%s5829 + $0x20] sm:$0xf]
    %v5839 = vld [vmem:[%s5829 + $0x24] sm:$0xf]
    %v5840 = vld [vmem:[%s5829 + $0x28] sm:$0xf]
    %v5841 = vld [vmem:[%s5829 + $0x2c] sm:$0xf]
    %v5842 = vld [vmem:[%s5829 + $0x30] sm:$0xf]
    %v5843 = vld [vmem:[%s5829 + $0x34] sm:$0xf]
    %v5844 = vld [vmem:[%s5829 + $0x38] sm:$0xf]
    %v5845 = vld [vmem:[%s5829 + $0x3c] sm:$0xf]
    %v5846 = vld [vmem:[%s5829 + $0x40] sm:$0xf]
    %v5847 = vld [vmem:[%s5829 + $0x44] sm:$0xf]
    %v5848 = vld [vmem:[%s5829 + $0x48] sm:$0xf]
    %v5849 = vld [vmem:[%s5829 + $0x4c] sm:$0xf]
    %v5850 = vld [vmem:[%s5829 + $0x50] sm:$0xf]
    %v5851 = vld [vmem:[%s5829 + $0x54] sm:$0xf]
    %v5852 = vld [vmem:[%s5829 + $0x58] sm:$0xf]
    %v5853 = vld [vmem:[%s5829 + $0x5c] sm:$0xf]
    %v5854 = vld [vmem:[%s5829 + $0x60] sm:$0xf]
    %v5855 = vld [vmem:[%s5829 + $0x64] sm:$0xf]
    %v5856 = vld [vmem:[%s5829 + $0x68] sm:$0xf]
    %v5857 = vld [vmem:[%s5829 + $0x6c] sm:$0xf]
    %v5858 = vld [vmem:[%s5829 + $0x70] sm:$0xf]
    %v5859 = vld [vmem:[%s5829 + $0x74] sm:$0xf]
    %v5860 = vld [vmem:[%s5829 + $0x78] sm:$0xf]
    %v5861 = vld [vmem:[%s5829 + $0x7c] sm:$0xf]
    %v5862 = vld [vmem:[%s5829 + $0x80] sm:$0xf]
    %v5863 = vld [vmem:[%s5829 + $0x84] sm:$0xf]
    %v5864 = vld [vmem:[%s5829 + $0x88] sm:$0xf]
    %v5865 = vld [vmem:[%s5829 + $0x8c] sm:$0xf]
    %v5866 = vld [vmem:[%s5829 + $0x90] sm:$0xf]
    %v5867 = vld [vmem:[%s5829 + $0x94] sm:$0xf]
    %v5868 = vld [vmem:[%s5829 + $0x98] sm:$0xf]
    %v5869 = vld [vmem:[%s5829 + $0x9c] sm:$0xf]
    %v5910 = vunpack.c.l.b16 %v5830
    %v5911 = vunpack.c.l.b16 %v5831
    %v5912 = vunpack.c.l.b16 %v5832
    %v5913 = vunpack.c.l.b16 %v5833
    %v5914 = vunpack.c.l.b16 %v5834
    %v5915 = vunpack.c.l.b16 %v5835
    %v5916 = vunpack.c.l.b16 %v5836
    %v5917 = vunpack.c.l.b16 %v5837
    %v5918 = vunpack.c.l.b16 %v5838
    %v5919 = vunpack.c.l.b16 %v5839
    %v5920 = vunpack.c.l.b16 %v5840
    %v5921 = vunpack.c.l.b16 %v5841
    %v5922 = vunpack.c.l.b16 %v5842
    %v5923 = vunpack.c.l.b16 %v5843
    %v5924 = vunpack.c.l.b16 %v5844
    %v5925 = vunpack.c.l.b16 %v5845
    %v5926 = vunpack.c.l.b16 %v5846
    %v5927 = vunpack.c.l.b16 %v5847
    %v5928 = vunpack.c.l.b16 %v5848
    %v5929 = vunpack.c.l.b16 %v5849
    %v5930 = vunpack.c.l.b16 %v5850
    %v5931 = vunpack.c.l.b16 %v5851
    %v5932 = vunpack.c.l.b16 %v5852
    %v5933 = vunpack.c.l.b16 %v5853
    %v5934 = vunpack.c.l.b16 %v5854
    %v5935 = vunpack.c.l.b16 %v5855
    %v5936 = vunpack.c.l.b16 %v5856
    %v5937 = vunpack.c.l.b16 %v5857
    %v5938 = vunpack.c.l.b16 %v5858
    %v5939 = vunpack.c.l.b16 %v5859
    %v5940 = vunpack.c.l.b16 %v5860
    %v5941 = vunpack.c.l.b16 %v5861
    %v5942 = vunpack.c.l.b16 %v5862
    %v5943 = vunpack.c.l.b16 %v5863
    %v5944 = vunpack.c.l.b16 %v5864
    %v5945 = vunpack.c.l.b16 %v5865
    %v5946 = vunpack.c.l.b16 %v5866
    %v5947 = vunpack.c.l.b16 %v5867
    %v5948 = vunpack.c.l.b16 %v5868
    %v5949 = vunpack.c.l.b16 %v5869
    %v5950 = vpack.c.b16 %v5911, %v5910
    %v5951 = vpack.c.b16 %v5913, %v5912
    %v5952 = vpack.c.b16 %v5915, %v5914
    %v5953 = vpack.c.b16 %v5917, %v5916
    %v5954 = vpack.c.b16 %v5919, %v5918
    %v5955 = vpack.c.b16 %v5921, %v5920
    %v5956 = vpack.c.b16 %v5923, %v5922
    %v5957 = vpack.c.b16 %v5925, %v5924
    %v5958 = vpack.c.b16 %v5927, %v5926
    %v5959 = vpack.c.b16 %v5929, %v5928
    %v5960 = vpack.c.b16 %v5931, %v5930
    %v5961 = vpack.c.b16 %v5933, %v5932
    %v5962 = vpack.c.b16 %v5935, %v5934
    %v5963 = vpack.c.b16 %v5937, %v5936
    %v5964 = vpack.c.b16 %v5939, %v5938
    %v5965 = vpack.c.b16 %v5941, %v5940
    %v5966 = vpack.c.b16 %v5943, %v5942
    %v5967 = vpack.c.b16 %v5945, %v5944
    %v5968 = vpack.c.b16 %v5947, %v5946
    %v5969 = vpack.c.b16 %v5949, %v5948
    %v5991 = vsel %vm528, %v5825, 0
    %v5994 = vsel %vm528, %v5828, 0
    %5996 = vmatprep.subr.bf16.mxu0 0
    %5997 = vmatpush1.bf16.msra.mxu0 %v5957
    %5998 = vmatprep.subr.bf16.mxu0 0
    %5999 = vmatpush1.bf16.msra.mxu0 %v5956
    %6000 = vmatprep.subr.bf16.mxu0 0
    %6001 = vmatpush1.bf16.msra.mxu0 %v5955
    %6002 = vmatprep.subr.bf16.mxu0 0
    %6003 = vmatpush1.bf16.msra.mxu0 %v5954
    %6004 = vmatprep.subr.bf16.mxu0 0
    %6005 = vmatpush1.bf16.msra.mxu0 %v5953
    %6006 = vmatprep.subr.bf16.mxu0 0
    %6007 = vmatpush1.bf16.msra.mxu0 %v5952
    %6008 = vmatprep.subr.bf16.mxu0 0
    %6009 = vmatpush1.bf16.msra.mxu0 %v5951
    %6010 = vmatprep.subr.bf16.mxu0 0
    %6011 = vmatpush1.bf16.msra.mxu0 %v5950
    %6012 = vmatprep.subr.bf16.mxu0 0
    %6013 = vmatpush2.bf16.msra.mxu0 %v5965
    %6014 = vmatprep.subr.bf16.mxu0 0
    %6015 = vmatpush2.bf16.msra.mxu0 %v5964
    %6016 = vmatprep.subr.bf16.mxu0 0
    %6017 = vmatpush2.bf16.msra.mxu0 %v5963
    %6018 = vmatprep.subr.bf16.mxu0 0
    %6019 = vmatpush2.bf16.msra.mxu0 %v5962
    %6020 = vmatprep.subr.bf16.mxu0 0
    %6021 = vmatpush2.bf16.msra.mxu0 %v5961
    %6022 = vmatprep.subr.bf16.mxu0 0
    %6023 = vmatpush2.bf16.msra.mxu0 %v5960
    %6024 = vmatprep.subr.bf16.mxu0 0
    %6025 = vmatpush2.bf16.msra.mxu0 %v5959
    %6026 = vmatprep.subr.bf16.mxu0 0
    %6027 = vmatpush2.bf16.msra.mxu0 %v5958
    %6028 = vmatprep.mubr.bf16.mxu0 %v5824
    %6029 = vmatmul.mubr.bf16.gmra.mxu0 %v5823
    %v6030 = vpop.f32.mrf.mxu0
    %v6031 = vadd.f32 0.0, %v6030
    %v6032 = vpop.f32.mrf.mxu0
    %v6033 = vpop.f32.mrf.mxu0
    %v6034 = vadd.f32 0.0, %v6033
    %v6035 = vpop.f32.mrf.mxu0
    %6036 = vmatprep.mubr.bf16.mxu0 %v5827
    %6037 = vmatmul.mubr.bf16.gmra.mxu0 %v5826
    %v6038 = vpop.f32.mrf.mxu0
    %v6039 = vadd.f32 0.0, %v6038
    %v6040 = vpop.f32.mrf.mxu0
    %v6041 = vpop.f32.mrf.mxu0
    %v6042 = vadd.f32 0.0, %v6041
    %v6043 = vpop.f32.mrf.mxu0
    %6044 = vdwg.mxu0
    %6045 = vmatprep.subr.bf16.mxu0 0
    %6046 = vmatpush1.bf16.msra.mxu0 0
    %6047 = vmatprep.subr.bf16.mxu0 0
    %6048 = vmatpush1.bf16.msra.mxu0 0
    %6049 = vmatprep.subr.bf16.mxu0 0
    %6050 = vmatpush1.bf16.msra.mxu0 0
    %6051 = vmatprep.subr.bf16.mxu0 0
    %6052 = vmatpush1.bf16.msra.mxu0 0
    %6053 = vmatprep.subr.bf16.mxu0 0
    %6054 = vmatpush1.bf16.msra.mxu0 %v5969
    %6055 = vmatprep.subr.bf16.mxu0 0
    %6056 = vmatpush1.bf16.msra.mxu0 %v5968
    %6057 = vmatprep.subr.bf16.mxu0 0
    %6058 = vmatpush1.bf16.msra.mxu0 %v5967
    %6059 = vmatprep.subr.bf16.mxu0 0
    %6060 = vmatpush1.bf16.msra.mxu0 %v5966
    %6061 = vmatprep.subr.bf16.mxu0 0
    %6062 = vmatpush2.bf16.msra.mxu0 0
    %6063 = vmatprep.subr.bf16.mxu0 0
    %6064 = vmatpush2.bf16.msra.mxu0 0
    %6065 = vmatprep.subr.bf16.mxu0 0
    %6066 = vmatpush2.bf16.msra.mxu0 0
    %6067 = vmatprep.subr.bf16.mxu0 0
    %6068 = vmatpush2.bf16.msra.mxu0 0
    %6069 = vmatprep.subr.bf16.mxu0 0
    %6070 = vmatpush2.bf16.msra.mxu0 0
    %6071 = vmatprep.subr.bf16.mxu0 0
    %6072 = vmatpush2.bf16.msra.mxu0 0
    %6073 = vmatprep.subr.bf16.mxu0 0
    %6074 = vmatpush2.bf16.msra.mxu0 0
    %6075 = vmatprep.subr.bf16.mxu0 0
    %6076 = vmatpush2.bf16.msra.mxu0 0
    %6077 = vmatprep.mubr.bf16.mxu0 0
    %6078 = vmatmul.mubr.bf16.gmra.mxu0 %v5991
    %v6079 = vpop.f32.mrf.mxu0
    %v6080 = vadd.f32 %v6031, %v6079
    %v6081 = vpop.f32.mrf.mxu0
    %v6082 = vpop.f32.mrf.mxu0
    %v6083 = vadd.f32 %v6034, %v6082
    %v6084 = vpop.f32.mrf.mxu0
    %6085 = vmatprep.mubr.bf16.mxu0 0
    %6086 = vmatmul.mubr.bf16.gmra.mxu0 %v5994
    %v6087 = vpop.f32.mrf.mxu0
    %v6088 = vadd.f32 %v6039, %v6087
    %v6089 = vpop.f32.mrf.mxu0
    %v6090 = vpop.f32.mrf.mxu0
    %v6091 = vadd.f32 %v6042, %v6090
    %v6092 = vpop.f32.mrf.mxu0
    %6093 = vdwg.mxu0
    %v6094 = vadd.f32 %v5696, %v6080
    %v6095 = vadd.f32 %v5697, %v6083
    %v6096 = vadd.f32 %v5698, %v6088
    %v6097 = vadd.f32 %v5699, %v6091
    %s6098 = scalar_lea.vmem %s21, 64
    %v6099 = vld [vmem:[%s6098] sm:$0xf]
    %v6100 = vld [vmem:[%s6098 + $0x4] sm:$0xf]
    %v6101 = vld [vmem:[%s6098 + $0x8] sm:$0xf]
    %v6102 = vld [vmem:[%s6098 + $0xc] sm:$0xf]
    %v6107 = vunpack.c.l.b16 %v6099
    %v6108 = vunpack.c.l.b16 %v6100
    %v6109 = vunpack.c.l.b16 %v6101
    %v6110 = vunpack.c.l.b16 %v6102
    %v6111 = vpack.c.b16 %v6108, %v6107
    %v6112 = vpack.c.b16 %v6110, %v6109
    %v6114 = vsel %vm528, %v6111, 0
    %v6117 = vsel %vm528, %v6112, 0
    %6119 = vmatprep.subr.bf16.mxu0 0
    %6120 = vmatpush1.bf16.msra.mxu0 0
    %6121 = vmatprep.subr.bf16.mxu0 0
    %6122 = vmatpush1.bf16.msra.mxu0 0
    %6123 = vmatprep.subr.bf16.mxu0 0
    %6124 = vmatpush1.bf16.msra.mxu0 0
    %6125 = vmatprep.subr.bf16.mxu0 0
    %6126 = vmatpush1.bf16.msra.mxu0 0
    %6127 = vmatprep.subr.bf16.mxu0 %v4514
    %6128 = vmatpush1.bf16.msra.mxu0 %v4513
    %6129 = vmatprep.subr.bf16.mxu0 %v4511
    %6130 = vmatpush1.bf16.msra.mxu0 %v4510
    %6131 = vmatprep.subr.bf16.mxu0 %v4508
    %6132 = vmatpush1.bf16.msra.mxu0 %v4507
    %6133 = vmatprep.subr.bf16.mxu0 %v4505
    %6134 = vmatpush1.bf16.msra.mxu0 %v4504
    %6135 = vmatprep.subr.bf16.mxu0 0
    %6136 = vmatpush2.bf16.msra.mxu0 0
    %6137 = vmatprep.subr.bf16.mxu0 0
    %6138 = vmatpush2.bf16.msra.mxu0 0
    %6139 = vmatprep.subr.bf16.mxu0 0
    %6140 = vmatpush2.bf16.msra.mxu0 0
    %6141 = vmatprep.subr.bf16.mxu0 0
    %6142 = vmatpush2.bf16.msra.mxu0 0
    %6143 = vmatprep.subr.bf16.mxu0 0
    %6144 = vmatpush2.bf16.msra.mxu0 0
    %6145 = vmatprep.subr.bf16.mxu0 0
    %6146 = vmatpush2.bf16.msra.mxu0 0
    %6147 = vmatprep.subr.bf16.mxu0 0
    %6148 = vmatpush2.bf16.msra.mxu0 0
    %6149 = vmatprep.subr.bf16.mxu0 0
    %6150 = vmatpush2.bf16.msra.mxu0 0
    %6151 = vmatprep.mubr.bf16.mxu0 0
    %6152 = vmatmul.mubr.bf16.gmra.mxu0 %v6114
    %v6153 = vpop.f32.mrf.mxu0
    %v6154 = vadd.f32 0.0, %v6153
    %v6155 = vpop.f32.mrf.mxu0
    %v6156 = vadd.f32 0.0, %v6155
    %v6157 = vpop.f32.mrf.mxu0
    %v6158 = vadd.f32 0.0, %v6157
    %v6159 = vpop.f32.mrf.mxu0
    %v6160 = vadd.f32 0.0, %v6159
    %6161 = vmatprep.mubr.bf16.mxu0 0
    %6162 = vmatmul.mubr.bf16.gmra.mxu0 %v6117
    %v6163 = vpop.f32.mrf.mxu0
    %v6164 = vadd.f32 0.0, %v6163
    %v6165 = vpop.f32.mrf.mxu0
    %v6166 = vadd.f32 0.0, %v6165
    %v6167 = vpop.f32.mrf.mxu0
    %v6168 = vadd.f32 0.0, %v6167
    %v6169 = vpop.f32.mrf.mxu0
    %v6170 = vadd.f32 0.0, %v6169
    %6171 = vdwg.mxu0
    %6172 = vmatprep.subr.bf16.mxu0 0
    %6173 = vmatpush1.bf16.msra.mxu0 0
    %6174 = vmatprep.subr.bf16.mxu0 0
    %6175 = vmatpush1.bf16.msra.mxu0 0
    %6176 = vmatprep.subr.bf16.mxu0 0
    %6177 = vmatpush1.bf16.msra.mxu0 0
    %6178 = vmatprep.subr.bf16.mxu0 0
    %6179 = vmatpush1.bf16.msra.mxu0 0
    %6180 = vmatprep.subr.bf16.mxu0 0
    %6181 = vmatpush1.bf16.msra.mxu0 %v4515
    %6182 = vmatprep.subr.bf16.mxu0 0
    %6183 = vmatpush1.bf16.msra.mxu0 %v4512
    %6184 = vmatprep.subr.bf16.mxu0 0
    %6185 = vmatpush1.bf16.msra.mxu0 %v4509
    %6186 = vmatprep.subr.bf16.mxu0 0
    %6187 = vmatpush1.bf16.msra.mxu0 %v4506
    %6188 = vmatprep.subr.bf16.mxu0 0
    %6189 = vmatpush2.bf16.msra.mxu0 0
    %6190 = vmatprep.subr.bf16.mxu0 0
    %6191 = vmatpush2.bf16.msra.mxu0 0
    %6192 = vmatprep.subr.bf16.mxu0 0
    %6193 = vmatpush2.bf16.msra.mxu0 0
    %6194 = vmatprep.subr.bf16.mxu0 0
    %6195 = vmatpush2.bf16.msra.mxu0 0
    %6196 = vmatprep.subr.bf16.mxu0 0
    %6197 = vmatpush2.bf16.msra.mxu0 0
    %6198 = vmatprep.subr.bf16.mxu0 0
    %6199 = vmatpush2.bf16.msra.mxu0 0
    %6200 = vmatprep.subr.bf16.mxu0 0
    %6201 = vmatpush2.bf16.msra.mxu0 0
    %6202 = vmatprep.subr.bf16.mxu0 0
    %6203 = vmatpush2.bf16.msra.mxu0 0
    %6204 = vmatprep.mubr.bf16.mxu0 0
    %6205 = vmatmul.mubr.bf16.gmra.mxu0 %v6114
    %v6206 = vpop.f32.mrf.mxu0
    %v6207 = vadd.f32 0.0, %v6206
    %v6208 = vpop.f32.mrf.mxu0
    %v6209 = vpop.f32.mrf.mxu0
    %v6210 = vadd.f32 0.0, %v6209
    %v6211 = vpop.f32.mrf.mxu0
    %6212 = vmatprep.mubr.bf16.mxu0 0
    %6213 = vmatmul.mubr.bf16.gmra.mxu0 %v6117
    %v6214 = vpop.f32.mrf.mxu0
    %v6215 = vadd.f32 0.0, %v6214
    %v6216 = vpop.f32.mrf.mxu0
    %v6217 = vpop.f32.mrf.mxu0
    %v6218 = vadd.f32 0.0, %v6217
    %v6219 = vpop.f32.mrf.mxu0
    %6220 = vdwg.mxu0
    %v6221 = vpack.c.bf16 %v6158, %v6154
    %v6222 = vpack.c.bf16 %v6160, %v6156
    %v6223 = vpack.c.bf16 %v6210, %v6207
    %v6224 = vpack.c.bf16 %v6168, %v6164
    %v6225 = vpack.c.bf16 %v6170, %v6166
    %v6226 = vpack.c.bf16 %v6218, %v6215
    %s6227 = scalar_lea.vmem %s23, 640
    %v6228 = vld [vmem:[%s6227] sm:$0xf]
    %v6229 = vld [vmem:[%s6227 + $0x4] sm:$0xf]
    %v6230 = vld [vmem:[%s6227 + $0x8] sm:$0xf]
    %v6231 = vld [vmem:[%s6227 + $0xc] sm:$0xf]
    %v6232 = vld [vmem:[%s6227 + $0x10] sm:$0xf]
    %v6233 = vld [vmem:[%s6227 + $0x14] sm:$0xf]
    %v6234 = vld [vmem:[%s6227 + $0x18] sm:$0xf]
    %v6235 = vld [vmem:[%s6227 + $0x1c] sm:$0xf]
    %v6236 = vld [vmem:[%s6227 + $0x20] sm:$0xf]
    %v6237 = vld [vmem:[%s6227 + $0x24] sm:$0xf]
    %v6238 = vld [vmem:[%s6227 + $0x28] sm:$0xf]
    %v6239 = vld [vmem:[%s6227 + $0x2c] sm:$0xf]
    %v6240 = vld [vmem:[%s6227 + $0x30] sm:$0xf]
    %v6241 = vld [vmem:[%s6227 + $0x34] sm:$0xf]
    %v6242 = vld [vmem:[%s6227 + $0x38] sm:$0xf]
    %v6243 = vld [vmem:[%s6227 + $0x3c] sm:$0xf]
    %v6244 = vld [vmem:[%s6227 + $0x40] sm:$0xf]
    %v6245 = vld [vmem:[%s6227 + $0x44] sm:$0xf]
    %v6246 = vld [vmem:[%s6227 + $0x48] sm:$0xf]
    %v6247 = vld [vmem:[%s6227 + $0x4c] sm:$0xf]
    %v6248 = vld [vmem:[%s6227 + $0x50] sm:$0xf]
    %v6249 = vld [vmem:[%s6227 + $0x54] sm:$0xf]
    %v6250 = vld [vmem:[%s6227 + $0x58] sm:$0xf]
    %v6251 = vld [vmem:[%s6227 + $0x5c] sm:$0xf]
    %v6252 = vld [vmem:[%s6227 + $0x60] sm:$0xf]
    %v6253 = vld [vmem:[%s6227 + $0x64] sm:$0xf]
    %v6254 = vld [vmem:[%s6227 + $0x68] sm:$0xf]
    %v6255 = vld [vmem:[%s6227 + $0x6c] sm:$0xf]
    %v6256 = vld [vmem:[%s6227 + $0x70] sm:$0xf]
    %v6257 = vld [vmem:[%s6227 + $0x74] sm:$0xf]
    %v6258 = vld [vmem:[%s6227 + $0x78] sm:$0xf]
    %v6259 = vld [vmem:[%s6227 + $0x7c] sm:$0xf]
    %v6260 = vld [vmem:[%s6227 + $0x80] sm:$0xf]
    %v6261 = vld [vmem:[%s6227 + $0x84] sm:$0xf]
    %v6262 = vld [vmem:[%s6227 + $0x88] sm:$0xf]
    %v6263 = vld [vmem:[%s6227 + $0x8c] sm:$0xf]
    %v6264 = vld [vmem:[%s6227 + $0x90] sm:$0xf]
    %v6265 = vld [vmem:[%s6227 + $0x94] sm:$0xf]
    %v6266 = vld [vmem:[%s6227 + $0x98] sm:$0xf]
    %v6267 = vld [vmem:[%s6227 + $0x9c] sm:$0xf]
    %v6308 = vunpack.c.l.b16 %v6228
    %v6309 = vunpack.c.l.b16 %v6229
    %v6310 = vunpack.c.l.b16 %v6230
    %v6311 = vunpack.c.l.b16 %v6231
    %v6312 = vunpack.c.l.b16 %v6232
    %v6313 = vunpack.c.l.b16 %v6233
    %v6314 = vunpack.c.l.b16 %v6234
    %v6315 = vunpack.c.l.b16 %v6235
    %v6316 = vunpack.c.l.b16 %v6236
    %v6317 = vunpack.c.l.b16 %v6237
    %v6318 = vunpack.c.l.b16 %v6238
    %v6319 = vunpack.c.l.b16 %v6239
    %v6320 = vunpack.c.l.b16 %v6240
    %v6321 = vunpack.c.l.b16 %v6241
    %v6322 = vunpack.c.l.b16 %v6242
    %v6323 = vunpack.c.l.b16 %v6243
    %v6324 = vunpack.c.l.b16 %v6244
    %v6325 = vunpack.c.l.b16 %v6245
    %v6326 = vunpack.c.l.b16 %v6246
    %v6327 = vunpack.c.l.b16 %v6247
    %v6328 = vunpack.c.l.b16 %v6248
    %v6329 = vunpack.c.l.b16 %v6249
    %v6330 = vunpack.c.l.b16 %v6250
    %v6331 = vunpack.c.l.b16 %v6251
    %v6332 = vunpack.c.l.b16 %v6252
    %v6333 = vunpack.c.l.b16 %v6253
    %v6334 = vunpack.c.l.b16 %v6254
    %v6335 = vunpack.c.l.b16 %v6255
    %v6336 = vunpack.c.l.b16 %v6256
    %v6337 = vunpack.c.l.b16 %v6257
    %v6338 = vunpack.c.l.b16 %v6258
    %v6339 = vunpack.c.l.b16 %v6259
    %v6340 = vunpack.c.l.b16 %v6260
    %v6341 = vunpack.c.l.b16 %v6261
    %v6342 = vunpack.c.l.b16 %v6262
    %v6343 = vunpack.c.l.b16 %v6263
    %v6344 = vunpack.c.l.b16 %v6264
    %v6345 = vunpack.c.l.b16 %v6265
    %v6346 = vunpack.c.l.b16 %v6266
    %v6347 = vunpack.c.l.b16 %v6267
    %v6348 = vpack.c.b16 %v6309, %v6308
    %v6349 = vpack.c.b16 %v6311, %v6310
    %v6350 = vpack.c.b16 %v6313, %v6312
    %v6351 = vpack.c.b16 %v6315, %v6314
    %v6352 = vpack.c.b16 %v6317, %v6316
    %v6353 = vpack.c.b16 %v6319, %v6318
    %v6354 = vpack.c.b16 %v6321, %v6320
    %v6355 = vpack.c.b16 %v6323, %v6322
    %v6356 = vpack.c.b16 %v6325, %v6324
    %v6357 = vpack.c.b16 %v6327, %v6326
    %v6358 = vpack.c.b16 %v6329, %v6328
    %v6359 = vpack.c.b16 %v6331, %v6330
    %v6360 = vpack.c.b16 %v6333, %v6332
    %v6361 = vpack.c.b16 %v6335, %v6334
    %v6362 = vpack.c.b16 %v6337, %v6336
    %v6363 = vpack.c.b16 %v6339, %v6338
    %v6364 = vpack.c.b16 %v6341, %v6340
    %v6365 = vpack.c.b16 %v6343, %v6342
    %v6366 = vpack.c.b16 %v6345, %v6344
    %v6367 = vpack.c.b16 %v6347, %v6346
    %v6389 = vsel %vm528, %v6223, 0
    %v6392 = vsel %vm528, %v6226, 0
    %6394 = vmatprep.subr.bf16.mxu0 0
    %6395 = vmatpush1.bf16.msra.mxu0 %v6355
    %6396 = vmatprep.subr.bf16.mxu0 0
    %6397 = vmatpush1.bf16.msra.mxu0 %v6354
    %6398 = vmatprep.subr.bf16.mxu0 0
    %6399 = vmatpush1.bf16.msra.mxu0 %v6353
    %6400 = vmatprep.subr.bf16.mxu0 0
    %6401 = vmatpush1.bf16.msra.mxu0 %v6352
    %6402 = vmatprep.subr.bf16.mxu0 0
    %6403 = vmatpush1.bf16.msra.mxu0 %v6351
    %6404 = vmatprep.subr.bf16.mxu0 0
    %6405 = vmatpush1.bf16.msra.mxu0 %v6350
    %6406 = vmatprep.subr.bf16.mxu0 0
    %6407 = vmatpush1.bf16.msra.mxu0 %v6349
    %6408 = vmatprep.subr.bf16.mxu0 0
    %6409 = vmatpush1.bf16.msra.mxu0 %v6348
    %6410 = vmatprep.subr.bf16.mxu0 0
    %6411 = vmatpush2.bf16.msra.mxu0 %v6363
    %6412 = vmatprep.subr.bf16.mxu0 0
    %6413 = vmatpush2.bf16.msra.mxu0 %v6362
    %6414 = vmatprep.subr.bf16.mxu0 0
    %6415 = vmatpush2.bf16.msra.mxu0 %v6361
    %6416 = vmatprep.subr.bf16.mxu0 0
    %6417 = vmatpush2.bf16.msra.mxu0 %v6360
    %6418 = vmatprep.subr.bf16.mxu0 0
    %6419 = vmatpush2.bf16.msra.mxu0 %v6359
    %6420 = vmatprep.subr.bf16.mxu0 0
    %6421 = vmatpush2.bf16.msra.mxu0 %v6358
    %6422 = vmatprep.subr.bf16.mxu0 0
    %6423 = vmatpush2.bf16.msra.mxu0 %v6357
    %6424 = vmatprep.subr.bf16.mxu0 0
    %6425 = vmatpush2.bf16.msra.mxu0 %v6356
    %6426 = vmatprep.mubr.bf16.mxu0 %v6222
    %6427 = vmatmul.mubr.bf16.gmra.mxu0 %v6221
    %v6428 = vpop.f32.mrf.mxu0
    %v6429 = vadd.f32 0.0, %v6428
    %v6430 = vpop.f32.mrf.mxu0
    %v6431 = vpop.f32.mrf.mxu0
    %v6432 = vadd.f32 0.0, %v6431
    %v6433 = vpop.f32.mrf.mxu0
    %6434 = vmatprep.mubr.bf16.mxu0 %v6225
    %6435 = vmatmul.mubr.bf16.gmra.mxu0 %v6224
    %v6436 = vpop.f32.mrf.mxu0
    %v6437 = vadd.f32 0.0, %v6436
    %v6438 = vpop.f32.mrf.mxu0
    %v6439 = vpop.f32.mrf.mxu0
    %v6440 = vadd.f32 0.0, %v6439
    %v6441 = vpop.f32.mrf.mxu0
    %6442 = vdwg.mxu0
    %6443 = vmatprep.subr.bf16.mxu0 0
    %6444 = vmatpush1.bf16.msra.mxu0 0
    %6445 = vmatprep.subr.bf16.mxu0 0
    %6446 = vmatpush1.bf16.msra.mxu0 0
    %6447 = vmatprep.subr.bf16.mxu0 0
    %6448 = vmatpush1.bf16.msra.mxu0 0
    %6449 = vmatprep.subr.bf16.mxu0 0
    %6450 = vmatpush1.bf16.msra.mxu0 0
    %6451 = vmatprep.subr.bf16.mxu0 0
    %6452 = vmatpush1.bf16.msra.mxu0 %v6367
    %6453 = vmatprep.subr.bf16.mxu0 0
    %6454 = vmatpush1.bf16.msra.mxu0 %v6366
    %6455 = vmatprep.subr.bf16.mxu0 0
    %6456 = vmatpush1.bf16.msra.mxu0 %v6365
    %6457 = vmatprep.subr.bf16.mxu0 0
    %6458 = vmatpush1.bf16.msra.mxu0 %v6364
    %6459 = vmatprep.subr.bf16.mxu0 0
    %6460 = vmatpush2.bf16.msra.mxu0 0
    %6461 = vmatprep.subr.bf16.mxu0 0
    %6462 = vmatpush2.bf16.msra.mxu0 0
    %6463 = vmatprep.subr.bf16.mxu0 0
    %6464 = vmatpush2.bf16.msra.mxu0 0
    %6465 = vmatprep.subr.bf16.mxu0 0
    %6466 = vmatpush2.bf16.msra.mxu0 0
    %6467 = vmatprep.subr.bf16.mxu0 0
    %6468 = vmatpush2.bf16.msra.mxu0 0
    %6469 = vmatprep.subr.bf16.mxu0 0
    %6470 = vmatpush2.bf16.msra.mxu0 0
    %6471 = vmatprep.subr.bf16.mxu0 0
    %6472 = vmatpush2.bf16.msra.mxu0 0
    %6473 = vmatprep.subr.bf16.mxu0 0
    %6474 = vmatpush2.bf16.msra.mxu0 0
    %6475 = vmatprep.mubr.bf16.mxu0 0
    %6476 = vmatmul.mubr.bf16.gmra.mxu0 %v6389
    %v6477 = vpop.f32.mrf.mxu0
    %v6478 = vadd.f32 %v6429, %v6477
    %v6479 = vpop.f32.mrf.mxu0
    %v6480 = vpop.f32.mrf.mxu0
    %v6481 = vadd.f32 %v6432, %v6480
    %v6482 = vpop.f32.mrf.mxu0
    %6483 = vmatprep.mubr.bf16.mxu0 0
    %6484 = vmatmul.mubr.bf16.gmra.mxu0 %v6392
    %v6485 = vpop.f32.mrf.mxu0
    %v6486 = vadd.f32 %v6437, %v6485
    %v6487 = vpop.f32.mrf.mxu0
    %v6488 = vpop.f32.mrf.mxu0
    %v6489 = vadd.f32 %v6440, %v6488
    %v6490 = vpop.f32.mrf.mxu0
    %6491 = vdwg.mxu0
    %v6492 = vadd.f32 %v6094, %v6478
    %v6493 = vadd.f32 %v6095, %v6481
    %v6494 = vadd.f32 %v6096, %v6486
    %v6495 = vadd.f32 %v6097, %v6489
    %v6496 = vld [vmem:[%s25] sm:$0x1]
    %v6498 = vlaneseq
    %v6499 = vshrl.u32 %v6498, 7
    %v6500 = vsub.s32 0, %v6499
    %v6501 = vrot.slane %v6496, %v6500
    %v6503 = vadd.f32 %v6492, %v6501
    %v6504 = vadd.f32 %v6493, %v6501
    %v6505 = vadd.f32 %v6494, %v6501
    %v6506 = vadd.f32 %v6495, %v6501
    %v6507 = vld [vmem:[%s31] sm:$0xff]
    %v6508 = vld [vmem:[%s31 + $0x8] sm:$0xff]
    %v6509 = vld [vmem:[%s31 + $0x10] sm:$0xff]
    %v6510 = vld [vmem:[%s31 + $0x18] sm:$0xff]
    %v6511 = vld [vmem:[%s31 + $0x20] sm:$0xff]
    %v6512 = vld [vmem:[%s31 + $0x28] sm:$0xff]
    %v6513 = vld [vmem:[%s31 + $0x30] sm:$0xff]
    %v6514 = vld [vmem:[%s31 + $0x38] sm:$0xff]
    %v6515 = vld [vmem:[%s31 + $0x40] sm:$0xff]
    %v6516 = vld [vmem:[%s31 + $0x48] sm:$0xff]
    %v6517 = vld [vmem:[%s31 + $0x50] sm:$0xff]
    %v6518 = vld [vmem:[%s31 + $0x58] sm:$0xff]
    %v6519 = vld [vmem:[%s31 + $0x60] sm:$0xff]
    %v6520 = vld [vmem:[%s31 + $0x68] sm:$0xff]
    %v6521 = vld [vmem:[%s31 + $0x70] sm:$0xff]
    %v6522 = vld [vmem:[%s31 + $0x78] sm:$0xff]
    %v6523 = vld [vmem:[%s33] sm:$0xff]
    %v6524 = vadd.f32 %v6503, %v6504
    %v6525 = vadd.f32 %v6524, %v6505
    %v6526 = vadd.f32 %v6525, %v6506
    %v6527 = vrot.slane %v6526, 4
    %v6528 = vadd.f32 %v6526, %v6527
    %v6529 = vrot.slane %v6528, 2
    %v6530 = vadd.f32 %v6528, %v6529
    %v6531 = vrot.slane %v6530, 1
    %v6532 = vadd.f32 %v6530, %v6531
    %6533 = vmatprep.subr.mxu0 0.0
    %6534 = vmatpush1.msra.mxu0 %v6522
    %6535 = vmatprep.subr.mxu0 0.0
    %6536 = vmatpush1.msra.mxu0 %v6521
    %6537 = vmatprep.subr.mxu0 0.0
    %6538 = vmatpush1.msra.mxu0 %v6520
    %6539 = vmatprep.subr.mxu0 0.0
    %6540 = vmatpush1.msra.mxu0 %v6519
    %6541 = vmatprep.subr.mxu0 0.0
    %6542 = vmatpush1.msra.mxu0 %v6518
    %6543 = vmatprep.subr.mxu0 0.0
    %6544 = vmatpush1.msra.mxu0 %v6517
    %6545 = vmatprep.subr.mxu0 0.0
    %6546 = vmatpush1.msra.mxu0 %v6516
    %6547 = vmatprep.subr.mxu0 0.0
    %6548 = vmatpush1.msra.mxu0 %v6515
    %6549 = vmatprep.subr.mxu0 0.0
    %6550 = vmatpush1.msra.mxu0 %v6514
    %6551 = vmatprep.subr.mxu0 0.0
    %6552 = vmatpush1.msra.mxu0 %v6513
    %6553 = vmatprep.subr.mxu0 0.0
    %6554 = vmatpush1.msra.mxu0 %v6512
    %6555 = vmatprep.subr.mxu0 0.0
    %6556 = vmatpush1.msra.mxu0 %v6511
    %6557 = vmatprep.subr.mxu0 0.0
    %6558 = vmatpush1.msra.mxu0 %v6510
    %6559 = vmatprep.subr.mxu0 0.0
    %6560 = vmatpush1.msra.mxu0 %v6509
    %6561 = vmatprep.subr.mxu0 0.0
    %6562 = vmatpush1.msra.mxu0 %v6508
    %6563 = vmatprep.subr.mxu0 0.0
    %6564 = vmatpush1.msra.mxu0 %v6507
    %6565 = vmatprep.subr.mxu0 0.0
    %6566 = vmatpush2.msra.mxu0 0.0
    %6567 = vmatprep.subr.mxu0 0.0
    %6568 = vmatpush2.msra.mxu0 0.0
    %6569 = vmatprep.subr.mxu0 0.0
    %6570 = vmatpush2.msra.mxu0 0.0
    %6571 = vmatprep.subr.mxu0 0.0
    %6572 = vmatpush2.msra.mxu0 0.0
    %6573 = vmatprep.subr.mxu0 0.0
    %6574 = vmatpush2.msra.mxu0 0.0
    %6575 = vmatprep.subr.mxu0 0.0
    %6576 = vmatpush2.msra.mxu0 0.0
    %6577 = vmatprep.subr.mxu0 0.0
    %6578 = vmatpush2.msra.mxu0 0.0
    %6579 = vmatprep.subr.mxu0 0.0
    %6580 = vmatpush2.msra.mxu0 0.0
    %6581 = vmatprep.subr.mxu0 0.0
    %6582 = vmatpush2.msra.mxu0 0.0
    %6583 = vmatprep.subr.mxu0 0.0
    %6584 = vmatpush2.msra.mxu0 0.0
    %6585 = vmatprep.subr.mxu0 0.0
    %6586 = vmatpush2.msra.mxu0 0.0
    %6587 = vmatprep.subr.mxu0 0.0
    %6588 = vmatpush2.msra.mxu0 0.0
    %6589 = vmatprep.subr.mxu0 0.0
    %6590 = vmatpush2.msra.mxu0 0.0
    %6591 = vmatprep.subr.mxu0 0.0
    %6592 = vmatpush2.msra.mxu0 0.0
    %6593 = vmatprep.subr.mxu0 0.0
    %6594 = vmatpush2.msra.mxu0 0.0
    %6595 = vmatprep.subr.mxu0 0.0
    %6596 = vmatpush2.msra.mxu0 0.0
    %6597 = vmatprep.mubr.f32.mxu0 0.0
    %6598 = vmatmul.mubr.f32.gmra.mxu0 %v6532
    %v6599 = vpop.f32.mrf.mxu0
    %v6600 = vadd.f32 0.0, %v6599
    %v6601 = vpop.f32.mrf.mxu0
    %6602 = vdwg.mxu0
    %vm6603 = vcmask 64512
    %v6605 = vsel %vm6603, %v6600, 0
    %6607 = vmatprep.subr.mxu0 0.0
    %6608 = vmatpush1.msra.mxu0 0.0
    %6609 = vmatprep.subr.mxu0 0.0
    %6610 = vmatpush1.msra.mxu0 0.0
    %6611 = vmatprep.subr.mxu0 0.0
    %6612 = vmatpush1.msra.mxu0 0.0
    %6613 = vmatprep.subr.mxu0 0.0
    %6614 = vmatpush1.msra.mxu0 0.0
    %6615 = vmatprep.subr.mxu0 0.0
    %6616 = vmatpush1.msra.mxu0 0.0
    %6617 = vmatprep.subr.mxu0 0.0
    %6618 = vmatpush1.msra.mxu0 0.0
    %6619 = vmatprep.subr.mxu0 0.0
    %6620 = vmatpush1.msra.mxu0 0.0
    %6621 = vmatprep.subr.mxu0 0.0
    %6622 = vmatpush1.msra.mxu0 0.0
    %6623 = vmatprep.subr.mxu0 0.0
    %6624 = vmatpush1.msra.mxu0 0.0
    %6625 = vmatprep.subr.mxu0 0.0
    %6626 = vmatpush1.msra.mxu0 0.0
    %6627 = vmatprep.subr.mxu0 0.0
    %6628 = vmatpush1.msra.mxu0 0.0
    %6629 = vmatprep.subr.mxu0 0.0
    %6630 = vmatpush1.msra.mxu0 0.0
    %6631 = vmatprep.subr.mxu0 0.0
    %6632 = vmatpush1.msra.mxu0 0.0
    %6633 = vmatprep.subr.mxu0 0.0
    %6634 = vmatpush1.msra.mxu0 0.0
    %6635 = vmatprep.subr.mxu0 0.0
    %6636 = vmatpush1.msra.mxu0 0.0
    %6637 = vmatprep.subr.mxu0 0.0
    %6638 = vmatpush1.msra.mxu0 %v6523
    %6639 = vmatprep.subr.mxu0 0.0
    %6640 = vmatpush2.msra.mxu0 0.0
    %6641 = vmatprep.subr.mxu0 0.0
    %6642 = vmatpush2.msra.mxu0 0.0
    %6643 = vmatprep.subr.mxu0 0.0
    %6644 = vmatpush2.msra.mxu0 0.0
    %6645 = vmatprep.subr.mxu0 0.0
    %6646 = vmatpush2.msra.mxu0 0.0
    %6647 = vmatprep.subr.mxu0 0.0
    %6648 = vmatpush2.msra.mxu0 0.0
    %6649 = vmatprep.subr.mxu0 0.0
    %6650 = vmatpush2.msra.mxu0 0.0
    %6651 = vmatprep.subr.mxu0 0.0
    %6652 = vmatpush2.msra.mxu0 0.0
    %6653 = vmatprep.subr.mxu0 0.0
    %6654 = vmatpush2.msra.mxu0 0.0
    %6655 = vmatprep.subr.mxu0 0.0
    %6656 = vmatpush2.msra.mxu0 0.0
    %6657 = vmatprep.subr.mxu0 0.0
    %6658 = vmatpush2.msra.mxu0 0.0
    %6659 = vmatprep.subr.mxu0 0.0
    %6660 = vmatpush2.msra.mxu0 0.0
    %6661 = vmatprep.subr.mxu0 0.0
    %6662 = vmatpush2.msra.mxu0 0.0
    %6663 = vmatprep.subr.mxu0 0.0
    %6664 = vmatpush2.msra.mxu0 0.0
    %6665 = vmatprep.subr.mxu0 0.0
    %6666 = vmatpush2.msra.mxu0 0.0
    %6667 = vmatprep.subr.mxu0 0.0
    %6668 = vmatpush2.msra.mxu0 0.0
    %6669 = vmatprep.subr.mxu0 0.0
    %6670 = vmatpush2.msra.mxu0 0.0
    %6671 = vmatprep.mubr.f32.mxu0 0.0
    %6672 = vmatmul.mubr.f32.gmra.mxu0 %v6605
    %v6673 = vpop.f32.mrf.mxu0
    %v6674 = vadd.f32 0.0, %v6673
    %v6675 = vpop.f32.mrf.mxu0
    %6676 = vdwg.mxu0
    %v6677 = vlaneseq
    %v6678 = vshrl.u32 %v6677, 7
    %v6679 = vsub.s32 0, %v6678
    %v6680 = vrot.slane %v6674, %v6679
    %v6681 = vsub.f32 %v6503, %v6680
    %v6682 = vsub.f32 %v6504, %v6680
    %v6683 = vsub.f32 %v6505, %v6680
    %v6684 = vsub.f32 %v6506, %v6680
    %v6685 = vmul.f32 %v6681, %v6681
    %v6686 = vmul.f32 %v6682, %v6682
    %v6687 = vmul.f32 %v6683, %v6683
    %v6688 = vmul.f32 %v6684, %v6684
    %v6689 = vadd.f32 %v6685, %v6686
    %v6690 = vadd.f32 %v6689, %v6687
    %v6691 = vadd.f32 %v6690, %v6688
    %v6692 = vrot.slane %v6691, 4
    %v6693 = vadd.f32 %v6691, %v6692
    %v6694 = vrot.slane %v6693, 2
    %v6695 = vadd.f32 %v6693, %v6694
    %v6696 = vrot.slane %v6695, 1
    %v6697 = vadd.f32 %v6695, %v6696
    %v6698 = vld [vmem:[%s27] sm:$0x1]
    %6699 = vmatprep.subr.mxu0 0.0
    %6700 = vmatpush1.msra.mxu0 %v6522
    %6701 = vmatprep.subr.mxu0 0.0
    %6702 = vmatpush1.msra.mxu0 %v6521
    %6703 = vmatprep.subr.mxu0 0.0
    %6704 = vmatpush1.msra.mxu0 %v6520
    %6705 = vmatprep.subr.mxu0 0.0
    %6706 = vmatpush1.msra.mxu0 %v6519
    %6707 = vmatprep.subr.mxu0 0.0
    %6708 = vmatpush1.msra.mxu0 %v6518
    %6709 = vmatprep.subr.mxu0 0.0
    %6710 = vmatpush1.msra.mxu0 %v6517
    %6711 = vmatprep.subr.mxu0 0.0
    %6712 = vmatpush1.msra.mxu0 %v6516
    %6713 = vmatprep.subr.mxu0 0.0
    %6714 = vmatpush1.msra.mxu0 %v6515
    %6715 = vmatprep.subr.mxu0 0.0
    %6716 = vmatpush1.msra.mxu0 %v6514
    %6717 = vmatprep.subr.mxu0 0.0
    %6718 = vmatpush1.msra.mxu0 %v6513
    %6719 = vmatprep.subr.mxu0 0.0
    %6720 = vmatpush1.msra.mxu0 %v6512
    %6721 = vmatprep.subr.mxu0 0.0
    %6722 = vmatpush1.msra.mxu0 %v6511
    %6723 = vmatprep.subr.mxu0 0.0
    %6724 = vmatpush1.msra.mxu0 %v6510
    %6725 = vmatprep.subr.mxu0 0.0
    %6726 = vmatpush1.msra.mxu0 %v6509
    %6727 = vmatprep.subr.mxu0 0.0
    %6728 = vmatpush1.msra.mxu0 %v6508
    %6729 = vmatprep.subr.mxu0 0.0
    %6730 = vmatpush1.msra.mxu0 %v6507
    %6731 = vmatprep.subr.mxu0 0.0
    %6732 = vmatpush2.msra.mxu0 0.0
    %6733 = vmatprep.subr.mxu0 0.0
    %6734 = vmatpush2.msra.mxu0 0.0
    %6735 = vmatprep.subr.mxu0 0.0
    %6736 = vmatpush2.msra.mxu0 0.0
    %6737 = vmatprep.subr.mxu0 0.0
    %6738 = vmatpush2.msra.mxu0 0.0
    %6739 = vmatprep.subr.mxu0 0.0
    %6740 = vmatpush2.msra.mxu0 0.0
    %6741 = vmatprep.subr.mxu0 0.0
    %6742 = vmatpush2.msra.mxu0 0.0
    %6743 = vmatprep.subr.mxu0 0.0
    %6744 = vmatpush2.msra.mxu0 0.0
    %6745 = vmatprep.subr.mxu0 0.0
    %6746 = vmatpush2.msra.mxu0 0.0
    %6747 = vmatprep.subr.mxu0 0.0
    %6748 = vmatpush2.msra.mxu0 0.0
    %6749 = vmatprep.subr.mxu0 0.0
    %6750 = vmatpush2.msra.mxu0 0.0
    %6751 = vmatprep.subr.mxu0 0.0
    %6752 = vmatpush2.msra.mxu0 0.0
    %6753 = vmatprep.subr.mxu0 0.0
    %6754 = vmatpush2.msra.mxu0 0.0
    %6755 = vmatprep.subr.mxu0 0.0
    %6756 = vmatpush2.msra.mxu0 0.0
    %6757 = vmatprep.subr.mxu0 0.0
    %6758 = vmatpush2.msra.mxu0 0.0
    %6759 = vmatprep.subr.mxu0 0.0
    %6760 = vmatpush2.msra.mxu0 0.0
    %6761 = vmatprep.subr.mxu0 0.0
    %6762 = vmatpush2.msra.mxu0 0.0
    %6763 = vmatprep.mubr.f32.mxu0 0.0
    %6764 = vmatmul.mubr.f32.gmra.mxu0 %v6697
    %v6765 = vpop.f32.mrf.mxu0
    %v6766 = vadd.f32 1e-05, %v6765
    %v6767 = vpop.f32.mrf.mxu0
    %6768 = vdwg.mxu0
    %v6769 = vrsqrt.pop %v6766
    %v6770 = vmul.f32 %v6698, %v6769
    %v6772 = vsel %vm6603, %v6770, 0
    %6774 = vmatprep.subr.mxu0 0.0
    %6775 = vmatpush1.msra.mxu0 0.0
    %6776 = vmatprep.subr.mxu0 0.0
    %6777 = vmatpush1.msra.mxu0 0.0
    %6778 = vmatprep.subr.mxu0 0.0
    %6779 = vmatpush1.msra.mxu0 0.0
    %6780 = vmatprep.subr.mxu0 0.0
    %6781 = vmatpush1.msra.mxu0 0.0
    %6782 = vmatprep.subr.mxu0 0.0
    %6783 = vmatpush1.msra.mxu0 0.0
    %6784 = vmatprep.subr.mxu0 0.0
    %6785 = vmatpush1.msra.mxu0 0.0
    %6786 = vmatprep.subr.mxu0 0.0
    %6787 = vmatpush1.msra.mxu0 0.0
    %6788 = vmatprep.subr.mxu0 0.0
    %6789 = vmatpush1.msra.mxu0 0.0
    %6790 = vmatprep.subr.mxu0 0.0
    %6791 = vmatpush1.msra.mxu0 0.0
    %6792 = vmatprep.subr.mxu0 0.0
    %6793 = vmatpush1.msra.mxu0 0.0
    %6794 = vmatprep.subr.mxu0 0.0
    %6795 = vmatpush1.msra.mxu0 0.0
    %6796 = vmatprep.subr.mxu0 0.0
    %6797 = vmatpush1.msra.mxu0 0.0
    %6798 = vmatprep.subr.mxu0 0.0
    %6799 = vmatpush1.msra.mxu0 0.0
    %6800 = vmatprep.subr.mxu0 0.0
    %6801 = vmatpush1.msra.mxu0 0.0
    %6802 = vmatprep.subr.mxu0 0.0
    %6803 = vmatpush1.msra.mxu0 0.0
    %6804 = vmatprep.subr.mxu0 0.0
    %6805 = vmatpush1.msra.mxu0 %v6523
    %6806 = vmatprep.subr.mxu0 0.0
    %6807 = vmatpush2.msra.mxu0 0.0
    %6808 = vmatprep.subr.mxu0 0.0
    %6809 = vmatpush2.msra.mxu0 0.0
    %6810 = vmatprep.subr.mxu0 0.0
    %6811 = vmatpush2.msra.mxu0 0.0
    %6812 = vmatprep.subr.mxu0 0.0
    %6813 = vmatpush2.msra.mxu0 0.0
    %6814 = vmatprep.subr.mxu0 0.0
    %6815 = vmatpush2.msra.mxu0 0.0
    %6816 = vmatprep.subr.mxu0 0.0
    %6817 = vmatpush2.msra.mxu0 0.0
    %6818 = vmatprep.subr.mxu0 0.0
    %6819 = vmatpush2.msra.mxu0 0.0
    %6820 = vmatprep.subr.mxu0 0.0
    %6821 = vmatpush2.msra.mxu0 0.0
    %6822 = vmatprep.subr.mxu0 0.0
    %6823 = vmatpush2.msra.mxu0 0.0
    %6824 = vmatprep.subr.mxu0 0.0
    %6825 = vmatpush2.msra.mxu0 0.0
    %6826 = vmatprep.subr.mxu0 0.0
    %6827 = vmatpush2.msra.mxu0 0.0
    %6828 = vmatprep.subr.mxu0 0.0
    %6829 = vmatpush2.msra.mxu0 0.0
    %6830 = vmatprep.subr.mxu0 0.0
    %6831 = vmatpush2.msra.mxu0 0.0
    %6832 = vmatprep.subr.mxu0 0.0
    %6833 = vmatpush2.msra.mxu0 0.0
    %6834 = vmatprep.subr.mxu0 0.0
    %6835 = vmatpush2.msra.mxu0 0.0
    %6836 = vmatprep.subr.mxu0 0.0
    %6837 = vmatpush2.msra.mxu0 0.0
    %6838 = vmatprep.mubr.f32.mxu0 0.0
    %6839 = vmatmul.mubr.f32.gmra.mxu0 %v6772
    %v6840 = vpop.f32.mrf.mxu0
    %v6841 = vadd.f32 0.0, %v6840
    %v6842 = vpop.f32.mrf.mxu0
    %6843 = vdwg.mxu0
    %v6844 = vld [vmem:[%s29] sm:$0x1]
    %v6846 = vsel %vm6603, %v6844, 0
    %6848 = vmatprep.subr.mxu0 0.0
    %6849 = vmatpush1.msra.mxu0 0.0
    %6850 = vmatprep.subr.mxu0 0.0
    %6851 = vmatpush1.msra.mxu0 0.0
    %6852 = vmatprep.subr.mxu0 0.0
    %6853 = vmatpush1.msra.mxu0 0.0
    %6854 = vmatprep.subr.mxu0 0.0
    %6855 = vmatpush1.msra.mxu0 0.0
    %6856 = vmatprep.subr.mxu0 0.0
    %6857 = vmatpush1.msra.mxu0 0.0
    %6858 = vmatprep.subr.mxu0 0.0
    %6859 = vmatpush1.msra.mxu0 0.0
    %6860 = vmatprep.subr.mxu0 0.0
    %6861 = vmatpush1.msra.mxu0 0.0
    %6862 = vmatprep.subr.mxu0 0.0
    %6863 = vmatpush1.msra.mxu0 0.0
    %6864 = vmatprep.subr.mxu0 0.0
    %6865 = vmatpush1.msra.mxu0 0.0
    %6866 = vmatprep.subr.mxu0 0.0
    %6867 = vmatpush1.msra.mxu0 0.0
    %6868 = vmatprep.subr.mxu0 0.0
    %6869 = vmatpush1.msra.mxu0 0.0
    %6870 = vmatprep.subr.mxu0 0.0
    %6871 = vmatpush1.msra.mxu0 0.0
    %6872 = vmatprep.subr.mxu0 0.0
    %6873 = vmatpush1.msra.mxu0 0.0
    %6874 = vmatprep.subr.mxu0 0.0
    %6875 = vmatpush1.msra.mxu0 0.0
    %6876 = vmatprep.subr.mxu0 0.0
    %6877 = vmatpush1.msra.mxu0 0.0
    %6878 = vmatprep.subr.mxu0 0.0
    %6879 = vmatpush1.msra.mxu0 %v6523
    %6880 = vmatprep.subr.mxu0 0.0
    %6881 = vmatpush2.msra.mxu0 0.0
    %6882 = vmatprep.subr.mxu0 0.0
    %6883 = vmatpush2.msra.mxu0 0.0
    %6884 = vmatprep.subr.mxu0 0.0
    %6885 = vmatpush2.msra.mxu0 0.0
    %6886 = vmatprep.subr.mxu0 0.0
    %6887 = vmatpush2.msra.mxu0 0.0
    %6888 = vmatprep.subr.mxu0 0.0
    %6889 = vmatpush2.msra.mxu0 0.0
    %6890 = vmatprep.subr.mxu0 0.0
    %6891 = vmatpush2.msra.mxu0 0.0
    %6892 = vmatprep.subr.mxu0 0.0
    %6893 = vmatpush2.msra.mxu0 0.0
    %6894 = vmatprep.subr.mxu0 0.0
    %6895 = vmatpush2.msra.mxu0 0.0
    %6896 = vmatprep.subr.mxu0 0.0
    %6897 = vmatpush2.msra.mxu0 0.0
    %6898 = vmatprep.subr.mxu0 0.0
    %6899 = vmatpush2.msra.mxu0 0.0
    %6900 = vmatprep.subr.mxu0 0.0
    %6901 = vmatpush2.msra.mxu0 0.0
    %6902 = vmatprep.subr.mxu0 0.0
    %6903 = vmatpush2.msra.mxu0 0.0
    %6904 = vmatprep.subr.mxu0 0.0
    %6905 = vmatpush2.msra.mxu0 0.0
    %6906 = vmatprep.subr.mxu0 0.0
    %6907 = vmatpush2.msra.mxu0 0.0
    %6908 = vmatprep.subr.mxu0 0.0
    %6909 = vmatpush2.msra.mxu0 0.0
    %6910 = vmatprep.subr.mxu0 0.0
    %6911 = vmatpush2.msra.mxu0 0.0
    %6912 = vmatprep.mubr.f32.mxu0 0.0
    %6913 = vmatmul.mubr.f32.gmra.mxu0 %v6846
    %v6914 = vpop.f32.mrf.mxu0
    %v6915 = vadd.f32 0.0, %v6914
    %v6916 = vpop.f32.mrf.mxu0
    %6917 = vdwg.mxu0
    %v6918 = vlaneseq
    %v6919 = vshrl.u32 %v6918, 7
    %v6920 = vsub.s32 0, %v6919
    %v6921 = vrot.slane %v6841, %v6920
    %v6922 = vmul.f32 %v6681, %v6921
    %v6923 = vmul.f32 %v6682, %v6921
    %v6924 = vmul.f32 %v6683, %v6921
    %v6925 = vmul.f32 %v6684, %v6921
    %v6926 = vlaneseq
    %v6927 = vshrl.u32 %v6926, 7
    %v6928 = vsub.s32 0, %v6927
    %v6929 = vrot.slane %v6915, %v6928
    %v6930 = vadd.f32 %v6922, %v6929
    %v6931 = vadd.f32 %v6923, %v6929
    %v6932 = vadd.f32 %v6924, %v6929
    %v6933 = vadd.f32 %v6925, %v6929
    %v6934 = vmax.f32 %v6930, 0.0
    %v6935 = vmax.f32 %v6931, 0.0
    %v6936 = vmax.f32 %v6932, 0.0
    %v6937 = vmax.f32 %v6933, 0.0
    %v6938 = vpack.c.bf16 %v6935, %v6934
    %v6939 = vpack.c.bf16 %v6937, %v6936
    %v6940 = vld [vmem:[%s35] sm:$0xff]
    %v6941 = vld [vmem:[%s35 + $0x8] sm:$0xf]
    %v6942 = vld [vmem:[%s35 + $0xc] sm:$0xff]
    %v6943 = vld [vmem:[%s35 + $0x14] sm:$0xf]
    %v6944 = vld [vmem:[%s35 + $0x18] sm:$0xff]
    %v6945 = vld [vmem:[%s35 + $0x20] sm:$0xf]
    %v6946 = vld [vmem:[%s35 + $0x24] sm:$0xff]
    %v6947 = vld [vmem:[%s35 + $0x2c] sm:$0xf]
    %v6948 = vld [vmem:[%s35 + $0x30] sm:$0xff]
    %v6949 = vld [vmem:[%s35 + $0x38] sm:$0xf]
    %v6950 = vld [vmem:[%s35 + $0x3c] sm:$0xff]
    %v6951 = vld [vmem:[%s35 + $0x44] sm:$0xf]
    %v6952 = vld [vmem:[%s35 + $0x48] sm:$0xff]
    %v6953 = vld [vmem:[%s35 + $0x50] sm:$0xf]
    %v6954 = vld [vmem:[%s35 + $0x54] sm:$0xff]
    %v6955 = vld [vmem:[%s35 + $0x5c] sm:$0xf]
    %v6956 = vld [vmem:[%s35 + $0x60] sm:$0xff]
    %v6957 = vld [vmem:[%s35 + $0x68] sm:$0xf]
    %v6958 = vld [vmem:[%s35 + $0x6c] sm:$0xff]
    %v6959 = vld [vmem:[%s35 + $0x74] sm:$0xf]
    %v6960 = vld [vmem:[%s35 + $0x78] sm:$0xff]
    %v6961 = vld [vmem:[%s35 + $0x80] sm:$0xf]
    %v6962 = vld [vmem:[%s35 + $0x84] sm:$0xff]
    %v6963 = vld [vmem:[%s35 + $0x8c] sm:$0xf]
    %v6964 = vld [vmem:[%s35 + $0x90] sm:$0xff]
    %v6965 = vld [vmem:[%s35 + $0x98] sm:$0xf]
    %v6966 = vld [vmem:[%s35 + $0x9c] sm:$0xff]
    %v6967 = vld [vmem:[%s35 + $0xa4] sm:$0xf]
    %v6968 = vld [vmem:[%s35 + $0xa8] sm:$0xff]
    %v6969 = vld [vmem:[%s35 + $0xb0] sm:$0xf]
    %v6970 = vld [vmem:[%s35 + $0xb4] sm:$0xff]
    %v6971 = vld [vmem:[%s35 + $0xbc] sm:$0xf]
    %v7004 = vunpack.c.l.b16 %v6940
    %v7005 = vunpack.c.h.b16 %v6940
    %v7006 = vunpack.c.l.b16 %v6941
    %v7007 = vunpack.c.l.b16 %v6942
    %v7008 = vunpack.c.h.b16 %v6942
    %v7009 = vunpack.c.l.b16 %v6943
    %v7010 = vunpack.c.l.b16 %v6944
    %v7011 = vunpack.c.h.b16 %v6944
    %v7012 = vunpack.c.l.b16 %v6945
    %v7013 = vunpack.c.l.b16 %v6946
    %v7014 = vunpack.c.h.b16 %v6946
    %v7015 = vunpack.c.l.b16 %v6947
    %v7016 = vunpack.c.l.b16 %v6948
    %v7017 = vunpack.c.h.b16 %v6948
    %v7018 = vunpack.c.l.b16 %v6949
    %v7019 = vunpack.c.l.b16 %v6950
    %v7020 = vunpack.c.h.b16 %v6950
    %v7021 = vunpack.c.l.b16 %v6951
    %v7022 = vunpack.c.l.b16 %v6952
    %v7023 = vunpack.c.h.b16 %v6952
    %v7024 = vunpack.c.l.b16 %v6953
    %v7025 = vunpack.c.l.b16 %v6954
    %v7026 = vunpack.c.h.b16 %v6954
    %v7027 = vunpack.c.l.b16 %v6955
    %v7028 = vunpack.c.l.b16 %v6956
    %v7029 = vunpack.c.h.b16 %v6956
    %v7030 = vunpack.c.l.b16 %v6957
    %v7031 = vunpack.c.l.b16 %v6958
    %v7032 = vunpack.c.h.b16 %v6958
    %v7033 = vunpack.c.l.b16 %v6959
    %v7034 = vunpack.c.l.b16 %v6960
    %v7035 = vunpack.c.h.b16 %v6960
    %v7036 = vunpack.c.l.b16 %v6961
    %v7037 = vunpack.c.l.b16 %v6962
    %v7038 = vunpack.c.h.b16 %v6962
    %v7039 = vunpack.c.l.b16 %v6963
    %v7040 = vunpack.c.l.b16 %v6964
    %v7041 = vunpack.c.h.b16 %v6964
    %v7042 = vunpack.c.l.b16 %v6965
    %v7043 = vunpack.c.l.b16 %v6966
    %v7044 = vunpack.c.h.b16 %v6966
    %v7045 = vunpack.c.l.b16 %v6967
    %v7046 = vunpack.c.l.b16 %v6968
    %v7047 = vunpack.c.h.b16 %v6968
    %v7048 = vunpack.c.l.b16 %v6969
    %v7049 = vunpack.c.l.b16 %v6970
    %v7050 = vunpack.c.h.b16 %v6970
    %v7051 = vunpack.c.l.b16 %v6971
    %v7052 = vpack.c.b16 %v7007, %v7004
    %v7053 = vpack.c.b16 %v7008, %v7005
    %v7054 = vpack.c.b16 %v7009, %v7006
    %v7055 = vpack.c.b16 %v7013, %v7010
    %v7056 = vpack.c.b16 %v7014, %v7011
    %v7057 = vpack.c.b16 %v7015, %v7012
    %v7058 = vpack.c.b16 %v7019, %v7016
    %v7059 = vpack.c.b16 %v7020, %v7017
    %v7060 = vpack.c.b16 %v7021, %v7018
    %v7061 = vpack.c.b16 %v7025, %v7022
    %v7062 = vpack.c.b16 %v7026, %v7023
    %v7063 = vpack.c.b16 %v7027, %v7024
    %v7064 = vpack.c.b16 %v7031, %v7028
    %v7065 = vpack.c.b16 %v7032, %v7029
    %v7066 = vpack.c.b16 %v7033, %v7030
    %v7067 = vpack.c.b16 %v7037, %v7034
    %v7068 = vpack.c.b16 %v7038, %v7035
    %v7069 = vpack.c.b16 %v7039, %v7036
    %v7070 = vpack.c.b16 %v7043, %v7040
    %v7071 = vpack.c.b16 %v7044, %v7041
    %v7072 = vpack.c.b16 %v7045, %v7042
    %v7073 = vpack.c.b16 %v7049, %v7046
    %v7074 = vpack.c.b16 %v7050, %v7047
    %v7075 = vpack.c.b16 %v7051, %v7048
    %7100 = vmatprep.subr.bf16.mxu0 %v7074
    %7101 = vmatpush1.bf16.msra.mxu0 %v7073
    %7102 = vmatprep.subr.bf16.mxu0 %v7071
    %7103 = vmatpush1.bf16.msra.mxu0 %v7070
    %7104 = vmatprep.subr.bf16.mxu0 %v7068
    %7105 = vmatpush1.bf16.msra.mxu0 %v7067
    %7106 = vmatprep.subr.bf16.mxu0 %v7065
    %7107 = vmatpush1.bf16.msra.mxu0 %v7064
    %7108 = vmatprep.subr.bf16.mxu0 %v7062
    %7109 = vmatpush1.bf16.msra.mxu0 %v7061
    %7110 = vmatprep.subr.bf16.mxu0 %v7059
    %7111 = vmatpush1.bf16.msra.mxu0 %v7058
    %7112 = vmatprep.subr.bf16.mxu0 %v7056
    %7113 = vmatpush1.bf16.msra.mxu0 %v7055
    %7114 = vmatprep.subr.bf16.mxu0 %v7053
    %7115 = vmatpush1.bf16.msra.mxu0 %v7052
    %7116 = vmatprep.subr.bf16.mxu0 0
    %7117 = vmatpush2.bf16.msra.mxu0 0
    %7118 = vmatprep.subr.bf16.mxu0 0
    %7119 = vmatpush2.bf16.msra.mxu0 0
    %7120 = vmatprep.subr.bf16.mxu0 0
    %7121 = vmatpush2.bf16.msra.mxu0 0
    %7122 = vmatprep.subr.bf16.mxu0 0
    %7123 = vmatpush2.bf16.msra.mxu0 0
    %7124 = vmatprep.subr.bf16.mxu0 0
    %7125 = vmatpush2.bf16.msra.mxu0 0
    %7126 = vmatprep.subr.bf16.mxu0 0
    %7127 = vmatpush2.bf16.msra.mxu0 0
    %7128 = vmatprep.subr.bf16.mxu0 0
    %7129 = vmatpush2.bf16.msra.mxu0 0
    %7130 = vmatprep.subr.bf16.mxu0 0
    %7131 = vmatpush2.bf16.msra.mxu0 0
    %7132 = vmatprep.mubr.bf16.mxu0 0
    %7133 = vmatmul.mubr.bf16.gmra.mxu0 %v6938
    %v7134 = vpop.f32.mrf.mxu0
    %v7135 = vadd.f32 0.0, %v7134
    %v7136 = vpop.f32.mrf.mxu0
    %v7137 = vadd.f32 0.0, %v7136
    %v7138 = vpop.f32.mrf.mxu0
    %v7139 = vadd.f32 0.0, %v7138
    %v7140 = vpop.f32.mrf.mxu0
    %v7141 = vadd.f32 0.0, %v7140
    %7142 = vmatprep.mubr.bf16.mxu0 0
    %7143 = vmatmul.mubr.bf16.gmra.mxu0 %v6939
    %v7144 = vpop.f32.mrf.mxu0
    %v7145 = vadd.f32 0.0, %v7144
    %v7146 = vpop.f32.mrf.mxu0
    %v7147 = vadd.f32 0.0, %v7146
    %v7148 = vpop.f32.mrf.mxu0
    %v7149 = vadd.f32 0.0, %v7148
    %v7150 = vpop.f32.mrf.mxu0
    %v7151 = vadd.f32 0.0, %v7150
    %7152 = vdwg.mxu0
    %7153 = vmatprep.subr.bf16.mxu0 0
    %7154 = vmatpush1.bf16.msra.mxu0 %v7075
    %7155 = vmatprep.subr.bf16.mxu0 0
    %7156 = vmatpush1.bf16.msra.mxu0 %v7072
    %7157 = vmatprep.subr.bf16.mxu0 0
    %7158 = vmatpush1.bf16.msra.mxu0 %v7069
    %7159 = vmatprep.subr.bf16.mxu0 0
    %7160 = vmatpush1.bf16.msra.mxu0 %v7066
    %7161 = vmatprep.subr.bf16.mxu0 0
    %7162 = vmatpush1.bf16.msra.mxu0 %v7063
    %7163 = vmatprep.subr.bf16.mxu0 0
    %7164 = vmatpush1.bf16.msra.mxu0 %v7060
    %7165 = vmatprep.subr.bf16.mxu0 0
    %7166 = vmatpush1.bf16.msra.mxu0 %v7057
    %7167 = vmatprep.subr.bf16.mxu0 0
    %7168 = vmatpush1.bf16.msra.mxu0 %v7054
    %7169 = vmatprep.subr.bf16.mxu0 0
    %7170 = vmatpush2.bf16.msra.mxu0 0
    %7171 = vmatprep.subr.bf16.mxu0 0
    %7172 = vmatpush2.bf16.msra.mxu0 0
    %7173 = vmatprep.subr.bf16.mxu0 0
    %7174 = vmatpush2.bf16.msra.mxu0 0
    %7175 = vmatprep.subr.bf16.mxu0 0
    %7176 = vmatpush2.bf16.msra.mxu0 0
    %7177 = vmatprep.subr.bf16.mxu0 0
    %7178 = vmatpush2.bf16.msra.mxu0 0
    %7179 = vmatprep.subr.bf16.mxu0 0
    %7180 = vmatpush2.bf16.msra.mxu0 0
    %7181 = vmatprep.subr.bf16.mxu0 0
    %7182 = vmatpush2.bf16.msra.mxu0 0
    %7183 = vmatprep.subr.bf16.mxu0 0
    %7184 = vmatpush2.bf16.msra.mxu0 0
    %7185 = vmatprep.mubr.bf16.mxu0 0
    %7186 = vmatmul.mubr.bf16.gmra.mxu0 %v6938
    %v7187 = vpop.f32.mrf.mxu0
    %v7188 = vadd.f32 0.0, %v7187
    %v7189 = vpop.f32.mrf.mxu0
    %v7190 = vpop.f32.mrf.mxu0
    %v7191 = vadd.f32 0.0, %v7190
    %v7192 = vpop.f32.mrf.mxu0
    %7193 = vmatprep.mubr.bf16.mxu0 0
    %7194 = vmatmul.mubr.bf16.gmra.mxu0 %v6939
    %v7195 = vpop.f32.mrf.mxu0
    %v7196 = vadd.f32 0.0, %v7195
    %v7197 = vpop.f32.mrf.mxu0
    %v7198 = vpop.f32.mrf.mxu0
    %v7199 = vadd.f32 0.0, %v7198
    %v7200 = vpop.f32.mrf.mxu0
    %7201 = vdwg.mxu0
    %v7202 = vpack.c.bf16 %v7139, %v7135
    %v7203 = vpack.c.bf16 %v7141, %v7137
    %v7204 = vpack.c.bf16 %v7191, %v7188
    %v7205 = vpack.c.bf16 %v7149, %v7145
    %v7206 = vpack.c.bf16 %v7151, %v7147
    %v7207 = vpack.c.bf16 %v7199, %v7196
    %v7208 = vld [vmem:[%s37] sm:$0xf]
    %v7209 = vld [vmem:[%s37 + $0x4] sm:$0xf]
    %v7212 = vunpack.c.l.b16 %v7208
    %v7213 = vunpack.c.l.b16 %v7209
    %v7214 = vpack.c.b16 %v7213, %v7212
    %vm7215 = vcmask 261120
    %v7217 = vsel %vm7215, %v7214, 0
    %7219 = vmatprep.subr.bf16.mxu0 0
    %7220 = vmatpush1.bf16.msra.mxu0 0
    %7221 = vmatprep.subr.bf16.mxu0 0
    %7222 = vmatpush1.bf16.msra.mxu0 0
    %7223 = vmatprep.subr.bf16.mxu0 0
    %7224 = vmatpush1.bf16.msra.mxu0 0
    %7225 = vmatprep.subr.bf16.mxu0 0
    %7226 = vmatpush1.bf16.msra.mxu0 0
    %7227 = vmatprep.subr.bf16.mxu0 0
    %7228 = vmatpush1.bf16.msra.mxu0 0
    %7229 = vmatprep.subr.bf16.mxu0 0
    %7230 = vmatpush1.bf16.msra.mxu0 0
    %7231 = vmatprep.subr.bf16.mxu0 %v7206
    %7232 = vmatpush1.bf16.msra.mxu0 %v7205
    %7233 = vmatprep.subr.bf16.mxu0 %v7203
    %7234 = vmatpush1.bf16.msra.mxu0 %v7202
    %7235 = vmatprep.subr.bf16.mxu0 0
    %7236 = vmatpush2.bf16.msra.mxu0 0
    %7237 = vmatprep.subr.bf16.mxu0 0
    %7238 = vmatpush2.bf16.msra.mxu0 0
    %7239 = vmatprep.subr.bf16.mxu0 0
    %7240 = vmatpush2.bf16.msra.mxu0 0
    %7241 = vmatprep.subr.bf16.mxu0 0
    %7242 = vmatpush2.bf16.msra.mxu0 0
    %7243 = vmatprep.subr.bf16.mxu0 0
    %7244 = vmatpush2.bf16.msra.mxu0 0
    %7245 = vmatprep.subr.bf16.mxu0 0
    %7246 = vmatpush2.bf16.msra.mxu0 0
    %7247 = vmatprep.subr.bf16.mxu0 0
    %7248 = vmatpush2.bf16.msra.mxu0 0
    %7249 = vmatprep.subr.bf16.mxu0 0
    %7250 = vmatpush2.bf16.msra.mxu0 0
    %7251 = vmatprep.mubr.bf16.mxu0 0
    %7252 = vmatmul.mubr.bf16.gmra.mxu0 %v7217
    %v7253 = vpop.f32.mrf.mxu0
    %v7254 = vadd.f32 0.0, %v7253
    %v7255 = vpop.f32.mrf.mxu0
    %v7256 = vadd.f32 0.0, %v7255
    %v7257 = vpop.f32.mrf.mxu0
    %v7258 = vadd.f32 0.0, %v7257
    %v7259 = vpop.f32.mrf.mxu0
    %v7260 = vadd.f32 0.0, %v7259
    %7261 = vdwg.mxu0
    %7262 = vmatprep.subr.bf16.mxu0 0
    %7263 = vmatpush1.bf16.msra.mxu0 0
    %7264 = vmatprep.subr.bf16.mxu0 0
    %7265 = vmatpush1.bf16.msra.mxu0 0
    %7266 = vmatprep.subr.bf16.mxu0 0
    %7267 = vmatpush1.bf16.msra.mxu0 0
    %7268 = vmatprep.subr.bf16.mxu0 0
    %7269 = vmatpush1.bf16.msra.mxu0 0
    %7270 = vmatprep.subr.bf16.mxu0 0
    %7271 = vmatpush1.bf16.msra.mxu0 0
    %7272 = vmatprep.subr.bf16.mxu0 0
    %7273 = vmatpush1.bf16.msra.mxu0 0
    %7274 = vmatprep.subr.bf16.mxu0 0
    %7275 = vmatpush1.bf16.msra.mxu0 %v7207
    %7276 = vmatprep.subr.bf16.mxu0 0
    %7277 = vmatpush1.bf16.msra.mxu0 %v7204
    %7278 = vmatprep.subr.bf16.mxu0 0
    %7279 = vmatpush2.bf16.msra.mxu0 0
    %7280 = vmatprep.subr.bf16.mxu0 0
    %7281 = vmatpush2.bf16.msra.mxu0 0
    %7282 = vmatprep.subr.bf16.mxu0 0
    %7283 = vmatpush2.bf16.msra.mxu0 0
    %7284 = vmatprep.subr.bf16.mxu0 0
    %7285 = vmatpush2.bf16.msra.mxu0 0
    %7286 = vmatprep.subr.bf16.mxu0 0
    %7287 = vmatpush2.bf16.msra.mxu0 0
    %7288 = vmatprep.subr.bf16.mxu0 0
    %7289 = vmatpush2.bf16.msra.mxu0 0
    %7290 = vmatprep.subr.bf16.mxu0 0
    %7291 = vmatpush2.bf16.msra.mxu0 0
    %7292 = vmatprep.subr.bf16.mxu0 0
    %7293 = vmatpush2.bf16.msra.mxu0 0
    %7294 = vmatprep.mubr.bf16.mxu0 0
    %7295 = vmatmul.mubr.bf16.gmra.mxu0 %v7217
    %v7296 = vpop.f32.mrf.mxu0
    %v7297 = vadd.f32 0.0, %v7296
    %v7298 = vpop.f32.mrf.mxu0
    %v7299 = vpop.f32.mrf.mxu0
    %v7300 = vadd.f32 0.0, %v7299
    %v7301 = vpop.f32.mrf.mxu0
    %7302 = vdwg.mxu0
    %v7303 = vpack.c.bf16 %v7258, %v7254
    %v7304 = vpack.c.bf16 %v7260, %v7256
    %v7305 = vpack.c.bf16 %v7300, %v7297
    %v7306 = vld [vmem:[%s39] sm:$0xf]
    %v7307 = vld [vmem:[%s39 + $0x4] sm:$0xf]
    %v7308 = vld [vmem:[%s39 + $0x8] sm:$0xf]
    %v7309 = vld [vmem:[%s39 + $0xc] sm:$0xf]
    %v7310 = vld [vmem:[%s39 + $0x10] sm:$0xf]
    %v7311 = vld [vmem:[%s39 + $0x14] sm:$0xf]
    %v7312 = vld [vmem:[%s39 + $0x18] sm:$0xf]
    %v7313 = vld [vmem:[%s39 + $0x1c] sm:$0xf]
    %v7314 = vld [vmem:[%s39 + $0x20] sm:$0xf]
    %v7315 = vld [vmem:[%s39 + $0x24] sm:$0xf]
    %v7316 = vld [vmem:[%s39 + $0x28] sm:$0xf]
    %v7317 = vld [vmem:[%s39 + $0x2c] sm:$0xf]
    %v7318 = vld [vmem:[%s39 + $0x30] sm:$0xf]
    %v7319 = vld [vmem:[%s39 + $0x34] sm:$0xf]
    %v7320 = vld [vmem:[%s39 + $0x38] sm:$0xf]
    %v7321 = vld [vmem:[%s39 + $0x3c] sm:$0xf]
    %v7322 = vld [vmem:[%s39 + $0x40] sm:$0xf]
    %v7323 = vld [vmem:[%s39 + $0x44] sm:$0xf]
    %v7324 = vld [vmem:[%s39 + $0x48] sm:$0xf]
    %v7325 = vld [vmem:[%s39 + $0x4c] sm:$0xf]
    %v7326 = vld [vmem:[%s39 + $0x50] sm:$0xf]
    %v7327 = vld [vmem:[%s39 + $0x54] sm:$0xf]
    %v7328 = vld [vmem:[%s39 + $0x58] sm:$0xf]
    %v7329 = vld [vmem:[%s39 + $0x5c] sm:$0xf]
    %v7330 = vld [vmem:[%s39 + $0x60] sm:$0xf]
    %v7331 = vld [vmem:[%s39 + $0x64] sm:$0xf]
    %v7332 = vld [vmem:[%s39 + $0x68] sm:$0xf]
    %v7333 = vld [vmem:[%s39 + $0x6c] sm:$0xf]
    %v7334 = vld [vmem:[%s39 + $0x70] sm:$0xf]
    %v7335 = vld [vmem:[%s39 + $0x74] sm:$0xf]
    %v7336 = vld [vmem:[%s39 + $0x78] sm:$0xf]
    %v7337 = vld [vmem:[%s39 + $0x7c] sm:$0xf]
    %v7338 = vld [vmem:[%s39 + $0x80] sm:$0xf]
    %v7339 = vld [vmem:[%s39 + $0x84] sm:$0xf]
    %v7340 = vld [vmem:[%s39 + $0x88] sm:$0xf]
    %v7341 = vld [vmem:[%s39 + $0x8c] sm:$0xf]
    %v7342 = vld [vmem:[%s39 + $0x90] sm:$0xf]
    %v7343 = vld [vmem:[%s39 + $0x94] sm:$0xf]
    %v7344 = vld [vmem:[%s39 + $0x98] sm:$0xf]
    %v7345 = vld [vmem:[%s39 + $0x9c] sm:$0xf]
    %s7346 = scalar_lea.vmem %s37, 8
    %v7347 = vld [vmem:[%s7346] sm:$0xf]
    %v7348 = vld [vmem:[%s7346 + $0x4] sm:$0xf]
    %v7351 = vunpack.c.l.b16 %v7347
    %v7352 = vunpack.c.l.b16 %v7348
    %v7353 = vpack.c.b16 %v7352, %v7351
    %v7355 = vsel %vm7215, %v7353, 0
    %7357 = vmatprep.subr.bf16.mxu0 0
    %7358 = vmatpush1.bf16.msra.mxu0 0
    %7359 = vmatprep.subr.bf16.mxu0 0
    %7360 = vmatpush1.bf16.msra.mxu0 0
    %7361 = vmatprep.subr.bf16.mxu0 0
    %7362 = vmatpush1.bf16.msra.mxu0 0
    %7363 = vmatprep.subr.bf16.mxu0 0
    %7364 = vmatpush1.bf16.msra.mxu0 0
    %7365 = vmatprep.subr.bf16.mxu0 0
    %7366 = vmatpush1.bf16.msra.mxu0 0
    %7367 = vmatprep.subr.bf16.mxu0 0
    %7368 = vmatpush1.bf16.msra.mxu0 0
    %7369 = vmatprep.subr.bf16.mxu0 %v7206
    %7370 = vmatpush1.bf16.msra.mxu0 %v7205
    %7371 = vmatprep.subr.bf16.mxu0 %v7203
    %7372 = vmatpush1.bf16.msra.mxu0 %v7202
    %7373 = vmatprep.subr.bf16.mxu0 0
    %7374 = vmatpush2.bf16.msra.mxu0 0
    %7375 = vmatprep.subr.bf16.mxu0 0
    %7376 = vmatpush2.bf16.msra.mxu0 0
    %7377 = vmatprep.subr.bf16.mxu0 0
    %7378 = vmatpush2.bf16.msra.mxu0 0
    %7379 = vmatprep.subr.bf16.mxu0 0
    %7380 = vmatpush2.bf16.msra.mxu0 0
    %7381 = vmatprep.subr.bf16.mxu0 0
    %7382 = vmatpush2.bf16.msra.mxu0 0
    %7383 = vmatprep.subr.bf16.mxu0 0
    %7384 = vmatpush2.bf16.msra.mxu0 0
    %7385 = vmatprep.subr.bf16.mxu0 0
    %7386 = vmatpush2.bf16.msra.mxu0 0
    %7387 = vmatprep.subr.bf16.mxu0 0
    %7388 = vmatpush2.bf16.msra.mxu0 0
    %7389 = vmatprep.mubr.bf16.mxu0 0
    %7390 = vmatmul.mubr.bf16.gmra.mxu0 %v7355
    %v7391 = vpop.f32.mrf.mxu0
    %v7392 = vadd.f32 0.0, %v7391
    %v7393 = vpop.f32.mrf.mxu0
    %v7394 = vadd.f32 0.0, %v7393
    %v7395 = vpop.f32.mrf.mxu0
    %v7396 = vadd.f32 0.0, %v7395
    %v7397 = vpop.f32.mrf.mxu0
    %v7398 = vadd.f32 0.0, %v7397
    %7399 = vdwg.mxu0
    %7400 = vmatprep.subr.bf16.mxu0 0
    %7401 = vmatpush1.bf16.msra.mxu0 0
    %7402 = vmatprep.subr.bf16.mxu0 0
    %7403 = vmatpush1.bf16.msra.mxu0 0
    %7404 = vmatprep.subr.bf16.mxu0 0
    %7405 = vmatpush1.bf16.msra.mxu0 0
    %7406 = vmatprep.subr.bf16.mxu0 0
    %7407 = vmatpush1.bf16.msra.mxu0 0
    %7408 = vmatprep.subr.bf16.mxu0 0
    %7409 = vmatpush1.bf16.msra.mxu0 0
    %7410 = vmatprep.subr.bf16.mxu0 0
    %7411 = vmatpush1.bf16.msra.mxu0 0
    %7412 = vmatprep.subr.bf16.mxu0 0
    %7413 = vmatpush1.bf16.msra.mxu0 %v7207
    %7414 = vmatprep.subr.bf16.mxu0 0
    %7415 = vmatpush1.bf16.msra.mxu0 %v7204
    %7416 = vmatprep.subr.bf16.mxu0 0
    %7417 = vmatpush2.bf16.msra.mxu0 0
    %7418 = vmatprep.subr.bf16.mxu0 0
    %7419 = vmatpush2.bf16.msra.mxu0 0
    %7420 = vmatprep.subr.bf16.mxu0 0
    %7421 = vmatpush2.bf16.msra.mxu0 0
    %7422 = vmatprep.subr.bf16.mxu0 0
    %7423 = vmatpush2.bf16.msra.mxu0 0
    %7424 = vmatprep.subr.bf16.mxu0 0
    %7425 = vmatpush2.bf16.msra.mxu0 0
    %7426 = vmatprep.subr.bf16.mxu0 0
    %7427 = vmatpush2.bf16.msra.mxu0 0
    %7428 = vmatprep.subr.bf16.mxu0 0
    %7429 = vmatpush2.bf16.msra.mxu0 0
    %7430 = vmatprep.subr.bf16.mxu0 0
    %7431 = vmatpush2.bf16.msra.mxu0 0
    %7432 = vmatprep.mubr.bf16.mxu0 0
    %7433 = vmatmul.mubr.bf16.gmra.mxu0 %v7355
    %v7434 = vpop.f32.mrf.mxu0
    %v7435 = vadd.f32 0.0, %v7434
    %v7436 = vpop.f32.mrf.mxu0
    %v7437 = vpop.f32.mrf.mxu0
    %v7438 = vadd.f32 0.0, %v7437
    %v7439 = vpop.f32.mrf.mxu0
    %7440 = vdwg.mxu0
    %v7441 = vpack.c.bf16 %v7396, %v7392
    %v7442 = vpack.c.bf16 %v7398, %v7394
    %v7443 = vpack.c.bf16 %v7438, %v7435
    %s7444 = scalar_lea.vmem %s39, 160
    %v7445 = vld [vmem:[%s7444] sm:$0xf]
    %v7446 = vld [vmem:[%s7444 + $0x4] sm:$0xf]
    %v7447 = vld [vmem:[%s7444 + $0x8] sm:$0xf]
    %v7448 = vld [vmem:[%s7444 + $0xc] sm:$0xf]
    %v7449 = vld [vmem:[%s7444 + $0x10] sm:$0xf]
    %v7450 = vld [vmem:[%s7444 + $0x14] sm:$0xf]
    %v7451 = vld [vmem:[%s7444 + $0x18] sm:$0xf]
    %v7452 = vld [vmem:[%s7444 + $0x1c] sm:$0xf]
    %v7453 = vld [vmem:[%s7444 + $0x20] sm:$0xf]
    %v7454 = vld [vmem:[%s7444 + $0x24] sm:$0xf]
    %v7455 = vld [vmem:[%s7444 + $0x28] sm:$0xf]
    %v7456 = vld [vmem:[%s7444 + $0x2c] sm:$0xf]
    %v7457 = vld [vmem:[%s7444 + $0x30] sm:$0xf]
    %v7458 = vld [vmem:[%s7444 + $0x34] sm:$0xf]
    %v7459 = vld [vmem:[%s7444 + $0x38] sm:$0xf]
    %v7460 = vld [vmem:[%s7444 + $0x3c] sm:$0xf]
    %v7461 = vld [vmem:[%s7444 + $0x40] sm:$0xf]
    %v7462 = vld [vmem:[%s7444 + $0x44] sm:$0xf]
    %v7463 = vld [vmem:[%s7444 + $0x48] sm:$0xf]
    %v7464 = vld [vmem:[%s7444 + $0x4c] sm:$0xf]
    %v7465 = vld [vmem:[%s7444 + $0x50] sm:$0xf]
    %v7466 = vld [vmem:[%s7444 + $0x54] sm:$0xf]
    %v7467 = vld [vmem:[%s7444 + $0x58] sm:$0xf]
    %v7468 = vld [vmem:[%s7444 + $0x5c] sm:$0xf]
    %v7469 = vld [vmem:[%s7444 + $0x60] sm:$0xf]
    %v7470 = vld [vmem:[%s7444 + $0x64] sm:$0xf]
    %v7471 = vld [vmem:[%s7444 + $0x68] sm:$0xf]
    %v7472 = vld [vmem:[%s7444 + $0x6c] sm:$0xf]
    %v7473 = vld [vmem:[%s7444 + $0x70] sm:$0xf]
    %v7474 = vld [vmem:[%s7444 + $0x74] sm:$0xf]
    %v7475 = vld [vmem:[%s7444 + $0x78] sm:$0xf]
    %v7476 = vld [vmem:[%s7444 + $0x7c] sm:$0xf]
    %v7477 = vld [vmem:[%s7444 + $0x80] sm:$0xf]
    %v7478 = vld [vmem:[%s7444 + $0x84] sm:$0xf]
    %v7479 = vld [vmem:[%s7444 + $0x88] sm:$0xf]
    %v7480 = vld [vmem:[%s7444 + $0x8c] sm:$0xf]
    %v7481 = vld [vmem:[%s7444 + $0x90] sm:$0xf]
    %v7482 = vld [vmem:[%s7444 + $0x94] sm:$0xf]
    %v7483 = vld [vmem:[%s7444 + $0x98] sm:$0xf]
    %v7484 = vld [vmem:[%s7444 + $0x9c] sm:$0xf]
    %v7525 = vunpack.c.l.b16 %v7445
    %v7526 = vunpack.c.l.b16 %v7446
    %v7527 = vunpack.c.l.b16 %v7447
    %v7528 = vunpack.c.l.b16 %v7448
    %v7529 = vunpack.c.l.b16 %v7449
    %v7530 = vunpack.c.l.b16 %v7450
    %v7531 = vunpack.c.l.b16 %v7451
    %v7532 = vunpack.c.l.b16 %v7452
    %v7533 = vunpack.c.l.b16 %v7453
    %v7534 = vunpack.c.l.b16 %v7454
    %v7535 = vunpack.c.l.b16 %v7455
    %v7536 = vunpack.c.l.b16 %v7456
    %v7537 = vunpack.c.l.b16 %v7457
    %v7538 = vunpack.c.l.b16 %v7458
    %v7539 = vunpack.c.l.b16 %v7459
    %v7540 = vunpack.c.l.b16 %v7460
    %v7541 = vunpack.c.l.b16 %v7461
    %v7542 = vunpack.c.l.b16 %v7462
    %v7543 = vunpack.c.l.b16 %v7463
    %v7544 = vunpack.c.l.b16 %v7464
    %v7545 = vunpack.c.l.b16 %v7465
    %v7546 = vunpack.c.l.b16 %v7466
    %v7547 = vunpack.c.l.b16 %v7467
    %v7548 = vunpack.c.l.b16 %v7468
    %v7549 = vunpack.c.l.b16 %v7469
    %v7550 = vunpack.c.l.b16 %v7470
    %v7551 = vunpack.c.l.b16 %v7471
    %v7552 = vunpack.c.l.b16 %v7472
    %v7553 = vunpack.c.l.b16 %v7473
    %v7554 = vunpack.c.l.b16 %v7474
    %v7555 = vunpack.c.l.b16 %v7475
    %v7556 = vunpack.c.l.b16 %v7476
    %v7557 = vunpack.c.l.b16 %v7477
    %v7558 = vunpack.c.l.b16 %v7478
    %v7559 = vunpack.c.l.b16 %v7479
    %v7560 = vunpack.c.l.b16 %v7480
    %v7561 = vunpack.c.l.b16 %v7481
    %v7562 = vunpack.c.l.b16 %v7482
    %v7563 = vunpack.c.l.b16 %v7483
    %v7564 = vunpack.c.l.b16 %v7484
    %v7565 = vpack.c.b16 %v7526, %v7525
    %v7566 = vpack.c.b16 %v7528, %v7527
    %v7567 = vpack.c.b16 %v7530, %v7529
    %v7568 = vpack.c.b16 %v7532, %v7531
    %v7569 = vpack.c.b16 %v7534, %v7533
    %v7570 = vpack.c.b16 %v7536, %v7535
    %v7571 = vpack.c.b16 %v7538, %v7537
    %v7572 = vpack.c.b16 %v7540, %v7539
    %v7573 = vpack.c.b16 %v7542, %v7541
    %v7574 = vpack.c.b16 %v7544, %v7543
    %v7575 = vpack.c.b16 %v7546, %v7545
    %v7576 = vpack.c.b16 %v7548, %v7547
    %v7577 = vpack.c.b16 %v7550, %v7549
    %v7578 = vpack.c.b16 %v7552, %v7551
    %v7579 = vpack.c.b16 %v7554, %v7553
    %v7580 = vpack.c.b16 %v7556, %v7555
    %v7581 = vpack.c.b16 %v7558, %v7557
    %v7582 = vpack.c.b16 %v7560, %v7559
    %v7583 = vpack.c.b16 %v7562, %v7561
    %v7584 = vpack.c.b16 %v7564, %v7563
    %v7606 = vsel %vm528, %v7443, 0
    %7608 = vmatprep.subr.bf16.mxu0 0
    %7609 = vmatpush1.bf16.msra.mxu0 %v7572
    %7610 = vmatprep.subr.bf16.mxu0 0
    %7611 = vmatpush1.bf16.msra.mxu0 %v7571
    %7612 = vmatprep.subr.bf16.mxu0 0
    %7613 = vmatpush1.bf16.msra.mxu0 %v7570
    %7614 = vmatprep.subr.bf16.mxu0 0
    %7615 = vmatpush1.bf16.msra.mxu0 %v7569
    %7616 = vmatprep.subr.bf16.mxu0 0
    %7617 = vmatpush1.bf16.msra.mxu0 %v7568
    %7618 = vmatprep.subr.bf16.mxu0 0
    %7619 = vmatpush1.bf16.msra.mxu0 %v7567
    %7620 = vmatprep.subr.bf16.mxu0 0
    %7621 = vmatpush1.bf16.msra.mxu0 %v7566
    %7622 = vmatprep.subr.bf16.mxu0 0
    %7623 = vmatpush1.bf16.msra.mxu0 %v7565
    %7624 = vmatprep.subr.bf16.mxu0 0
    %7625 = vmatpush2.bf16.msra.mxu0 %v7580
    %7626 = vmatprep.subr.bf16.mxu0 0
    %7627 = vmatpush2.bf16.msra.mxu0 %v7579
    %7628 = vmatprep.subr.bf16.mxu0 0
    %7629 = vmatpush2.bf16.msra.mxu0 %v7578
    %7630 = vmatprep.subr.bf16.mxu0 0
    %7631 = vmatpush2.bf16.msra.mxu0 %v7577
    %7632 = vmatprep.subr.bf16.mxu0 0
    %7633 = vmatpush2.bf16.msra.mxu0 %v7576
    %7634 = vmatprep.subr.bf16.mxu0 0
    %7635 = vmatpush2.bf16.msra.mxu0 %v7575
    %7636 = vmatprep.subr.bf16.mxu0 0
    %7637 = vmatpush2.bf16.msra.mxu0 %v7574
    %7638 = vmatprep.subr.bf16.mxu0 0
    %7639 = vmatpush2.bf16.msra.mxu0 %v7573
    %7640 = vmatprep.mubr.bf16.mxu0 %v7442
    %7641 = vmatmul.mubr.bf16.gmra.mxu0 %v7441
    %v7642 = vpop.f32.mrf.mxu0
    %v7643 = vadd.f32 0.0, %v7642
    %v7644 = vpop.f32.mrf.mxu0
    %v7645 = vpop.f32.mrf.mxu0
    %v7646 = vadd.f32 0.0, %v7645
    %v7647 = vpop.f32.mrf.mxu0
    %7648 = vdwg.mxu0
    %7649 = vmatprep.subr.bf16.mxu0 0
    %7650 = vmatpush1.bf16.msra.mxu0 0
    %7651 = vmatprep.subr.bf16.mxu0 0
    %7652 = vmatpush1.bf16.msra.mxu0 0
    %7653 = vmatprep.subr.bf16.mxu0 0
    %7654 = vmatpush1.bf16.msra.mxu0 0
    %7655 = vmatprep.subr.bf16.mxu0 0
    %7656 = vmatpush1.bf16.msra.mxu0 0
    %7657 = vmatprep.subr.bf16.mxu0 0
    %7658 = vmatpush1.bf16.msra.mxu0 %v7584
    %7659 = vmatprep.subr.bf16.mxu0 0
    %7660 = vmatpush1.bf16.msra.mxu0 %v7583
    %7661 = vmatprep.subr.bf16.mxu0 0
    %7662 = vmatpush1.bf16.msra.mxu0 %v7582
    %7663 = vmatprep.subr.bf16.mxu0 0
    %7664 = vmatpush1.bf16.msra.mxu0 %v7581
    %7665 = vmatprep.subr.bf16.mxu0 0
    %7666 = vmatpush2.bf16.msra.mxu0 0
    %7667 = vmatprep.subr.bf16.mxu0 0
    %7668 = vmatpush2.bf16.msra.mxu0 0
    %7669 = vmatprep.subr.bf16.mxu0 0
    %7670 = vmatpush2.bf16.msra.mxu0 0
    %7671 = vmatprep.subr.bf16.mxu0 0
    %7672 = vmatpush2.bf16.msra.mxu0 0
    %7673 = vmatprep.subr.bf16.mxu0 0
    %7674 = vmatpush2.bf16.msra.mxu0 0
    %7675 = vmatprep.subr.bf16.mxu0 0
    %7676 = vmatpush2.bf16.msra.mxu0 0
    %7677 = vmatprep.subr.bf16.mxu0 0
    %7678 = vmatpush2.bf16.msra.mxu0 0
    %7679 = vmatprep.subr.bf16.mxu0 0
    %7680 = vmatpush2.bf16.msra.mxu0 0
    %7681 = vmatprep.mubr.bf16.mxu0 0
    %7682 = vmatmul.mubr.bf16.gmra.mxu0 %v7606
    %v7683 = vpop.f32.mrf.mxu0
    %v7684 = vadd.f32 %v7643, %v7683
    %v7685 = vpop.f32.mrf.mxu0
    %v7686 = vpop.f32.mrf.mxu0
    %v7687 = vadd.f32 %v7646, %v7686
    %v7688 = vpop.f32.mrf.mxu0
    %7689 = vdwg.mxu0
    %v7730 = vunpack.c.l.b16 %v7306
    %v7731 = vunpack.c.l.b16 %v7307
    %v7732 = vunpack.c.l.b16 %v7308
    %v7733 = vunpack.c.l.b16 %v7309
    %v7734 = vunpack.c.l.b16 %v7310
    %v7735 = vunpack.c.l.b16 %v7311
    %v7736 = vunpack.c.l.b16 %v7312
    %v7737 = vunpack.c.l.b16 %v7313
    %v7738 = vunpack.c.l.b16 %v7314
    %v7739 = vunpack.c.l.b16 %v7315
    %v7740 = vunpack.c.l.b16 %v7316
    %v7741 = vunpack.c.l.b16 %v7317
    %v7742 = vunpack.c.l.b16 %v7318
    %v7743 = vunpack.c.l.b16 %v7319
    %v7744 = vunpack.c.l.b16 %v7320
    %v7745 = vunpack.c.l.b16 %v7321
    %v7746 = vunpack.c.l.b16 %v7322
    %v7747 = vunpack.c.l.b16 %v7323
    %v7748 = vunpack.c.l.b16 %v7324
    %v7749 = vunpack.c.l.b16 %v7325
    %v7750 = vunpack.c.l.b16 %v7326
    %v7751 = vunpack.c.l.b16 %v7327
    %v7752 = vunpack.c.l.b16 %v7328
    %v7753 = vunpack.c.l.b16 %v7329
    %v7754 = vunpack.c.l.b16 %v7330
    %v7755 = vunpack.c.l.b16 %v7331
    %v7756 = vunpack.c.l.b16 %v7332
    %v7757 = vunpack.c.l.b16 %v7333
    %v7758 = vunpack.c.l.b16 %v7334
    %v7759 = vunpack.c.l.b16 %v7335
    %v7760 = vunpack.c.l.b16 %v7336
    %v7761 = vunpack.c.l.b16 %v7337
    %v7762 = vunpack.c.l.b16 %v7338
    %v7763 = vunpack.c.l.b16 %v7339
    %v7764 = vunpack.c.l.b16 %v7340
    %v7765 = vunpack.c.l.b16 %v7341
    %v7766 = vunpack.c.l.b16 %v7342
    %v7767 = vunpack.c.l.b16 %v7343
    %v7768 = vunpack.c.l.b16 %v7344
    %v7769 = vunpack.c.l.b16 %v7345
    %v7770 = vpack.c.b16 %v7731, %v7730
    %v7771 = vpack.c.b16 %v7733, %v7732
    %v7772 = vpack.c.b16 %v7735, %v7734
    %v7773 = vpack.c.b16 %v7737, %v7736
    %v7774 = vpack.c.b16 %v7739, %v7738
    %v7775 = vpack.c.b16 %v7741, %v7740
    %v7776 = vpack.c.b16 %v7743, %v7742
    %v7777 = vpack.c.b16 %v7745, %v7744
    %v7778 = vpack.c.b16 %v7747, %v7746
    %v7779 = vpack.c.b16 %v7749, %v7748
    %v7780 = vpack.c.b16 %v7751, %v7750
    %v7781 = vpack.c.b16 %v7753, %v7752
    %v7782 = vpack.c.b16 %v7755, %v7754
    %v7783 = vpack.c.b16 %v7757, %v7756
    %v7784 = vpack.c.b16 %v7759, %v7758
    %v7785 = vpack.c.b16 %v7761, %v7760
    %v7786 = vpack.c.b16 %v7763, %v7762
    %v7787 = vpack.c.b16 %v7765, %v7764
    %v7788 = vpack.c.b16 %v7767, %v7766
    %v7789 = vpack.c.b16 %v7769, %v7768
    %v7811 = vsel %vm528, %v7305, 0
    %7813 = vmatprep.subr.bf16.mxu0 0
    %7814 = vmatpush1.bf16.msra.mxu0 %v7777
    %7815 = vmatprep.subr.bf16.mxu0 0
    %7816 = vmatpush1.bf16.msra.mxu0 %v7776
    %7817 = vmatprep.subr.bf16.mxu0 0
    %7818 = vmatpush1.bf16.msra.mxu0 %v7775
    %7819 = vmatprep.subr.bf16.mxu0 0
    %7820 = vmatpush1.bf16.msra.mxu0 %v7774
    %7821 = vmatprep.subr.bf16.mxu0 0
    %7822 = vmatpush1.bf16.msra.mxu0 %v7773
    %7823 = vmatprep.subr.bf16.mxu0 0
    %7824 = vmatpush1.bf16.msra.mxu0 %v7772
    %7825 = vmatprep.subr.bf16.mxu0 0
    %7826 = vmatpush1.bf16.msra.mxu0 %v7771
    %7827 = vmatprep.subr.bf16.mxu0 0
    %7828 = vmatpush1.bf16.msra.mxu0 %v7770
    %7829 = vmatprep.subr.bf16.mxu0 0
    %7830 = vmatpush2.bf16.msra.mxu0 %v7785
    %7831 = vmatprep.subr.bf16.mxu0 0
    %7832 = vmatpush2.bf16.msra.mxu0 %v7784
    %7833 = vmatprep.subr.bf16.mxu0 0
    %7834 = vmatpush2.bf16.msra.mxu0 %v7783
    %7835 = vmatprep.subr.bf16.mxu0 0
    %7836 = vmatpush2.bf16.msra.mxu0 %v7782
    %7837 = vmatprep.subr.bf16.mxu0 0
    %7838 = vmatpush2.bf16.msra.mxu0 %v7781
    %7839 = vmatprep.subr.bf16.mxu0 0
    %7840 = vmatpush2.bf16.msra.mxu0 %v7780
    %7841 = vmatprep.subr.bf16.mxu0 0
    %7842 = vmatpush2.bf16.msra.mxu0 %v7779
    %7843 = vmatprep.subr.bf16.mxu0 0
    %7844 = vmatpush2.bf16.msra.mxu0 %v7778
    %7845 = vmatprep.mubr.bf16.mxu0 %v7304
    %7846 = vmatmul.mubr.bf16.gmra.mxu0 %v7303
    %v7847 = vpop.f32.mrf.mxu0
    %v7848 = vadd.f32 %v7684, %v7847
    %v7849 = vpop.f32.mrf.mxu0
    %v7850 = vpop.f32.mrf.mxu0
    %v7851 = vadd.f32 %v7687, %v7850
    %v7852 = vpop.f32.mrf.mxu0
    %7853 = vdwg.mxu0
    %7854 = vmatprep.subr.bf16.mxu0 0
    %7855 = vmatpush1.bf16.msra.mxu0 0
    %7856 = vmatprep.subr.bf16.mxu0 0
    %7857 = vmatpush1.bf16.msra.mxu0 0
    %7858 = vmatprep.subr.bf16.mxu0 0
    %7859 = vmatpush1.bf16.msra.mxu0 0
    %7860 = vmatprep.subr.bf16.mxu0 0
    %7861 = vmatpush1.bf16.msra.mxu0 0
    %7862 = vmatprep.subr.bf16.mxu0 0
    %7863 = vmatpush1.bf16.msra.mxu0 %v7789
    %7864 = vmatprep.subr.bf16.mxu0 0
    %7865 = vmatpush1.bf16.msra.mxu0 %v7788
    %7866 = vmatprep.subr.bf16.mxu0 0
    %7867 = vmatpush1.bf16.msra.mxu0 %v7787
    %7868 = vmatprep.subr.bf16.mxu0 0
    %7869 = vmatpush1.bf16.msra.mxu0 %v7786
    %7870 = vmatprep.subr.bf16.mxu0 0
    %7871 = vmatpush2.bf16.msra.mxu0 0
    %7872 = vmatprep.subr.bf16.mxu0 0
    %7873 = vmatpush2.bf16.msra.mxu0 0
    %7874 = vmatprep.subr.bf16.mxu0 0
    %7875 = vmatpush2.bf16.msra.mxu0 0
    %7876 = vmatprep.subr.bf16.mxu0 0
    %7877 = vmatpush2.bf16.msra.mxu0 0
    %7878 = vmatprep.subr.bf16.mxu0 0
    %7879 = vmatpush2.bf16.msra.mxu0 0
    %7880 = vmatprep.subr.bf16.mxu0 0
    %7881 = vmatpush2.bf16.msra.mxu0 0
    %7882 = vmatprep.subr.bf16.mxu0 0
    %7883 = vmatpush2.bf16.msra.mxu0 0
    %7884 = vmatprep.subr.bf16.mxu0 0
    %7885 = vmatpush2.bf16.msra.mxu0 0
    %7886 = vmatprep.mubr.bf16.mxu0 0
    %7887 = vmatmul.mubr.bf16.gmra.mxu0 %v7811
    %v7888 = vpop.f32.mrf.mxu0
    %v7889 = vadd.f32 %v7848, %v7888
    %v7890 = vpop.f32.mrf.mxu0
    %v7891 = vpop.f32.mrf.mxu0
    %v7892 = vadd.f32 %v7851, %v7891
    %v7893 = vpop.f32.mrf.mxu0
    %7894 = vdwg.mxu0
    %s7895 = scalar_lea.vmem %s37, 16
    %v7896 = vld [vmem:[%s7895] sm:$0xf]
    %v7897 = vld [vmem:[%s7895 + $0x4] sm:$0xf]
    %v7900 = vunpack.c.l.b16 %v7896
    %v7901 = vunpack.c.l.b16 %v7897
    %v7902 = vpack.c.b16 %v7901, %v7900
    %v7904 = vsel %vm7215, %v7902, 0
    %7906 = vmatprep.subr.bf16.mxu0 0
    %7907 = vmatpush1.bf16.msra.mxu0 0
    %7908 = vmatprep.subr.bf16.mxu0 0
    %7909 = vmatpush1.bf16.msra.mxu0 0
    %7910 = vmatprep.subr.bf16.mxu0 0
    %7911 = vmatpush1.bf16.msra.mxu0 0
    %7912 = vmatprep.subr.bf16.mxu0 0
    %7913 = vmatpush1.bf16.msra.mxu0 0
    %7914 = vmatprep.subr.bf16.mxu0 0
    %7915 = vmatpush1.bf16.msra.mxu0 0
    %7916 = vmatprep.subr.bf16.mxu0 0
    %7917 = vmatpush1.bf16.msra.mxu0 0
    %7918 = vmatprep.subr.bf16.mxu0 %v7206
    %7919 = vmatpush1.bf16.msra.mxu0 %v7205
    %7920 = vmatprep.subr.bf16.mxu0 %v7203
    %7921 = vmatpush1.bf16.msra.mxu0 %v7202
    %7922 = vmatprep.subr.bf16.mxu0 0
    %7923 = vmatpush2.bf16.msra.mxu0 0
    %7924 = vmatprep.subr.bf16.mxu0 0
    %7925 = vmatpush2.bf16.msra.mxu0 0
    %7926 = vmatprep.subr.bf16.mxu0 0
    %7927 = vmatpush2.bf16.msra.mxu0 0
    %7928 = vmatprep.subr.bf16.mxu0 0
    %7929 = vmatpush2.bf16.msra.mxu0 0
    %7930 = vmatprep.subr.bf16.mxu0 0
    %7931 = vmatpush2.bf16.msra.mxu0 0
    %7932 = vmatprep.subr.bf16.mxu0 0
    %7933 = vmatpush2.bf16.msra.mxu0 0
    %7934 = vmatprep.subr.bf16.mxu0 0
    %7935 = vmatpush2.bf16.msra.mxu0 0
    %7936 = vmatprep.subr.bf16.mxu0 0
    %7937 = vmatpush2.bf16.msra.mxu0 0
    %7938 = vmatprep.mubr.bf16.mxu0 0
    %7939 = vmatmul.mubr.bf16.gmra.mxu0 %v7904
    %v7940 = vpop.f32.mrf.mxu0
    %v7941 = vadd.f32 0.0, %v7940
    %v7942 = vpop.f32.mrf.mxu0
    %v7943 = vadd.f32 0.0, %v7942
    %v7944 = vpop.f32.mrf.mxu0
    %v7945 = vadd.f32 0.0, %v7944
    %v7946 = vpop.f32.mrf.mxu0
    %v7947 = vadd.f32 0.0, %v7946
    %7948 = vdwg.mxu0
    %7949 = vmatprep.subr.bf16.mxu0 0
    %7950 = vmatpush1.bf16.msra.mxu0 0
    %7951 = vmatprep.subr.bf16.mxu0 0
    %7952 = vmatpush1.bf16.msra.mxu0 0
    %7953 = vmatprep.subr.bf16.mxu0 0
    %7954 = vmatpush1.bf16.msra.mxu0 0
    %7955 = vmatprep.subr.bf16.mxu0 0
    %7956 = vmatpush1.bf16.msra.mxu0 0
    %7957 = vmatprep.subr.bf16.mxu0 0
    %7958 = vmatpush1.bf16.msra.mxu0 0
    %7959 = vmatprep.subr.bf16.mxu0 0
    %7960 = vmatpush1.bf16.msra.mxu0 0
    %7961 = vmatprep.subr.bf16.mxu0 0
    %7962 = vmatpush1.bf16.msra.mxu0 %v7207
    %7963 = vmatprep.subr.bf16.mxu0 0
    %7964 = vmatpush1.bf16.msra.mxu0 %v7204
    %7965 = vmatprep.subr.bf16.mxu0 0
    %7966 = vmatpush2.bf16.msra.mxu0 0
    %7967 = vmatprep.subr.bf16.mxu0 0
    %7968 = vmatpush2.bf16.msra.mxu0 0
    %7969 = vmatprep.subr.bf16.mxu0 0
    %7970 = vmatpush2.bf16.msra.mxu0 0
    %7971 = vmatprep.subr.bf16.mxu0 0
    %7972 = vmatpush2.bf16.msra.mxu0 0
    %7973 = vmatprep.subr.bf16.mxu0 0
    %7974 = vmatpush2.bf16.msra.mxu0 0
    %7975 = vmatprep.subr.bf16.mxu0 0
    %7976 = vmatpush2.bf16.msra.mxu0 0
    %7977 = vmatprep.subr.bf16.mxu0 0
    %7978 = vmatpush2.bf16.msra.mxu0 0
    %7979 = vmatprep.subr.bf16.mxu0 0
    %7980 = vmatpush2.bf16.msra.mxu0 0
    %7981 = vmatprep.mubr.bf16.mxu0 0
    %7982 = vmatmul.mubr.bf16.gmra.mxu0 %v7904
    %v7983 = vpop.f32.mrf.mxu0
    %v7984 = vadd.f32 0.0, %v7983
    %v7985 = vpop.f32.mrf.mxu0
    %v7986 = vpop.f32.mrf.mxu0
    %v7987 = vadd.f32 0.0, %v7986
    %v7988 = vpop.f32.mrf.mxu0
    %7989 = vdwg.mxu0
    %v7990 = vpack.c.bf16 %v7945, %v7941
    %v7991 = vpack.c.bf16 %v7947, %v7943
    %v7992 = vpack.c.bf16 %v7987, %v7984
    %s7993 = scalar_lea.vmem %s39, 320
    %v7994 = vld [vmem:[%s7993] sm:$0xf]
    %v7995 = vld [vmem:[%s7993 + $0x4] sm:$0xf]
    %v7996 = vld [vmem:[%s7993 + $0x8] sm:$0xf]
    %v7997 = vld [vmem:[%s7993 + $0xc] sm:$0xf]
    %v7998 = vld [vmem:[%s7993 + $0x10] sm:$0xf]
    %v7999 = vld [vmem:[%s7993 + $0x14] sm:$0xf]
    %v8000 = vld [vmem:[%s7993 + $0x18] sm:$0xf]
    %v8001 = vld [vmem:[%s7993 + $0x1c] sm:$0xf]
    %v8002 = vld [vmem:[%s7993 + $0x20] sm:$0xf]
    %v8003 = vld [vmem:[%s7993 + $0x24] sm:$0xf]
    %v8004 = vld [vmem:[%s7993 + $0x28] sm:$0xf]
    %v8005 = vld [vmem:[%s7993 + $0x2c] sm:$0xf]
    %v8006 = vld [vmem:[%s7993 + $0x30] sm:$0xf]
    %v8007 = vld [vmem:[%s7993 + $0x34] sm:$0xf]
    %v8008 = vld [vmem:[%s7993 + $0x38] sm:$0xf]
    %v8009 = vld [vmem:[%s7993 + $0x3c] sm:$0xf]
    %v8010 = vld [vmem:[%s7993 + $0x40] sm:$0xf]
    %v8011 = vld [vmem:[%s7993 + $0x44] sm:$0xf]
    %v8012 = vld [vmem:[%s7993 + $0x48] sm:$0xf]
    %v8013 = vld [vmem:[%s7993 + $0x4c] sm:$0xf]
    %v8014 = vld [vmem:[%s7993 + $0x50] sm:$0xf]
    %v8015 = vld [vmem:[%s7993 + $0x54] sm:$0xf]
    %v8016 = vld [vmem:[%s7993 + $0x58] sm:$0xf]
    %v8017 = vld [vmem:[%s7993 + $0x5c] sm:$0xf]
    %v8018 = vld [vmem:[%s7993 + $0x60] sm:$0xf]
    %v8019 = vld [vmem:[%s7993 + $0x64] sm:$0xf]
    %v8020 = vld [vmem:[%s7993 + $0x68] sm:$0xf]
    %v8021 = vld [vmem:[%s7993 + $0x6c] sm:$0xf]
    %v8022 = vld [vmem:[%s7993 + $0x70] sm:$0xf]
    %v8023 = vld [vmem:[%s7993 + $0x74] sm:$0xf]
    %v8024 = vld [vmem:[%s7993 + $0x78] sm:$0xf]
    %v8025 = vld [vmem:[%s7993 + $0x7c] sm:$0xf]
    %v8026 = vld [vmem:[%s7993 + $0x80] sm:$0xf]
    %v8027 = vld [vmem:[%s7993 + $0x84] sm:$0xf]
    %v8028 = vld [vmem:[%s7993 + $0x88] sm:$0xf]
    %v8029 = vld [vmem:[%s7993 + $0x8c] sm:$0xf]
    %v8030 = vld [vmem:[%s7993 + $0x90] sm:$0xf]
    %v8031 = vld [vmem:[%s7993 + $0x94] sm:$0xf]
    %v8032 = vld [vmem:[%s7993 + $0x98] sm:$0xf]
    %v8033 = vld [vmem:[%s7993 + $0x9c] sm:$0xf]
    %v8074 = vunpack.c.l.b16 %v7994
    %v8075 = vunpack.c.l.b16 %v7995
    %v8076 = vunpack.c.l.b16 %v7996
    %v8077 = vunpack.c.l.b16 %v7997
    %v8078 = vunpack.c.l.b16 %v7998
    %v8079 = vunpack.c.l.b16 %v7999
    %v8080 = vunpack.c.l.b16 %v8000
    %v8081 = vunpack.c.l.b16 %v8001
    %v8082 = vunpack.c.l.b16 %v8002
    %v8083 = vunpack.c.l.b16 %v8003
    %v8084 = vunpack.c.l.b16 %v8004
    %v8085 = vunpack.c.l.b16 %v8005
    %v8086 = vunpack.c.l.b16 %v8006
    %v8087 = vunpack.c.l.b16 %v8007
    %v8088 = vunpack.c.l.b16 %v8008
    %v8089 = vunpack.c.l.b16 %v8009
    %v8090 = vunpack.c.l.b16 %v8010
    %v8091 = vunpack.c.l.b16 %v8011
    %v8092 = vunpack.c.l.b16 %v8012
    %v8093 = vunpack.c.l.b16 %v8013
    %v8094 = vunpack.c.l.b16 %v8014
    %v8095 = vunpack.c.l.b16 %v8015
    %v8096 = vunpack.c.l.b16 %v8016
    %v8097 = vunpack.c.l.b16 %v8017
    %v8098 = vunpack.c.l.b16 %v8018
    %v8099 = vunpack.c.l.b16 %v8019
    %v8100 = vunpack.c.l.b16 %v8020
    %v8101 = vunpack.c.l.b16 %v8021
    %v8102 = vunpack.c.l.b16 %v8022
    %v8103 = vunpack.c.l.b16 %v8023
    %v8104 = vunpack.c.l.b16 %v8024
    %v8105 = vunpack.c.l.b16 %v8025
    %v8106 = vunpack.c.l.b16 %v8026
    %v8107 = vunpack.c.l.b16 %v8027
    %v8108 = vunpack.c.l.b16 %v8028
    %v8109 = vunpack.c.l.b16 %v8029
    %v8110 = vunpack.c.l.b16 %v8030
    %v8111 = vunpack.c.l.b16 %v8031
    %v8112 = vunpack.c.l.b16 %v8032
    %v8113 = vunpack.c.l.b16 %v8033
    %v8114 = vpack.c.b16 %v8075, %v8074
    %v8115 = vpack.c.b16 %v8077, %v8076
    %v8116 = vpack.c.b16 %v8079, %v8078
    %v8117 = vpack.c.b16 %v8081, %v8080
    %v8118 = vpack.c.b16 %v8083, %v8082
    %v8119 = vpack.c.b16 %v8085, %v8084
    %v8120 = vpack.c.b16 %v8087, %v8086
    %v8121 = vpack.c.b16 %v8089, %v8088
    %v8122 = vpack.c.b16 %v8091, %v8090
    %v8123 = vpack.c.b16 %v8093, %v8092
    %v8124 = vpack.c.b16 %v8095, %v8094
    %v8125 = vpack.c.b16 %v8097, %v8096
    %v8126 = vpack.c.b16 %v8099, %v8098
    %v8127 = vpack.c.b16 %v8101, %v8100
    %v8128 = vpack.c.b16 %v8103, %v8102
    %v8129 = vpack.c.b16 %v8105, %v8104
    %v8130 = vpack.c.b16 %v8107, %v8106
    %v8131 = vpack.c.b16 %v8109, %v8108
    %v8132 = vpack.c.b16 %v8111, %v8110
    %v8133 = vpack.c.b16 %v8113, %v8112
    %v8155 = vsel %vm528, %v7992, 0
    %8157 = vmatprep.subr.bf16.mxu0 0
    %8158 = vmatpush1.bf16.msra.mxu0 %v8121
    %8159 = vmatprep.subr.bf16.mxu0 0
    %8160 = vmatpush1.bf16.msra.mxu0 %v8120
    %8161 = vmatprep.subr.bf16.mxu0 0
    %8162 = vmatpush1.bf16.msra.mxu0 %v8119
    %8163 = vmatprep.subr.bf16.mxu0 0
    %8164 = vmatpush1.bf16.msra.mxu0 %v8118
    %8165 = vmatprep.subr.bf16.mxu0 0
    %8166 = vmatpush1.bf16.msra.mxu0 %v8117
    %8167 = vmatprep.subr.bf16.mxu0 0
    %8168 = vmatpush1.bf16.msra.mxu0 %v8116
    %8169 = vmatprep.subr.bf16.mxu0 0
    %8170 = vmatpush1.bf16.msra.mxu0 %v8115
    %8171 = vmatprep.subr.bf16.mxu0 0
    %8172 = vmatpush1.bf16.msra.mxu0 %v8114
    %8173 = vmatprep.subr.bf16.mxu0 0
    %8174 = vmatpush2.bf16.msra.mxu0 %v8129
    %8175 = vmatprep.subr.bf16.mxu0 0
    %8176 = vmatpush2.bf16.msra.mxu0 %v8128
    %8177 = vmatprep.subr.bf16.mxu0 0
    %8178 = vmatpush2.bf16.msra.mxu0 %v8127
    %8179 = vmatprep.subr.bf16.mxu0 0
    %8180 = vmatpush2.bf16.msra.mxu0 %v8126
    %8181 = vmatprep.subr.bf16.mxu0 0
    %8182 = vmatpush2.bf16.msra.mxu0 %v8125
    %8183 = vmatprep.subr.bf16.mxu0 0
    %8184 = vmatpush2.bf16.msra.mxu0 %v8124
    %8185 = vmatprep.subr.bf16.mxu0 0
    %8186 = vmatpush2.bf16.msra.mxu0 %v8123
    %8187 = vmatprep.subr.bf16.mxu0 0
    %8188 = vmatpush2.bf16.msra.mxu0 %v8122
    %8189 = vmatprep.mubr.bf16.mxu0 %v7991
    %8190 = vmatmul.mubr.bf16.gmra.mxu0 %v7990
    %v8191 = vpop.f32.mrf.mxu0
    %v8192 = vadd.f32 0.0, %v8191
    %v8193 = vpop.f32.mrf.mxu0
    %v8194 = vpop.f32.mrf.mxu0
    %v8195 = vadd.f32 0.0, %v8194
    %v8196 = vpop.f32.mrf.mxu0
    %8197 = vdwg.mxu0
    %8198 = vmatprep.subr.bf16.mxu0 0
    %8199 = vmatpush1.bf16.msra.mxu0 0
    %8200 = vmatprep.subr.bf16.mxu0 0
    %8201 = vmatpush1.bf16.msra.mxu0 0
    %8202 = vmatprep.subr.bf16.mxu0 0
    %8203 = vmatpush1.bf16.msra.mxu0 0
    %8204 = vmatprep.subr.bf16.mxu0 0
    %8205 = vmatpush1.bf16.msra.mxu0 0
    %8206 = vmatprep.subr.bf16.mxu0 0
    %8207 = vmatpush1.bf16.msra.mxu0 %v8133
    %8208 = vmatprep.subr.bf16.mxu0 0
    %8209 = vmatpush1.bf16.msra.mxu0 %v8132
    %8210 = vmatprep.subr.bf16.mxu0 0
    %8211 = vmatpush1.bf16.msra.mxu0 %v8131
    %8212 = vmatprep.subr.bf16.mxu0 0
    %8213 = vmatpush1.bf16.msra.mxu0 %v8130
    %8214 = vmatprep.subr.bf16.mxu0 0
    %8215 = vmatpush2.bf16.msra.mxu0 0
    %8216 = vmatprep.subr.bf16.mxu0 0
    %8217 = vmatpush2.bf16.msra.mxu0 0
    %8218 = vmatprep.subr.bf16.mxu0 0
    %8219 = vmatpush2.bf16.msra.mxu0 0
    %8220 = vmatprep.subr.bf16.mxu0 0
    %8221 = vmatpush2.bf16.msra.mxu0 0
    %8222 = vmatprep.subr.bf16.mxu0 0
    %8223 = vmatpush2.bf16.msra.mxu0 0
    %8224 = vmatprep.subr.bf16.mxu0 0
    %8225 = vmatpush2.bf16.msra.mxu0 0
    %8226 = vmatprep.subr.bf16.mxu0 0
    %8227 = vmatpush2.bf16.msra.mxu0 0
    %8228 = vmatprep.subr.bf16.mxu0 0
    %8229 = vmatpush2.bf16.msra.mxu0 0
    %8230 = vmatprep.mubr.bf16.mxu0 0
    %8231 = vmatmul.mubr.bf16.gmra.mxu0 %v8155
    %v8232 = vpop.f32.mrf.mxu0
    %v8233 = vadd.f32 %v8192, %v8232
    %v8234 = vpop.f32.mrf.mxu0
    %v8235 = vpop.f32.mrf.mxu0
    %v8236 = vadd.f32 %v8195, %v8235
    %v8237 = vpop.f32.mrf.mxu0
    %8238 = vdwg.mxu0
    %v8239 = vadd.f32 %v7889, %v8233
    %v8240 = vadd.f32 %v7892, %v8236
    %s8241 = scalar_lea.vmem %s37, 24
    %v8242 = vld [vmem:[%s8241] sm:$0xf]
    %v8243 = vld [vmem:[%s8241 + $0x4] sm:$0xf]
    %v8246 = vunpack.c.l.b16 %v8242
    %v8247 = vunpack.c.l.b16 %v8243
    %v8248 = vpack.c.b16 %v8247, %v8246
    %v8250 = vsel %vm7215, %v8248, 0
    %8252 = vmatprep.subr.bf16.mxu0 0
    %8253 = vmatpush1.bf16.msra.mxu0 0
    %8254 = vmatprep.subr.bf16.mxu0 0
    %8255 = vmatpush1.bf16.msra.mxu0 0
    %8256 = vmatprep.subr.bf16.mxu0 0
    %8257 = vmatpush1.bf16.msra.mxu0 0
    %8258 = vmatprep.subr.bf16.mxu0 0
    %8259 = vmatpush1.bf16.msra.mxu0 0
    %8260 = vmatprep.subr.bf16.mxu0 0
    %8261 = vmatpush1.bf16.msra.mxu0 0
    %8262 = vmatprep.subr.bf16.mxu0 0
    %8263 = vmatpush1.bf16.msra.mxu0 0
    %8264 = vmatprep.subr.bf16.mxu0 %v7206
    %8265 = vmatpush1.bf16.msra.mxu0 %v7205
    %8266 = vmatprep.subr.bf16.mxu0 %v7203
    %8267 = vmatpush1.bf16.msra.mxu0 %v7202
    %8268 = vmatprep.subr.bf16.mxu0 0
    %8269 = vmatpush2.bf16.msra.mxu0 0
    %8270 = vmatprep.subr.bf16.mxu0 0
    %8271 = vmatpush2.bf16.msra.mxu0 0
    %8272 = vmatprep.subr.bf16.mxu0 0
    %8273 = vmatpush2.bf16.msra.mxu0 0
    %8274 = vmatprep.subr.bf16.mxu0 0
    %8275 = vmatpush2.bf16.msra.mxu0 0
    %8276 = vmatprep.subr.bf16.mxu0 0
    %8277 = vmatpush2.bf16.msra.mxu0 0
    %8278 = vmatprep.subr.bf16.mxu0 0
    %8279 = vmatpush2.bf16.msra.mxu0 0
    %8280 = vmatprep.subr.bf16.mxu0 0
    %8281 = vmatpush2.bf16.msra.mxu0 0
    %8282 = vmatprep.subr.bf16.mxu0 0
    %8283 = vmatpush2.bf16.msra.mxu0 0
    %8284 = vmatprep.mubr.bf16.mxu0 0
    %8285 = vmatmul.mubr.bf16.gmra.mxu0 %v8250
    %v8286 = vpop.f32.mrf.mxu0
    %v8287 = vadd.f32 0.0, %v8286
    %v8288 = vpop.f32.mrf.mxu0
    %v8289 = vadd.f32 0.0, %v8288
    %v8290 = vpop.f32.mrf.mxu0
    %v8291 = vadd.f32 0.0, %v8290
    %v8292 = vpop.f32.mrf.mxu0
    %v8293 = vadd.f32 0.0, %v8292
    %8294 = vdwg.mxu0
    %8295 = vmatprep.subr.bf16.mxu0 0
    %8296 = vmatpush1.bf16.msra.mxu0 0
    %8297 = vmatprep.subr.bf16.mxu0 0
    %8298 = vmatpush1.bf16.msra.mxu0 0
    %8299 = vmatprep.subr.bf16.mxu0 0
    %8300 = vmatpush1.bf16.msra.mxu0 0
    %8301 = vmatprep.subr.bf16.mxu0 0
    %8302 = vmatpush1.bf16.msra.mxu0 0
    %8303 = vmatprep.subr.bf16.mxu0 0
    %8304 = vmatpush1.bf16.msra.mxu0 0
    %8305 = vmatprep.subr.bf16.mxu0 0
    %8306 = vmatpush1.bf16.msra.mxu0 0
    %8307 = vmatprep.subr.bf16.mxu0 0
    %8308 = vmatpush1.bf16.msra.mxu0 %v7207
    %8309 = vmatprep.subr.bf16.mxu0 0
    %8310 = vmatpush1.bf16.msra.mxu0 %v7204
    %8311 = vmatprep.subr.bf16.mxu0 0
    %8312 = vmatpush2.bf16.msra.mxu0 0
    %8313 = vmatprep.subr.bf16.mxu0 0
    %8314 = vmatpush2.bf16.msra.mxu0 0
    %8315 = vmatprep.subr.bf16.mxu0 0
    %8316 = vmatpush2.bf16.msra.mxu0 0
    %8317 = vmatprep.subr.bf16.mxu0 0
    %8318 = vmatpush2.bf16.msra.mxu0 0
    %8319 = vmatprep.subr.bf16.mxu0 0
    %8320 = vmatpush2.bf16.msra.mxu0 0
    %8321 = vmatprep.subr.bf16.mxu0 0
    %8322 = vmatpush2.bf16.msra.mxu0 0
    %8323 = vmatprep.subr.bf16.mxu0 0
    %8324 = vmatpush2.bf16.msra.mxu0 0
    %8325 = vmatprep.subr.bf16.mxu0 0
    %8326 = vmatpush2.bf16.msra.mxu0 0
    %8327 = vmatprep.mubr.bf16.mxu0 0
    %8328 = vmatmul.mubr.bf16.gmra.mxu0 %v8250
    %v8329 = vpop.f32.mrf.mxu0
    %v8330 = vadd.f32 0.0, %v8329
    %v8331 = vpop.f32.mrf.mxu0
    %v8332 = vpop.f32.mrf.mxu0
    %v8333 = vadd.f32 0.0, %v8332
    %v8334 = vpop.f32.mrf.mxu0
    %8335 = vdwg.mxu0
    %v8336 = vpack.c.bf16 %v8291, %v8287
    %v8337 = vpack.c.bf16 %v8293, %v8289
    %v8338 = vpack.c.bf16 %v8333, %v8330
    %s8339 = scalar_lea.vmem %s39, 480
    %v8340 = vld [vmem:[%s8339] sm:$0xf]
    %v8341 = vld [vmem:[%s8339 + $0x4] sm:$0xf]
    %v8342 = vld [vmem:[%s8339 + $0x8] sm:$0xf]
    %v8343 = vld [vmem:[%s8339 + $0xc] sm:$0xf]
    %v8344 = vld [vmem:[%s8339 + $0x10] sm:$0xf]
    %v8345 = vld [vmem:[%s8339 + $0x14] sm:$0xf]
    %v8346 = vld [vmem:[%s8339 + $0x18] sm:$0xf]
    %v8347 = vld [vmem:[%s8339 + $0x1c] sm:$0xf]
    %v8348 = vld [vmem:[%s8339 + $0x20] sm:$0xf]
    %v8349 = vld [vmem:[%s8339 + $0x24] sm:$0xf]
    %v8350 = vld [vmem:[%s8339 + $0x28] sm:$0xf]
    %v8351 = vld [vmem:[%s8339 + $0x2c] sm:$0xf]
    %v8352 = vld [vmem:[%s8339 + $0x30] sm:$0xf]
    %v8353 = vld [vmem:[%s8339 + $0x34] sm:$0xf]
    %v8354 = vld [vmem:[%s8339 + $0x38] sm:$0xf]
    %v8355 = vld [vmem:[%s8339 + $0x3c] sm:$0xf]
    %v8356 = vld [vmem:[%s8339 + $0x40] sm:$0xf]
    %v8357 = vld [vmem:[%s8339 + $0x44] sm:$0xf]
    %v8358 = vld [vmem:[%s8339 + $0x48] sm:$0xf]
    %v8359 = vld [vmem:[%s8339 + $0x4c] sm:$0xf]
    %v8360 = vld [vmem:[%s8339 + $0x50] sm:$0xf]
    %v8361 = vld [vmem:[%s8339 + $0x54] sm:$0xf]
    %v8362 = vld [vmem:[%s8339 + $0x58] sm:$0xf]
    %v8363 = vld [vmem:[%s8339 + $0x5c] sm:$0xf]
    %v8364 = vld [vmem:[%s8339 + $0x60] sm:$0xf]
    %v8365 = vld [vmem:[%s8339 + $0x64] sm:$0xf]
    %v8366 = vld [vmem:[%s8339 + $0x68] sm:$0xf]
    %v8367 = vld [vmem:[%s8339 + $0x6c] sm:$0xf]
    %v8368 = vld [vmem:[%s8339 + $0x70] sm:$0xf]
    %v8369 = vld [vmem:[%s8339 + $0x74] sm:$0xf]
    %v8370 = vld [vmem:[%s8339 + $0x78] sm:$0xf]
    %v8371 = vld [vmem:[%s8339 + $0x7c] sm:$0xf]
    %v8372 = vld [vmem:[%s8339 + $0x80] sm:$0xf]
    %v8373 = vld [vmem:[%s8339 + $0x84] sm:$0xf]
    %v8374 = vld [vmem:[%s8339 + $0x88] sm:$0xf]
    %v8375 = vld [vmem:[%s8339 + $0x8c] sm:$0xf]
    %v8376 = vld [vmem:[%s8339 + $0x90] sm:$0xf]
    %v8377 = vld [vmem:[%s8339 + $0x94] sm:$0xf]
    %v8378 = vld [vmem:[%s8339 + $0x98] sm:$0xf]
    %v8379 = vld [vmem:[%s8339 + $0x9c] sm:$0xf]
    %v8420 = vunpack.c.l.b16 %v8340
    %v8421 = vunpack.c.l.b16 %v8341
    %v8422 = vunpack.c.l.b16 %v8342
    %v8423 = vunpack.c.l.b16 %v8343
    %v8424 = vunpack.c.l.b16 %v8344
    %v8425 = vunpack.c.l.b16 %v8345
    %v8426 = vunpack.c.l.b16 %v8346
    %v8427 = vunpack.c.l.b16 %v8347
    %v8428 = vunpack.c.l.b16 %v8348
    %v8429 = vunpack.c.l.b16 %v8349
    %v8430 = vunpack.c.l.b16 %v8350
    %v8431 = vunpack.c.l.b16 %v8351
    %v8432 = vunpack.c.l.b16 %v8352
    %v8433 = vunpack.c.l.b16 %v8353
    %v8434 = vunpack.c.l.b16 %v8354
    %v8435 = vunpack.c.l.b16 %v8355
    %v8436 = vunpack.c.l.b16 %v8356
    %v8437 = vunpack.c.l.b16 %v8357
    %v8438 = vunpack.c.l.b16 %v8358
    %v8439 = vunpack.c.l.b16 %v8359
    %v8440 = vunpack.c.l.b16 %v8360
    %v8441 = vunpack.c.l.b16 %v8361
    %v8442 = vunpack.c.l.b16 %v8362
    %v8443 = vunpack.c.l.b16 %v8363
    %v8444 = vunpack.c.l.b16 %v8364
    %v8445 = vunpack.c.l.b16 %v8365
    %v8446 = vunpack.c.l.b16 %v8366
    %v8447 = vunpack.c.l.b16 %v8367
    %v8448 = vunpack.c.l.b16 %v8368
    %v8449 = vunpack.c.l.b16 %v8369
    %v8450 = vunpack.c.l.b16 %v8370
    %v8451 = vunpack.c.l.b16 %v8371
    %v8452 = vunpack.c.l.b16 %v8372
    %v8453 = vunpack.c.l.b16 %v8373
    %v8454 = vunpack.c.l.b16 %v8374
    %v8455 = vunpack.c.l.b16 %v8375
    %v8456 = vunpack.c.l.b16 %v8376
    %v8457 = vunpack.c.l.b16 %v8377
    %v8458 = vunpack.c.l.b16 %v8378
    %v8459 = vunpack.c.l.b16 %v8379
    %v8460 = vpack.c.b16 %v8421, %v8420
    %v8461 = vpack.c.b16 %v8423, %v8422
    %v8462 = vpack.c.b16 %v8425, %v8424
    %v8463 = vpack.c.b16 %v8427, %v8426
    %v8464 = vpack.c.b16 %v8429, %v8428
    %v8465 = vpack.c.b16 %v8431, %v8430
    %v8466 = vpack.c.b16 %v8433, %v8432
    %v8467 = vpack.c.b16 %v8435, %v8434
    %v8468 = vpack.c.b16 %v8437, %v8436
    %v8469 = vpack.c.b16 %v8439, %v8438
    %v8470 = vpack.c.b16 %v8441, %v8440
    %v8471 = vpack.c.b16 %v8443, %v8442
    %v8472 = vpack.c.b16 %v8445, %v8444
    %v8473 = vpack.c.b16 %v8447, %v8446
    %v8474 = vpack.c.b16 %v8449, %v8448
    %v8475 = vpack.c.b16 %v8451, %v8450
    %v8476 = vpack.c.b16 %v8453, %v8452
    %v8477 = vpack.c.b16 %v8455, %v8454
    %v8478 = vpack.c.b16 %v8457, %v8456
    %v8479 = vpack.c.b16 %v8459, %v8458
    %v8501 = vsel %vm528, %v8338, 0
    %8503 = vmatprep.subr.bf16.mxu0 0
    %8504 = vmatpush1.bf16.msra.mxu0 %v8467
    %8505 = vmatprep.subr.bf16.mxu0 0
    %8506 = vmatpush1.bf16.msra.mxu0 %v8466
    %8507 = vmatprep.subr.bf16.mxu0 0
    %8508 = vmatpush1.bf16.msra.mxu0 %v8465
    %8509 = vmatprep.subr.bf16.mxu0 0
    %8510 = vmatpush1.bf16.msra.mxu0 %v8464
    %8511 = vmatprep.subr.bf16.mxu0 0
    %8512 = vmatpush1.bf16.msra.mxu0 %v8463
    %8513 = vmatprep.subr.bf16.mxu0 0
    %8514 = vmatpush1.bf16.msra.mxu0 %v8462
    %8515 = vmatprep.subr.bf16.mxu0 0
    %8516 = vmatpush1.bf16.msra.mxu0 %v8461
    %8517 = vmatprep.subr.bf16.mxu0 0
    %8518 = vmatpush1.bf16.msra.mxu0 %v8460
    %8519 = vmatprep.subr.bf16.mxu0 0
    %8520 = vmatpush2.bf16.msra.mxu0 %v8475
    %8521 = vmatprep.subr.bf16.mxu0 0
    %8522 = vmatpush2.bf16.msra.mxu0 %v8474
    %8523 = vmatprep.subr.bf16.mxu0 0
    %8524 = vmatpush2.bf16.msra.mxu0 %v8473
    %8525 = vmatprep.subr.bf16.mxu0 0
    %8526 = vmatpush2.bf16.msra.mxu0 %v8472
    %8527 = vmatprep.subr.bf16.mxu0 0
    %8528 = vmatpush2.bf16.msra.mxu0 %v8471
    %8529 = vmatprep.subr.bf16.mxu0 0
    %8530 = vmatpush2.bf16.msra.mxu0 %v8470
    %8531 = vmatprep.subr.bf16.mxu0 0
    %8532 = vmatpush2.bf16.msra.mxu0 %v8469
    %8533 = vmatprep.subr.bf16.mxu0 0
    %8534 = vmatpush2.bf16.msra.mxu0 %v8468
    %8535 = vmatprep.mubr.bf16.mxu0 %v8337
    %8536 = vmatmul.mubr.bf16.gmra.mxu0 %v8336
    %v8537 = vpop.f32.mrf.mxu0
    %v8538 = vadd.f32 0.0, %v8537
    %v8539 = vpop.f32.mrf.mxu0
    %v8540 = vpop.f32.mrf.mxu0
    %v8541 = vadd.f32 0.0, %v8540
    %v8542 = vpop.f32.mrf.mxu0
    %8543 = vdwg.mxu0
    %8544 = vmatprep.subr.bf16.mxu0 0
    %8545 = vmatpush1.bf16.msra.mxu0 0
    %8546 = vmatprep.subr.bf16.mxu0 0
    %8547 = vmatpush1.bf16.msra.mxu0 0
    %8548 = vmatprep.subr.bf16.mxu0 0
    %8549 = vmatpush1.bf16.msra.mxu0 0
    %8550 = vmatprep.subr.bf16.mxu0 0
    %8551 = vmatpush1.bf16.msra.mxu0 0
    %8552 = vmatprep.subr.bf16.mxu0 0
    %8553 = vmatpush1.bf16.msra.mxu0 %v8479
    %8554 = vmatprep.subr.bf16.mxu0 0
    %8555 = vmatpush1.bf16.msra.mxu0 %v8478
    %8556 = vmatprep.subr.bf16.mxu0 0
    %8557 = vmatpush1.bf16.msra.mxu0 %v8477
    %8558 = vmatprep.subr.bf16.mxu0 0
    %8559 = vmatpush1.bf16.msra.mxu0 %v8476
    %8560 = vmatprep.subr.bf16.mxu0 0
    %8561 = vmatpush2.bf16.msra.mxu0 0
    %8562 = vmatprep.subr.bf16.mxu0 0
    %8563 = vmatpush2.bf16.msra.mxu0 0
    %8564 = vmatprep.subr.bf16.mxu0 0
    %8565 = vmatpush2.bf16.msra.mxu0 0
    %8566 = vmatprep.subr.bf16.mxu0 0
    %8567 = vmatpush2.bf16.msra.mxu0 0
    %8568 = vmatprep.subr.bf16.mxu0 0
    %8569 = vmatpush2.bf16.msra.mxu0 0
    %8570 = vmatprep.subr.bf16.mxu0 0
    %8571 = vmatpush2.bf16.msra.mxu0 0
    %8572 = vmatprep.subr.bf16.mxu0 0
    %8573 = vmatpush2.bf16.msra.mxu0 0
    %8574 = vmatprep.subr.bf16.mxu0 0
    %8575 = vmatpush2.bf16.msra.mxu0 0
    %8576 = vmatprep.mubr.bf16.mxu0 0
    %8577 = vmatmul.mubr.bf16.gmra.mxu0 %v8501
    %v8578 = vpop.f32.mrf.mxu0
    %v8579 = vadd.f32 %v8538, %v8578
    %v8580 = vpop.f32.mrf.mxu0
    %v8581 = vpop.f32.mrf.mxu0
    %v8582 = vadd.f32 %v8541, %v8581
    %v8583 = vpop.f32.mrf.mxu0
    %8584 = vdwg.mxu0
    %v8585 = vadd.f32 %v8239, %v8579
    %v8586 = vadd.f32 %v8240, %v8582
    %s8587 = scalar_lea.vmem %s37, 32
    %v8588 = vld [vmem:[%s8587] sm:$0xf]
    %v8589 = vld [vmem:[%s8587 + $0x4] sm:$0xf]
    %v8592 = vunpack.c.l.b16 %v8588
    %v8593 = vunpack.c.l.b16 %v8589
    %v8594 = vpack.c.b16 %v8593, %v8592
    %v8596 = vsel %vm7215, %v8594, 0
    %8598 = vmatprep.subr.bf16.mxu0 0
    %8599 = vmatpush1.bf16.msra.mxu0 0
    %8600 = vmatprep.subr.bf16.mxu0 0
    %8601 = vmatpush1.bf16.msra.mxu0 0
    %8602 = vmatprep.subr.bf16.mxu0 0
    %8603 = vmatpush1.bf16.msra.mxu0 0
    %8604 = vmatprep.subr.bf16.mxu0 0
    %8605 = vmatpush1.bf16.msra.mxu0 0
    %8606 = vmatprep.subr.bf16.mxu0 0
    %8607 = vmatpush1.bf16.msra.mxu0 0
    %8608 = vmatprep.subr.bf16.mxu0 0
    %8609 = vmatpush1.bf16.msra.mxu0 0
    %8610 = vmatprep.subr.bf16.mxu0 %v7206
    %8611 = vmatpush1.bf16.msra.mxu0 %v7205
    %8612 = vmatprep.subr.bf16.mxu0 %v7203
    %8613 = vmatpush1.bf16.msra.mxu0 %v7202
    %8614 = vmatprep.subr.bf16.mxu0 0
    %8615 = vmatpush2.bf16.msra.mxu0 0
    %8616 = vmatprep.subr.bf16.mxu0 0
    %8617 = vmatpush2.bf16.msra.mxu0 0
    %8618 = vmatprep.subr.bf16.mxu0 0
    %8619 = vmatpush2.bf16.msra.mxu0 0
    %8620 = vmatprep.subr.bf16.mxu0 0
    %8621 = vmatpush2.bf16.msra.mxu0 0
    %8622 = vmatprep.subr.bf16.mxu0 0
    %8623 = vmatpush2.bf16.msra.mxu0 0
    %8624 = vmatprep.subr.bf16.mxu0 0
    %8625 = vmatpush2.bf16.msra.mxu0 0
    %8626 = vmatprep.subr.bf16.mxu0 0
    %8627 = vmatpush2.bf16.msra.mxu0 0
    %8628 = vmatprep.subr.bf16.mxu0 0
    %8629 = vmatpush2.bf16.msra.mxu0 0
    %8630 = vmatprep.mubr.bf16.mxu0 0
    %8631 = vmatmul.mubr.bf16.gmra.mxu0 %v8596
    %v8632 = vpop.f32.mrf.mxu0
    %v8633 = vadd.f32 0.0, %v8632
    %v8634 = vpop.f32.mrf.mxu0
    %v8635 = vadd.f32 0.0, %v8634
    %v8636 = vpop.f32.mrf.mxu0
    %v8637 = vadd.f32 0.0, %v8636
    %v8638 = vpop.f32.mrf.mxu0
    %v8639 = vadd.f32 0.0, %v8638
    %8640 = vdwg.mxu0
    %8641 = vmatprep.subr.bf16.mxu0 0
    %8642 = vmatpush1.bf16.msra.mxu0 0
    %8643 = vmatprep.subr.bf16.mxu0 0
    %8644 = vmatpush1.bf16.msra.mxu0 0
    %8645 = vmatprep.subr.bf16.mxu0 0
    %8646 = vmatpush1.bf16.msra.mxu0 0
    %8647 = vmatprep.subr.bf16.mxu0 0
    %8648 = vmatpush1.bf16.msra.mxu0 0
    %8649 = vmatprep.subr.bf16.mxu0 0
    %8650 = vmatpush1.bf16.msra.mxu0 0
    %8651 = vmatprep.subr.bf16.mxu0 0
    %8652 = vmatpush1.bf16.msra.mxu0 0
    %8653 = vmatprep.subr.bf16.mxu0 0
    %8654 = vmatpush1.bf16.msra.mxu0 %v7207
    %8655 = vmatprep.subr.bf16.mxu0 0
    %8656 = vmatpush1.bf16.msra.mxu0 %v7204
    %8657 = vmatprep.subr.bf16.mxu0 0
    %8658 = vmatpush2.bf16.msra.mxu0 0
    %8659 = vmatprep.subr.bf16.mxu0 0
    %8660 = vmatpush2.bf16.msra.mxu0 0
    %8661 = vmatprep.subr.bf16.mxu0 0
    %8662 = vmatpush2.bf16.msra.mxu0 0
    %8663 = vmatprep.subr.bf16.mxu0 0
    %8664 = vmatpush2.bf16.msra.mxu0 0
    %8665 = vmatprep.subr.bf16.mxu0 0
    %8666 = vmatpush2.bf16.msra.mxu0 0
    %8667 = vmatprep.subr.bf16.mxu0 0
    %8668 = vmatpush2.bf16.msra.mxu0 0
    %8669 = vmatprep.subr.bf16.mxu0 0
    %8670 = vmatpush2.bf16.msra.mxu0 0
    %8671 = vmatprep.subr.bf16.mxu0 0
    %8672 = vmatpush2.bf16.msra.mxu0 0
    %8673 = vmatprep.mubr.bf16.mxu0 0
    %8674 = vmatmul.mubr.bf16.gmra.mxu0 %v8596
    %v8675 = vpop.f32.mrf.mxu0
    %v8676 = vadd.f32 0.0, %v8675
    %v8677 = vpop.f32.mrf.mxu0
    %v8678 = vpop.f32.mrf.mxu0
    %v8679 = vadd.f32 0.0, %v8678
    %v8680 = vpop.f32.mrf.mxu0
    %8681 = vdwg.mxu0
    %v8682 = vpack.c.bf16 %v8637, %v8633
    %v8683 = vpack.c.bf16 %v8639, %v8635
    %v8684 = vpack.c.bf16 %v8679, %v8676
    %s8685 = scalar_lea.vmem %s39, 640
    %v8686 = vld [vmem:[%s8685] sm:$0xf]
    %v8687 = vld [vmem:[%s8685 + $0x4] sm:$0xf]
    %v8688 = vld [vmem:[%s8685 + $0x8] sm:$0xf]
    %v8689 = vld [vmem:[%s8685 + $0xc] sm:$0xf]
    %v8690 = vld [vmem:[%s8685 + $0x10] sm:$0xf]
    %v8691 = vld [vmem:[%s8685 + $0x14] sm:$0xf]
    %v8692 = vld [vmem:[%s8685 + $0x18] sm:$0xf]
    %v8693 = vld [vmem:[%s8685 + $0x1c] sm:$0xf]
    %v8694 = vld [vmem:[%s8685 + $0x20] sm:$0xf]
    %v8695 = vld [vmem:[%s8685 + $0x24] sm:$0xf]
    %v8696 = vld [vmem:[%s8685 + $0x28] sm:$0xf]
    %v8697 = vld [vmem:[%s8685 + $0x2c] sm:$0xf]
    %v8698 = vld [vmem:[%s8685 + $0x30] sm:$0xf]
    %v8699 = vld [vmem:[%s8685 + $0x34] sm:$0xf]
    %v8700 = vld [vmem:[%s8685 + $0x38] sm:$0xf]
    %v8701 = vld [vmem:[%s8685 + $0x3c] sm:$0xf]
    %v8702 = vld [vmem:[%s8685 + $0x40] sm:$0xf]
    %v8703 = vld [vmem:[%s8685 + $0x44] sm:$0xf]
    %v8704 = vld [vmem:[%s8685 + $0x48] sm:$0xf]
    %v8705 = vld [vmem:[%s8685 + $0x4c] sm:$0xf]
    %v8706 = vld [vmem:[%s8685 + $0x50] sm:$0xf]
    %v8707 = vld [vmem:[%s8685 + $0x54] sm:$0xf]
    %v8708 = vld [vmem:[%s8685 + $0x58] sm:$0xf]
    %v8709 = vld [vmem:[%s8685 + $0x5c] sm:$0xf]
    %v8710 = vld [vmem:[%s8685 + $0x60] sm:$0xf]
    %v8711 = vld [vmem:[%s8685 + $0x64] sm:$0xf]
    %v8712 = vld [vmem:[%s8685 + $0x68] sm:$0xf]
    %v8713 = vld [vmem:[%s8685 + $0x6c] sm:$0xf]
    %v8714 = vld [vmem:[%s8685 + $0x70] sm:$0xf]
    %v8715 = vld [vmem:[%s8685 + $0x74] sm:$0xf]
    %v8716 = vld [vmem:[%s8685 + $0x78] sm:$0xf]
    %v8717 = vld [vmem:[%s8685 + $0x7c] sm:$0xf]
    %v8718 = vld [vmem:[%s8685 + $0x80] sm:$0xf]
    %v8719 = vld [vmem:[%s8685 + $0x84] sm:$0xf]
    %v8720 = vld [vmem:[%s8685 + $0x88] sm:$0xf]
    %v8721 = vld [vmem:[%s8685 + $0x8c] sm:$0xf]
    %v8722 = vld [vmem:[%s8685 + $0x90] sm:$0xf]
    %v8723 = vld [vmem:[%s8685 + $0x94] sm:$0xf]
    %v8724 = vld [vmem:[%s8685 + $0x98] sm:$0xf]
    %v8725 = vld [vmem:[%s8685 + $0x9c] sm:$0xf]
    %v8766 = vunpack.c.l.b16 %v8686
    %v8767 = vunpack.c.l.b16 %v8687
    %v8768 = vunpack.c.l.b16 %v8688
    %v8769 = vunpack.c.l.b16 %v8689
    %v8770 = vunpack.c.l.b16 %v8690
    %v8771 = vunpack.c.l.b16 %v8691
    %v8772 = vunpack.c.l.b16 %v8692
    %v8773 = vunpack.c.l.b16 %v8693
    %v8774 = vunpack.c.l.b16 %v8694
    %v8775 = vunpack.c.l.b16 %v8695
    %v8776 = vunpack.c.l.b16 %v8696
    %v8777 = vunpack.c.l.b16 %v8697
    %v8778 = vunpack.c.l.b16 %v8698
    %v8779 = vunpack.c.l.b16 %v8699
    %v8780 = vunpack.c.l.b16 %v8700
    %v8781 = vunpack.c.l.b16 %v8701
    %v8782 = vunpack.c.l.b16 %v8702
    %v8783 = vunpack.c.l.b16 %v8703
    %v8784 = vunpack.c.l.b16 %v8704
    %v8785 = vunpack.c.l.b16 %v8705
    %v8786 = vunpack.c.l.b16 %v8706
    %v8787 = vunpack.c.l.b16 %v8707
    %v8788 = vunpack.c.l.b16 %v8708
    %v8789 = vunpack.c.l.b16 %v8709
    %v8790 = vunpack.c.l.b16 %v8710
    %v8791 = vunpack.c.l.b16 %v8711
    %v8792 = vunpack.c.l.b16 %v8712
    %v8793 = vunpack.c.l.b16 %v8713
    %v8794 = vunpack.c.l.b16 %v8714
    %v8795 = vunpack.c.l.b16 %v8715
    %v8796 = vunpack.c.l.b16 %v8716
    %v8797 = vunpack.c.l.b16 %v8717
    %v8798 = vunpack.c.l.b16 %v8718
    %v8799 = vunpack.c.l.b16 %v8719
    %v8800 = vunpack.c.l.b16 %v8720
    %v8801 = vunpack.c.l.b16 %v8721
    %v8802 = vunpack.c.l.b16 %v8722
    %v8803 = vunpack.c.l.b16 %v8723
    %v8804 = vunpack.c.l.b16 %v8724
    %v8805 = vunpack.c.l.b16 %v8725
    %v8806 = vpack.c.b16 %v8767, %v8766
    %v8807 = vpack.c.b16 %v8769, %v8768
    %v8808 = vpack.c.b16 %v8771, %v8770
    %v8809 = vpack.c.b16 %v8773, %v8772
    %v8810 = vpack.c.b16 %v8775, %v8774
    %v8811 = vpack.c.b16 %v8777, %v8776
    %v8812 = vpack.c.b16 %v8779, %v8778
    %v8813 = vpack.c.b16 %v8781, %v8780
    %v8814 = vpack.c.b16 %v8783, %v8782
    %v8815 = vpack.c.b16 %v8785, %v8784
    %v8816 = vpack.c.b16 %v8787, %v8786
    %v8817 = vpack.c.b16 %v8789, %v8788
    %v8818 = vpack.c.b16 %v8791, %v8790
    %v8819 = vpack.c.b16 %v8793, %v8792
    %v8820 = vpack.c.b16 %v8795, %v8794
    %v8821 = vpack.c.b16 %v8797, %v8796
    %v8822 = vpack.c.b16 %v8799, %v8798
    %v8823 = vpack.c.b16 %v8801, %v8800
    %v8824 = vpack.c.b16 %v8803, %v8802
    %v8825 = vpack.c.b16 %v8805, %v8804
    %v8847 = vsel %vm528, %v8684, 0
    %8849 = vmatprep.subr.bf16.mxu0 0
    %8850 = vmatpush1.bf16.msra.mxu0 %v8813
    %8851 = vmatprep.subr.bf16.mxu0 0
    %8852 = vmatpush1.bf16.msra.mxu0 %v8812
    %8853 = vmatprep.subr.bf16.mxu0 0
    %8854 = vmatpush1.bf16.msra.mxu0 %v8811
    %8855 = vmatprep.subr.bf16.mxu0 0
    %8856 = vmatpush1.bf16.msra.mxu0 %v8810
    %8857 = vmatprep.subr.bf16.mxu0 0
    %8858 = vmatpush1.bf16.msra.mxu0 %v8809
    %8859 = vmatprep.subr.bf16.mxu0 0
    %8860 = vmatpush1.bf16.msra.mxu0 %v8808
    %8861 = vmatprep.subr.bf16.mxu0 0
    %8862 = vmatpush1.bf16.msra.mxu0 %v8807
    %8863 = vmatprep.subr.bf16.mxu0 0
    %8864 = vmatpush1.bf16.msra.mxu0 %v8806
    %8865 = vmatprep.subr.bf16.mxu0 0
    %8866 = vmatpush2.bf16.msra.mxu0 %v8821
    %8867 = vmatprep.subr.bf16.mxu0 0
    %8868 = vmatpush2.bf16.msra.mxu0 %v8820
    %8869 = vmatprep.subr.bf16.mxu0 0
    %8870 = vmatpush2.bf16.msra.mxu0 %v8819
    %8871 = vmatprep.subr.bf16.mxu0 0
    %8872 = vmatpush2.bf16.msra.mxu0 %v8818
    %8873 = vmatprep.subr.bf16.mxu0 0
    %8874 = vmatpush2.bf16.msra.mxu0 %v8817
    %8875 = vmatprep.subr.bf16.mxu0 0
    %8876 = vmatpush2.bf16.msra.mxu0 %v8816
    %8877 = vmatprep.subr.bf16.mxu0 0
    %8878 = vmatpush2.bf16.msra.mxu0 %v8815
    %8879 = vmatprep.subr.bf16.mxu0 0
    %8880 = vmatpush2.bf16.msra.mxu0 %v8814
    %8881 = vmatprep.mubr.bf16.mxu0 %v8683
    %8882 = vmatmul.mubr.bf16.gmra.mxu0 %v8682
    %v8883 = vpop.f32.mrf.mxu0
    %v8884 = vadd.f32 0.0, %v8883
    %v8885 = vpop.f32.mrf.mxu0
    %v8886 = vpop.f32.mrf.mxu0
    %v8887 = vadd.f32 0.0, %v8886
    %v8888 = vpop.f32.mrf.mxu0
    %8889 = vdwg.mxu0
    %8890 = vmatprep.subr.bf16.mxu0 0
    %8891 = vmatpush1.bf16.msra.mxu0 0
    %8892 = vmatprep.subr.bf16.mxu0 0
    %8893 = vmatpush1.bf16.msra.mxu0 0
    %8894 = vmatprep.subr.bf16.mxu0 0
    %8895 = vmatpush1.bf16.msra.mxu0 0
    %8896 = vmatprep.subr.bf16.mxu0 0
    %8897 = vmatpush1.bf16.msra.mxu0 0
    %8898 = vmatprep.subr.bf16.mxu0 0
    %8899 = vmatpush1.bf16.msra.mxu0 %v8825
    %8900 = vmatprep.subr.bf16.mxu0 0
    %8901 = vmatpush1.bf16.msra.mxu0 %v8824
    %8902 = vmatprep.subr.bf16.mxu0 0
    %8903 = vmatpush1.bf16.msra.mxu0 %v8823
    %8904 = vmatprep.subr.bf16.mxu0 0
    %8905 = vmatpush1.bf16.msra.mxu0 %v8822
    %8906 = vmatprep.subr.bf16.mxu0 0
    %8907 = vmatpush2.bf16.msra.mxu0 0
    %8908 = vmatprep.subr.bf16.mxu0 0
    %8909 = vmatpush2.bf16.msra.mxu0 0
    %8910 = vmatprep.subr.bf16.mxu0 0
    %8911 = vmatpush2.bf16.msra.mxu0 0
    %8912 = vmatprep.subr.bf16.mxu0 0
    %8913 = vmatpush2.bf16.msra.mxu0 0
    %8914 = vmatprep.subr.bf16.mxu0 0
    %8915 = vmatpush2.bf16.msra.mxu0 0
    %8916 = vmatprep.subr.bf16.mxu0 0
    %8917 = vmatpush2.bf16.msra.mxu0 0
    %8918 = vmatprep.subr.bf16.mxu0 0
    %8919 = vmatpush2.bf16.msra.mxu0 0
    %8920 = vmatprep.subr.bf16.mxu0 0
    %8921 = vmatpush2.bf16.msra.mxu0 0
    %8922 = vmatprep.mubr.bf16.mxu0 0
    %8923 = vmatmul.mubr.bf16.gmra.mxu0 %v8847
    %v8924 = vpop.f32.mrf.mxu0
    %v8925 = vadd.f32 %v8884, %v8924
    %v8926 = vpop.f32.mrf.mxu0
    %v8927 = vpop.f32.mrf.mxu0
    %v8928 = vadd.f32 %v8887, %v8927
    %v8929 = vpop.f32.mrf.mxu0
    %8930 = vdwg.mxu0
    %v8931 = vadd.f32 %v8585, %v8925
    %v8932 = vadd.f32 %v8586, %v8928
    %v8933 = vld [vmem:[%s41] sm:$0x1]
    %v8935 = vlaneseq
    %v8936 = vshrl.u32 %v8935, 7
    %v8937 = vsub.s32 0, %v8936
    %v8938 = vrot.slane %v8933, %v8937
    %v8940 = vadd.f32 %v8931, %v8938
    %v8941 = vadd.f32 %v8932, %v8938
    %v8942 = vld [vmem:[%s47] sm:$0xff]
    %v8943 = vld [vmem:[%s47 + $0x8] sm:$0xff]
    %v8944 = vld [vmem:[%s47 + $0x10] sm:$0xff]
    %v8945 = vld [vmem:[%s47 + $0x18] sm:$0xff]
    %v8946 = vld [vmem:[%s47 + $0x20] sm:$0xff]
    %v8947 = vld [vmem:[%s47 + $0x28] sm:$0xff]
    %v8948 = vld [vmem:[%s47 + $0x30] sm:$0xff]
    %v8949 = vld [vmem:[%s47 + $0x38] sm:$0xff]
    %v8950 = vld [vmem:[%s47 + $0x40] sm:$0xff]
    %v8951 = vld [vmem:[%s47 + $0x48] sm:$0xff]
    %v8952 = vld [vmem:[%s47 + $0x50] sm:$0xff]
    %v8953 = vld [vmem:[%s47 + $0x58] sm:$0xff]
    %v8954 = vld [vmem:[%s47 + $0x60] sm:$0xff]
    %v8955 = vld [vmem:[%s47 + $0x68] sm:$0xff]
    %v8956 = vld [vmem:[%s47 + $0x70] sm:$0xff]
    %v8957 = vld [vmem:[%s47 + $0x78] sm:$0xff]
    %v8958 = vld [vmem:[%s49] sm:$0xff]
    %v8959 = vld [vmem:[%s49 + $0x8] sm:$0xff]
    %v8960 = vadd.f32 %v8940, %v8941
    %v8961 = vrot.slane %v8960, 4
    %v8962 = vadd.f32 %v8960, %v8961
    %v8963 = vrot.slane %v8962, 2
    %v8964 = vadd.f32 %v8962, %v8963
    %v8965 = vrot.slane %v8964, 1
    %v8966 = vadd.f32 %v8964, %v8965
    %8967 = vmatprep.subr.mxu0 0.0
    %8968 = vmatpush1.msra.mxu0 %v8957
    %8969 = vmatprep.subr.mxu0 0.0
    %8970 = vmatpush1.msra.mxu0 %v8956
    %8971 = vmatprep.subr.mxu0 0.0
    %8972 = vmatpush1.msra.mxu0 %v8955
    %8973 = vmatprep.subr.mxu0 0.0
    %8974 = vmatpush1.msra.mxu0 %v8954
    %8975 = vmatprep.subr.mxu0 0.0
    %8976 = vmatpush1.msra.mxu0 %v8953
    %8977 = vmatprep.subr.mxu0 0.0
    %8978 = vmatpush1.msra.mxu0 %v8952
    %8979 = vmatprep.subr.mxu0 0.0
    %8980 = vmatpush1.msra.mxu0 %v8951
    %8981 = vmatprep.subr.mxu0 0.0
    %8982 = vmatpush1.msra.mxu0 %v8950
    %8983 = vmatprep.subr.mxu0 0.0
    %8984 = vmatpush1.msra.mxu0 %v8949
    %8985 = vmatprep.subr.mxu0 0.0
    %8986 = vmatpush1.msra.mxu0 %v8948
    %8987 = vmatprep.subr.mxu0 0.0
    %8988 = vmatpush1.msra.mxu0 %v8947
    %8989 = vmatprep.subr.mxu0 0.0
    %8990 = vmatpush1.msra.mxu0 %v8946
    %8991 = vmatprep.subr.mxu0 0.0
    %8992 = vmatpush1.msra.mxu0 %v8945
    %8993 = vmatprep.subr.mxu0 0.0
    %8994 = vmatpush1.msra.mxu0 %v8944
    %8995 = vmatprep.subr.mxu0 0.0
    %8996 = vmatpush1.msra.mxu0 %v8943
    %8997 = vmatprep.subr.mxu0 0.0
    %8998 = vmatpush1.msra.mxu0 %v8942
    %8999 = vmatprep.subr.mxu0 0.0
    %9000 = vmatpush2.msra.mxu0 0.0
    %9001 = vmatprep.subr.mxu0 0.0
    %9002 = vmatpush2.msra.mxu0 0.0
    %9003 = vmatprep.subr.mxu0 0.0
    %9004 = vmatpush2.msra.mxu0 0.0
    %9005 = vmatprep.subr.mxu0 0.0
    %9006 = vmatpush2.msra.mxu0 0.0
    %9007 = vmatprep.subr.mxu0 0.0
    %9008 = vmatpush2.msra.mxu0 0.0
    %9009 = vmatprep.subr.mxu0 0.0
    %9010 = vmatpush2.msra.mxu0 0.0
    %9011 = vmatprep.subr.mxu0 0.0
    %9012 = vmatpush2.msra.mxu0 0.0
    %9013 = vmatprep.subr.mxu0 0.0
    %9014 = vmatpush2.msra.mxu0 0.0
    %9015 = vmatprep.subr.mxu0 0.0
    %9016 = vmatpush2.msra.mxu0 0.0
    %9017 = vmatprep.subr.mxu0 0.0
    %9018 = vmatpush2.msra.mxu0 0.0
    %9019 = vmatprep.subr.mxu0 0.0
    %9020 = vmatpush2.msra.mxu0 0.0
    %9021 = vmatprep.subr.mxu0 0.0
    %9022 = vmatpush2.msra.mxu0 0.0
    %9023 = vmatprep.subr.mxu0 0.0
    %9024 = vmatpush2.msra.mxu0 0.0
    %9025 = vmatprep.subr.mxu0 0.0
    %9026 = vmatpush2.msra.mxu0 0.0
    %9027 = vmatprep.subr.mxu0 0.0
    %9028 = vmatpush2.msra.mxu0 0.0
    %9029 = vmatprep.subr.mxu0 0.0
    %9030 = vmatpush2.msra.mxu0 0.0
    %9031 = vmatprep.mubr.f32.mxu0 0.0
    %9032 = vmatmul.mubr.f32.gmra.mxu0 %v8966
    %v9033 = vpop.f32.mrf.mxu0
    %v9034 = vadd.f32 0.0, %v9033
    %v9035 = vpop.f32.mrf.mxu0
    %9036 = vdwg.mxu0
    %vm9037 = vcmask 130048
    %v9039 = vsel %vm9037, %v9034, 0
    %9041 = vmatprep.subr.mxu0 0.0
    %9042 = vmatpush1.msra.mxu0 0.0
    %9043 = vmatprep.subr.mxu0 0.0
    %9044 = vmatpush1.msra.mxu0 0.0
    %9045 = vmatprep.subr.mxu0 0.0
    %9046 = vmatpush1.msra.mxu0 0.0
    %9047 = vmatprep.subr.mxu0 0.0
    %9048 = vmatpush1.msra.mxu0 0.0
    %9049 = vmatprep.subr.mxu0 0.0
    %9050 = vmatpush1.msra.mxu0 0.0
    %9051 = vmatprep.subr.mxu0 0.0
    %9052 = vmatpush1.msra.mxu0 0.0
    %9053 = vmatprep.subr.mxu0 0.0
    %9054 = vmatpush1.msra.mxu0 0.0
    %9055 = vmatprep.subr.mxu0 0.0
    %9056 = vmatpush1.msra.mxu0 0.0
    %9057 = vmatprep.subr.mxu0 0.0
    %9058 = vmatpush1.msra.mxu0 0.0
    %9059 = vmatprep.subr.mxu0 0.0
    %9060 = vmatpush1.msra.mxu0 0.0
    %9061 = vmatprep.subr.mxu0 0.0
    %9062 = vmatpush1.msra.mxu0 0.0
    %9063 = vmatprep.subr.mxu0 0.0
    %9064 = vmatpush1.msra.mxu0 0.0
    %9065 = vmatprep.subr.mxu0 0.0
    %9066 = vmatpush1.msra.mxu0 0.0
    %9067 = vmatprep.subr.mxu0 0.0
    %9068 = vmatpush1.msra.mxu0 0.0
    %9069 = vmatprep.subr.mxu0 0.0
    %9070 = vmatpush1.msra.mxu0 %v8959
    %9071 = vmatprep.subr.mxu0 0.0
    %9072 = vmatpush1.msra.mxu0 %v8958
    %9073 = vmatprep.subr.mxu0 0.0
    %9074 = vmatpush2.msra.mxu0 0.0
    %9075 = vmatprep.subr.mxu0 0.0
    %9076 = vmatpush2.msra.mxu0 0.0
    %9077 = vmatprep.subr.mxu0 0.0
    %9078 = vmatpush2.msra.mxu0 0.0
    %9079 = vmatprep.subr.mxu0 0.0
    %9080 = vmatpush2.msra.mxu0 0.0
    %9081 = vmatprep.subr.mxu0 0.0
    %9082 = vmatpush2.msra.mxu0 0.0
    %9083 = vmatprep.subr.mxu0 0.0
    %9084 = vmatpush2.msra.mxu0 0.0
    %9085 = vmatprep.subr.mxu0 0.0
    %9086 = vmatpush2.msra.mxu0 0.0
    %9087 = vmatprep.subr.mxu0 0.0
    %9088 = vmatpush2.msra.mxu0 0.0
    %9089 = vmatprep.subr.mxu0 0.0
    %9090 = vmatpush2.msra.mxu0 0.0
    %9091 = vmatprep.subr.mxu0 0.0
    %9092 = vmatpush2.msra.mxu0 0.0
    %9093 = vmatprep.subr.mxu0 0.0
    %9094 = vmatpush2.msra.mxu0 0.0
    %9095 = vmatprep.subr.mxu0 0.0
    %9096 = vmatpush2.msra.mxu0 0.0
    %9097 = vmatprep.subr.mxu0 0.0
    %9098 = vmatpush2.msra.mxu0 0.0
    %9099 = vmatprep.subr.mxu0 0.0
    %9100 = vmatpush2.msra.mxu0 0.0
    %9101 = vmatprep.subr.mxu0 0.0
    %9102 = vmatpush2.msra.mxu0 0.0
    %9103 = vmatprep.subr.mxu0 0.0
    %9104 = vmatpush2.msra.mxu0 0.0
    %9105 = vmatprep.mubr.f32.mxu0 0.0
    %9106 = vmatmul.mubr.f32.gmra.mxu0 %v9039
    %v9107 = vpop.f32.mrf.mxu0
    %v9108 = vadd.f32 0.0, %v9107
    %v9109 = vpop.f32.mrf.mxu0
    %9110 = vdwg.mxu0
    %v9111 = vlaneseq
    %v9112 = vshrl.u32 %v9111, 7
    %v9113 = vsub.s32 0, %v9112
    %v9114 = vrot.slane %v9108, %v9113
    %v9115 = vsub.f32 %v8940, %v9114
    %v9116 = vsub.f32 %v8941, %v9114
    %v9117 = vmul.f32 %v9115, %v9115
    %v9118 = vmul.f32 %v9116, %v9116
    %v9119 = vadd.f32 %v9117, %v9118
    %v9120 = vrot.slane %v9119, 4
    %v9121 = vadd.f32 %v9119, %v9120
    %v9122 = vrot.slane %v9121, 2
    %v9123 = vadd.f32 %v9121, %v9122
    %v9124 = vrot.slane %v9123, 1
    %v9125 = vadd.f32 %v9123, %v9124
    %v9126 = vld [vmem:[%s43] sm:$0x1]
    %9127 = vmatprep.subr.mxu0 0.0
    %9128 = vmatpush1.msra.mxu0 %v8957
    %9129 = vmatprep.subr.mxu0 0.0
    %9130 = vmatpush1.msra.mxu0 %v8956
    %9131 = vmatprep.subr.mxu0 0.0
    %9132 = vmatpush1.msra.mxu0 %v8955
    %9133 = vmatprep.subr.mxu0 0.0
    %9134 = vmatpush1.msra.mxu0 %v8954
    %9135 = vmatprep.subr.mxu0 0.0
    %9136 = vmatpush1.msra.mxu0 %v8953
    %9137 = vmatprep.subr.mxu0 0.0
    %9138 = vmatpush1.msra.mxu0 %v8952
    %9139 = vmatprep.subr.mxu0 0.0
    %9140 = vmatpush1.msra.mxu0 %v8951
    %9141 = vmatprep.subr.mxu0 0.0
    %9142 = vmatpush1.msra.mxu0 %v8950
    %9143 = vmatprep.subr.mxu0 0.0
    %9144 = vmatpush1.msra.mxu0 %v8949
    %9145 = vmatprep.subr.mxu0 0.0
    %9146 = vmatpush1.msra.mxu0 %v8948
    %9147 = vmatprep.subr.mxu0 0.0
    %9148 = vmatpush1.msra.mxu0 %v8947
    %9149 = vmatprep.subr.mxu0 0.0
    %9150 = vmatpush1.msra.mxu0 %v8946
    %9151 = vmatprep.subr.mxu0 0.0
    %9152 = vmatpush1.msra.mxu0 %v8945
    %9153 = vmatprep.subr.mxu0 0.0
    %9154 = vmatpush1.msra.mxu0 %v8944
    %9155 = vmatprep.subr.mxu0 0.0
    %9156 = vmatpush1.msra.mxu0 %v8943
    %9157 = vmatprep.subr.mxu0 0.0
    %9158 = vmatpush1.msra.mxu0 %v8942
    %9159 = vmatprep.subr.mxu0 0.0
    %9160 = vmatpush2.msra.mxu0 0.0
    %9161 = vmatprep.subr.mxu0 0.0
    %9162 = vmatpush2.msra.mxu0 0.0
    %9163 = vmatprep.subr.mxu0 0.0
    %9164 = vmatpush2.msra.mxu0 0.0
    %9165 = vmatprep.subr.mxu0 0.0
    %9166 = vmatpush2.msra.mxu0 0.0
    %9167 = vmatprep.subr.mxu0 0.0
    %9168 = vmatpush2.msra.mxu0 0.0
    %9169 = vmatprep.subr.mxu0 0.0
    %9170 = vmatpush2.msra.mxu0 0.0
    %9171 = vmatprep.subr.mxu0 0.0
    %9172 = vmatpush2.msra.mxu0 0.0
    %9173 = vmatprep.subr.mxu0 0.0
    %9174 = vmatpush2.msra.mxu0 0.0
    %9175 = vmatprep.subr.mxu0 0.0
    %9176 = vmatpush2.msra.mxu0 0.0
    %9177 = vmatprep.subr.mxu0 0.0
    %9178 = vmatpush2.msra.mxu0 0.0
    %9179 = vmatprep.subr.mxu0 0.0
    %9180 = vmatpush2.msra.mxu0 0.0
    %9181 = vmatprep.subr.mxu0 0.0
    %9182 = vmatpush2.msra.mxu0 0.0
    %9183 = vmatprep.subr.mxu0 0.0
    %9184 = vmatpush2.msra.mxu0 0.0
    %9185 = vmatprep.subr.mxu0 0.0
    %9186 = vmatpush2.msra.mxu0 0.0
    %9187 = vmatprep.subr.mxu0 0.0
    %9188 = vmatpush2.msra.mxu0 0.0
    %9189 = vmatprep.subr.mxu0 0.0
    %9190 = vmatpush2.msra.mxu0 0.0
    %9191 = vmatprep.mubr.f32.mxu0 0.0
    %9192 = vmatmul.mubr.f32.gmra.mxu0 %v9125
    %v9193 = vpop.f32.mrf.mxu0
    %v9194 = vadd.f32 1e-05, %v9193
    %v9195 = vpop.f32.mrf.mxu0
    %9196 = vdwg.mxu0
    %v9197 = vrsqrt.pop %v9194
    %v9198 = vmul.f32 %v9126, %v9197
    %v9200 = vsel %vm9037, %v9198, 0
    %9202 = vmatprep.subr.mxu0 0.0
    %9203 = vmatpush1.msra.mxu0 0.0
    %9204 = vmatprep.subr.mxu0 0.0
    %9205 = vmatpush1.msra.mxu0 0.0
    %9206 = vmatprep.subr.mxu0 0.0
    %9207 = vmatpush1.msra.mxu0 0.0
    %9208 = vmatprep.subr.mxu0 0.0
    %9209 = vmatpush1.msra.mxu0 0.0
    %9210 = vmatprep.subr.mxu0 0.0
    %9211 = vmatpush1.msra.mxu0 0.0
    %9212 = vmatprep.subr.mxu0 0.0
    %9213 = vmatpush1.msra.mxu0 0.0
    %9214 = vmatprep.subr.mxu0 0.0
    %9215 = vmatpush1.msra.mxu0 0.0
    %9216 = vmatprep.subr.mxu0 0.0
    %9217 = vmatpush1.msra.mxu0 0.0
    %9218 = vmatprep.subr.mxu0 0.0
    %9219 = vmatpush1.msra.mxu0 0.0
    %9220 = vmatprep.subr.mxu0 0.0
    %9221 = vmatpush1.msra.mxu0 0.0
    %9222 = vmatprep.subr.mxu0 0.0
    %9223 = vmatpush1.msra.mxu0 0.0
    %9224 = vmatprep.subr.mxu0 0.0
    %9225 = vmatpush1.msra.mxu0 0.0
    %9226 = vmatprep.subr.mxu0 0.0
    %9227 = vmatpush1.msra.mxu0 0.0
    %9228 = vmatprep.subr.mxu0 0.0
    %9229 = vmatpush1.msra.mxu0 0.0
    %9230 = vmatprep.subr.mxu0 0.0
    %9231 = vmatpush1.msra.mxu0 %v8959
    %9232 = vmatprep.subr.mxu0 0.0
    %9233 = vmatpush1.msra.mxu0 %v8958
    %9234 = vmatprep.subr.mxu0 0.0
    %9235 = vmatpush2.msra.mxu0 0.0
    %9236 = vmatprep.subr.mxu0 0.0
    %9237 = vmatpush2.msra.mxu0 0.0
    %9238 = vmatprep.subr.mxu0 0.0
    %9239 = vmatpush2.msra.mxu0 0.0
    %9240 = vmatprep.subr.mxu0 0.0
    %9241 = vmatpush2.msra.mxu0 0.0
    %9242 = vmatprep.subr.mxu0 0.0
    %9243 = vmatpush2.msra.mxu0 0.0
    %9244 = vmatprep.subr.mxu0 0.0
    %9245 = vmatpush2.msra.mxu0 0.0
    %9246 = vmatprep.subr.mxu0 0.0
    %9247 = vmatpush2.msra.mxu0 0.0
    %9248 = vmatprep.subr.mxu0 0.0
    %9249 = vmatpush2.msra.mxu0 0.0
    %9250 = vmatprep.subr.mxu0 0.0
    %9251 = vmatpush2.msra.mxu0 0.0
    %9252 = vmatprep.subr.mxu0 0.0
    %9253 = vmatpush2.msra.mxu0 0.0
    %9254 = vmatprep.subr.mxu0 0.0
    %9255 = vmatpush2.msra.mxu0 0.0
    %9256 = vmatprep.subr.mxu0 0.0
    %9257 = vmatpush2.msra.mxu0 0.0
    %9258 = vmatprep.subr.mxu0 0.0
    %9259 = vmatpush2.msra.mxu0 0.0
    %9260 = vmatprep.subr.mxu0 0.0
    %9261 = vmatpush2.msra.mxu0 0.0
    %9262 = vmatprep.subr.mxu0 0.0
    %9263 = vmatpush2.msra.mxu0 0.0
    %9264 = vmatprep.subr.mxu0 0.0
    %9265 = vmatpush2.msra.mxu0 0.0
    %9266 = vmatprep.mubr.f32.mxu0 0.0
    %9267 = vmatmul.mubr.f32.gmra.mxu0 %v9200
    %v9268 = vpop.f32.mrf.mxu0
    %v9269 = vadd.f32 0.0, %v9268
    %v9270 = vpop.f32.mrf.mxu0
    %9271 = vdwg.mxu0
    %v9272 = vld [vmem:[%s45] sm:$0x1]
    %v9274 = vsel %vm9037, %v9272, 0
    %9276 = vmatprep.subr.mxu0 0.0
    %9277 = vmatpush1.msra.mxu0 0.0
    %9278 = vmatprep.subr.mxu0 0.0
    %9279 = vmatpush1.msra.mxu0 0.0
    %9280 = vmatprep.subr.mxu0 0.0
    %9281 = vmatpush1.msra.mxu0 0.0
    %9282 = vmatprep.subr.mxu0 0.0
    %9283 = vmatpush1.msra.mxu0 0.0
    %9284 = vmatprep.subr.mxu0 0.0
    %9285 = vmatpush1.msra.mxu0 0.0
    %9286 = vmatprep.subr.mxu0 0.0
    %9287 = vmatpush1.msra.mxu0 0.0
    %9288 = vmatprep.subr.mxu0 0.0
    %9289 = vmatpush1.msra.mxu0 0.0
    %9290 = vmatprep.subr.mxu0 0.0
    %9291 = vmatpush1.msra.mxu0 0.0
    %9292 = vmatprep.subr.mxu0 0.0
    %9293 = vmatpush1.msra.mxu0 0.0
    %9294 = vmatprep.subr.mxu0 0.0
    %9295 = vmatpush1.msra.mxu0 0.0
    %9296 = vmatprep.subr.mxu0 0.0
    %9297 = vmatpush1.msra.mxu0 0.0
    %9298 = vmatprep.subr.mxu0 0.0
    %9299 = vmatpush1.msra.mxu0 0.0
    %9300 = vmatprep.subr.mxu0 0.0
    %9301 = vmatpush1.msra.mxu0 0.0
    %9302 = vmatprep.subr.mxu0 0.0
    %9303 = vmatpush1.msra.mxu0 0.0
    %9304 = vmatprep.subr.mxu0 0.0
    %9305 = vmatpush1.msra.mxu0 %v8959
    %9306 = vmatprep.subr.mxu0 0.0
    %9307 = vmatpush1.msra.mxu0 %v8958
    %9308 = vmatprep.subr.mxu0 0.0
    %9309 = vmatpush2.msra.mxu0 0.0
    %9310 = vmatprep.subr.mxu0 0.0
    %9311 = vmatpush2.msra.mxu0 0.0
    %9312 = vmatprep.subr.mxu0 0.0
    %9313 = vmatpush2.msra.mxu0 0.0
    %9314 = vmatprep.subr.mxu0 0.0
    %9315 = vmatpush2.msra.mxu0 0.0
    %9316 = vmatprep.subr.mxu0 0.0
    %9317 = vmatpush2.msra.mxu0 0.0
    %9318 = vmatprep.subr.mxu0 0.0
    %9319 = vmatpush2.msra.mxu0 0.0
    %9320 = vmatprep.subr.mxu0 0.0
    %9321 = vmatpush2.msra.mxu0 0.0
    %9322 = vmatprep.subr.mxu0 0.0
    %9323 = vmatpush2.msra.mxu0 0.0
    %9324 = vmatprep.subr.mxu0 0.0
    %9325 = vmatpush2.msra.mxu0 0.0
    %9326 = vmatprep.subr.mxu0 0.0
    %9327 = vmatpush2.msra.mxu0 0.0
    %9328 = vmatprep.subr.mxu0 0.0
    %9329 = vmatpush2.msra.mxu0 0.0
    %9330 = vmatprep.subr.mxu0 0.0
    %9331 = vmatpush2.msra.mxu0 0.0
    %9332 = vmatprep.subr.mxu0 0.0
    %9333 = vmatpush2.msra.mxu0 0.0
    %9334 = vmatprep.subr.mxu0 0.0
    %9335 = vmatpush2.msra.mxu0 0.0
    %9336 = vmatprep.subr.mxu0 0.0
    %9337 = vmatpush2.msra.mxu0 0.0
    %9338 = vmatprep.subr.mxu0 0.0
    %9339 = vmatpush2.msra.mxu0 0.0
    %9340 = vmatprep.mubr.f32.mxu0 0.0
    %9341 = vmatmul.mubr.f32.gmra.mxu0 %v9274
    %v9342 = vpop.f32.mrf.mxu0
    %v9343 = vadd.f32 0.0, %v9342
    %v9344 = vpop.f32.mrf.mxu0
    %9345 = vdwg.mxu0
    %v9346 = vlaneseq
    %v9347 = vshrl.u32 %v9346, 7
    %v9348 = vsub.s32 0, %v9347
    %v9349 = vrot.slane %v9269, %v9348
    %v9350 = vmul.f32 %v9115, %v9349
    %v9351 = vmul.f32 %v9116, %v9349
    %v9352 = vlaneseq
    %v9353 = vshrl.u32 %v9352, 7
    %v9354 = vsub.s32 0, %v9353
    %v9355 = vrot.slane %v9343, %v9354
    %v9356 = vadd.f32 %v9350, %v9355
    %v9357 = vadd.f32 %v9351, %v9355
    %v9358 = vmax.f32 %v9356, 0.0
    %v9359 = vmax.f32 %v9357, 0.0
    %v9360 = vpack.c.bf16 %v9359, %v9358
    %v9361 = vld [vmem:[%s51] sm:$0xff]
    %v9362 = vld [vmem:[%s51 + $0x8] sm:$0xf]
    %v9363 = vld [vmem:[%s51 + $0xc] sm:$0xff]
    %v9364 = vld [vmem:[%s51 + $0x14] sm:$0xf]
    %v9365 = vld [vmem:[%s51 + $0x18] sm:$0xff]
    %v9366 = vld [vmem:[%s51 + $0x20] sm:$0xf]
    %v9367 = vld [vmem:[%s51 + $0x24] sm:$0xff]
    %v9368 = vld [vmem:[%s51 + $0x2c] sm:$0xf]
    %v9369 = vld [vmem:[%s51 + $0x30] sm:$0xff]
    %v9370 = vld [vmem:[%s51 + $0x38] sm:$0xf]
    %v9371 = vld [vmem:[%s51 + $0x3c] sm:$0xff]
    %v9372 = vld [vmem:[%s51 + $0x44] sm:$0xf]
    %v9373 = vld [vmem:[%s51 + $0x48] sm:$0xff]
    %v9374 = vld [vmem:[%s51 + $0x50] sm:$0xf]
    %v9375 = vld [vmem:[%s51 + $0x54] sm:$0xff]
    %v9376 = vld [vmem:[%s51 + $0x5c] sm:$0xf]
    %v9377 = vld [vmem:[%s51 + $0x60] sm:$0xff]
    %v9378 = vld [vmem:[%s51 + $0x68] sm:$0xf]
    %v9379 = vld [vmem:[%s51 + $0x6c] sm:$0xff]
    %v9380 = vld [vmem:[%s51 + $0x74] sm:$0xf]
    %v9381 = vld [vmem:[%s51 + $0x78] sm:$0xff]
    %v9382 = vld [vmem:[%s51 + $0x80] sm:$0xf]
    %v9383 = vld [vmem:[%s51 + $0x84] sm:$0xff]
    %v9384 = vld [vmem:[%s51 + $0x8c] sm:$0xf]
    %v9385 = vld [vmem:[%s51 + $0x90] sm:$0xff]
    %v9386 = vld [vmem:[%s51 + $0x98] sm:$0xf]
    %v9387 = vld [vmem:[%s51 + $0x9c] sm:$0xff]
    %v9388 = vld [vmem:[%s51 + $0xa4] sm:$0xf]
    %v9389 = vld [vmem:[%s51 + $0xa8] sm:$0xff]
    %v9390 = vld [vmem:[%s51 + $0xb0] sm:$0xf]
    %v9391 = vld [vmem:[%s51 + $0xb4] sm:$0xff]
    %v9392 = vld [vmem:[%s51 + $0xbc] sm:$0xf]
    %v9425 = vunpack.c.l.b16 %v9361
    %v9426 = vunpack.c.h.b16 %v9361
    %v9427 = vunpack.c.l.b16 %v9362
    %v9428 = vunpack.c.l.b16 %v9363
    %v9429 = vunpack.c.h.b16 %v9363
    %v9430 = vunpack.c.l.b16 %v9364
    %v9431 = vunpack.c.l.b16 %v9365
    %v9432 = vunpack.c.h.b16 %v9365
    %v9433 = vunpack.c.l.b16 %v9366
    %v9434 = vunpack.c.l.b16 %v9367
    %v9435 = vunpack.c.h.b16 %v9367
    %v9436 = vunpack.c.l.b16 %v9368
    %v9437 = vunpack.c.l.b16 %v9369
    %v9438 = vunpack.c.h.b16 %v9369
    %v9439 = vunpack.c.l.b16 %v9370
    %v9440 = vunpack.c.l.b16 %v9371
    %v9441 = vunpack.c.h.b16 %v9371
    %v9442 = vunpack.c.l.b16 %v9372
    %v9443 = vunpack.c.l.b16 %v9373
    %v9444 = vunpack.c.h.b16 %v9373
    %v9445 = vunpack.c.l.b16 %v9374
    %v9446 = vunpack.c.l.b16 %v9375
    %v9447 = vunpack.c.h.b16 %v9375
    %v9448 = vunpack.c.l.b16 %v9376
    %v9449 = vunpack.c.l.b16 %v9377
    %v9450 = vunpack.c.h.b16 %v9377
    %v9451 = vunpack.c.l.b16 %v9378
    %v9452 = vunpack.c.l.b16 %v9379
    %v9453 = vunpack.c.h.b16 %v9379
    %v9454 = vunpack.c.l.b16 %v9380
    %v9455 = vunpack.c.l.b16 %v9381
    %v9456 = vunpack.c.h.b16 %v9381
    %v9457 = vunpack.c.l.b16 %v9382
    %v9458 = vunpack.c.l.b16 %v9383
    %v9459 = vunpack.c.h.b16 %v9383
    %v9460 = vunpack.c.l.b16 %v9384
    %v9461 = vunpack.c.l.b16 %v9385
    %v9462 = vunpack.c.h.b16 %v9385
    %v9463 = vunpack.c.l.b16 %v9386
    %v9464 = vunpack.c.l.b16 %v9387
    %v9465 = vunpack.c.h.b16 %v9387
    %v9466 = vunpack.c.l.b16 %v9388
    %v9467 = vunpack.c.l.b16 %v9389
    %v9468 = vunpack.c.h.b16 %v9389
    %v9469 = vunpack.c.l.b16 %v9390
    %v9470 = vunpack.c.l.b16 %v9391
    %v9471 = vunpack.c.h.b16 %v9391
    %v9472 = vunpack.c.l.b16 %v9392
    %v9473 = vpack.c.b16 %v9428, %v9425
    %v9474 = vpack.c.b16 %v9429, %v9426
    %v9475 = vpack.c.b16 %v9430, %v9427
    %v9476 = vpack.c.b16 %v9434, %v9431
    %v9477 = vpack.c.b16 %v9435, %v9432
    %v9478 = vpack.c.b16 %v9436, %v9433
    %v9479 = vpack.c.b16 %v9440, %v9437
    %v9480 = vpack.c.b16 %v9441, %v9438
    %v9481 = vpack.c.b16 %v9442, %v9439
    %v9482 = vpack.c.b16 %v9446, %v9443
    %v9483 = vpack.c.b16 %v9447, %v9444
    %v9484 = vpack.c.b16 %v9448, %v9445
    %v9485 = vpack.c.b16 %v9452, %v9449
    %v9486 = vpack.c.b16 %v9453, %v9450
    %v9487 = vpack.c.b16 %v9454, %v9451
    %v9488 = vpack.c.b16 %v9458, %v9455
    %v9489 = vpack.c.b16 %v9459, %v9456
    %v9490 = vpack.c.b16 %v9460, %v9457
    %v9491 = vpack.c.b16 %v9464, %v9461
    %v9492 = vpack.c.b16 %v9465, %v9462
    %v9493 = vpack.c.b16 %v9466, %v9463
    %v9494 = vpack.c.b16 %v9470, %v9467
    %v9495 = vpack.c.b16 %v9471, %v9468
    %v9496 = vpack.c.b16 %v9472, %v9469
    %9521 = vmatprep.subr.bf16.mxu0 %v9495
    %9522 = vmatpush1.bf16.msra.mxu0 %v9494
    %9523 = vmatprep.subr.bf16.mxu0 %v9492
    %9524 = vmatpush1.bf16.msra.mxu0 %v9491
    %9525 = vmatprep.subr.bf16.mxu0 %v9489
    %9526 = vmatpush1.bf16.msra.mxu0 %v9488
    %9527 = vmatprep.subr.bf16.mxu0 %v9486
    %9528 = vmatpush1.bf16.msra.mxu0 %v9485
    %9529 = vmatprep.subr.bf16.mxu0 %v9483
    %9530 = vmatpush1.bf16.msra.mxu0 %v9482
    %9531 = vmatprep.subr.bf16.mxu0 %v9480
    %9532 = vmatpush1.bf16.msra.mxu0 %v9479
    %9533 = vmatprep.subr.bf16.mxu0 %v9477
    %9534 = vmatpush1.bf16.msra.mxu0 %v9476
    %9535 = vmatprep.subr.bf16.mxu0 %v9474
    %9536 = vmatpush1.bf16.msra.mxu0 %v9473
    %9537 = vmatprep.subr.bf16.mxu0 0
    %9538 = vmatpush2.bf16.msra.mxu0 0
    %9539 = vmatprep.subr.bf16.mxu0 0
    %9540 = vmatpush2.bf16.msra.mxu0 0
    %9541 = vmatprep.subr.bf16.mxu0 0
    %9542 = vmatpush2.bf16.msra.mxu0 0
    %9543 = vmatprep.subr.bf16.mxu0 0
    %9544 = vmatpush2.bf16.msra.mxu0 0
    %9545 = vmatprep.subr.bf16.mxu0 0
    %9546 = vmatpush2.bf16.msra.mxu0 0
    %9547 = vmatprep.subr.bf16.mxu0 0
    %9548 = vmatpush2.bf16.msra.mxu0 0
    %9549 = vmatprep.subr.bf16.mxu0 0
    %9550 = vmatpush2.bf16.msra.mxu0 0
    %9551 = vmatprep.subr.bf16.mxu0 0
    %9552 = vmatpush2.bf16.msra.mxu0 0
    %9553 = vmatprep.mubr.bf16.mxu0 0
    %9554 = vmatmul.mubr.bf16.gmra.mxu0 %v9360
    %v9555 = vpop.f32.mrf.mxu0
    %v9556 = vadd.f32 0.0, %v9555
    %v9557 = vpop.f32.mrf.mxu0
    %v9558 = vadd.f32 0.0, %v9557
    %v9559 = vpop.f32.mrf.mxu0
    %v9560 = vadd.f32 0.0, %v9559
    %v9561 = vpop.f32.mrf.mxu0
    %v9562 = vadd.f32 0.0, %v9561
    %9563 = vdwg.mxu0
    %9564 = vmatprep.subr.bf16.mxu0 0
    %9565 = vmatpush1.bf16.msra.mxu0 %v9496
    %9566 = vmatprep.subr.bf16.mxu0 0
    %9567 = vmatpush1.bf16.msra.mxu0 %v9493
    %9568 = vmatprep.subr.bf16.mxu0 0
    %9569 = vmatpush1.bf16.msra.mxu0 %v9490
    %9570 = vmatprep.subr.bf16.mxu0 0
    %9571 = vmatpush1.bf16.msra.mxu0 %v9487
    %9572 = vmatprep.subr.bf16.mxu0 0
    %9573 = vmatpush1.bf16.msra.mxu0 %v9484
    %9574 = vmatprep.subr.bf16.mxu0 0
    %9575 = vmatpush1.bf16.msra.mxu0 %v9481
    %9576 = vmatprep.subr.bf16.mxu0 0
    %9577 = vmatpush1.bf16.msra.mxu0 %v9478
    %9578 = vmatprep.subr.bf16.mxu0 0
    %9579 = vmatpush1.bf16.msra.mxu0 %v9475
    %9580 = vmatprep.subr.bf16.mxu0 0
    %9581 = vmatpush2.bf16.msra.mxu0 0
    %9582 = vmatprep.subr.bf16.mxu0 0
    %9583 = vmatpush2.bf16.msra.mxu0 0
    %9584 = vmatprep.subr.bf16.mxu0 0
    %9585 = vmatpush2.bf16.msra.mxu0 0
    %9586 = vmatprep.subr.bf16.mxu0 0
    %9587 = vmatpush2.bf16.msra.mxu0 0
    %9588 = vmatprep.subr.bf16.mxu0 0
    %9589 = vmatpush2.bf16.msra.mxu0 0
    %9590 = vmatprep.subr.bf16.mxu0 0
    %9591 = vmatpush2.bf16.msra.mxu0 0
    %9592 = vmatprep.subr.bf16.mxu0 0
    %9593 = vmatpush2.bf16.msra.mxu0 0
    %9594 = vmatprep.subr.bf16.mxu0 0
    %9595 = vmatpush2.bf16.msra.mxu0 0
    %9596 = vmatprep.mubr.bf16.mxu0 0
    %9597 = vmatmul.mubr.bf16.gmra.mxu0 %v9360
    %v9598 = vpop.f32.mrf.mxu0
    %v9599 = vadd.f32 0.0, %v9598
    %v9600 = vpop.f32.mrf.mxu0
    %v9601 = vpop.f32.mrf.mxu0
    %v9602 = vadd.f32 0.0, %v9601
    %v9603 = vpop.f32.mrf.mxu0
    %9604 = vdwg.mxu0
    %v9605 = vpack.c.bf16 %v9560, %v9556
    %v9606 = vpack.c.bf16 %v9562, %v9558
    %v9607 = vpack.c.bf16 %v9602, %v9599
    %v9608 = vld [vmem:[%s53] sm:$0xf]
    %v9610 = vsel %vm9037, %v9608, 0
    %9612 = vmatprep.subr.bf16.mxu0 0
    %9613 = vmatpush1.bf16.msra.mxu0 0
    %9614 = vmatprep.subr.bf16.mxu0 0
    %9615 = vmatpush1.bf16.msra.mxu0 0
    %9616 = vmatprep.subr.bf16.mxu0 0
    %9617 = vmatpush1.bf16.msra.mxu0 0
    %9618 = vmatprep.subr.bf16.mxu0 0
    %9619 = vmatpush1.bf16.msra.mxu0 0
    %9620 = vmatprep.subr.bf16.mxu0 0
    %9621 = vmatpush1.bf16.msra.mxu0 0
    %9622 = vmatprep.subr.bf16.mxu0 0
    %9623 = vmatpush1.bf16.msra.mxu0 0
    %9624 = vmatprep.subr.bf16.mxu0 0
    %9625 = vmatpush1.bf16.msra.mxu0 0
    %9626 = vmatprep.subr.bf16.mxu0 %v9606
    %9627 = vmatpush1.bf16.msra.mxu0 %v9605
    %9628 = vmatprep.subr.bf16.mxu0 0
    %9629 = vmatpush2.bf16.msra.mxu0 0
    %9630 = vmatprep.subr.bf16.mxu0 0
    %9631 = vmatpush2.bf16.msra.mxu0 0
    %9632 = vmatprep.subr.bf16.mxu0 0
    %9633 = vmatpush2.bf16.msra.mxu0 0
    %9634 = vmatprep.subr.bf16.mxu0 0
    %9635 = vmatpush2.bf16.msra.mxu0 0
    %9636 = vmatprep.subr.bf16.mxu0 0
    %9637 = vmatpush2.bf16.msra.mxu0 0
    %9638 = vmatprep.subr.bf16.mxu0 0
    %9639 = vmatpush2.bf16.msra.mxu0 0
    %9640 = vmatprep.subr.bf16.mxu0 0
    %9641 = vmatpush2.bf16.msra.mxu0 0
    %9642 = vmatprep.subr.bf16.mxu0 0
    %9643 = vmatpush2.bf16.msra.mxu0 0
    %9644 = vmatprep.mubr.bf16.mxu0 0
    %9645 = vmatmul.mubr.bf16.gmra.mxu0 %v9610
    %v9646 = vpop.f32.mrf.mxu0
    %v9647 = vadd.f32 0.0, %v9646
    %v9648 = vpop.f32.mrf.mxu0
    %v9649 = vadd.f32 0.0, %v9648
    %v9650 = vpop.f32.mrf.mxu0
    %v9651 = vpop.f32.mrf.mxu0
    %9652 = vdwg.mxu0
    %9653 = vmatprep.subr.bf16.mxu0 0
    %9654 = vmatpush1.bf16.msra.mxu0 0
    %9655 = vmatprep.subr.bf16.mxu0 0
    %9656 = vmatpush1.bf16.msra.mxu0 0
    %9657 = vmatprep.subr.bf16.mxu0 0
    %9658 = vmatpush1.bf16.msra.mxu0 0
    %9659 = vmatprep.subr.bf16.mxu0 0
    %9660 = vmatpush1.bf16.msra.mxu0 0
    %9661 = vmatprep.subr.bf16.mxu0 0
    %9662 = vmatpush1.bf16.msra.mxu0 0
    %9663 = vmatprep.subr.bf16.mxu0 0
    %9664 = vmatpush1.bf16.msra.mxu0 0
    %9665 = vmatprep.subr.bf16.mxu0 0
    %9666 = vmatpush1.bf16.msra.mxu0 0
    %9667 = vmatprep.subr.bf16.mxu0 0
    %9668 = vmatpush1.bf16.msra.mxu0 %v9607
    %9669 = vmatprep.subr.bf16.mxu0 0
    %9670 = vmatpush2.bf16.msra.mxu0 0
    %9671 = vmatprep.subr.bf16.mxu0 0
    %9672 = vmatpush2.bf16.msra.mxu0 0
    %9673 = vmatprep.subr.bf16.mxu0 0
    %9674 = vmatpush2.bf16.msra.mxu0 0
    %9675 = vmatprep.subr.bf16.mxu0 0
    %9676 = vmatpush2.bf16.msra.mxu0 0
    %9677 = vmatprep.subr.bf16.mxu0 0
    %9678 = vmatpush2.bf16.msra.mxu0 0
    %9679 = vmatprep.subr.bf16.mxu0 0
    %9680 = vmatpush2.bf16.msra.mxu0 0
    %9681 = vmatprep.subr.bf16.mxu0 0
    %9682 = vmatpush2.bf16.msra.mxu0 0
    %9683 = vmatprep.subr.bf16.mxu0 0
    %9684 = vmatpush2.bf16.msra.mxu0 0
    %9685 = vmatprep.mubr.bf16.mxu0 0
    %9686 = vmatmul.mubr.bf16.gmra.mxu0 %v9610
    %v9687 = vpop.f32.mrf.mxu0
    %v9688 = vadd.f32 0.0, %v9687
    %v9689 = vpop.f32.mrf.mxu0
    %v9690 = vpop.f32.mrf.mxu0
    %v9691 = vpop.f32.mrf.mxu0
    %9692 = vdwg.mxu0
    %v9693 = vpack.c.bf16 %v9647, %v9647
    %v9694 = vpack.c.bf16 %v9649, %v9649
    %v9695 = vpack.c.bf16 %v9688, %v9688
    %v9696 = vld [vmem:[%s55] sm:$0xf]
    %v9697 = vld [vmem:[%s55 + $0x4] sm:$0xf]
    %v9698 = vld [vmem:[%s55 + $0x8] sm:$0xf]
    %v9699 = vld [vmem:[%s55 + $0xc] sm:$0xf]
    %v9700 = vld [vmem:[%s55 + $0x10] sm:$0xf]
    %v9701 = vld [vmem:[%s55 + $0x14] sm:$0xf]
    %v9702 = vld [vmem:[%s55 + $0x18] sm:$0xf]
    %v9703 = vld [vmem:[%s55 + $0x1c] sm:$0xf]
    %v9704 = vld [vmem:[%s55 + $0x20] sm:$0xf]
    %v9705 = vld [vmem:[%s55 + $0x24] sm:$0xf]
    %v9706 = vld [vmem:[%s55 + $0x28] sm:$0xf]
    %v9707 = vld [vmem:[%s55 + $0x2c] sm:$0xf]
    %v9708 = vld [vmem:[%s55 + $0x30] sm:$0xf]
    %v9709 = vld [vmem:[%s55 + $0x34] sm:$0xf]
    %v9710 = vld [vmem:[%s55 + $0x38] sm:$0xf]
    %v9711 = vld [vmem:[%s55 + $0x3c] sm:$0xf]
    %v9712 = vld [vmem:[%s55 + $0x40] sm:$0xf]
    %v9713 = vld [vmem:[%s55 + $0x44] sm:$0xf]
    %v9714 = vld [vmem:[%s55 + $0x48] sm:$0xf]
    %v9715 = vld [vmem:[%s55 + $0x4c] sm:$0xf]
    %v9716 = vld [vmem:[%s55 + $0x50] sm:$0xf]
    %v9717 = vld [vmem:[%s55 + $0x54] sm:$0xf]
    %v9718 = vld [vmem:[%s55 + $0x58] sm:$0xf]
    %v9719 = vld [vmem:[%s55 + $0x5c] sm:$0xf]
    %v9720 = vld [vmem:[%s55 + $0x60] sm:$0xf]
    %v9721 = vld [vmem:[%s55 + $0x64] sm:$0xf]
    %v9722 = vld [vmem:[%s55 + $0x68] sm:$0xf]
    %v9723 = vld [vmem:[%s55 + $0x6c] sm:$0xf]
    %v9724 = vld [vmem:[%s55 + $0x70] sm:$0xf]
    %v9725 = vld [vmem:[%s55 + $0x74] sm:$0xf]
    %v9726 = vld [vmem:[%s55 + $0x78] sm:$0xf]
    %v9727 = vld [vmem:[%s55 + $0x7c] sm:$0xf]
    %v9728 = vld [vmem:[%s55 + $0x80] sm:$0xf]
    %v9729 = vld [vmem:[%s55 + $0x84] sm:$0xf]
    %v9730 = vld [vmem:[%s55 + $0x88] sm:$0xf]
    %v9731 = vld [vmem:[%s55 + $0x8c] sm:$0xf]
    %v9732 = vld [vmem:[%s55 + $0x90] sm:$0xf]
    %v9733 = vld [vmem:[%s55 + $0x94] sm:$0xf]
    %v9734 = vld [vmem:[%s55 + $0x98] sm:$0xf]
    %v9735 = vld [vmem:[%s55 + $0x9c] sm:$0xf]
    %s9736 = scalar_lea.vmem %s53, 4
    %v9737 = vld [vmem:[%s9736] sm:$0xf]
    %v9739 = vsel %vm9037, %v9737, 0
    %9741 = vmatprep.subr.bf16.mxu0 0
    %9742 = vmatpush1.bf16.msra.mxu0 0
    %9743 = vmatprep.subr.bf16.mxu0 0
    %9744 = vmatpush1.bf16.msra.mxu0 0
    %9745 = vmatprep.subr.bf16.mxu0 0
    %9746 = vmatpush1.bf16.msra.mxu0 0
    %9747 = vmatprep.subr.bf16.mxu0 0
    %9748 = vmatpush1.bf16.msra.mxu0 0
    %9749 = vmatprep.subr.bf16.mxu0 0
    %9750 = vmatpush1.bf16.msra.mxu0 0
    %9751 = vmatprep.subr.bf16.mxu0 0
    %9752 = vmatpush1.bf16.msra.mxu0 0
    %9753 = vmatprep.subr.bf16.mxu0 0
    %9754 = vmatpush1.bf16.msra.mxu0 0
    %9755 = vmatprep.subr.bf16.mxu0 %v9606
    %9756 = vmatpush1.bf16.msra.mxu0 %v9605
    %9757 = vmatprep.subr.bf16.mxu0 0
    %9758 = vmatpush2.bf16.msra.mxu0 0
    %9759 = vmatprep.subr.bf16.mxu0 0
    %9760 = vmatpush2.bf16.msra.mxu0 0
    %9761 = vmatprep.subr.bf16.mxu0 0
    %9762 = vmatpush2.bf16.msra.mxu0 0
    %9763 = vmatprep.subr.bf16.mxu0 0
    %9764 = vmatpush2.bf16.msra.mxu0 0
    %9765 = vmatprep.subr.bf16.mxu0 0
    %9766 = vmatpush2.bf16.msra.mxu0 0
    %9767 = vmatprep.subr.bf16.mxu0 0
    %9768 = vmatpush2.bf16.msra.mxu0 0
    %9769 = vmatprep.subr.bf16.mxu0 0
    %9770 = vmatpush2.bf16.msra.mxu0 0
    %9771 = vmatprep.subr.bf16.mxu0 0
    %9772 = vmatpush2.bf16.msra.mxu0 0
    %9773 = vmatprep.mubr.bf16.mxu0 0
    %9774 = vmatmul.mubr.bf16.gmra.mxu0 %v9739
    %v9775 = vpop.f32.mrf.mxu0
    %v9776 = vadd.f32 0.0, %v9775
    %v9777 = vpop.f32.mrf.mxu0
    %v9778 = vadd.f32 0.0, %v9777
    %v9779 = vpop.f32.mrf.mxu0
    %v9780 = vpop.f32.mrf.mxu0
    %9781 = vdwg.mxu0
    %9782 = vmatprep.subr.bf16.mxu0 0
    %9783 = vmatpush1.bf16.msra.mxu0 0
    %9784 = vmatprep.subr.bf16.mxu0 0
    %9785 = vmatpush1.bf16.msra.mxu0 0
    %9786 = vmatprep.subr.bf16.mxu0 0
    %9787 = vmatpush1.bf16.msra.mxu0 0
    %9788 = vmatprep.subr.bf16.mxu0 0
    %9789 = vmatpush1.bf16.msra.mxu0 0
    %9790 = vmatprep.subr.bf16.mxu0 0
    %9791 = vmatpush1.bf16.msra.mxu0 0
    %9792 = vmatprep.subr.bf16.mxu0 0
    %9793 = vmatpush1.bf16.msra.mxu0 0
    %9794 = vmatprep.subr.bf16.mxu0 0
    %9795 = vmatpush1.bf16.msra.mxu0 0
    %9796 = vmatprep.subr.bf16.mxu0 0
    %9797 = vmatpush1.bf16.msra.mxu0 %v9607
    %9798 = vmatprep.subr.bf16.mxu0 0
    %9799 = vmatpush2.bf16.msra.mxu0 0
    %9800 = vmatprep.subr.bf16.mxu0 0
    %9801 = vmatpush2.bf16.msra.mxu0 0
    %9802 = vmatprep.subr.bf16.mxu0 0
    %9803 = vmatpush2.bf16.msra.mxu0 0
    %9804 = vmatprep.subr.bf16.mxu0 0
    %9805 = vmatpush2.bf16.msra.mxu0 0
    %9806 = vmatprep.subr.bf16.mxu0 0
    %9807 = vmatpush2.bf16.msra.mxu0 0
    %9808 = vmatprep.subr.bf16.mxu0 0
    %9809 = vmatpush2.bf16.msra.mxu0 0
    %9810 = vmatprep.subr.bf16.mxu0 0
    %9811 = vmatpush2.bf16.msra.mxu0 0
    %9812 = vmatprep.subr.bf16.mxu0 0
    %9813 = vmatpush2.bf16.msra.mxu0 0
    %9814 = vmatprep.mubr.bf16.mxu0 0
    %9815 = vmatmul.mubr.bf16.gmra.mxu0 %v9739
    %v9816 = vpop.f32.mrf.mxu0
    %v9817 = vadd.f32 0.0, %v9816
    %v9818 = vpop.f32.mrf.mxu0
    %v9819 = vpop.f32.mrf.mxu0
    %v9820 = vpop.f32.mrf.mxu0
    %9821 = vdwg.mxu0
    %v9822 = vpack.c.bf16 %v9776, %v9776
    %v9823 = vpack.c.bf16 %v9778, %v9778
    %v9824 = vpack.c.bf16 %v9817, %v9817
    %s9825 = scalar_lea.vmem %s55, 160
    %v9826 = vld [vmem:[%s9825] sm:$0xf]
    %v9827 = vld [vmem:[%s9825 + $0x4] sm:$0xf]
    %v9828 = vld [vmem:[%s9825 + $0x8] sm:$0xf]
    %v9829 = vld [vmem:[%s9825 + $0xc] sm:$0xf]
    %v9830 = vld [vmem:[%s9825 + $0x10] sm:$0xf]
    %v9831 = vld [vmem:[%s9825 + $0x14] sm:$0xf]
    %v9832 = vld [vmem:[%s9825 + $0x18] sm:$0xf]
    %v9833 = vld [vmem:[%s9825 + $0x1c] sm:$0xf]
    %v9834 = vld [vmem:[%s9825 + $0x20] sm:$0xf]
    %v9835 = vld [vmem:[%s9825 + $0x24] sm:$0xf]
    %v9836 = vld [vmem:[%s9825 + $0x28] sm:$0xf]
    %v9837 = vld [vmem:[%s9825 + $0x2c] sm:$0xf]
    %v9838 = vld [vmem:[%s9825 + $0x30] sm:$0xf]
    %v9839 = vld [vmem:[%s9825 + $0x34] sm:$0xf]
    %v9840 = vld [vmem:[%s9825 + $0x38] sm:$0xf]
    %v9841 = vld [vmem:[%s9825 + $0x3c] sm:$0xf]
    %v9842 = vld [vmem:[%s9825 + $0x40] sm:$0xf]
    %v9843 = vld [vmem:[%s9825 + $0x44] sm:$0xf]
    %v9844 = vld [vmem:[%s9825 + $0x48] sm:$0xf]
    %v9845 = vld [vmem:[%s9825 + $0x4c] sm:$0xf]
    %v9846 = vld [vmem:[%s9825 + $0x50] sm:$0xf]
    %v9847 = vld [vmem:[%s9825 + $0x54] sm:$0xf]
    %v9848 = vld [vmem:[%s9825 + $0x58] sm:$0xf]
    %v9849 = vld [vmem:[%s9825 + $0x5c] sm:$0xf]
    %v9850 = vld [vmem:[%s9825 + $0x60] sm:$0xf]
    %v9851 = vld [vmem:[%s9825 + $0x64] sm:$0xf]
    %v9852 = vld [vmem:[%s9825 + $0x68] sm:$0xf]
    %v9853 = vld [vmem:[%s9825 + $0x6c] sm:$0xf]
    %v9854 = vld [vmem:[%s9825 + $0x70] sm:$0xf]
    %v9855 = vld [vmem:[%s9825 + $0x74] sm:$0xf]
    %v9856 = vld [vmem:[%s9825 + $0x78] sm:$0xf]
    %v9857 = vld [vmem:[%s9825 + $0x7c] sm:$0xf]
    %v9858 = vld [vmem:[%s9825 + $0x80] sm:$0xf]
    %v9859 = vld [vmem:[%s9825 + $0x84] sm:$0xf]
    %v9860 = vld [vmem:[%s9825 + $0x88] sm:$0xf]
    %v9861 = vld [vmem:[%s9825 + $0x8c] sm:$0xf]
    %v9862 = vld [vmem:[%s9825 + $0x90] sm:$0xf]
    %v9863 = vld [vmem:[%s9825 + $0x94] sm:$0xf]
    %v9864 = vld [vmem:[%s9825 + $0x98] sm:$0xf]
    %v9865 = vld [vmem:[%s9825 + $0x9c] sm:$0xf]
    %v9906 = vunpack.c.l.b16 %v9826
    %v9907 = vunpack.c.l.b16 %v9827
    %v9908 = vunpack.c.l.b16 %v9828
    %v9909 = vunpack.c.l.b16 %v9829
    %v9910 = vunpack.c.l.b16 %v9830
    %v9911 = vunpack.c.l.b16 %v9831
    %v9912 = vunpack.c.l.b16 %v9832
    %v9913 = vunpack.c.l.b16 %v9833
    %v9914 = vunpack.c.l.b16 %v9834
    %v9915 = vunpack.c.l.b16 %v9835
    %v9916 = vunpack.c.l.b16 %v9836
    %v9917 = vunpack.c.l.b16 %v9837
    %v9918 = vunpack.c.l.b16 %v9838
    %v9919 = vunpack.c.l.b16 %v9839
    %v9920 = vunpack.c.l.b16 %v9840
    %v9921 = vunpack.c.l.b16 %v9841
    %v9922 = vunpack.c.l.b16 %v9842
    %v9923 = vunpack.c.l.b16 %v9843
    %v9924 = vunpack.c.l.b16 %v9844
    %v9925 = vunpack.c.l.b16 %v9845
    %v9926 = vunpack.c.l.b16 %v9846
    %v9927 = vunpack.c.l.b16 %v9847
    %v9928 = vunpack.c.l.b16 %v9848
    %v9929 = vunpack.c.l.b16 %v9849
    %v9930 = vunpack.c.l.b16 %v9850
    %v9931 = vunpack.c.l.b16 %v9851
    %v9932 = vunpack.c.l.b16 %v9852
    %v9933 = vunpack.c.l.b16 %v9853
    %v9934 = vunpack.c.l.b16 %v9854
    %v9935 = vunpack.c.l.b16 %v9855
    %v9936 = vunpack.c.l.b16 %v9856
    %v9937 = vunpack.c.l.b16 %v9857
    %v9938 = vunpack.c.l.b16 %v9858
    %v9939 = vunpack.c.l.b16 %v9859
    %v9940 = vunpack.c.l.b16 %v9860
    %v9941 = vunpack.c.l.b16 %v9861
    %v9942 = vunpack.c.l.b16 %v9862
    %v9943 = vunpack.c.l.b16 %v9863
    %v9944 = vunpack.c.l.b16 %v9864
    %v9945 = vunpack.c.l.b16 %v9865
    %v9946 = vpack.c.b16 %v9907, %v9906
    %v9947 = vpack.c.b16 %v9909, %v9908
    %v9948 = vpack.c.b16 %v9911, %v9910
    %v9949 = vpack.c.b16 %v9913, %v9912
    %v9950 = vpack.c.b16 %v9915, %v9914
    %v9951 = vpack.c.b16 %v9917, %v9916
    %v9952 = vpack.c.b16 %v9919, %v9918
    %v9953 = vpack.c.b16 %v9921, %v9920
    %v9954 = vpack.c.b16 %v9923, %v9922
    %v9955 = vpack.c.b16 %v9925, %v9924
    %v9956 = vpack.c.b16 %v9927, %v9926
    %v9957 = vpack.c.b16 %v9929, %v9928
    %v9958 = vpack.c.b16 %v9931, %v9930
    %v9959 = vpack.c.b16 %v9933, %v9932
    %v9960 = vpack.c.b16 %v9935, %v9934
    %v9961 = vpack.c.b16 %v9937, %v9936
    %v9962 = vpack.c.b16 %v9939, %v9938
    %v9963 = vpack.c.b16 %v9941, %v9940
    %v9964 = vpack.c.b16 %v9943, %v9942
    %v9965 = vpack.c.b16 %v9945, %v9944
    %v9987 = vsel %vm528, %v9824, 0
    %9989 = vmatprep.subr.bf16.mxu0 0
    %9990 = vmatpush1.bf16.msra.mxu0 %v9953
    %9991 = vmatprep.subr.bf16.mxu0 0
    %9992 = vmatpush1.bf16.msra.mxu0 %v9952
    %9993 = vmatprep.subr.bf16.mxu0 0
    %9994 = vmatpush1.bf16.msra.mxu0 %v9951
    %9995 = vmatprep.subr.bf16.mxu0 0
    %9996 = vmatpush1.bf16.msra.mxu0 %v9950
    %9997 = vmatprep.subr.bf16.mxu0 0
    %9998 = vmatpush1.bf16.msra.mxu0 %v9949
    %9999 = vmatprep.subr.bf16.mxu0 0
    %10000 = vmatpush1.bf16.msra.mxu0 %v9948
    %10001 = vmatprep.subr.bf16.mxu0 0
    %10002 = vmatpush1.bf16.msra.mxu0 %v9947
    %10003 = vmatprep.subr.bf16.mxu0 0
    %10004 = vmatpush1.bf16.msra.mxu0 %v9946
    %10005 = vmatprep.subr.bf16.mxu0 0
    %10006 = vmatpush2.bf16.msra.mxu0 %v9961
    %10007 = vmatprep.subr.bf16.mxu0 0
    %10008 = vmatpush2.bf16.msra.mxu0 %v9960
    %10009 = vmatprep.subr.bf16.mxu0 0
    %10010 = vmatpush2.bf16.msra.mxu0 %v9959
    %10011 = vmatprep.subr.bf16.mxu0 0
    %10012 = vmatpush2.bf16.msra.mxu0 %v9958
    %10013 = vmatprep.subr.bf16.mxu0 0
    %10014 = vmatpush2.bf16.msra.mxu0 %v9957
    %10015 = vmatprep.subr.bf16.mxu0 0
    %10016 = vmatpush2.bf16.msra.mxu0 %v9956
    %10017 = vmatprep.subr.bf16.mxu0 0
    %10018 = vmatpush2.bf16.msra.mxu0 %v9955
    %10019 = vmatprep.subr.bf16.mxu0 0
    %10020 = vmatpush2.bf16.msra.mxu0 %v9954
    %10021 = vmatprep.mubr.bf16.mxu0 %v9823
    %10022 = vmatmul.mubr.bf16.gmra.mxu0 %v9822
    %v10023 = vpop.f32.mrf.mxu0
    %v10024 = vadd.f32 0.0, %v10023
    %v10025 = vpop.f32.mrf.mxu0
    %v10026 = vpop.f32.mrf.mxu0
    %v10027 = vpop.f32.mrf.mxu0
    %10028 = vdwg.mxu0
    %10029 = vmatprep.subr.bf16.mxu0 0
    %10030 = vmatpush1.bf16.msra.mxu0 0
    %10031 = vmatprep.subr.bf16.mxu0 0
    %10032 = vmatpush1.bf16.msra.mxu0 0
    %10033 = vmatprep.subr.bf16.mxu0 0
    %10034 = vmatpush1.bf16.msra.mxu0 0
    %10035 = vmatprep.subr.bf16.mxu0 0
    %10036 = vmatpush1.bf16.msra.mxu0 0
    %10037 = vmatprep.subr.bf16.mxu0 0
    %10038 = vmatpush1.bf16.msra.mxu0 %v9965
    %10039 = vmatprep.subr.bf16.mxu0 0
    %10040 = vmatpush1.bf16.msra.mxu0 %v9964
    %10041 = vmatprep.subr.bf16.mxu0 0
    %10042 = vmatpush1.bf16.msra.mxu0 %v9963
    %10043 = vmatprep.subr.bf16.mxu0 0
    %10044 = vmatpush1.bf16.msra.mxu0 %v9962
    %10045 = vmatprep.subr.bf16.mxu0 0
    %10046 = vmatpush2.bf16.msra.mxu0 0
    %10047 = vmatprep.subr.bf16.mxu0 0
    %10048 = vmatpush2.bf16.msra.mxu0 0
    %10049 = vmatprep.subr.bf16.mxu0 0
    %10050 = vmatpush2.bf16.msra.mxu0 0
    %10051 = vmatprep.subr.bf16.mxu0 0
    %10052 = vmatpush2.bf16.msra.mxu0 0
    %10053 = vmatprep.subr.bf16.mxu0 0
    %10054 = vmatpush2.bf16.msra.mxu0 0
    %10055 = vmatprep.subr.bf16.mxu0 0
    %10056 = vmatpush2.bf16.msra.mxu0 0
    %10057 = vmatprep.subr.bf16.mxu0 0
    %10058 = vmatpush2.bf16.msra.mxu0 0
    %10059 = vmatprep.subr.bf16.mxu0 0
    %10060 = vmatpush2.bf16.msra.mxu0 0
    %10061 = vmatprep.mubr.bf16.mxu0 0
    %10062 = vmatmul.mubr.bf16.gmra.mxu0 %v9987
    %v10063 = vpop.f32.mrf.mxu0
    %v10064 = vadd.f32 %v10024, %v10063
    %v10065 = vpop.f32.mrf.mxu0
    %v10066 = vpop.f32.mrf.mxu0
    %v10067 = vpop.f32.mrf.mxu0
    %10068 = vdwg.mxu0
    %v10109 = vunpack.c.l.b16 %v9696
    %v10110 = vunpack.c.l.b16 %v9697
    %v10111 = vunpack.c.l.b16 %v9698
    %v10112 = vunpack.c.l.b16 %v9699
    %v10113 = vunpack.c.l.b16 %v9700
    %v10114 = vunpack.c.l.b16 %v9701
    %v10115 = vunpack.c.l.b16 %v9702
    %v10116 = vunpack.c.l.b16 %v9703
    %v10117 = vunpack.c.l.b16 %v9704
    %v10118 = vunpack.c.l.b16 %v9705
    %v10119 = vunpack.c.l.b16 %v9706
    %v10120 = vunpack.c.l.b16 %v9707
    %v10121 = vunpack.c.l.b16 %v9708
    %v10122 = vunpack.c.l.b16 %v9709
    %v10123 = vunpack.c.l.b16 %v9710
    %v10124 = vunpack.c.l.b16 %v9711
    %v10125 = vunpack.c.l.b16 %v9712
    %v10126 = vunpack.c.l.b16 %v9713
    %v10127 = vunpack.c.l.b16 %v9714
    %v10128 = vunpack.c.l.b16 %v9715
    %v10129 = vunpack.c.l.b16 %v9716
    %v10130 = vunpack.c.l.b16 %v9717
    %v10131 = vunpack.c.l.b16 %v9718
    %v10132 = vunpack.c.l.b16 %v9719
    %v10133 = vunpack.c.l.b16 %v9720
    %v10134 = vunpack.c.l.b16 %v9721
    %v10135 = vunpack.c.l.b16 %v9722
    %v10136 = vunpack.c.l.b16 %v9723
    %v10137 = vunpack.c.l.b16 %v9724
    %v10138 = vunpack.c.l.b16 %v9725
    %v10139 = vunpack.c.l.b16 %v9726
    %v10140 = vunpack.c.l.b16 %v9727
    %v10141 = vunpack.c.l.b16 %v9728
    %v10142 = vunpack.c.l.b16 %v9729
    %v10143 = vunpack.c.l.b16 %v9730
    %v10144 = vunpack.c.l.b16 %v9731
    %v10145 = vunpack.c.l.b16 %v9732
    %v10146 = vunpack.c.l.b16 %v9733
    %v10147 = vunpack.c.l.b16 %v9734
    %v10148 = vunpack.c.l.b16 %v9735
    %v10149 = vpack.c.b16 %v10110, %v10109
    %v10150 = vpack.c.b16 %v10112, %v10111
    %v10151 = vpack.c.b16 %v10114, %v10113
    %v10152 = vpack.c.b16 %v10116, %v10115
    %v10153 = vpack.c.b16 %v10118, %v10117
    %v10154 = vpack.c.b16 %v10120, %v10119
    %v10155 = vpack.c.b16 %v10122, %v10121
    %v10156 = vpack.c.b16 %v10124, %v10123
    %v10157 = vpack.c.b16 %v10126, %v10125
    %v10158 = vpack.c.b16 %v10128, %v10127
    %v10159 = vpack.c.b16 %v10130, %v10129
    %v10160 = vpack.c.b16 %v10132, %v10131
    %v10161 = vpack.c.b16 %v10134, %v10133
    %v10162 = vpack.c.b16 %v10136, %v10135
    %v10163 = vpack.c.b16 %v10138, %v10137
    %v10164 = vpack.c.b16 %v10140, %v10139
    %v10165 = vpack.c.b16 %v10142, %v10141
    %v10166 = vpack.c.b16 %v10144, %v10143
    %v10167 = vpack.c.b16 %v10146, %v10145
    %v10168 = vpack.c.b16 %v10148, %v10147
    %v10190 = vsel %vm528, %v9695, 0
    %10192 = vmatprep.subr.bf16.mxu0 0
    %10193 = vmatpush1.bf16.msra.mxu0 %v10156
    %10194 = vmatprep.subr.bf16.mxu0 0
    %10195 = vmatpush1.bf16.msra.mxu0 %v10155
    %10196 = vmatprep.subr.bf16.mxu0 0
    %10197 = vmatpush1.bf16.msra.mxu0 %v10154
    %10198 = vmatprep.subr.bf16.mxu0 0
    %10199 = vmatpush1.bf16.msra.mxu0 %v10153
    %10200 = vmatprep.subr.bf16.mxu0 0
    %10201 = vmatpush1.bf16.msra.mxu0 %v10152
    %10202 = vmatprep.subr.bf16.mxu0 0
    %10203 = vmatpush1.bf16.msra.mxu0 %v10151
    %10204 = vmatprep.subr.bf16.mxu0 0
    %10205 = vmatpush1.bf16.msra.mxu0 %v10150
    %10206 = vmatprep.subr.bf16.mxu0 0
    %10207 = vmatpush1.bf16.msra.mxu0 %v10149
    %10208 = vmatprep.subr.bf16.mxu0 0
    %10209 = vmatpush2.bf16.msra.mxu0 %v10164
    %10210 = vmatprep.subr.bf16.mxu0 0
    %10211 = vmatpush2.bf16.msra.mxu0 %v10163
    %10212 = vmatprep.subr.bf16.mxu0 0
    %10213 = vmatpush2.bf16.msra.mxu0 %v10162
    %10214 = vmatprep.subr.bf16.mxu0 0
    %10215 = vmatpush2.bf16.msra.mxu0 %v10161
    %10216 = vmatprep.subr.bf16.mxu0 0
    %10217 = vmatpush2.bf16.msra.mxu0 %v10160
    %10218 = vmatprep.subr.bf16.mxu0 0
    %10219 = vmatpush2.bf16.msra.mxu0 %v10159
    %10220 = vmatprep.subr.bf16.mxu0 0
    %10221 = vmatpush2.bf16.msra.mxu0 %v10158
    %10222 = vmatprep.subr.bf16.mxu0 0
    %10223 = vmatpush2.bf16.msra.mxu0 %v10157
    %10224 = vmatprep.mubr.bf16.mxu0 %v9694
    %10225 = vmatmul.mubr.bf16.gmra.mxu0 %v9693
    %v10226 = vpop.f32.mrf.mxu0
    %v10227 = vadd.f32 %v10064, %v10226
    %v10228 = vpop.f32.mrf.mxu0
    %v10229 = vpop.f32.mrf.mxu0
    %v10230 = vpop.f32.mrf.mxu0
    %10231 = vdwg.mxu0
    %10232 = vmatprep.subr.bf16.mxu0 0
    %10233 = vmatpush1.bf16.msra.mxu0 0
    %10234 = vmatprep.subr.bf16.mxu0 0
    %10235 = vmatpush1.bf16.msra.mxu0 0
    %10236 = vmatprep.subr.bf16.mxu0 0
    %10237 = vmatpush1.bf16.msra.mxu0 0
    %10238 = vmatprep.subr.bf16.mxu0 0
    %10239 = vmatpush1.bf16.msra.mxu0 0
    %10240 = vmatprep.subr.bf16.mxu0 0
    %10241 = vmatpush1.bf16.msra.mxu0 %v10168
    %10242 = vmatprep.subr.bf16.mxu0 0
    %10243 = vmatpush1.bf16.msra.mxu0 %v10167
    %10244 = vmatprep.subr.bf16.mxu0 0
    %10245 = vmatpush1.bf16.msra.mxu0 %v10166
    %10246 = vmatprep.subr.bf16.mxu0 0
    %10247 = vmatpush1.bf16.msra.mxu0 %v10165
    %10248 = vmatprep.subr.bf16.mxu0 0
    %10249 = vmatpush2.bf16.msra.mxu0 0
    %10250 = vmatprep.subr.bf16.mxu0 0
    %10251 = vmatpush2.bf16.msra.mxu0 0
    %10252 = vmatprep.subr.bf16.mxu0 0
    %10253 = vmatpush2.bf16.msra.mxu0 0
    %10254 = vmatprep.subr.bf16.mxu0 0
    %10255 = vmatpush2.bf16.msra.mxu0 0
    %10256 = vmatprep.subr.bf16.mxu0 0
    %10257 = vmatpush2.bf16.msra.mxu0 0
    %10258 = vmatprep.subr.bf16.mxu0 0
    %10259 = vmatpush2.bf16.msra.mxu0 0
    %10260 = vmatprep.subr.bf16.mxu0 0
    %10261 = vmatpush2.bf16.msra.mxu0 0
    %10262 = vmatprep.subr.bf16.mxu0 0
    %10263 = vmatpush2.bf16.msra.mxu0 0
    %10264 = vmatprep.mubr.bf16.mxu0 0
    %10265 = vmatmul.mubr.bf16.gmra.mxu0 %v10190
    %v10266 = vpop.f32.mrf.mxu0
    %v10267 = vadd.f32 %v10227, %v10266
    %v10268 = vpop.f32.mrf.mxu0
    %v10269 = vpop.f32.mrf.mxu0
    %v10270 = vpop.f32.mrf.mxu0
    %10271 = vdwg.mxu0
    %s10272 = scalar_lea.vmem %s53, 8
    %v10273 = vld [vmem:[%s10272] sm:$0xf]
    %v10275 = vsel %vm9037, %v10273, 0
    %10277 = vmatprep.subr.bf16.mxu0 0
    %10278 = vmatpush1.bf16.msra.mxu0 0
    %10279 = vmatprep.subr.bf16.mxu0 0
    %10280 = vmatpush1.bf16.msra.mxu0 0
    %10281 = vmatprep.subr.bf16.mxu0 0
    %10282 = vmatpush1.bf16.msra.mxu0 0
    %10283 = vmatprep.subr.bf16.mxu0 0
    %10284 = vmatpush1.bf16.msra.mxu0 0
    %10285 = vmatprep.subr.bf16.mxu0 0
    %10286 = vmatpush1.bf16.msra.mxu0 0
    %10287 = vmatprep.subr.bf16.mxu0 0
    %10288 = vmatpush1.bf16.msra.mxu0 0
    %10289 = vmatprep.subr.bf16.mxu0 0
    %10290 = vmatpush1.bf16.msra.mxu0 0
    %10291 = vmatprep.subr.bf16.mxu0 %v9606
    %10292 = vmatpush1.bf16.msra.mxu0 %v9605
    %10293 = vmatprep.subr.bf16.mxu0 0
    %10294 = vmatpush2.bf16.msra.mxu0 0
    %10295 = vmatprep.subr.bf16.mxu0 0
    %10296 = vmatpush2.bf16.msra.mxu0 0
    %10297 = vmatprep.subr.bf16.mxu0 0
    %10298 = vmatpush2.bf16.msra.mxu0 0
    %10299 = vmatprep.subr.bf16.mxu0 0
    %10300 = vmatpush2.bf16.msra.mxu0 0
    %10301 = vmatprep.subr.bf16.mxu0 0
    %10302 = vmatpush2.bf16.msra.mxu0 0
    %10303 = vmatprep.subr.bf16.mxu0 0
    %10304 = vmatpush2.bf16.msra.mxu0 0
    %10305 = vmatprep.subr.bf16.mxu0 0
    %10306 = vmatpush2.bf16.msra.mxu0 0
    %10307 = vmatprep.subr.bf16.mxu0 0
    %10308 = vmatpush2.bf16.msra.mxu0 0
    %10309 = vmatprep.mubr.bf16.mxu0 0
    %10310 = vmatmul.mubr.bf16.gmra.mxu0 %v10275
    %v10311 = vpop.f32.mrf.mxu0
    %v10312 = vadd.f32 0.0, %v10311
    %v10313 = vpop.f32.mrf.mxu0
    %v10314 = vadd.f32 0.0, %v10313
    %v10315 = vpop.f32.mrf.mxu0
    %v10316 = vpop.f32.mrf.mxu0
    %10317 = vdwg.mxu0
    %10318 = vmatprep.subr.bf16.mxu0 0
    %10319 = vmatpush1.bf16.msra.mxu0 0
    %10320 = vmatprep.subr.bf16.mxu0 0
    %10321 = vmatpush1.bf16.msra.mxu0 0
    %10322 = vmatprep.subr.bf16.mxu0 0
    %10323 = vmatpush1.bf16.msra.mxu0 0
    %10324 = vmatprep.subr.bf16.mxu0 0
    %10325 = vmatpush1.bf16.msra.mxu0 0
    %10326 = vmatprep.subr.bf16.mxu0 0
    %10327 = vmatpush1.bf16.msra.mxu0 0
    %10328 = vmatprep.subr.bf16.mxu0 0
    %10329 = vmatpush1.bf16.msra.mxu0 0
    %10330 = vmatprep.subr.bf16.mxu0 0
    %10331 = vmatpush1.bf16.msra.mxu0 0
    %10332 = vmatprep.subr.bf16.mxu0 0
    %10333 = vmatpush1.bf16.msra.mxu0 %v9607
    %10334 = vmatprep.subr.bf16.mxu0 0
    %10335 = vmatpush2.bf16.msra.mxu0 0
    %10336 = vmatprep.subr.bf16.mxu0 0
    %10337 = vmatpush2.bf16.msra.mxu0 0
    %10338 = vmatprep.subr.bf16.mxu0 0
    %10339 = vmatpush2.bf16.msra.mxu0 0
    %10340 = vmatprep.subr.bf16.mxu0 0
    %10341 = vmatpush2.bf16.msra.mxu0 0
    %10342 = vmatprep.subr.bf16.mxu0 0
    %10343 = vmatpush2.bf16.msra.mxu0 0
    %10344 = vmatprep.subr.bf16.mxu0 0
    %10345 = vmatpush2.bf16.msra.mxu0 0
    %10346 = vmatprep.subr.bf16.mxu0 0
    %10347 = vmatpush2.bf16.msra.mxu0 0
    %10348 = vmatprep.subr.bf16.mxu0 0
    %10349 = vmatpush2.bf16.msra.mxu0 0
    %10350 = vmatprep.mubr.bf16.mxu0 0
    %10351 = vmatmul.mubr.bf16.gmra.mxu0 %v10275
    %v10352 = vpop.f32.mrf.mxu0
    %v10353 = vadd.f32 0.0, %v10352
    %v10354 = vpop.f32.mrf.mxu0
    %v10355 = vpop.f32.mrf.mxu0
    %v10356 = vpop.f32.mrf.mxu0
    %10357 = vdwg.mxu0
    %v10358 = vpack.c.bf16 %v10312, %v10312
    %v10359 = vpack.c.bf16 %v10314, %v10314
    %v10360 = vpack.c.bf16 %v10353, %v10353
    %s10361 = scalar_lea.vmem %s55, 320
    %v10362 = vld [vmem:[%s10361] sm:$0xf]
    %v10363 = vld [vmem:[%s10361 + $0x4] sm:$0xf]
    %v10364 = vld [vmem:[%s10361 + $0x8] sm:$0xf]
    %v10365 = vld [vmem:[%s10361 + $0xc] sm:$0xf]
    %v10366 = vld [vmem:[%s10361 + $0x10] sm:$0xf]
    %v10367 = vld [vmem:[%s10361 + $0x14] sm:$0xf]
    %v10368 = vld [vmem:[%s10361 + $0x18] sm:$0xf]
    %v10369 = vld [vmem:[%s10361 + $0x1c] sm:$0xf]
    %v10370 = vld [vmem:[%s10361 + $0x20] sm:$0xf]
    %v10371 = vld [vmem:[%s10361 + $0x24] sm:$0xf]
    %v10372 = vld [vmem:[%s10361 + $0x28] sm:$0xf]
    %v10373 = vld [vmem:[%s10361 + $0x2c] sm:$0xf]
    %v10374 = vld [vmem:[%s10361 + $0x30] sm:$0xf]
    %v10375 = vld [vmem:[%s10361 + $0x34] sm:$0xf]
    %v10376 = vld [vmem:[%s10361 + $0x38] sm:$0xf]
    %v10377 = vld [vmem:[%s10361 + $0x3c] sm:$0xf]
    %v10378 = vld [vmem:[%s10361 + $0x40] sm:$0xf]
    %v10379 = vld [vmem:[%s10361 + $0x44] sm:$0xf]
    %v10380 = vld [vmem:[%s10361 + $0x48] sm:$0xf]
    %v10381 = vld [vmem:[%s10361 + $0x4c] sm:$0xf]
    %v10382 = vld [vmem:[%s10361 + $0x50] sm:$0xf]
    %v10383 = vld [vmem:[%s10361 + $0x54] sm:$0xf]
    %v10384 = vld [vmem:[%s10361 + $0x58] sm:$0xf]
    %v10385 = vld [vmem:[%s10361 + $0x5c] sm:$0xf]
    %v10386 = vld [vmem:[%s10361 + $0x60] sm:$0xf]
    %v10387 = vld [vmem:[%s10361 + $0x64] sm:$0xf]
    %v10388 = vld [vmem:[%s10361 + $0x68] sm:$0xf]
    %v10389 = vld [vmem:[%s10361 + $0x6c] sm:$0xf]
    %v10390 = vld [vmem:[%s10361 + $0x70] sm:$0xf]
    %v10391 = vld [vmem:[%s10361 + $0x74] sm:$0xf]
    %v10392 = vld [vmem:[%s10361 + $0x78] sm:$0xf]
    %v10393 = vld [vmem:[%s10361 + $0x7c] sm:$0xf]
    %v10394 = vld [vmem:[%s10361 + $0x80] sm:$0xf]
    %v10395 = vld [vmem:[%s10361 + $0x84] sm:$0xf]
    %v10396 = vld [vmem:[%s10361 + $0x88] sm:$0xf]
    %v10397 = vld [vmem:[%s10361 + $0x8c] sm:$0xf]
    %v10398 = vld [vmem:[%s10361 + $0x90] sm:$0xf]
    %v10399 = vld [vmem:[%s10361 + $0x94] sm:$0xf]
    %v10400 = vld [vmem:[%s10361 + $0x98] sm:$0xf]
    %v10401 = vld [vmem:[%s10361 + $0x9c] sm:$0xf]
    %v10442 = vunpack.c.l.b16 %v10362
    %v10443 = vunpack.c.l.b16 %v10363
    %v10444 = vunpack.c.l.b16 %v10364
    %v10445 = vunpack.c.l.b16 %v10365
    %v10446 = vunpack.c.l.b16 %v10366
    %v10447 = vunpack.c.l.b16 %v10367
    %v10448 = vunpack.c.l.b16 %v10368
    %v10449 = vunpack.c.l.b16 %v10369
    %v10450 = vunpack.c.l.b16 %v10370
    %v10451 = vunpack.c.l.b16 %v10371
    %v10452 = vunpack.c.l.b16 %v10372
    %v10453 = vunpack.c.l.b16 %v10373
    %v10454 = vunpack.c.l.b16 %v10374
    %v10455 = vunpack.c.l.b16 %v10375
    %v10456 = vunpack.c.l.b16 %v10376
    %v10457 = vunpack.c.l.b16 %v10377
    %v10458 = vunpack.c.l.b16 %v10378
    %v10459 = vunpack.c.l.b16 %v10379
    %v10460 = vunpack.c.l.b16 %v10380
    %v10461 = vunpack.c.l.b16 %v10381
    %v10462 = vunpack.c.l.b16 %v10382
    %v10463 = vunpack.c.l.b16 %v10383
    %v10464 = vunpack.c.l.b16 %v10384
    %v10465 = vunpack.c.l.b16 %v10385
    %v10466 = vunpack.c.l.b16 %v10386
    %v10467 = vunpack.c.l.b16 %v10387
    %v10468 = vunpack.c.l.b16 %v10388
    %v10469 = vunpack.c.l.b16 %v10389
    %v10470 = vunpack.c.l.b16 %v10390
    %v10471 = vunpack.c.l.b16 %v10391
    %v10472 = vunpack.c.l.b16 %v10392
    %v10473 = vunpack.c.l.b16 %v10393
    %v10474 = vunpack.c.l.b16 %v10394
    %v10475 = vunpack.c.l.b16 %v10395
    %v10476 = vunpack.c.l.b16 %v10396
    %v10477 = vunpack.c.l.b16 %v10397
    %v10478 = vunpack.c.l.b16 %v10398
    %v10479 = vunpack.c.l.b16 %v10399
    %v10480 = vunpack.c.l.b16 %v10400
    %v10481 = vunpack.c.l.b16 %v10401
    %v10482 = vpack.c.b16 %v10443, %v10442
    %v10483 = vpack.c.b16 %v10445, %v10444
    %v10484 = vpack.c.b16 %v10447, %v10446
    %v10485 = vpack.c.b16 %v10449, %v10448
    %v10486 = vpack.c.b16 %v10451, %v10450
    %v10487 = vpack.c.b16 %v10453, %v10452
    %v10488 = vpack.c.b16 %v10455, %v10454
    %v10489 = vpack.c.b16 %v10457, %v10456
    %v10490 = vpack.c.b16 %v10459, %v10458
    %v10491 = vpack.c.b16 %v10461, %v10460
    %v10492 = vpack.c.b16 %v10463, %v10462
    %v10493 = vpack.c.b16 %v10465, %v10464
    %v10494 = vpack.c.b16 %v10467, %v10466
    %v10495 = vpack.c.b16 %v10469, %v10468
    %v10496 = vpack.c.b16 %v10471, %v10470
    %v10497 = vpack.c.b16 %v10473, %v10472
    %v10498 = vpack.c.b16 %v10475, %v10474
    %v10499 = vpack.c.b16 %v10477, %v10476
    %v10500 = vpack.c.b16 %v10479, %v10478
    %v10501 = vpack.c.b16 %v10481, %v10480
    %v10523 = vsel %vm528, %v10360, 0
    %10525 = vmatprep.subr.bf16.mxu0 0
    %10526 = vmatpush1.bf16.msra.mxu0 %v10489
    %10527 = vmatprep.subr.bf16.mxu0 0
    %10528 = vmatpush1.bf16.msra.mxu0 %v10488
    %10529 = vmatprep.subr.bf16.mxu0 0
    %10530 = vmatpush1.bf16.msra.mxu0 %v10487
    %10531 = vmatprep.subr.bf16.mxu0 0
    %10532 = vmatpush1.bf16.msra.mxu0 %v10486
    %10533 = vmatprep.subr.bf16.mxu0 0
    %10534 = vmatpush1.bf16.msra.mxu0 %v10485
    %10535 = vmatprep.subr.bf16.mxu0 0
    %10536 = vmatpush1.bf16.msra.mxu0 %v10484
    %10537 = vmatprep.subr.bf16.mxu0 0
    %10538 = vmatpush1.bf16.msra.mxu0 %v10483
    %10539 = vmatprep.subr.bf16.mxu0 0
    %10540 = vmatpush1.bf16.msra.mxu0 %v10482
    %10541 = vmatprep.subr.bf16.mxu0 0
    %10542 = vmatpush2.bf16.msra.mxu0 %v10497
    %10543 = vmatprep.subr.bf16.mxu0 0
    %10544 = vmatpush2.bf16.msra.mxu0 %v10496
    %10545 = vmatprep.subr.bf16.mxu0 0
    %10546 = vmatpush2.bf16.msra.mxu0 %v10495
    %10547 = vmatprep.subr.bf16.mxu0 0
    %10548 = vmatpush2.bf16.msra.mxu0 %v10494
    %10549 = vmatprep.subr.bf16.mxu0 0
    %10550 = vmatpush2.bf16.msra.mxu0 %v10493
    %10551 = vmatprep.subr.bf16.mxu0 0
    %10552 = vmatpush2.bf16.msra.mxu0 %v10492
    %10553 = vmatprep.subr.bf16.mxu0 0
    %10554 = vmatpush2.bf16.msra.mxu0 %v10491
    %10555 = vmatprep.subr.bf16.mxu0 0
    %10556 = vmatpush2.bf16.msra.mxu0 %v10490
    %10557 = vmatprep.mubr.bf16.mxu0 %v10359
    %10558 = vmatmul.mubr.bf16.gmra.mxu0 %v10358
    %v10559 = vpop.f32.mrf.mxu0
    %v10560 = vadd.f32 0.0, %v10559
    %v10561 = vpop.f32.mrf.mxu0
    %v10562 = vpop.f32.mrf.mxu0
    %v10563 = vpop.f32.mrf.mxu0
    %10564 = vdwg.mxu0
    %10565 = vmatprep.subr.bf16.mxu0 0
    %10566 = vmatpush1.bf16.msra.mxu0 0
    %10567 = vmatprep.subr.bf16.mxu0 0
    %10568 = vmatpush1.bf16.msra.mxu0 0
    %10569 = vmatprep.subr.bf16.mxu0 0
    %10570 = vmatpush1.bf16.msra.mxu0 0
    %10571 = vmatprep.subr.bf16.mxu0 0
    %10572 = vmatpush1.bf16.msra.mxu0 0
    %10573 = vmatprep.subr.bf16.mxu0 0
    %10574 = vmatpush1.bf16.msra.mxu0 %v10501
    %10575 = vmatprep.subr.bf16.mxu0 0
    %10576 = vmatpush1.bf16.msra.mxu0 %v10500
    %10577 = vmatprep.subr.bf16.mxu0 0
    %10578 = vmatpush1.bf16.msra.mxu0 %v10499
    %10579 = vmatprep.subr.bf16.mxu0 0
    %10580 = vmatpush1.bf16.msra.mxu0 %v10498
    %10581 = vmatprep.subr.bf16.mxu0 0
    %10582 = vmatpush2.bf16.msra.mxu0 0
    %10583 = vmatprep.subr.bf16.mxu0 0
    %10584 = vmatpush2.bf16.msra.mxu0 0
    %10585 = vmatprep.subr.bf16.mxu0 0
    %10586 = vmatpush2.bf16.msra.mxu0 0
    %10587 = vmatprep.subr.bf16.mxu0 0
    %10588 = vmatpush2.bf16.msra.mxu0 0
    %10589 = vmatprep.subr.bf16.mxu0 0
    %10590 = vmatpush2.bf16.msra.mxu0 0
    %10591 = vmatprep.subr.bf16.mxu0 0
    %10592 = vmatpush2.bf16.msra.mxu0 0
    %10593 = vmatprep.subr.bf16.mxu0 0
    %10594 = vmatpush2.bf16.msra.mxu0 0
    %10595 = vmatprep.subr.bf16.mxu0 0
    %10596 = vmatpush2.bf16.msra.mxu0 0
    %10597 = vmatprep.mubr.bf16.mxu0 0
    %10598 = vmatmul.mubr.bf16.gmra.mxu0 %v10523
    %v10599 = vpop.f32.mrf.mxu0
    %v10600 = vadd.f32 %v10560, %v10599
    %v10601 = vpop.f32.mrf.mxu0
    %v10602 = vpop.f32.mrf.mxu0
    %v10603 = vpop.f32.mrf.mxu0
    %10604 = vdwg.mxu0
    %v10605 = vadd.f32 %v10267, %v10600
    %s10606 = scalar_lea.vmem %s53, 12
    %v10607 = vld [vmem:[%s10606] sm:$0xf]
    %v10609 = vsel %vm9037, %v10607, 0
    %10611 = vmatprep.subr.bf16.mxu0 0
    %10612 = vmatpush1.bf16.msra.mxu0 0
    %10613 = vmatprep.subr.bf16.mxu0 0
    %10614 = vmatpush1.bf16.msra.mxu0 0
    %10615 = vmatprep.subr.bf16.mxu0 0
    %10616 = vmatpush1.bf16.msra.mxu0 0
    %10617 = vmatprep.subr.bf16.mxu0 0
    %10618 = vmatpush1.bf16.msra.mxu0 0
    %10619 = vmatprep.subr.bf16.mxu0 0
    %10620 = vmatpush1.bf16.msra.mxu0 0
    %10621 = vmatprep.subr.bf16.mxu0 0
    %10622 = vmatpush1.bf16.msra.mxu0 0
    %10623 = vmatprep.subr.bf16.mxu0 0
    %10624 = vmatpush1.bf16.msra.mxu0 0
    %10625 = vmatprep.subr.bf16.mxu0 %v9606
    %10626 = vmatpush1.bf16.msra.mxu0 %v9605
    %10627 = vmatprep.subr.bf16.mxu0 0
    %10628 = vmatpush2.bf16.msra.mxu0 0
    %10629 = vmatprep.subr.bf16.mxu0 0
    %10630 = vmatpush2.bf16.msra.mxu0 0
    %10631 = vmatprep.subr.bf16.mxu0 0
    %10632 = vmatpush2.bf16.msra.mxu0 0
    %10633 = vmatprep.subr.bf16.mxu0 0
    %10634 = vmatpush2.bf16.msra.mxu0 0
    %10635 = vmatprep.subr.bf16.mxu0 0
    %10636 = vmatpush2.bf16.msra.mxu0 0
    %10637 = vmatprep.subr.bf16.mxu0 0
    %10638 = vmatpush2.bf16.msra.mxu0 0
    %10639 = vmatprep.subr.bf16.mxu0 0
    %10640 = vmatpush2.bf16.msra.mxu0 0
    %10641 = vmatprep.subr.bf16.mxu0 0
    %10642 = vmatpush2.bf16.msra.mxu0 0
    %10643 = vmatprep.mubr.bf16.mxu0 0
    %10644 = vmatmul.mubr.bf16.gmra.mxu0 %v10609
    %v10645 = vpop.f32.mrf.mxu0
    %v10646 = vadd.f32 0.0, %v10645
    %v10647 = vpop.f32.mrf.mxu0
    %v10648 = vadd.f32 0.0, %v10647
    %v10649 = vpop.f32.mrf.mxu0
    %v10650 = vpop.f32.mrf.mxu0
    %10651 = vdwg.mxu0
    %10652 = vmatprep.subr.bf16.mxu0 0
    %10653 = vmatpush1.bf16.msra.mxu0 0
    %10654 = vmatprep.subr.bf16.mxu0 0
    %10655 = vmatpush1.bf16.msra.mxu0 0
    %10656 = vmatprep.subr.bf16.mxu0 0
    %10657 = vmatpush1.bf16.msra.mxu0 0
    %10658 = vmatprep.subr.bf16.mxu0 0
    %10659 = vmatpush1.bf16.msra.mxu0 0
    %10660 = vmatprep.subr.bf16.mxu0 0
    %10661 = vmatpush1.bf16.msra.mxu0 0
    %10662 = vmatprep.subr.bf16.mxu0 0
    %10663 = vmatpush1.bf16.msra.mxu0 0
    %10664 = vmatprep.subr.bf16.mxu0 0
    %10665 = vmatpush1.bf16.msra.mxu0 0
    %10666 = vmatprep.subr.bf16.mxu0 0
    %10667 = vmatpush1.bf16.msra.mxu0 %v9607
    %10668 = vmatprep.subr.bf16.mxu0 0
    %10669 = vmatpush2.bf16.msra.mxu0 0
    %10670 = vmatprep.subr.bf16.mxu0 0
    %10671 = vmatpush2.bf16.msra.mxu0 0
    %10672 = vmatprep.subr.bf16.mxu0 0
    %10673 = vmatpush2.bf16.msra.mxu0 0
    %10674 = vmatprep.subr.bf16.mxu0 0
    %10675 = vmatpush2.bf16.msra.mxu0 0
    %10676 = vmatprep.subr.bf16.mxu0 0
    %10677 = vmatpush2.bf16.msra.mxu0 0
    %10678 = vmatprep.subr.bf16.mxu0 0
    %10679 = vmatpush2.bf16.msra.mxu0 0
    %10680 = vmatprep.subr.bf16.mxu0 0
    %10681 = vmatpush2.bf16.msra.mxu0 0
    %10682 = vmatprep.subr.bf16.mxu0 0
    %10683 = vmatpush2.bf16.msra.mxu0 0
    %10684 = vmatprep.mubr.bf16.mxu0 0
    %10685 = vmatmul.mubr.bf16.gmra.mxu0 %v10609
    %v10686 = vpop.f32.mrf.mxu0
    %v10687 = vadd.f32 0.0, %v10686
    %v10688 = vpop.f32.mrf.mxu0
    %v10689 = vpop.f32.mrf.mxu0
    %v10690 = vpop.f32.mrf.mxu0
    %10691 = vdwg.mxu0
    %v10692 = vpack.c.bf16 %v10646, %v10646
    %v10693 = vpack.c.bf16 %v10648, %v10648
    %v10694 = vpack.c.bf16 %v10687, %v10687
    %s10695 = scalar_lea.vmem %s55, 480
    %v10696 = vld [vmem:[%s10695] sm:$0xf]
    %v10697 = vld [vmem:[%s10695 + $0x4] sm:$0xf]
    %v10698 = vld [vmem:[%s10695 + $0x8] sm:$0xf]
    %v10699 = vld [vmem:[%s10695 + $0xc] sm:$0xf]
    %v10700 = vld [vmem:[%s10695 + $0x10] sm:$0xf]
    %v10701 = vld [vmem:[%s10695 + $0x14] sm:$0xf]
    %v10702 = vld [vmem:[%s10695 + $0x18] sm:$0xf]
    %v10703 = vld [vmem:[%s10695 + $0x1c] sm:$0xf]
    %v10704 = vld [vmem:[%s10695 + $0x20] sm:$0xf]
    %v10705 = vld [vmem:[%s10695 + $0x24] sm:$0xf]
    %v10706 = vld [vmem:[%s10695 + $0x28] sm:$0xf]
    %v10707 = vld [vmem:[%s10695 + $0x2c] sm:$0xf]
    %v10708 = vld [vmem:[%s10695 + $0x30] sm:$0xf]
    %v10709 = vld [vmem:[%s10695 + $0x34] sm:$0xf]
    %v10710 = vld [vmem:[%s10695 + $0x38] sm:$0xf]
    %v10711 = vld [vmem:[%s10695 + $0x3c] sm:$0xf]
    %v10712 = vld [vmem:[%s10695 + $0x40] sm:$0xf]
    %v10713 = vld [vmem:[%s10695 + $0x44] sm:$0xf]
    %v10714 = vld [vmem:[%s10695 + $0x48] sm:$0xf]
    %v10715 = vld [vmem:[%s10695 + $0x4c] sm:$0xf]
    %v10716 = vld [vmem:[%s10695 + $0x50] sm:$0xf]
    %v10717 = vld [vmem:[%s10695 + $0x54] sm:$0xf]
    %v10718 = vld [vmem:[%s10695 + $0x58] sm:$0xf]
    %v10719 = vld [vmem:[%s10695 + $0x5c] sm:$0xf]
    %v10720 = vld [vmem:[%s10695 + $0x60] sm:$0xf]
    %v10721 = vld [vmem:[%s10695 + $0x64] sm:$0xf]
    %v10722 = vld [vmem:[%s10695 + $0x68] sm:$0xf]
    %v10723 = vld [vmem:[%s10695 + $0x6c] sm:$0xf]
    %v10724 = vld [vmem:[%s10695 + $0x70] sm:$0xf]
    %v10725 = vld [vmem:[%s10695 + $0x74] sm:$0xf]
    %v10726 = vld [vmem:[%s10695 + $0x78] sm:$0xf]
    %v10727 = vld [vmem:[%s10695 + $0x7c] sm:$0xf]
    %v10728 = vld [vmem:[%s10695 + $0x80] sm:$0xf]
    %v10729 = vld [vmem:[%s10695 + $0x84] sm:$0xf]
    %v10730 = vld [vmem:[%s10695 + $0x88] sm:$0xf]
    %v10731 = vld [vmem:[%s10695 + $0x8c] sm:$0xf]
    %v10732 = vld [vmem:[%s10695 + $0x90] sm:$0xf]
    %v10733 = vld [vmem:[%s10695 + $0x94] sm:$0xf]
    %v10734 = vld [vmem:[%s10695 + $0x98] sm:$0xf]
    %v10735 = vld [vmem:[%s10695 + $0x9c] sm:$0xf]
    %v10776 = vunpack.c.l.b16 %v10696
    %v10777 = vunpack.c.l.b16 %v10697
    %v10778 = vunpack.c.l.b16 %v10698
    %v10779 = vunpack.c.l.b16 %v10699
    %v10780 = vunpack.c.l.b16 %v10700
    %v10781 = vunpack.c.l.b16 %v10701
    %v10782 = vunpack.c.l.b16 %v10702
    %v10783 = vunpack.c.l.b16 %v10703
    %v10784 = vunpack.c.l.b16 %v10704
    %v10785 = vunpack.c.l.b16 %v10705
    %v10786 = vunpack.c.l.b16 %v10706
    %v10787 = vunpack.c.l.b16 %v10707
    %v10788 = vunpack.c.l.b16 %v10708
    %v10789 = vunpack.c.l.b16 %v10709
    %v10790 = vunpack.c.l.b16 %v10710
    %v10791 = vunpack.c.l.b16 %v10711
    %v10792 = vunpack.c.l.b16 %v10712
    %v10793 = vunpack.c.l.b16 %v10713
    %v10794 = vunpack.c.l.b16 %v10714
    %v10795 = vunpack.c.l.b16 %v10715
    %v10796 = vunpack.c.l.b16 %v10716
    %v10797 = vunpack.c.l.b16 %v10717
    %v10798 = vunpack.c.l.b16 %v10718
    %v10799 = vunpack.c.l.b16 %v10719
    %v10800 = vunpack.c.l.b16 %v10720
    %v10801 = vunpack.c.l.b16 %v10721
    %v10802 = vunpack.c.l.b16 %v10722
    %v10803 = vunpack.c.l.b16 %v10723
    %v10804 = vunpack.c.l.b16 %v10724
    %v10805 = vunpack.c.l.b16 %v10725
    %v10806 = vunpack.c.l.b16 %v10726
    %v10807 = vunpack.c.l.b16 %v10727
    %v10808 = vunpack.c.l.b16 %v10728
    %v10809 = vunpack.c.l.b16 %v10729
    %v10810 = vunpack.c.l.b16 %v10730
    %v10811 = vunpack.c.l.b16 %v10731
    %v10812 = vunpack.c.l.b16 %v10732
    %v10813 = vunpack.c.l.b16 %v10733
    %v10814 = vunpack.c.l.b16 %v10734
    %v10815 = vunpack.c.l.b16 %v10735
    %v10816 = vpack.c.b16 %v10777, %v10776
    %v10817 = vpack.c.b16 %v10779, %v10778
    %v10818 = vpack.c.b16 %v10781, %v10780
    %v10819 = vpack.c.b16 %v10783, %v10782
    %v10820 = vpack.c.b16 %v10785, %v10784
    %v10821 = vpack.c.b16 %v10787, %v10786
    %v10822 = vpack.c.b16 %v10789, %v10788
    %v10823 = vpack.c.b16 %v10791, %v10790
    %v10824 = vpack.c.b16 %v10793, %v10792
    %v10825 = vpack.c.b16 %v10795, %v10794
    %v10826 = vpack.c.b16 %v10797, %v10796
    %v10827 = vpack.c.b16 %v10799, %v10798
    %v10828 = vpack.c.b16 %v10801, %v10800
    %v10829 = vpack.c.b16 %v10803, %v10802
    %v10830 = vpack.c.b16 %v10805, %v10804
    %v10831 = vpack.c.b16 %v10807, %v10806
    %v10832 = vpack.c.b16 %v10809, %v10808
    %v10833 = vpack.c.b16 %v10811, %v10810
    %v10834 = vpack.c.b16 %v10813, %v10812
    %v10835 = vpack.c.b16 %v10815, %v10814
    %v10857 = vsel %vm528, %v10694, 0
    %10859 = vmatprep.subr.bf16.mxu0 0
    %10860 = vmatpush1.bf16.msra.mxu0 %v10823
    %10861 = vmatprep.subr.bf16.mxu0 0
    %10862 = vmatpush1.bf16.msra.mxu0 %v10822
    %10863 = vmatprep.subr.bf16.mxu0 0
    %10864 = vmatpush1.bf16.msra.mxu0 %v10821
    %10865 = vmatprep.subr.bf16.mxu0 0
    %10866 = vmatpush1.bf16.msra.mxu0 %v10820
    %10867 = vmatprep.subr.bf16.mxu0 0
    %10868 = vmatpush1.bf16.msra.mxu0 %v10819
    %10869 = vmatprep.subr.bf16.mxu0 0
    %10870 = vmatpush1.bf16.msra.mxu0 %v10818
    %10871 = vmatprep.subr.bf16.mxu0 0
    %10872 = vmatpush1.bf16.msra.mxu0 %v10817
    %10873 = vmatprep.subr.bf16.mxu0 0
    %10874 = vmatpush1.bf16.msra.mxu0 %v10816
    %10875 = vmatprep.subr.bf16.mxu0 0
    %10876 = vmatpush2.bf16.msra.mxu0 %v10831
    %10877 = vmatprep.subr.bf16.mxu0 0
    %10878 = vmatpush2.bf16.msra.mxu0 %v10830
    %10879 = vmatprep.subr.bf16.mxu0 0
    %10880 = vmatpush2.bf16.msra.mxu0 %v10829
    %10881 = vmatprep.subr.bf16.mxu0 0
    %10882 = vmatpush2.bf16.msra.mxu0 %v10828
    %10883 = vmatprep.subr.bf16.mxu0 0
    %10884 = vmatpush2.bf16.msra.mxu0 %v10827
    %10885 = vmatprep.subr.bf16.mxu0 0
    %10886 = vmatpush2.bf16.msra.mxu0 %v10826
    %10887 = vmatprep.subr.bf16.mxu0 0
    %10888 = vmatpush2.bf16.msra.mxu0 %v10825
    %10889 = vmatprep.subr.bf16.mxu0 0
    %10890 = vmatpush2.bf16.msra.mxu0 %v10824
    %10891 = vmatprep.mubr.bf16.mxu0 %v10693
    %10892 = vmatmul.mubr.bf16.gmra.mxu0 %v10692
    %v10893 = vpop.f32.mrf.mxu0
    %v10894 = vadd.f32 0.0, %v10893
    %v10895 = vpop.f32.mrf.mxu0
    %v10896 = vpop.f32.mrf.mxu0
    %v10897 = vpop.f32.mrf.mxu0
    %10898 = vdwg.mxu0
    %10899 = vmatprep.subr.bf16.mxu0 0
    %10900 = vmatpush1.bf16.msra.mxu0 0
    %10901 = vmatprep.subr.bf16.mxu0 0
    %10902 = vmatpush1.bf16.msra.mxu0 0
    %10903 = vmatprep.subr.bf16.mxu0 0
    %10904 = vmatpush1.bf16.msra.mxu0 0
    %10905 = vmatprep.subr.bf16.mxu0 0
    %10906 = vmatpush1.bf16.msra.mxu0 0
    %10907 = vmatprep.subr.bf16.mxu0 0
    %10908 = vmatpush1.bf16.msra.mxu0 %v10835
    %10909 = vmatprep.subr.bf16.mxu0 0
    %10910 = vmatpush1.bf16.msra.mxu0 %v10834
    %10911 = vmatprep.subr.bf16.mxu0 0
    %10912 = vmatpush1.bf16.msra.mxu0 %v10833
    %10913 = vmatprep.subr.bf16.mxu0 0
    %10914 = vmatpush1.bf16.msra.mxu0 %v10832
    %10915 = vmatprep.subr.bf16.mxu0 0
    %10916 = vmatpush2.bf16.msra.mxu0 0
    %10917 = vmatprep.subr.bf16.mxu0 0
    %10918 = vmatpush2.bf16.msra.mxu0 0
    %10919 = vmatprep.subr.bf16.mxu0 0
    %10920 = vmatpush2.bf16.msra.mxu0 0
    %10921 = vmatprep.subr.bf16.mxu0 0
    %10922 = vmatpush2.bf16.msra.mxu0 0
    %10923 = vmatprep.subr.bf16.mxu0 0
    %10924 = vmatpush2.bf16.msra.mxu0 0
    %10925 = vmatprep.subr.bf16.mxu0 0
    %10926 = vmatpush2.bf16.msra.mxu0 0
    %10927 = vmatprep.subr.bf16.mxu0 0
    %10928 = vmatpush2.bf16.msra.mxu0 0
    %10929 = vmatprep.subr.bf16.mxu0 0
    %10930 = vmatpush2.bf16.msra.mxu0 0
    %10931 = vmatprep.mubr.bf16.mxu0 0
    %10932 = vmatmul.mubr.bf16.gmra.mxu0 %v10857
    %v10933 = vpop.f32.mrf.mxu0
    %v10934 = vadd.f32 %v10894, %v10933
    %v10935 = vpop.f32.mrf.mxu0
    %v10936 = vpop.f32.mrf.mxu0
    %v10937 = vpop.f32.mrf.mxu0
    %10938 = vdwg.mxu0
    %v10939 = vadd.f32 %v10605, %v10934
    %s10940 = scalar_lea.vmem %s53, 16
    %v10941 = vld [vmem:[%s10940] sm:$0xf]
    %v10943 = vsel %vm9037, %v10941, 0
    %10945 = vmatprep.subr.bf16.mxu0 0
    %10946 = vmatpush1.bf16.msra.mxu0 0
    %10947 = vmatprep.subr.bf16.mxu0 0
    %10948 = vmatpush1.bf16.msra.mxu0 0
    %10949 = vmatprep.subr.bf16.mxu0 0
    %10950 = vmatpush1.bf16.msra.mxu0 0
    %10951 = vmatprep.subr.bf16.mxu0 0
    %10952 = vmatpush1.bf16.msra.mxu0 0
    %10953 = vmatprep.subr.bf16.mxu0 0
    %10954 = vmatpush1.bf16.msra.mxu0 0
    %10955 = vmatprep.subr.bf16.mxu0 0
    %10956 = vmatpush1.bf16.msra.mxu0 0
    %10957 = vmatprep.subr.bf16.mxu0 0
    %10958 = vmatpush1.bf16.msra.mxu0 0
    %10959 = vmatprep.subr.bf16.mxu0 %v9606
    %10960 = vmatpush1.bf16.msra.mxu0 %v9605
    %10961 = vmatprep.subr.bf16.mxu0 0
    %10962 = vmatpush2.bf16.msra.mxu0 0
    %10963 = vmatprep.subr.bf16.mxu0 0
    %10964 = vmatpush2.bf16.msra.mxu0 0
    %10965 = vmatprep.subr.bf16.mxu0 0
    %10966 = vmatpush2.bf16.msra.mxu0 0
    %10967 = vmatprep.subr.bf16.mxu0 0
    %10968 = vmatpush2.bf16.msra.mxu0 0
    %10969 = vmatprep.subr.bf16.mxu0 0
    %10970 = vmatpush2.bf16.msra.mxu0 0
    %10971 = vmatprep.subr.bf16.mxu0 0
    %10972 = vmatpush2.bf16.msra.mxu0 0
    %10973 = vmatprep.subr.bf16.mxu0 0
    %10974 = vmatpush2.bf16.msra.mxu0 0
    %10975 = vmatprep.subr.bf16.mxu0 0
    %10976 = vmatpush2.bf16.msra.mxu0 0
    %10977 = vmatprep.mubr.bf16.mxu0 0
    %10978 = vmatmul.mubr.bf16.gmra.mxu0 %v10943
    %v10979 = vpop.f32.mrf.mxu0
    %v10980 = vadd.f32 0.0, %v10979
    %v10981 = vpop.f32.mrf.mxu0
    %v10982 = vadd.f32 0.0, %v10981
    %v10983 = vpop.f32.mrf.mxu0
    %v10984 = vpop.f32.mrf.mxu0
    %10985 = vdwg.mxu0
    %10986 = vmatprep.subr.bf16.mxu0 0
    %10987 = vmatpush1.bf16.msra.mxu0 0
    %10988 = vmatprep.subr.bf16.mxu0 0
    %10989 = vmatpush1.bf16.msra.mxu0 0
    %10990 = vmatprep.subr.bf16.mxu0 0
    %10991 = vmatpush1.bf16.msra.mxu0 0
    %10992 = vmatprep.subr.bf16.mxu0 0
    %10993 = vmatpush1.bf16.msra.mxu0 0
    %10994 = vmatprep.subr.bf16.mxu0 0
    %10995 = vmatpush1.bf16.msra.mxu0 0
    %10996 = vmatprep.subr.bf16.mxu0 0
    %10997 = vmatpush1.bf16.msra.mxu0 0
    %10998 = vmatprep.subr.bf16.mxu0 0
    %10999 = vmatpush1.bf16.msra.mxu0 0
    %11000 = vmatprep.subr.bf16.mxu0 0
    %11001 = vmatpush1.bf16.msra.mxu0 %v9607
    %11002 = vmatprep.subr.bf16.mxu0 0
    %11003 = vmatpush2.bf16.msra.mxu0 0
    %11004 = vmatprep.subr.bf16.mxu0 0
    %11005 = vmatpush2.bf16.msra.mxu0 0
    %11006 = vmatprep.subr.bf16.mxu0 0
    %11007 = vmatpush2.bf16.msra.mxu0 0
    %11008 = vmatprep.subr.bf16.mxu0 0
    %11009 = vmatpush2.bf16.msra.mxu0 0
    %11010 = vmatprep.subr.bf16.mxu0 0
    %11011 = vmatpush2.bf16.msra.mxu0 0
    %11012 = vmatprep.subr.bf16.mxu0 0
    %11013 = vmatpush2.bf16.msra.mxu0 0
    %11014 = vmatprep.subr.bf16.mxu0 0
    %11015 = vmatpush2.bf16.msra.mxu0 0
    %11016 = vmatprep.subr.bf16.mxu0 0
    %11017 = vmatpush2.bf16.msra.mxu0 0
    %11018 = vmatprep.mubr.bf16.mxu0 0
    %11019 = vmatmul.mubr.bf16.gmra.mxu0 %v10943
    %v11020 = vpop.f32.mrf.mxu0
    %v11021 = vadd.f32 0.0, %v11020
    %v11022 = vpop.f32.mrf.mxu0
    %v11023 = vpop.f32.mrf.mxu0
    %v11024 = vpop.f32.mrf.mxu0
    %11025 = vdwg.mxu0
    %v11026 = vpack.c.bf16 %v10980, %v10980
    %v11027 = vpack.c.bf16 %v10982, %v10982
    %v11028 = vpack.c.bf16 %v11021, %v11021
    %s11029 = scalar_lea.vmem %s55, 640
    %v11030 = vld [vmem:[%s11029] sm:$0xf]
    %v11031 = vld [vmem:[%s11029 + $0x4] sm:$0xf]
    %v11032 = vld [vmem:[%s11029 + $0x8] sm:$0xf]
    %v11033 = vld [vmem:[%s11029 + $0xc] sm:$0xf]
    %v11034 = vld [vmem:[%s11029 + $0x10] sm:$0xf]
    %v11035 = vld [vmem:[%s11029 + $0x14] sm:$0xf]
    %v11036 = vld [vmem:[%s11029 + $0x18] sm:$0xf]
    %v11037 = vld [vmem:[%s11029 + $0x1c] sm:$0xf]
    %v11038 = vld [vmem:[%s11029 + $0x20] sm:$0xf]
    %v11039 = vld [vmem:[%s11029 + $0x24] sm:$0xf]
    %v11040 = vld [vmem:[%s11029 + $0x28] sm:$0xf]
    %v11041 = vld [vmem:[%s11029 + $0x2c] sm:$0xf]
    %v11042 = vld [vmem:[%s11029 + $0x30] sm:$0xf]
    %v11043 = vld [vmem:[%s11029 + $0x34] sm:$0xf]
    %v11044 = vld [vmem:[%s11029 + $0x38] sm:$0xf]
    %v11045 = vld [vmem:[%s11029 + $0x3c] sm:$0xf]
    %v11046 = vld [vmem:[%s11029 + $0x40] sm:$0xf]
    %v11047 = vld [vmem:[%s11029 + $0x44] sm:$0xf]
    %v11048 = vld [vmem:[%s11029 + $0x48] sm:$0xf]
    %v11049 = vld [vmem:[%s11029 + $0x4c] sm:$0xf]
    %v11050 = vld [vmem:[%s11029 + $0x50] sm:$0xf]
    %v11051 = vld [vmem:[%s11029 + $0x54] sm:$0xf]
    %v11052 = vld [vmem:[%s11029 + $0x58] sm:$0xf]
    %v11053 = vld [vmem:[%s11029 + $0x5c] sm:$0xf]
    %v11054 = vld [vmem:[%s11029 + $0x60] sm:$0xf]
    %v11055 = vld [vmem:[%s11029 + $0x64] sm:$0xf]
    %v11056 = vld [vmem:[%s11029 + $0x68] sm:$0xf]
    %v11057 = vld [vmem:[%s11029 + $0x6c] sm:$0xf]
    %v11058 = vld [vmem:[%s11029 + $0x70] sm:$0xf]
    %v11059 = vld [vmem:[%s11029 + $0x74] sm:$0xf]
    %v11060 = vld [vmem:[%s11029 + $0x78] sm:$0xf]
    %v11061 = vld [vmem:[%s11029 + $0x7c] sm:$0xf]
    %v11062 = vld [vmem:[%s11029 + $0x80] sm:$0xf]
    %v11063 = vld [vmem:[%s11029 + $0x84] sm:$0xf]
    %v11064 = vld [vmem:[%s11029 + $0x88] sm:$0xf]
    %v11065 = vld [vmem:[%s11029 + $0x8c] sm:$0xf]
    %v11066 = vld [vmem:[%s11029 + $0x90] sm:$0xf]
    %v11067 = vld [vmem:[%s11029 + $0x94] sm:$0xf]
    %v11068 = vld [vmem:[%s11029 + $0x98] sm:$0xf]
    %v11069 = vld [vmem:[%s11029 + $0x9c] sm:$0xf]
    %v11110 = vunpack.c.l.b16 %v11030
    %v11111 = vunpack.c.l.b16 %v11031
    %v11112 = vunpack.c.l.b16 %v11032
    %v11113 = vunpack.c.l.b16 %v11033
    %v11114 = vunpack.c.l.b16 %v11034
    %v11115 = vunpack.c.l.b16 %v11035
    %v11116 = vunpack.c.l.b16 %v11036
    %v11117 = vunpack.c.l.b16 %v11037
    %v11118 = vunpack.c.l.b16 %v11038
    %v11119 = vunpack.c.l.b16 %v11039
    %v11120 = vunpack.c.l.b16 %v11040
    %v11121 = vunpack.c.l.b16 %v11041
    %v11122 = vunpack.c.l.b16 %v11042
    %v11123 = vunpack.c.l.b16 %v11043
    %v11124 = vunpack.c.l.b16 %v11044
    %v11125 = vunpack.c.l.b16 %v11045
    %v11126 = vunpack.c.l.b16 %v11046
    %v11127 = vunpack.c.l.b16 %v11047
    %v11128 = vunpack.c.l.b16 %v11048
    %v11129 = vunpack.c.l.b16 %v11049
    %v11130 = vunpack.c.l.b16 %v11050
    %v11131 = vunpack.c.l.b16 %v11051
    %v11132 = vunpack.c.l.b16 %v11052
    %v11133 = vunpack.c.l.b16 %v11053
    %v11134 = vunpack.c.l.b16 %v11054
    %v11135 = vunpack.c.l.b16 %v11055
    %v11136 = vunpack.c.l.b16 %v11056
    %v11137 = vunpack.c.l.b16 %v11057
    %v11138 = vunpack.c.l.b16 %v11058
    %v11139 = vunpack.c.l.b16 %v11059
    %v11140 = vunpack.c.l.b16 %v11060
    %v11141 = vunpack.c.l.b16 %v11061
    %v11142 = vunpack.c.l.b16 %v11062
    %v11143 = vunpack.c.l.b16 %v11063
    %v11144 = vunpack.c.l.b16 %v11064
    %v11145 = vunpack.c.l.b16 %v11065
    %v11146 = vunpack.c.l.b16 %v11066
    %v11147 = vunpack.c.l.b16 %v11067
    %v11148 = vunpack.c.l.b16 %v11068
    %v11149 = vunpack.c.l.b16 %v11069
    %v11150 = vpack.c.b16 %v11111, %v11110
    %v11151 = vpack.c.b16 %v11113, %v11112
    %v11152 = vpack.c.b16 %v11115, %v11114
    %v11153 = vpack.c.b16 %v11117, %v11116
    %v11154 = vpack.c.b16 %v11119, %v11118
    %v11155 = vpack.c.b16 %v11121, %v11120
    %v11156 = vpack.c.b16 %v11123, %v11122
    %v11157 = vpack.c.b16 %v11125, %v11124
    %v11158 = vpack.c.b16 %v11127, %v11126
    %v11159 = vpack.c.b16 %v11129, %v11128
    %v11160 = vpack.c.b16 %v11131, %v11130
    %v11161 = vpack.c.b16 %v11133, %v11132
    %v11162 = vpack.c.b16 %v11135, %v11134
    %v11163 = vpack.c.b16 %v11137, %v11136
    %v11164 = vpack.c.b16 %v11139, %v11138
    %v11165 = vpack.c.b16 %v11141, %v11140
    %v11166 = vpack.c.b16 %v11143, %v11142
    %v11167 = vpack.c.b16 %v11145, %v11144
    %v11168 = vpack.c.b16 %v11147, %v11146
    %v11169 = vpack.c.b16 %v11149, %v11148
    %v11191 = vsel %vm528, %v11028, 0
    %11193 = vmatprep.subr.bf16.mxu0 0
    %11194 = vmatpush1.bf16.msra.mxu0 %v11157
    %11195 = vmatprep.subr.bf16.mxu0 0
    %11196 = vmatpush1.bf16.msra.mxu0 %v11156
    %11197 = vmatprep.subr.bf16.mxu0 0
    %11198 = vmatpush1.bf16.msra.mxu0 %v11155
    %11199 = vmatprep.subr.bf16.mxu0 0
    %11200 = vmatpush1.bf16.msra.mxu0 %v11154
    %11201 = vmatprep.subr.bf16.mxu0 0
    %11202 = vmatpush1.bf16.msra.mxu0 %v11153
    %11203 = vmatprep.subr.bf16.mxu0 0
    %11204 = vmatpush1.bf16.msra.mxu0 %v11152
    %11205 = vmatprep.subr.bf16.mxu0 0
    %11206 = vmatpush1.bf16.msra.mxu0 %v11151
    %11207 = vmatprep.subr.bf16.mxu0 0
    %11208 = vmatpush1.bf16.msra.mxu0 %v11150
    %11209 = vmatprep.subr.bf16.mxu0 0
    %11210 = vmatpush2.bf16.msra.mxu0 %v11165
    %11211 = vmatprep.subr.bf16.mxu0 0
    %11212 = vmatpush2.bf16.msra.mxu0 %v11164
    %11213 = vmatprep.subr.bf16.mxu0 0
    %11214 = vmatpush2.bf16.msra.mxu0 %v11163
    %11215 = vmatprep.subr.bf16.mxu0 0
    %11216 = vmatpush2.bf16.msra.mxu0 %v11162
    %11217 = vmatprep.subr.bf16.mxu0 0
    %11218 = vmatpush2.bf16.msra.mxu0 %v11161
    %11219 = vmatprep.subr.bf16.mxu0 0
    %11220 = vmatpush2.bf16.msra.mxu0 %v11160
    %11221 = vmatprep.subr.bf16.mxu0 0
    %11222 = vmatpush2.bf16.msra.mxu0 %v11159
    %11223 = vmatprep.subr.bf16.mxu0 0
    %11224 = vmatpush2.bf16.msra.mxu0 %v11158
    %11225 = vmatprep.mubr.bf16.mxu0 %v11027
    %11226 = vmatmul.mubr.bf16.gmra.mxu0 %v11026
    %v11227 = vpop.f32.mrf.mxu0
    %v11228 = vadd.f32 0.0, %v11227
    %v11229 = vpop.f32.mrf.mxu0
    %v11230 = vpop.f32.mrf.mxu0
    %v11231 = vpop.f32.mrf.mxu0
    %11232 = vdwg.mxu0
    %11233 = vmatprep.subr.bf16.mxu0 0
    %11234 = vmatpush1.bf16.msra.mxu0 0
    %11235 = vmatprep.subr.bf16.mxu0 0
    %11236 = vmatpush1.bf16.msra.mxu0 0
    %11237 = vmatprep.subr.bf16.mxu0 0
    %11238 = vmatpush1.bf16.msra.mxu0 0
    %11239 = vmatprep.subr.bf16.mxu0 0
    %11240 = vmatpush1.bf16.msra.mxu0 0
    %11241 = vmatprep.subr.bf16.mxu0 0
    %11242 = vmatpush1.bf16.msra.mxu0 %v11169
    %11243 = vmatprep.subr.bf16.mxu0 0
    %11244 = vmatpush1.bf16.msra.mxu0 %v11168
    %11245 = vmatprep.subr.bf16.mxu0 0
    %11246 = vmatpush1.bf16.msra.mxu0 %v11167
    %11247 = vmatprep.subr.bf16.mxu0 0
    %11248 = vmatpush1.bf16.msra.mxu0 %v11166
    %11249 = vmatprep.subr.bf16.mxu0 0
    %11250 = vmatpush2.bf16.msra.mxu0 0
    %11251 = vmatprep.subr.bf16.mxu0 0
    %11252 = vmatpush2.bf16.msra.mxu0 0
    %11253 = vmatprep.subr.bf16.mxu0 0
    %11254 = vmatpush2.bf16.msra.mxu0 0
    %11255 = vmatprep.subr.bf16.mxu0 0
    %11256 = vmatpush2.bf16.msra.mxu0 0
    %11257 = vmatprep.subr.bf16.mxu0 0
    %11258 = vmatpush2.bf16.msra.mxu0 0
    %11259 = vmatprep.subr.bf16.mxu0 0
    %11260 = vmatpush2.bf16.msra.mxu0 0
    %11261 = vmatprep.subr.bf16.mxu0 0
    %11262 = vmatpush2.bf16.msra.mxu0 0
    %11263 = vmatprep.subr.bf16.mxu0 0
    %11264 = vmatpush2.bf16.msra.mxu0 0
    %11265 = vmatprep.mubr.bf16.mxu0 0
    %11266 = vmatmul.mubr.bf16.gmra.mxu0 %v11191
    %v11267 = vpop.f32.mrf.mxu0
    %v11268 = vadd.f32 %v11228, %v11267
    %v11269 = vpop.f32.mrf.mxu0
    %v11270 = vpop.f32.mrf.mxu0
    %v11271 = vpop.f32.mrf.mxu0
    %11272 = vdwg.mxu0
    %v11273 = vadd.f32 %v10939, %v11268
    %v11274 = vld [vmem:[%s57] sm:$0x1]
    %v11276 = vlaneseq
    %v11277 = vshrl.u32 %v11276, 7
    %v11278 = vsub.s32 0, %v11277
    %v11279 = vrot.slane %v11274, %v11278
    %v11281 = vadd.f32 %v11273, %v11279
    %v11282 = vld [vmem:[%s63] sm:$0xff]
    %v11283 = vld [vmem:[%s63 + $0x8] sm:$0xff]
    %v11284 = vld [vmem:[%s63 + $0x10] sm:$0xff]
    %v11285 = vld [vmem:[%s63 + $0x18] sm:$0xff]
    %v11286 = vld [vmem:[%s63 + $0x20] sm:$0xff]
    %v11287 = vld [vmem:[%s63 + $0x28] sm:$0xff]
    %v11288 = vld [vmem:[%s63 + $0x30] sm:$0xff]
    %v11289 = vld [vmem:[%s63 + $0x38] sm:$0xff]
    %v11290 = vld [vmem:[%s63 + $0x40] sm:$0xff]
    %v11291 = vld [vmem:[%s63 + $0x48] sm:$0xff]
    %v11292 = vld [vmem:[%s63 + $0x50] sm:$0xff]
    %v11293 = vld [vmem:[%s63 + $0x58] sm:$0xff]
    %v11294 = vld [vmem:[%s63 + $0x60] sm:$0xff]
    %v11295 = vld [vmem:[%s63 + $0x68] sm:$0xff]
    %v11296 = vld [vmem:[%s63 + $0x70] sm:$0xff]
    %v11297 = vld [vmem:[%s63 + $0x78] sm:$0xff]
    %v11298 = vld [vmem:[%s65] sm:$0xff]
    %v11299 = vld [vmem:[%s65 + $0x8] sm:$0xff]
    %v11300 = vld [vmem:[%s65 + $0x10] sm:$0xff]
    %v11301 = vld [vmem:[%s65 + $0x18] sm:$0xff]
    %v11302 = vrot.slane %v11281, 4
    %v11303 = vadd.f32 %v11281, %v11302
    %v11304 = vrot.slane %v11303, 2
    %v11305 = vadd.f32 %v11303, %v11304
    %v11306 = vrot.slane %v11305, 1
    %v11307 = vadd.f32 %v11305, %v11306
    %11308 = vmatprep.subr.mxu0 0.0
    %11309 = vmatpush1.msra.mxu0 %v11297
    %11310 = vmatprep.subr.mxu0 0.0
    %11311 = vmatpush1.msra.mxu0 %v11296
    %11312 = vmatprep.subr.mxu0 0.0
    %11313 = vmatpush1.msra.mxu0 %v11295
    %11314 = vmatprep.subr.mxu0 0.0
    %11315 = vmatpush1.msra.mxu0 %v11294
    %11316 = vmatprep.subr.mxu0 0.0
    %11317 = vmatpush1.msra.mxu0 %v11293
    %11318 = vmatprep.subr.mxu0 0.0
    %11319 = vmatpush1.msra.mxu0 %v11292
    %11320 = vmatprep.subr.mxu0 0.0
    %11321 = vmatpush1.msra.mxu0 %v11291
    %11322 = vmatprep.subr.mxu0 0.0
    %11323 = vmatpush1.msra.mxu0 %v11290
    %11324 = vmatprep.subr.mxu0 0.0
    %11325 = vmatpush1.msra.mxu0 %v11289
    %11326 = vmatprep.subr.mxu0 0.0
    %11327 = vmatpush1.msra.mxu0 %v11288
    %11328 = vmatprep.subr.mxu0 0.0
    %11329 = vmatpush1.msra.mxu0 %v11287
    %11330 = vmatprep.subr.mxu0 0.0
    %11331 = vmatpush1.msra.mxu0 %v11286
    %11332 = vmatprep.subr.mxu0 0.0
    %11333 = vmatpush1.msra.mxu0 %v11285
    %11334 = vmatprep.subr.mxu0 0.0
    %11335 = vmatpush1.msra.mxu0 %v11284
    %11336 = vmatprep.subr.mxu0 0.0
    %11337 = vmatpush1.msra.mxu0 %v11283
    %11338 = vmatprep.subr.mxu0 0.0
    %11339 = vmatpush1.msra.mxu0 %v11282
    %11340 = vmatprep.subr.mxu0 0.0
    %11341 = vmatpush2.msra.mxu0 0.0
    %11342 = vmatprep.subr.mxu0 0.0
    %11343 = vmatpush2.msra.mxu0 0.0
    %11344 = vmatprep.subr.mxu0 0.0
    %11345 = vmatpush2.msra.mxu0 0.0
    %11346 = vmatprep.subr.mxu0 0.0
    %11347 = vmatpush2.msra.mxu0 0.0
    %11348 = vmatprep.subr.mxu0 0.0
    %11349 = vmatpush2.msra.mxu0 0.0
    %11350 = vmatprep.subr.mxu0 0.0
    %11351 = vmatpush2.msra.mxu0 0.0
    %11352 = vmatprep.subr.mxu0 0.0
    %11353 = vmatpush2.msra.mxu0 0.0
    %11354 = vmatprep.subr.mxu0 0.0
    %11355 = vmatpush2.msra.mxu0 0.0
    %11356 = vmatprep.subr.mxu0 0.0
    %11357 = vmatpush2.msra.mxu0 0.0
    %11358 = vmatprep.subr.mxu0 0.0
    %11359 = vmatpush2.msra.mxu0 0.0
    %11360 = vmatprep.subr.mxu0 0.0
    %11361 = vmatpush2.msra.mxu0 0.0
    %11362 = vmatprep.subr.mxu0 0.0
    %11363 = vmatpush2.msra.mxu0 0.0
    %11364 = vmatprep.subr.mxu0 0.0
    %11365 = vmatpush2.msra.mxu0 0.0
    %11366 = vmatprep.subr.mxu0 0.0
    %11367 = vmatpush2.msra.mxu0 0.0
    %11368 = vmatprep.subr.mxu0 0.0
    %11369 = vmatpush2.msra.mxu0 0.0
    %11370 = vmatprep.subr.mxu0 0.0
    %11371 = vmatpush2.msra.mxu0 0.0
    %11372 = vmatprep.mubr.f32.mxu0 0.0
    %11373 = vmatmul.mubr.f32.gmra.mxu0 %v11307
    %v11374 = vpop.f32.mrf.mxu0
    %v11375 = vadd.f32 0.0, %v11374
    %v11376 = vpop.f32.mrf.mxu0
    %11377 = vdwg.mxu0
    %v11379 = vsel %vm7215, %v11375, 0
    %11381 = vmatprep.subr.mxu0 0.0
    %11382 = vmatpush1.msra.mxu0 0.0
    %11383 = vmatprep.subr.mxu0 0.0
    %11384 = vmatpush1.msra.mxu0 0.0
    %11385 = vmatprep.subr.mxu0 0.0
    %11386 = vmatpush1.msra.mxu0 0.0
    %11387 = vmatprep.subr.mxu0 0.0
    %11388 = vmatpush1.msra.mxu0 0.0
    %11389 = vmatprep.subr.mxu0 0.0
    %11390 = vmatpush1.msra.mxu0 0.0
    %11391 = vmatprep.subr.mxu0 0.0
    %11392 = vmatpush1.msra.mxu0 0.0
    %11393 = vmatprep.subr.mxu0 0.0
    %11394 = vmatpush1.msra.mxu0 0.0
    %11395 = vmatprep.subr.mxu0 0.0
    %11396 = vmatpush1.msra.mxu0 0.0
    %11397 = vmatprep.subr.mxu0 0.0
    %11398 = vmatpush1.msra.mxu0 0.0
    %11399 = vmatprep.subr.mxu0 0.0
    %11400 = vmatpush1.msra.mxu0 0.0
    %11401 = vmatprep.subr.mxu0 0.0
    %11402 = vmatpush1.msra.mxu0 0.0
    %11403 = vmatprep.subr.mxu0 0.0
    %11404 = vmatpush1.msra.mxu0 0.0
    %11405 = vmatprep.subr.mxu0 0.0
    %11406 = vmatpush1.msra.mxu0 %v11301
    %11407 = vmatprep.subr.mxu0 0.0
    %11408 = vmatpush1.msra.mxu0 %v11300
    %11409 = vmatprep.subr.mxu0 0.0
    %11410 = vmatpush1.msra.mxu0 %v11299
    %11411 = vmatprep.subr.mxu0 0.0
    %11412 = vmatpush1.msra.mxu0 %v11298
    %11413 = vmatprep.subr.mxu0 0.0
    %11414 = vmatpush2.msra.mxu0 0.0
    %11415 = vmatprep.subr.mxu0 0.0
    %11416 = vmatpush2.msra.mxu0 0.0
    %11417 = vmatprep.subr.mxu0 0.0
    %11418 = vmatpush2.msra.mxu0 0.0
    %11419 = vmatprep.subr.mxu0 0.0
    %11420 = vmatpush2.msra.mxu0 0.0
    %11421 = vmatprep.subr.mxu0 0.0
    %11422 = vmatpush2.msra.mxu0 0.0
    %11423 = vmatprep.subr.mxu0 0.0
    %11424 = vmatpush2.msra.mxu0 0.0
    %11425 = vmatprep.subr.mxu0 0.0
    %11426 = vmatpush2.msra.mxu0 0.0
    %11427 = vmatprep.subr.mxu0 0.0
    %11428 = vmatpush2.msra.mxu0 0.0
    %11429 = vmatprep.subr.mxu0 0.0
    %11430 = vmatpush2.msra.mxu0 0.0
    %11431 = vmatprep.subr.mxu0 0.0
    %11432 = vmatpush2.msra.mxu0 0.0
    %11433 = vmatprep.subr.mxu0 0.0
    %11434 = vmatpush2.msra.mxu0 0.0
    %11435 = vmatprep.subr.mxu0 0.0
    %11436 = vmatpush2.msra.mxu0 0.0
    %11437 = vmatprep.subr.mxu0 0.0
    %11438 = vmatpush2.msra.mxu0 0.0
    %11439 = vmatprep.subr.mxu0 0.0
    %11440 = vmatpush2.msra.mxu0 0.0
    %11441 = vmatprep.subr.mxu0 0.0
    %11442 = vmatpush2.msra.mxu0 0.0
    %11443 = vmatprep.subr.mxu0 0.0
    %11444 = vmatpush2.msra.mxu0 0.0
    %11445 = vmatprep.mubr.f32.mxu0 0.0
    %11446 = vmatmul.mubr.f32.gmra.mxu0 %v11379
    %v11447 = vpop.f32.mrf.mxu0
    %v11448 = vadd.f32 0.0, %v11447
    %v11449 = vpop.f32.mrf.mxu0
    %11450 = vdwg.mxu0
    %v11451 = vlaneseq
    %v11452 = vshrl.u32 %v11451, 7
    %v11453 = vsub.s32 0, %v11452
    %v11454 = vrot.slane %v11448, %v11453
    %v11455 = vsub.f32 %v11281, %v11454
    %v11456 = vmul.f32 %v11455, %v11455
    %v11457 = vrot.slane %v11456, 4
    %v11458 = vadd.f32 %v11456, %v11457
    %v11459 = vrot.slane %v11458, 2
    %v11460 = vadd.f32 %v11458, %v11459
    %v11461 = vrot.slane %v11460, 1
    %v11462 = vadd.f32 %v11460, %v11461
    %v11463 = vld [vmem:[%s59] sm:$0x1]
    %11464 = vmatprep.subr.mxu0 0.0
    %11465 = vmatpush1.msra.mxu0 %v11297
    %11466 = vmatprep.subr.mxu0 0.0
    %11467 = vmatpush1.msra.mxu0 %v11296
    %11468 = vmatprep.subr.mxu0 0.0
    %11469 = vmatpush1.msra.mxu0 %v11295
    %11470 = vmatprep.subr.mxu0 0.0
    %11471 = vmatpush1.msra.mxu0 %v11294
    %11472 = vmatprep.subr.mxu0 0.0
    %11473 = vmatpush1.msra.mxu0 %v11293
    %11474 = vmatprep.subr.mxu0 0.0
    %11475 = vmatpush1.msra.mxu0 %v11292
    %11476 = vmatprep.subr.mxu0 0.0
    %11477 = vmatpush1.msra.mxu0 %v11291
    %11478 = vmatprep.subr.mxu0 0.0
    %11479 = vmatpush1.msra.mxu0 %v11290
    %11480 = vmatprep.subr.mxu0 0.0
    %11481 = vmatpush1.msra.mxu0 %v11289
    %11482 = vmatprep.subr.mxu0 0.0
    %11483 = vmatpush1.msra.mxu0 %v11288
    %11484 = vmatprep.subr.mxu0 0.0
    %11485 = vmatpush1.msra.mxu0 %v11287
    %11486 = vmatprep.subr.mxu0 0.0
    %11487 = vmatpush1.msra.mxu0 %v11286
    %11488 = vmatprep.subr.mxu0 0.0
    %11489 = vmatpush1.msra.mxu0 %v11285
    %11490 = vmatprep.subr.mxu0 0.0
    %11491 = vmatpush1.msra.mxu0 %v11284
    %11492 = vmatprep.subr.mxu0 0.0
    %11493 = vmatpush1.msra.mxu0 %v11283
    %11494 = vmatprep.subr.mxu0 0.0
    %11495 = vmatpush1.msra.mxu0 %v11282
    %11496 = vmatprep.subr.mxu0 0.0
    %11497 = vmatpush2.msra.mxu0 0.0
    %11498 = vmatprep.subr.mxu0 0.0
    %11499 = vmatpush2.msra.mxu0 0.0
    %11500 = vmatprep.subr.mxu0 0.0
    %11501 = vmatpush2.msra.mxu0 0.0
    %11502 = vmatprep.subr.mxu0 0.0
    %11503 = vmatpush2.msra.mxu0 0.0
    %11504 = vmatprep.subr.mxu0 0.0
    %11505 = vmatpush2.msra.mxu0 0.0
    %11506 = vmatprep.subr.mxu0 0.0
    %11507 = vmatpush2.msra.mxu0 0.0
    %11508 = vmatprep.subr.mxu0 0.0
    %11509 = vmatpush2.msra.mxu0 0.0
    %11510 = vmatprep.subr.mxu0 0.0
    %11511 = vmatpush2.msra.mxu0 0.0
    %11512 = vmatprep.subr.mxu0 0.0
    %11513 = vmatpush2.msra.mxu0 0.0
    %11514 = vmatprep.subr.mxu0 0.0
    %11515 = vmatpush2.msra.mxu0 0.0
    %11516 = vmatprep.subr.mxu0 0.0
    %11517 = vmatpush2.msra.mxu0 0.0
    %11518 = vmatprep.subr.mxu0 0.0
    %11519 = vmatpush2.msra.mxu0 0.0
    %11520 = vmatprep.subr.mxu0 0.0
    %11521 = vmatpush2.msra.mxu0 0.0
    %11522 = vmatprep.subr.mxu0 0.0
    %11523 = vmatpush2.msra.mxu0 0.0
    %11524 = vmatprep.subr.mxu0 0.0
    %11525 = vmatpush2.msra.mxu0 0.0
    %11526 = vmatprep.subr.mxu0 0.0
    %11527 = vmatpush2.msra.mxu0 0.0
    %11528 = vmatprep.mubr.f32.mxu0 0.0
    %11529 = vmatmul.mubr.f32.gmra.mxu0 %v11462
    %v11530 = vpop.f32.mrf.mxu0
    %v11531 = vadd.f32 1e-05, %v11530
    %v11532 = vpop.f32.mrf.mxu0
    %11533 = vdwg.mxu0
    %v11534 = vrsqrt.pop %v11531
    %v11535 = vmul.f32 %v11463, %v11534
    %v11537 = vsel %vm7215, %v11535, 0
    %11539 = vmatprep.subr.mxu0 0.0
    %11540 = vmatpush1.msra.mxu0 0.0
    %11541 = vmatprep.subr.mxu0 0.0
    %11542 = vmatpush1.msra.mxu0 0.0
    %11543 = vmatprep.subr.mxu0 0.0
    %11544 = vmatpush1.msra.mxu0 0.0
    %11545 = vmatprep.subr.mxu0 0.0
    %11546 = vmatpush1.msra.mxu0 0.0
    %11547 = vmatprep.subr.mxu0 0.0
    %11548 = vmatpush1.msra.mxu0 0.0
    %11549 = vmatprep.subr.mxu0 0.0
    %11550 = vmatpush1.msra.mxu0 0.0
    %11551 = vmatprep.subr.mxu0 0.0
    %11552 = vmatpush1.msra.mxu0 0.0
    %11553 = vmatprep.subr.mxu0 0.0
    %11554 = vmatpush1.msra.mxu0 0.0
    %11555 = vmatprep.subr.mxu0 0.0
    %11556 = vmatpush1.msra.mxu0 0.0
    %11557 = vmatprep.subr.mxu0 0.0
    %11558 = vmatpush1.msra.mxu0 0.0
    %11559 = vmatprep.subr.mxu0 0.0
    %11560 = vmatpush1.msra.mxu0 0.0
    %11561 = vmatprep.subr.mxu0 0.0
    %11562 = vmatpush1.msra.mxu0 0.0
    %11563 = vmatprep.subr.mxu0 0.0
    %11564 = vmatpush1.msra.mxu0 %v11301
    %11565 = vmatprep.subr.mxu0 0.0
    %11566 = vmatpush1.msra.mxu0 %v11300
    %11567 = vmatprep.subr.mxu0 0.0
    %11568 = vmatpush1.msra.mxu0 %v11299
    %11569 = vmatprep.subr.mxu0 0.0
    %11570 = vmatpush1.msra.mxu0 %v11298
    %11571 = vmatprep.subr.mxu0 0.0
    %11572 = vmatpush2.msra.mxu0 0.0
    %11573 = vmatprep.subr.mxu0 0.0
    %11574 = vmatpush2.msra.mxu0 0.0
    %11575 = vmatprep.subr.mxu0 0.0
    %11576 = vmatpush2.msra.mxu0 0.0
    %11577 = vmatprep.subr.mxu0 0.0
    %11578 = vmatpush2.msra.mxu0 0.0
    %11579 = vmatprep.subr.mxu0 0.0
    %11580 = vmatpush2.msra.mxu0 0.0
    %11581 = vmatprep.subr.mxu0 0.0
    %11582 = vmatpush2.msra.mxu0 0.0
    %11583 = vmatprep.subr.mxu0 0.0
    %11584 = vmatpush2.msra.mxu0 0.0
    %11585 = vmatprep.subr.mxu0 0.0
    %11586 = vmatpush2.msra.mxu0 0.0
    %11587 = vmatprep.subr.mxu0 0.0
    %11588 = vmatpush2.msra.mxu0 0.0
    %11589 = vmatprep.subr.mxu0 0.0
    %11590 = vmatpush2.msra.mxu0 0.0
    %11591 = vmatprep.subr.mxu0 0.0
    %11592 = vmatpush2.msra.mxu0 0.0
    %11593 = vmatprep.subr.mxu0 0.0
    %11594 = vmatpush2.msra.mxu0 0.0
    %11595 = vmatprep.subr.mxu0 0.0
    %11596 = vmatpush2.msra.mxu0 0.0
    %11597 = vmatprep.subr.mxu0 0.0
    %11598 = vmatpush2.msra.mxu0 0.0
    %11599 = vmatprep.subr.mxu0 0.0
    %11600 = vmatpush2.msra.mxu0 0.0
    %11601 = vmatprep.subr.mxu0 0.0
    %11602 = vmatpush2.msra.mxu0 0.0
    %11603 = vmatprep.mubr.f32.mxu0 0.0
    %11604 = vmatmul.mubr.f32.gmra.mxu0 %v11537
    %v11605 = vpop.f32.mrf.mxu0
    %v11606 = vadd.f32 0.0, %v11605
    %v11607 = vpop.f32.mrf.mxu0
    %11608 = vdwg.mxu0
    %v11609 = vld [vmem:[%s61] sm:$0x1]
    %v11611 = vsel %vm7215, %v11609, 0
    %11613 = vmatprep.subr.mxu0 0.0
    %11614 = vmatpush1.msra.mxu0 0.0
    %11615 = vmatprep.subr.mxu0 0.0
    %11616 = vmatpush1.msra.mxu0 0.0
    %11617 = vmatprep.subr.mxu0 0.0
    %11618 = vmatpush1.msra.mxu0 0.0
    %11619 = vmatprep.subr.mxu0 0.0
    %11620 = vmatpush1.msra.mxu0 0.0
    %11621 = vmatprep.subr.mxu0 0.0
    %11622 = vmatpush1.msra.mxu0 0.0
    %11623 = vmatprep.subr.mxu0 0.0
    %11624 = vmatpush1.msra.mxu0 0.0
    %11625 = vmatprep.subr.mxu0 0.0
    %11626 = vmatpush1.msra.mxu0 0.0
    %11627 = vmatprep.subr.mxu0 0.0
    %11628 = vmatpush1.msra.mxu0 0.0
    %11629 = vmatprep.subr.mxu0 0.0
    %11630 = vmatpush1.msra.mxu0 0.0
    %11631 = vmatprep.subr.mxu0 0.0
    %11632 = vmatpush1.msra.mxu0 0.0
    %11633 = vmatprep.subr.mxu0 0.0
    %11634 = vmatpush1.msra.mxu0 0.0
    %11635 = vmatprep.subr.mxu0 0.0
    %11636 = vmatpush1.msra.mxu0 0.0
    %11637 = vmatprep.subr.mxu0 0.0
    %11638 = vmatpush1.msra.mxu0 %v11301
    %11639 = vmatprep.subr.mxu0 0.0
    %11640 = vmatpush1.msra.mxu0 %v11300
    %11641 = vmatprep.subr.mxu0 0.0
    %11642 = vmatpush1.msra.mxu0 %v11299
    %11643 = vmatprep.subr.mxu0 0.0
    %11644 = vmatpush1.msra.mxu0 %v11298
    %11645 = vmatprep.subr.mxu0 0.0
    %11646 = vmatpush2.msra.mxu0 0.0
    %11647 = vmatprep.subr.mxu0 0.0
    %11648 = vmatpush2.msra.mxu0 0.0
    %11649 = vmatprep.subr.mxu0 0.0
    %11650 = vmatpush2.msra.mxu0 0.0
    %11651 = vmatprep.subr.mxu0 0.0
    %11652 = vmatpush2.msra.mxu0 0.0
    %11653 = vmatprep.subr.mxu0 0.0
    %11654 = vmatpush2.msra.mxu0 0.0
    %11655 = vmatprep.subr.mxu0 0.0
    %11656 = vmatpush2.msra.mxu0 0.0
    %11657 = vmatprep.subr.mxu0 0.0
    %11658 = vmatpush2.msra.mxu0 0.0
    %11659 = vmatprep.subr.mxu0 0.0
    %11660 = vmatpush2.msra.mxu0 0.0
    %11661 = vmatprep.subr.mxu0 0.0
    %11662 = vmatpush2.msra.mxu0 0.0
    %11663 = vmatprep.subr.mxu0 0.0
    %11664 = vmatpush2.msra.mxu0 0.0
    %11665 = vmatprep.subr.mxu0 0.0
    %11666 = vmatpush2.msra.mxu0 0.0
    %11667 = vmatprep.subr.mxu0 0.0
    %11668 = vmatpush2.msra.mxu0 0.0
    %11669 = vmatprep.subr.mxu0 0.0
    %11670 = vmatpush2.msra.mxu0 0.0
    %11671 = vmatprep.subr.mxu0 0.0
    %11672 = vmatpush2.msra.mxu0 0.0
    %11673 = vmatprep.subr.mxu0 0.0
    %11674 = vmatpush2.msra.mxu0 0.0
    %11675 = vmatprep.subr.mxu0 0.0
    %11676 = vmatpush2.msra.mxu0 0.0
    %11677 = vmatprep.mubr.f32.mxu0 0.0
    %11678 = vmatmul.mubr.f32.gmra.mxu0 %v11611
    %v11679 = vpop.f32.mrf.mxu0
    %v11680 = vadd.f32 0.0, %v11679
    %v11681 = vpop.f32.mrf.mxu0
    %11682 = vdwg.mxu0
    %v11683 = vlaneseq
    %v11684 = vshrl.u32 %v11683, 7
    %v11685 = vsub.s32 0, %v11684
    %v11686 = vrot.slane %v11606, %v11685
    %v11687 = vmul.f32 %v11455, %v11686
    %v11688 = vlaneseq
    %v11689 = vshrl.u32 %v11688, 7
    %v11690 = vsub.s32 0, %v11689
    %v11691 = vrot.slane %v11680, %v11690
    %v11692 = vadd.f32 %v11687, %v11691
    %v11693 = vmax.f32 %v11692, 0.0
    %v11694 = vld [vmem:[%s67] sm:$0x3]
    %v11696 = vsel %vm6603, %v11694, 0
    %11698 = vmatprep.subr.mxu0 0.0
    %11699 = vmatpush1.msra.mxu0 0.0
    %11700 = vmatprep.subr.mxu0 0.0
    %11701 = vmatpush1.msra.mxu0 0.0
    %11702 = vmatprep.subr.mxu0 0.0
    %11703 = vmatpush1.msra.mxu0 0.0
    %11704 = vmatprep.subr.mxu0 0.0
    %11705 = vmatpush1.msra.mxu0 0.0
    %11706 = vmatprep.subr.mxu0 0.0
    %11707 = vmatpush1.msra.mxu0 0.0
    %11708 = vmatprep.subr.mxu0 0.0
    %11709 = vmatpush1.msra.mxu0 0.0
    %11710 = vmatprep.subr.mxu0 0.0
    %11711 = vmatpush1.msra.mxu0 0.0
    %11712 = vmatprep.subr.mxu0 0.0
    %11713 = vmatpush1.msra.mxu0 0.0
    %11714 = vmatprep.subr.mxu0 0.0
    %11715 = vmatpush1.msra.mxu0 0.0
    %11716 = vmatprep.subr.mxu0 0.0
    %11717 = vmatpush1.msra.mxu0 0.0
    %11718 = vmatprep.subr.mxu0 0.0
    %11719 = vmatpush1.msra.mxu0 0.0
    %11720 = vmatprep.subr.mxu0 0.0
    %11721 = vmatpush1.msra.mxu0 0.0
    %11722 = vmatprep.subr.mxu0 0.0
    %11723 = vmatpush1.msra.mxu0 0.0
    %11724 = vmatprep.subr.mxu0 0.0
    %11725 = vmatpush1.msra.mxu0 0.0
    %11726 = vmatprep.subr.mxu0 0.0
    %11727 = vmatpush1.msra.mxu0 0.0
    %11728 = vmatprep.subr.mxu0 0.0
    %11729 = vmatpush1.msra.mxu0 %v11693
    %11730 = vmatprep.subr.mxu0 0.0
    %11731 = vmatpush2.msra.mxu0 0.0
    %11732 = vmatprep.subr.mxu0 0.0
    %11733 = vmatpush2.msra.mxu0 0.0
    %11734 = vmatprep.subr.mxu0 0.0
    %11735 = vmatpush2.msra.mxu0 0.0
    %11736 = vmatprep.subr.mxu0 0.0
    %11737 = vmatpush2.msra.mxu0 0.0
    %11738 = vmatprep.subr.mxu0 0.0
    %11739 = vmatpush2.msra.mxu0 0.0
    %11740 = vmatprep.subr.mxu0 0.0
    %11741 = vmatpush2.msra.mxu0 0.0
    %11742 = vmatprep.subr.mxu0 0.0
    %11743 = vmatpush2.msra.mxu0 0.0
    %11744 = vmatprep.subr.mxu0 0.0
    %11745 = vmatpush2.msra.mxu0 0.0
    %11746 = vmatprep.subr.mxu0 0.0
    %11747 = vmatpush2.msra.mxu0 0.0
    %11748 = vmatprep.subr.mxu0 0.0
    %11749 = vmatpush2.msra.mxu0 0.0
    %11750 = vmatprep.subr.mxu0 0.0
    %11751 = vmatpush2.msra.mxu0 0.0
    %11752 = vmatprep.subr.mxu0 0.0
    %11753 = vmatpush2.msra.mxu0 0.0
    %11754 = vmatprep.subr.mxu0 0.0
    %11755 = vmatpush2.msra.mxu0 0.0
    %11756 = vmatprep.subr.mxu0 0.0
    %11757 = vmatpush2.msra.mxu0 0.0
    %11758 = vmatprep.subr.mxu0 0.0
    %11759 = vmatpush2.msra.mxu0 0.0
    %11760 = vmatprep.subr.mxu0 0.0
    %11761 = vmatpush2.msra.mxu0 0.0
    %11762 = vmatprep.mubr.f32.mxu0 0.0
    %11763 = vmatmul.mubr.f32.gmra.mxu0 %v11696
    %v11764 = vpop.f32.mrf.mxu0
    %v11765 = vadd.f32 0.0, %v11764
    %v11766 = vpop.f32.mrf.mxu0
    %11767 = vdwg.mxu0
    %v11768 = vld [vmem:[%s69] sm:$0xff]
    %v11769 = vld [vmem:[%s69 + $0x8] sm:$0xff]
    %v11770 = vld [vmem:[%s69 + $0x10] sm:$0xff]
    %v11771 = vld [vmem:[%s69 + $0x18] sm:$0xff]
    %v11772 = vld [vmem:[%s69 + $0x20] sm:$0xff]
    %v11773 = vld [vmem:[%s69 + $0x28] sm:$0xff]
    %v11774 = vld [vmem:[%s69 + $0x30] sm:$0xff]
    %v11775 = vld [vmem:[%s69 + $0x38] sm:$0xff]
    %v11776 = vld [vmem:[%s69 + $0x40] sm:$0xff]
    %v11777 = vld [vmem:[%s69 + $0x48] sm:$0xff]
    %v11778 = vld [vmem:[%s69 + $0x50] sm:$0xff]
    %v11779 = vld [vmem:[%s69 + $0x58] sm:$0xff]
    %v11780 = vld [vmem:[%s69 + $0x60] sm:$0xff]
    %v11781 = vld [vmem:[%s69 + $0x68] sm:$0xff]
    %v11782 = vld [vmem:[%s69 + $0x70] sm:$0xff]
    %v11783 = vld [vmem:[%s69 + $0x78] sm:$0xff]
    %s11784 = scalar_lea.vmem %s67, 2
    %v11785 = vld [vmem:[%s11784] sm:$0x3]
    %v11787 = vsel %vm6603, %v11785, 0
    %11789 = vmatprep.subr.mxu0 0.0
    %11790 = vmatpush1.msra.mxu0 0.0
    %11791 = vmatprep.subr.mxu0 0.0
    %11792 = vmatpush1.msra.mxu0 0.0
    %11793 = vmatprep.subr.mxu0 0.0
    %11794 = vmatpush1.msra.mxu0 0.0
    %11795 = vmatprep.subr.mxu0 0.0
    %11796 = vmatpush1.msra.mxu0 0.0
    %11797 = vmatprep.subr.mxu0 0.0
    %11798 = vmatpush1.msra.mxu0 0.0
    %11799 = vmatprep.subr.mxu0 0.0
    %11800 = vmatpush1.msra.mxu0 0.0
    %11801 = vmatprep.subr.mxu0 0.0
    %11802 = vmatpush1.msra.mxu0 0.0
    %11803 = vmatprep.subr.mxu0 0.0
    %11804 = vmatpush1.msra.mxu0 0.0
    %11805 = vmatprep.subr.mxu0 0.0
    %11806 = vmatpush1.msra.mxu0 0.0
    %11807 = vmatprep.subr.mxu0 0.0
    %11808 = vmatpush1.msra.mxu0 0.0
    %11809 = vmatprep.subr.mxu0 0.0
    %11810 = vmatpush1.msra.mxu0 0.0
    %11811 = vmatprep.subr.mxu0 0.0
    %11812 = vmatpush1.msra.mxu0 0.0
    %11813 = vmatprep.subr.mxu0 0.0
    %11814 = vmatpush1.msra.mxu0 0.0
    %11815 = vmatprep.subr.mxu0 0.0
    %11816 = vmatpush1.msra.mxu0 0.0
    %11817 = vmatprep.subr.mxu0 0.0
    %11818 = vmatpush1.msra.mxu0 0.0
    %11819 = vmatprep.subr.mxu0 0.0
    %11820 = vmatpush1.msra.mxu0 %v11693
    %11821 = vmatprep.subr.mxu0 0.0
    %11822 = vmatpush2.msra.mxu0 0.0
    %11823 = vmatprep.subr.mxu0 0.0
    %11824 = vmatpush2.msra.mxu0 0.0
    %11825 = vmatprep.subr.mxu0 0.0
    %11826 = vmatpush2.msra.mxu0 0.0
    %11827 = vmatprep.subr.mxu0 0.0
    %11828 = vmatpush2.msra.mxu0 0.0
    %11829 = vmatprep.subr.mxu0 0.0
    %11830 = vmatpush2.msra.mxu0 0.0
    %11831 = vmatprep.subr.mxu0 0.0
    %11832 = vmatpush2.msra.mxu0 0.0
    %11833 = vmatprep.subr.mxu0 0.0
    %11834 = vmatpush2.msra.mxu0 0.0
    %11835 = vmatprep.subr.mxu0 0.0
    %11836 = vmatpush2.msra.mxu0 0.0
    %11837 = vmatprep.subr.mxu0 0.0
    %11838 = vmatpush2.msra.mxu0 0.0
    %11839 = vmatprep.subr.mxu0 0.0
    %11840 = vmatpush2.msra.mxu0 0.0
    %11841 = vmatprep.subr.mxu0 0.0
    %11842 = vmatpush2.msra.mxu0 0.0
    %11843 = vmatprep.subr.mxu0 0.0
    %11844 = vmatpush2.msra.mxu0 0.0
    %11845 = vmatprep.subr.mxu0 0.0
    %11846 = vmatpush2.msra.mxu0 0.0
    %11847 = vmatprep.subr.mxu0 0.0
    %11848 = vmatpush2.msra.mxu0 0.0
    %11849 = vmatprep.subr.mxu0 0.0
    %11850 = vmatpush2.msra.mxu0 0.0
    %11851 = vmatprep.subr.mxu0 0.0
    %11852 = vmatpush2.msra.mxu0 0.0
    %11853 = vmatprep.mubr.f32.mxu0 0.0
    %11854 = vmatmul.mubr.f32.gmra.mxu0 %v11787
    %v11855 = vpop.f32.mrf.mxu0
    %v11856 = vadd.f32 0.0, %v11855
    %v11857 = vpop.f32.mrf.mxu0
    %11858 = vdwg.mxu0
    %s11859 = scalar_lea.vmem %s69, 128
    %v11860 = vld [vmem:[%s11859] sm:$0xff]
    %v11861 = vld [vmem:[%s11859 + $0x8] sm:$0xff]
    %v11862 = vld [vmem:[%s11859 + $0x10] sm:$0xff]
    %v11863 = vld [vmem:[%s11859 + $0x18] sm:$0xff]
    %v11864 = vld [vmem:[%s11859 + $0x20] sm:$0xff]
    %v11865 = vld [vmem:[%s11859 + $0x28] sm:$0xff]
    %v11866 = vld [vmem:[%s11859 + $0x30] sm:$0xff]
    %v11867 = vld [vmem:[%s11859 + $0x38] sm:$0xff]
    %v11868 = vld [vmem:[%s11859 + $0x40] sm:$0xff]
    %v11869 = vld [vmem:[%s11859 + $0x48] sm:$0xff]
    %v11870 = vld [vmem:[%s11859 + $0x50] sm:$0xff]
    %v11871 = vld [vmem:[%s11859 + $0x58] sm:$0xff]
    %v11872 = vld [vmem:[%s11859 + $0x60] sm:$0xff]
    %v11873 = vld [vmem:[%s11859 + $0x68] sm:$0xff]
    %v11874 = vld [vmem:[%s11859 + $0x70] sm:$0xff]
    %v11875 = vld [vmem:[%s11859 + $0x78] sm:$0xff]
    %11876 = vmatprep.subr.mxu0 0.0
    %11877 = vmatpush1.msra.mxu0 %v11875
    %11878 = vmatprep.subr.mxu0 0.0
    %11879 = vmatpush1.msra.mxu0 %v11874
    %11880 = vmatprep.subr.mxu0 0.0
    %11881 = vmatpush1.msra.mxu0 %v11873
    %11882 = vmatprep.subr.mxu0 0.0
    %11883 = vmatpush1.msra.mxu0 %v11872
    %11884 = vmatprep.subr.mxu0 0.0
    %11885 = vmatpush1.msra.mxu0 %v11871
    %11886 = vmatprep.subr.mxu0 0.0
    %11887 = vmatpush1.msra.mxu0 %v11870
    %11888 = vmatprep.subr.mxu0 0.0
    %11889 = vmatpush1.msra.mxu0 %v11869
    %11890 = vmatprep.subr.mxu0 0.0
    %11891 = vmatpush1.msra.mxu0 %v11868
    %11892 = vmatprep.subr.mxu0 0.0
    %11893 = vmatpush1.msra.mxu0 %v11867
    %11894 = vmatprep.subr.mxu0 0.0
    %11895 = vmatpush1.msra.mxu0 %v11866
    %11896 = vmatprep.subr.mxu0 0.0
    %11897 = vmatpush1.msra.mxu0 %v11865
    %11898 = vmatprep.subr.mxu0 0.0
    %11899 = vmatpush1.msra.mxu0 %v11864
    %11900 = vmatprep.subr.mxu0 0.0
    %11901 = vmatpush1.msra.mxu0 %v11863
    %11902 = vmatprep.subr.mxu0 0.0
    %11903 = vmatpush1.msra.mxu0 %v11862
    %11904 = vmatprep.subr.mxu0 0.0
    %11905 = vmatpush1.msra.mxu0 %v11861
    %11906 = vmatprep.subr.mxu0 0.0
    %11907 = vmatpush1.msra.mxu0 %v11860
    %11908 = vmatprep.subr.mxu0 0.0
    %11909 = vmatpush2.msra.mxu0 0.0
    %11910 = vmatprep.subr.mxu0 0.0
    %11911 = vmatpush2.msra.mxu0 0.0
    %11912 = vmatprep.subr.mxu0 0.0
    %11913 = vmatpush2.msra.mxu0 0.0
    %11914 = vmatprep.subr.mxu0 0.0
    %11915 = vmatpush2.msra.mxu0 0.0
    %11916 = vmatprep.subr.mxu0 0.0
    %11917 = vmatpush2.msra.mxu0 0.0
    %11918 = vmatprep.subr.mxu0 0.0
    %11919 = vmatpush2.msra.mxu0 0.0
    %11920 = vmatprep.subr.mxu0 0.0
    %11921 = vmatpush2.msra.mxu0 0.0
    %11922 = vmatprep.subr.mxu0 0.0
    %11923 = vmatpush2.msra.mxu0 0.0
    %11924 = vmatprep.subr.mxu0 0.0
    %11925 = vmatpush2.msra.mxu0 0.0
    %11926 = vmatprep.subr.mxu0 0.0
    %11927 = vmatpush2.msra.mxu0 0.0
    %11928 = vmatprep.subr.mxu0 0.0
    %11929 = vmatpush2.msra.mxu0 0.0
    %11930 = vmatprep.subr.mxu0 0.0
    %11931 = vmatpush2.msra.mxu0 0.0
    %11932 = vmatprep.subr.mxu0 0.0
    %11933 = vmatpush2.msra.mxu0 0.0
    %11934 = vmatprep.subr.mxu0 0.0
    %11935 = vmatpush2.msra.mxu0 0.0
    %11936 = vmatprep.subr.mxu0 0.0
    %11937 = vmatpush2.msra.mxu0 0.0
    %11938 = vmatprep.subr.mxu0 0.0
    %11939 = vmatpush2.msra.mxu0 0.0
    %11940 = vmatprep.mubr.f32.mxu0 0.0
    %11941 = vmatmul.mubr.f32.gmra.mxu0 %v11856
    %v11942 = vpop.f32.mrf.mxu0
    %v11943 = vadd.f32 0.0, %v11942
    %v11944 = vpop.f32.mrf.mxu0
    %11945 = vdwg.mxu0
    %11946 = vmatprep.subr.mxu0 0.0
    %11947 = vmatpush1.msra.mxu0 %v11783
    %11948 = vmatprep.subr.mxu0 0.0
    %11949 = vmatpush1.msra.mxu0 %v11782
    %11950 = vmatprep.subr.mxu0 0.0
    %11951 = vmatpush1.msra.mxu0 %v11781
    %11952 = vmatprep.subr.mxu0 0.0
    %11953 = vmatpush1.msra.mxu0 %v11780
    %11954 = vmatprep.subr.mxu0 0.0
    %11955 = vmatpush1.msra.mxu0 %v11779
    %11956 = vmatprep.subr.mxu0 0.0
    %11957 = vmatpush1.msra.mxu0 %v11778
    %11958 = vmatprep.subr.mxu0 0.0
    %11959 = vmatpush1.msra.mxu0 %v11777
    %11960 = vmatprep.subr.mxu0 0.0
    %11961 = vmatpush1.msra.mxu0 %v11776
    %11962 = vmatprep.subr.mxu0 0.0
    %11963 = vmatpush1.msra.mxu0 %v11775
    %11964 = vmatprep.subr.mxu0 0.0
    %11965 = vmatpush1.msra.mxu0 %v11774
    %11966 = vmatprep.subr.mxu0 0.0
    %11967 = vmatpush1.msra.mxu0 %v11773
    %11968 = vmatprep.subr.mxu0 0.0
    %11969 = vmatpush1.msra.mxu0 %v11772
    %11970 = vmatprep.subr.mxu0 0.0
    %11971 = vmatpush1.msra.mxu0 %v11771
    %11972 = vmatprep.subr.mxu0 0.0
    %11973 = vmatpush1.msra.mxu0 %v11770
    %11974 = vmatprep.subr.mxu0 0.0
    %11975 = vmatpush1.msra.mxu0 %v11769
    %11976 = vmatprep.subr.mxu0 0.0
    %11977 = vmatpush1.msra.mxu0 %v11768
    %11978 = vmatprep.subr.mxu0 0.0
    %11979 = vmatpush2.msra.mxu0 0.0
    %11980 = vmatprep.subr.mxu0 0.0
    %11981 = vmatpush2.msra.mxu0 0.0
    %11982 = vmatprep.subr.mxu0 0.0
    %11983 = vmatpush2.msra.mxu0 0.0
    %11984 = vmatprep.subr.mxu0 0.0
    %11985 = vmatpush2.msra.mxu0 0.0
    %11986 = vmatprep.subr.mxu0 0.0
    %11987 = vmatpush2.msra.mxu0 0.0
    %11988 = vmatprep.subr.mxu0 0.0
    %11989 = vmatpush2.msra.mxu0 0.0
    %11990 = vmatprep.subr.mxu0 0.0
    %11991 = vmatpush2.msra.mxu0 0.0
    %11992 = vmatprep.subr.mxu0 0.0
    %11993 = vmatpush2.msra.mxu0 0.0
    %11994 = vmatprep.subr.mxu0 0.0
    %11995 = vmatpush2.msra.mxu0 0.0
    %11996 = vmatprep.subr.mxu0 0.0
    %11997 = vmatpush2.msra.mxu0 0.0
    %11998 = vmatprep.subr.mxu0 0.0
    %11999 = vmatpush2.msra.mxu0 0.0
    %12000 = vmatprep.subr.mxu0 0.0
    %12001 = vmatpush2.msra.mxu0 0.0
    %12002 = vmatprep.subr.mxu0 0.0
    %12003 = vmatpush2.msra.mxu0 0.0
    %12004 = vmatprep.subr.mxu0 0.0
    %12005 = vmatpush2.msra.mxu0 0.0
    %12006 = vmatprep.subr.mxu0 0.0
    %12007 = vmatpush2.msra.mxu0 0.0
    %12008 = vmatprep.subr.mxu0 0.0
    %12009 = vmatpush2.msra.mxu0 0.0
    %12010 = vmatprep.mubr.f32.mxu0 0.0
    %12011 = vmatmul.mubr.f32.gmra.mxu0 %v11765
    %v12012 = vpop.f32.mrf.mxu0
    %v12013 = vadd.f32 %v11943, %v12012
    %v12014 = vpop.f32.mrf.mxu0
    %12015 = vdwg.mxu0
    %s12016 = scalar_lea.vmem %s67, 4
    %v12017 = vld [vmem:[%s12016] sm:$0x3]
    %v12019 = vsel %vm6603, %v12017, 0
    %12021 = vmatprep.subr.mxu0 0.0
    %12022 = vmatpush1.msra.mxu0 0.0
    %12023 = vmatprep.subr.mxu0 0.0
    %12024 = vmatpush1.msra.mxu0 0.0
    %12025 = vmatprep.subr.mxu0 0.0
    %12026 = vmatpush1.msra.mxu0 0.0
    %12027 = vmatprep.subr.mxu0 0.0
    %12028 = vmatpush1.msra.mxu0 0.0
    %12029 = vmatprep.subr.mxu0 0.0
    %12030 = vmatpush1.msra.mxu0 0.0
    %12031 = vmatprep.subr.mxu0 0.0
    %12032 = vmatpush1.msra.mxu0 0.0
    %12033 = vmatprep.subr.mxu0 0.0
    %12034 = vmatpush1.msra.mxu0 0.0
    %12035 = vmatprep.subr.mxu0 0.0
    %12036 = vmatpush1.msra.mxu0 0.0
    %12037 = vmatprep.subr.mxu0 0.0
    %12038 = vmatpush1.msra.mxu0 0.0
    %12039 = vmatprep.subr.mxu0 0.0
    %12040 = vmatpush1.msra.mxu0 0.0
    %12041 = vmatprep.subr.mxu0 0.0
    %12042 = vmatpush1.msra.mxu0 0.0
    %12043 = vmatprep.subr.mxu0 0.0
    %12044 = vmatpush1.msra.mxu0 0.0
    %12045 = vmatprep.subr.mxu0 0.0
    %12046 = vmatpush1.msra.mxu0 0.0
    %12047 = vmatprep.subr.mxu0 0.0
    %12048 = vmatpush1.msra.mxu0 0.0
    %12049 = vmatprep.subr.mxu0 0.0
    %12050 = vmatpush1.msra.mxu0 0.0
    %12051 = vmatprep.subr.mxu0 0.0
    %12052 = vmatpush1.msra.mxu0 %v11693
    %12053 = vmatprep.subr.mxu0 0.0
    %12054 = vmatpush2.msra.mxu0 0.0
    %12055 = vmatprep.subr.mxu0 0.0
    %12056 = vmatpush2.msra.mxu0 0.0
    %12057 = vmatprep.subr.mxu0 0.0
    %12058 = vmatpush2.msra.mxu0 0.0
    %12059 = vmatprep.subr.mxu0 0.0
    %12060 = vmatpush2.msra.mxu0 0.0
    %12061 = vmatprep.subr.mxu0 0.0
    %12062 = vmatpush2.msra.mxu0 0.0
    %12063 = vmatprep.subr.mxu0 0.0
    %12064 = vmatpush2.msra.mxu0 0.0
    %12065 = vmatprep.subr.mxu0 0.0
    %12066 = vmatpush2.msra.mxu0 0.0
    %12067 = vmatprep.subr.mxu0 0.0
    %12068 = vmatpush2.msra.mxu0 0.0
    %12069 = vmatprep.subr.mxu0 0.0
    %12070 = vmatpush2.msra.mxu0 0.0
    %12071 = vmatprep.subr.mxu0 0.0
    %12072 = vmatpush2.msra.mxu0 0.0
    %12073 = vmatprep.subr.mxu0 0.0
    %12074 = vmatpush2.msra.mxu0 0.0
    %12075 = vmatprep.subr.mxu0 0.0
    %12076 = vmatpush2.msra.mxu0 0.0
    %12077 = vmatprep.subr.mxu0 0.0
    %12078 = vmatpush2.msra.mxu0 0.0
    %12079 = vmatprep.subr.mxu0 0.0
    %12080 = vmatpush2.msra.mxu0 0.0
    %12081 = vmatprep.subr.mxu0 0.0
    %12082 = vmatpush2.msra.mxu0 0.0
    %12083 = vmatprep.subr.mxu0 0.0
    %12084 = vmatpush2.msra.mxu0 0.0
    %12085 = vmatprep.mubr.f32.mxu0 0.0
    %12086 = vmatmul.mubr.f32.gmra.mxu0 %v12019
    %v12087 = vpop.f32.mrf.mxu0
    %v12088 = vadd.f32 0.0, %v12087
    %v12089 = vpop.f32.mrf.mxu0
    %12090 = vdwg.mxu0
    %s12091 = scalar_lea.vmem %s69, 256
    %v12092 = vld [vmem:[%s12091] sm:$0xff]
    %v12093 = vld [vmem:[%s12091 + $0x8] sm:$0xff]
    %v12094 = vld [vmem:[%s12091 + $0x10] sm:$0xff]
    %v12095 = vld [vmem:[%s12091 + $0x18] sm:$0xff]
    %v12096 = vld [vmem:[%s12091 + $0x20] sm:$0xff]
    %v12097 = vld [vmem:[%s12091 + $0x28] sm:$0xff]
    %v12098 = vld [vmem:[%s12091 + $0x30] sm:$0xff]
    %v12099 = vld [vmem:[%s12091 + $0x38] sm:$0xff]
    %v12100 = vld [vmem:[%s12091 + $0x40] sm:$0xff]
    %v12101 = vld [vmem:[%s12091 + $0x48] sm:$0xff]
    %v12102 = vld [vmem:[%s12091 + $0x50] sm:$0xff]
    %v12103 = vld [vmem:[%s12091 + $0x58] sm:$0xff]
    %v12104 = vld [vmem:[%s12091 + $0x60] sm:$0xff]
    %v12105 = vld [vmem:[%s12091 + $0x68] sm:$0xff]
    %v12106 = vld [vmem:[%s12091 + $0x70] sm:$0xff]
    %v12107 = vld [vmem:[%s12091 + $0x78] sm:$0xff]
    %12108 = vmatprep.subr.mxu0 0.0
    %12109 = vmatpush1.msra.mxu0 %v12107
    %12110 = vmatprep.subr.mxu0 0.0
    %12111 = vmatpush1.msra.mxu0 %v12106
    %12112 = vmatprep.subr.mxu0 0.0
    %12113 = vmatpush1.msra.mxu0 %v12105
    %12114 = vmatprep.subr.mxu0 0.0
    %12115 = vmatpush1.msra.mxu0 %v12104
    %12116 = vmatprep.subr.mxu0 0.0
    %12117 = vmatpush1.msra.mxu0 %v12103
    %12118 = vmatprep.subr.mxu0 0.0
    %12119 = vmatpush1.msra.mxu0 %v12102
    %12120 = vmatprep.subr.mxu0 0.0
    %12121 = vmatpush1.msra.mxu0 %v12101
    %12122 = vmatprep.subr.mxu0 0.0
    %12123 = vmatpush1.msra.mxu0 %v12100
    %12124 = vmatprep.subr.mxu0 0.0
    %12125 = vmatpush1.msra.mxu0 %v12099
    %12126 = vmatprep.subr.mxu0 0.0
    %12127 = vmatpush1.msra.mxu0 %v12098
    %12128 = vmatprep.subr.mxu0 0.0
    %12129 = vmatpush1.msra.mxu0 %v12097
    %12130 = vmatprep.subr.mxu0 0.0
    %12131 = vmatpush1.msra.mxu0 %v12096
    %12132 = vmatprep.subr.mxu0 0.0
    %12133 = vmatpush1.msra.mxu0 %v12095
    %12134 = vmatprep.subr.mxu0 0.0
    %12135 = vmatpush1.msra.mxu0 %v12094
    %12136 = vmatprep.subr.mxu0 0.0
    %12137 = vmatpush1.msra.mxu0 %v12093
    %12138 = vmatprep.subr.mxu0 0.0
    %12139 = vmatpush1.msra.mxu0 %v12092
    %12140 = vmatprep.subr.mxu0 0.0
    %12141 = vmatpush2.msra.mxu0 0.0
    %12142 = vmatprep.subr.mxu0 0.0
    %12143 = vmatpush2.msra.mxu0 0.0
    %12144 = vmatprep.subr.mxu0 0.0
    %12145 = vmatpush2.msra.mxu0 0.0
    %12146 = vmatprep.subr.mxu0 0.0
    %12147 = vmatpush2.msra.mxu0 0.0
    %12148 = vmatprep.subr.mxu0 0.0
    %12149 = vmatpush2.msra.mxu0 0.0
    %12150 = vmatprep.subr.mxu0 0.0
    %12151 = vmatpush2.msra.mxu0 0.0
    %12152 = vmatprep.subr.mxu0 0.0
    %12153 = vmatpush2.msra.mxu0 0.0
    %12154 = vmatprep.subr.mxu0 0.0
    %12155 = vmatpush2.msra.mxu0 0.0
    %12156 = vmatprep.subr.mxu0 0.0
    %12157 = vmatpush2.msra.mxu0 0.0
    %12158 = vmatprep.subr.mxu0 0.0
    %12159 = vmatpush2.msra.mxu0 0.0
    %12160 = vmatprep.subr.mxu0 0.0
    %12161 = vmatpush2.msra.mxu0 0.0
    %12162 = vmatprep.subr.mxu0 0.0
    %12163 = vmatpush2.msra.mxu0 0.0
    %12164 = vmatprep.subr.mxu0 0.0
    %12165 = vmatpush2.msra.mxu0 0.0
    %12166 = vmatprep.subr.mxu0 0.0
    %12167 = vmatpush2.msra.mxu0 0.0
    %12168 = vmatprep.subr.mxu0 0.0
    %12169 = vmatpush2.msra.mxu0 0.0
    %12170 = vmatprep.subr.mxu0 0.0
    %12171 = vmatpush2.msra.mxu0 0.0
    %12172 = vmatprep.mubr.f32.mxu0 0.0
    %12173 = vmatmul.mubr.f32.gmra.mxu0 %v12088
    %v12174 = vpop.f32.mrf.mxu0
    %v12175 = vadd.f32 0.0, %v12174
    %v12176 = vpop.f32.mrf.mxu0
    %12177 = vdwg.mxu0
    %v12178 = vadd.f32 %v12013, %v12175
    %s12179 = scalar_lea.vmem %s67, 6
    %v12180 = vld [vmem:[%s12179] sm:$0x3]
    %v12182 = vsel %vm6603, %v12180, 0
    %12184 = vmatprep.subr.mxu0 0.0
    %12185 = vmatpush1.msra.mxu0 0.0
    %12186 = vmatprep.subr.mxu0 0.0
    %12187 = vmatpush1.msra.mxu0 0.0
    %12188 = vmatprep.subr.mxu0 0.0
    %12189 = vmatpush1.msra.mxu0 0.0
    %12190 = vmatprep.subr.mxu0 0.0
    %12191 = vmatpush1.msra.mxu0 0.0
    %12192 = vmatprep.subr.mxu0 0.0
    %12193 = vmatpush1.msra.mxu0 0.0
    %12194 = vmatprep.subr.mxu0 0.0
    %12195 = vmatpush1.msra.mxu0 0.0
    %12196 = vmatprep.subr.mxu0 0.0
    %12197 = vmatpush1.msra.mxu0 0.0
    %12198 = vmatprep.subr.mxu0 0.0
    %12199 = vmatpush1.msra.mxu0 0.0
    %12200 = vmatprep.subr.mxu0 0.0
    %12201 = vmatpush1.msra.mxu0 0.0
    %12202 = vmatprep.subr.mxu0 0.0
    %12203 = vmatpush1.msra.mxu0 0.0
    %12204 = vmatprep.subr.mxu0 0.0
    %12205 = vmatpush1.msra.mxu0 0.0
    %12206 = vmatprep.subr.mxu0 0.0
    %12207 = vmatpush1.msra.mxu0 0.0
    %12208 = vmatprep.subr.mxu0 0.0
    %12209 = vmatpush1.msra.mxu0 0.0
    %12210 = vmatprep.subr.mxu0 0.0
    %12211 = vmatpush1.msra.mxu0 0.0
    %12212 = vmatprep.subr.mxu0 0.0
    %12213 = vmatpush1.msra.mxu0 0.0
    %12214 = vmatprep.subr.mxu0 0.0
    %12215 = vmatpush1.msra.mxu0 %v11693
    %12216 = vmatprep.subr.mxu0 0.0
    %12217 = vmatpush2.msra.mxu0 0.0
    %12218 = vmatprep.subr.mxu0 0.0
    %12219 = vmatpush2.msra.mxu0 0.0
    %12220 = vmatprep.subr.mxu0 0.0
    %12221 = vmatpush2.msra.mxu0 0.0
    %12222 = vmatprep.subr.mxu0 0.0
    %12223 = vmatpush2.msra.mxu0 0.0
    %12224 = vmatprep.subr.mxu0 0.0
    %12225 = vmatpush2.msra.mxu0 0.0
    %12226 = vmatprep.subr.mxu0 0.0
    %12227 = vmatpush2.msra.mxu0 0.0
    %12228 = vmatprep.subr.mxu0 0.0
    %12229 = vmatpush2.msra.mxu0 0.0
    %12230 = vmatprep.subr.mxu0 0.0
    %12231 = vmatpush2.msra.mxu0 0.0
    %12232 = vmatprep.subr.mxu0 0.0
    %12233 = vmatpush2.msra.mxu0 0.0
    %12234 = vmatprep.subr.mxu0 0.0
    %12235 = vmatpush2.msra.mxu0 0.0
    %12236 = vmatprep.subr.mxu0 0.0
    %12237 = vmatpush2.msra.mxu0 0.0
    %12238 = vmatprep.subr.mxu0 0.0
    %12239 = vmatpush2.msra.mxu0 0.0
    %12240 = vmatprep.subr.mxu0 0.0
    %12241 = vmatpush2.msra.mxu0 0.0
    %12242 = vmatprep.subr.mxu0 0.0
    %12243 = vmatpush2.msra.mxu0 0.0
    %12244 = vmatprep.subr.mxu0 0.0
    %12245 = vmatpush2.msra.mxu0 0.0
    %12246 = vmatprep.subr.mxu0 0.0
    %12247 = vmatpush2.msra.mxu0 0.0
    %12248 = vmatprep.mubr.f32.mxu0 0.0
    %12249 = vmatmul.mubr.f32.gmra.mxu0 %v12182
    %v12250 = vpop.f32.mrf.mxu0
    %v12251 = vadd.f32 0.0, %v12250
    %v12252 = vpop.f32.mrf.mxu0
    %12253 = vdwg.mxu0
    %s12254 = scalar_lea.vmem %s69, 384
    %v12255 = vld [vmem:[%s12254] sm:$0xff]
    %v12256 = vld [vmem:[%s12254 + $0x8] sm:$0xff]
    %v12257 = vld [vmem:[%s12254 + $0x10] sm:$0xff]
    %v12258 = vld [vmem:[%s12254 + $0x18] sm:$0xff]
    %v12259 = vld [vmem:[%s12254 + $0x20] sm:$0xff]
    %v12260 = vld [vmem:[%s12254 + $0x28] sm:$0xff]
    %v12261 = vld [vmem:[%s12254 + $0x30] sm:$0xff]
    %v12262 = vld [vmem:[%s12254 + $0x38] sm:$0xff]
    %v12263 = vld [vmem:[%s12254 + $0x40] sm:$0xff]
    %v12264 = vld [vmem:[%s12254 + $0x48] sm:$0xff]
    %v12265 = vld [vmem:[%s12254 + $0x50] sm:$0xff]
    %v12266 = vld [vmem:[%s12254 + $0x58] sm:$0xff]
    %v12267 = vld [vmem:[%s12254 + $0x60] sm:$0xff]
    %v12268 = vld [vmem:[%s12254 + $0x68] sm:$0xff]
    %v12269 = vld [vmem:[%s12254 + $0x70] sm:$0xff]
    %v12270 = vld [vmem:[%s12254 + $0x78] sm:$0xff]
    %12271 = vmatprep.subr.mxu0 0.0
    %12272 = vmatpush1.msra.mxu0 %v12270
    %12273 = vmatprep.subr.mxu0 0.0
    %12274 = vmatpush1.msra.mxu0 %v12269
    %12275 = vmatprep.subr.mxu0 0.0
    %12276 = vmatpush1.msra.mxu0 %v12268
    %12277 = vmatprep.subr.mxu0 0.0
    %12278 = vmatpush1.msra.mxu0 %v12267
    %12279 = vmatprep.subr.mxu0 0.0
    %12280 = vmatpush1.msra.mxu0 %v12266
    %12281 = vmatprep.subr.mxu0 0.0
    %12282 = vmatpush1.msra.mxu0 %v12265
    %12283 = vmatprep.subr.mxu0 0.0
    %12284 = vmatpush1.msra.mxu0 %v12264
    %12285 = vmatprep.subr.mxu0 0.0
    %12286 = vmatpush1.msra.mxu0 %v12263
    %12287 = vmatprep.subr.mxu0 0.0
    %12288 = vmatpush1.msra.mxu0 %v12262
    %12289 = vmatprep.subr.mxu0 0.0
    %12290 = vmatpush1.msra.mxu0 %v12261
    %12291 = vmatprep.subr.mxu0 0.0
    %12292 = vmatpush1.msra.mxu0 %v12260
    %12293 = vmatprep.subr.mxu0 0.0
    %12294 = vmatpush1.msra.mxu0 %v12259
    %12295 = vmatprep.subr.mxu0 0.0
    %12296 = vmatpush1.msra.mxu0 %v12258
    %12297 = vmatprep.subr.mxu0 0.0
    %12298 = vmatpush1.msra.mxu0 %v12257
    %12299 = vmatprep.subr.mxu0 0.0
    %12300 = vmatpush1.msra.mxu0 %v12256
    %12301 = vmatprep.subr.mxu0 0.0
    %12302 = vmatpush1.msra.mxu0 %v12255
    %12303 = vmatprep.subr.mxu0 0.0
    %12304 = vmatpush2.msra.mxu0 0.0
    %12305 = vmatprep.subr.mxu0 0.0
    %12306 = vmatpush2.msra.mxu0 0.0
    %12307 = vmatprep.subr.mxu0 0.0
    %12308 = vmatpush2.msra.mxu0 0.0
    %12309 = vmatprep.subr.mxu0 0.0
    %12310 = vmatpush2.msra.mxu0 0.0
    %12311 = vmatprep.subr.mxu0 0.0
    %12312 = vmatpush2.msra.mxu0 0.0
    %12313 = vmatprep.subr.mxu0 0.0
    %12314 = vmatpush2.msra.mxu0 0.0
    %12315 = vmatprep.subr.mxu0 0.0
    %12316 = vmatpush2.msra.mxu0 0.0
    %12317 = vmatprep.subr.mxu0 0.0
    %12318 = vmatpush2.msra.mxu0 0.0
    %12319 = vmatprep.subr.mxu0 0.0
    %12320 = vmatpush2.msra.mxu0 0.0
    %12321 = vmatprep.subr.mxu0 0.0
    %12322 = vmatpush2.msra.mxu0 0.0
    %12323 = vmatprep.subr.mxu0 0.0
    %12324 = vmatpush2.msra.mxu0 0.0
    %12325 = vmatprep.subr.mxu0 0.0
    %12326 = vmatpush2.msra.mxu0 0.0
    %12327 = vmatprep.subr.mxu0 0.0
    %12328 = vmatpush2.msra.mxu0 0.0
    %12329 = vmatprep.subr.mxu0 0.0
    %12330 = vmatpush2.msra.mxu0 0.0
    %12331 = vmatprep.subr.mxu0 0.0
    %12332 = vmatpush2.msra.mxu0 0.0
    %12333 = vmatprep.subr.mxu0 0.0
    %12334 = vmatpush2.msra.mxu0 0.0
    %12335 = vmatprep.mubr.f32.mxu0 0.0
    %12336 = vmatmul.mubr.f32.gmra.mxu0 %v12251
    %v12337 = vpop.f32.mrf.mxu0
    %v12338 = vadd.f32 0.0, %v12337
    %v12339 = vpop.f32.mrf.mxu0
    %12340 = vdwg.mxu0
    %v12341 = vadd.f32 %v12178, %v12338
    %v12342 = vld [vmem:[%s71] sm:$0x1]
    %v12344 = vlaneseq
    %v12345 = vshrl.u32 %v12344, 7
    %v12346 = vsub.s32 0, %v12345
    %v12347 = vrot.slane %v12342, %v12346
    %v12349 = vadd.f32 %v12341, %v12347
    %vm12350 = vcmask 58368
    %12351 = vst.msk [vmem:[#allocation2] sm:$0x3] %vm12350, %v12349
    // Predicated region
    $region146: #{encoder_forward.1} parent=1 // pred_check
      _
    $region147: #{encoder_forward.1} parent=1 // pred_check_branch
      %12353 = sbr.rel (0) target = $region149
    $region148: #{encoder_forward.1} parent=1 // pred_region
      %s12355 = ssub.s32 32, 32
      %12356 = vsyncadd [#allocation3], %s12355
      %s12358 = sshll.u32 [#allocation2], 4
      %s12359 = int_to_ptr.vmem [resolvable:$true] %s12358
      %12361 = dma.vmem_to_hbm [thread:$0]  %s12359, 32, %s73, [#allocation3]
    $region149: #{encoder_forward.1} parent=1 // pred_fallthru
      _
    // Predicated region
    $region150: #{encoder_forward.1} parent=1 // pred_check
      _
    $region151: #{encoder_forward.1} parent=1 // pred_check_branch
      %12363 = sbr.rel (0) target = $region153
    $region152: #{encoder_forward.1} parent=1 // pred_region
      %12364 = dma.done [#allocation3], 32
    $region153: #{encoder_forward.1} parent=1 // pred_fallthru
      _
    %12365 = vsyncpa [#allocation3], 1

</llo_original>
